<compile_context>
chip_gen: v7x
topology: tpu7x:2x2x1
jax: 0.10.0
libtpu: 0.0.40
codegen_flags: <defaults>
</compile_context>

<pallas_src>
import math

import jax
import jax.numpy as jnp
from jax.experimental import pallas as pl
from jax.experimental.pallas import tpu as pltpu

EPS = 1e-5


# ----------------------------------------------------------------------------
# Compiler params (per-generation VMEM budget)
# ----------------------------------------------------------------------------

def _vmem_limit_bytes():
    cap = None
    try:
        info = pltpu.get_tpu_info()
        cap = (getattr(info, "vmem_capacity_bytes", None)
               or getattr(info, "vmem_size_bytes", None))
    except Exception:
        cap = None
    if not cap:
        cap = 64 * 1024 * 1024          # conservative (v7x-sized) fallback
    # 3/4 of physical, capped well below the largest parts.
    return int(min(cap * 3 // 4, 112 * 1024 * 1024))


def _cparams():
    return pltpu.CompilerParams(
        dimension_semantics=("parallel",),
        vmem_limit_bytes=_vmem_limit_bytes())


# ----------------------------------------------------------------------------
# Pallas kernels
# ----------------------------------------------------------------------------

def _conv3x3_accum(get_lhs, w_ref):
    """sum_t get_lhs(t) @ w_ref[t]   (9 taps, f32 accumulation on the MXU)."""
    acc = None
    for t in range(9):
        prod = jnp.dot(get_lhs(t), w_ref[t],
                       preferred_element_type=jnp.float32)
        acc = prod if acc is None else acc + prod
    return acc


def _make_conv_bn_prelu_kernel(Ho, Wo):
    """Kernel A: conv1 (3x3, stride 1, in-VMEM im2col) + BN1 bias + PReLU."""
    def kernel(x_ref, w_ref, b_ref, a_ref, o_ref):
        # x: (1, Ho+2, Wo+2, C) bf16 (BN0 applied, zero padded)
        # w: (9, C, D) bf16 (BN1 scale folded);  b, a: (1, D) f32
        # o: (1, Ho*Wo, D) bf16
        xp = x_ref[0].astype(jnp.float32)          # (Hp, Wp, C) in VMEM
        C = xp.shape[-1]

        def lhs(t):
            kh, kw = divmod(t, 3)
            sl = xp[kh:kh + Ho, kw:kw + Wo, :]     # shifted window (VMEM only)
            return sl.reshape(Ho * Wo, C).astype(jnp.bfloat16)

        y = _conv3x3_accum(lhs, w_ref) + b_ref[...]
        y = jnp.where(y > 0.0, y, y * a_ref[...])  # PReLU
        o_ref[0] = y.astype(o_ref.dtype)
    return kernel


def _make_conv_bn_se_kernel(Ho, Wo, prebuilt, proj):
    """Kernel B: conv2 + BN2 bias + SE + shortcut + residual add."""

    def conv(p_ref, w_ref):
        if prebuilt:
            # p: (1, 9, M, D) bf16 -- per-tap strided slabs built by XLA.
            return _conv3x3_accum(lambda t: p_ref[0, t], w_ref)
        # p: (1, Ho+2, Wo+2, D) bf16 padded activation; im2col done in VMEM.
        xp = p_ref[0].astype(jnp.float32)
        C = xp.shape[-1]

        def lhs(t):
            kh, kw = divmod(t, 3)
            sl = xp[kh:kh + Ho, kw:kw + Wo, :]
            return sl.reshape(Ho * Wo, C).astype(jnp.bfloat16)

        return _conv3x3_accum(lhs, w_ref)

    def se_gate(y, f1_ref, f2_ref):
        m = jnp.mean(y, axis=0, keepdims=True)     # AdaptiveAvgPool2d(1)
        h = jnp.maximum(
            jnp.dot(m, f1_ref[...], preferred_element_type=jnp.float32), 0.0)
        g = jnp.dot(h, f2_ref[...], preferred_element_type=jnp.float32)
        return 1.0 / (1.0 + jnp.exp(-g))           # Sigmoid (EUP exp)

    if proj:
        def kernel(p_ref, w_ref, b_ref, f1_ref, f2_ref,
                   xs_ref, wsc_ref, bsc_ref, o_ref):
            y = conv(p_ref, w_ref) + b_ref[...]
            g = se_gate(y, f1_ref, f2_ref)
            # Fused 1x1 projection conv (stride applied on xs by XLA) + BN.
            sc = jnp.dot(xs_ref[0], wsc_ref[...],
                         preferred_element_type=jnp.float32) + bsc_ref[...]
            o_ref[0] = (y * g + sc).astype(o_ref.dtype)
    else:
        def kernel(p_ref, w_ref, b_ref, f1_ref, f2_ref, sc_ref, o_ref):
            y = conv(p_ref, w_ref) + b_ref[...]
            g = se_gate(y, f1_ref, f2_ref)
            o_ref[0] = (y * g + sc_ref[0].astype(jnp.float32)).astype(o_ref.dtype)
    return kernel


# ----------------------------------------------------------------------------
# pallas_call wrappers
# ----------------------------------------------------------------------------

def _pcall_conv_bn_prelu(xp, w, b, a, Ho, Wo):
    B = xp.shape[0]
    D = w.shape[-1]
    M = Ho * Wo
    return pl.pallas_call(
        _make_conv_bn_prelu_kernel(Ho, Wo),
        out_shape=jax.ShapeDtypeStruct((B, M, D), jnp.bfloat16),
        grid=(B,),
        in_specs=[
            pl.BlockSpec((1,) + xp.shape[1:], lambda i: (i, 0, 0, 0)),
            pl.BlockSpec(w.shape, lambda i: (0, 0, 0)),
            pl.BlockSpec((1, D), lambda i: (0, 0)),
            pl.BlockSpec((1, D), lambda i: (0, 0)),
        ],
        out_specs=pl.BlockSpec((1, M, D), lambda i: (i, 0, 0)),
        compiler_params=_cparams(),
    )(xp, w, b, a)


def _pcall_conv_bn_se(p, w, b, f1, f2, shortcut_args, Ho, Wo, prebuilt, proj):
    B = p.shape[0]
    D = w.shape[-1]
    Cr = f1.shape[-1]
    M = Ho * Wo

    p_spec = pl.BlockSpec((1,) + p.shape[1:],
                          lambda i: (i,) + (0,) * (p.ndim - 1))
    specs = [
        p_spec,
        pl.BlockSpec(w.shape, lambda i: (0, 0, 0)),
        pl.BlockSpec((1, D), lambda i: (0, 0)),
        pl.BlockSpec((D, Cr), lambda i: (0, 0)),
        pl.BlockSpec((Cr, D), lambda i: (0, 0)),
    ]
    if proj:
        xs, wsc, bsc = shortcut_args
        Cin = xs.shape[-1]
        specs += [
            pl.BlockSpec((1, M, Cin), lambda i: (i, 0, 0)),
            pl.BlockSpec((Cin, D), lambda i: (0, 0)),
            pl.BlockSpec((1, D), lambda i: (0, 0)),
        ]
        args = (p, w, b, f1, f2, xs, wsc, bsc)
    else:
        (sc,) = shortcut_args
        specs += [pl.BlockSpec((1, M, D), lambda i: (i, 0, 0))]
        args = (p, w, b, f1, f2, sc)

    return pl.pallas_call(
        _make_conv_bn_se_kernel(Ho, Wo, prebuilt, proj),
        out_shape=jax.ShapeDtypeStruct((B, M, D), jnp.bfloat16),
        grid=(B,),
        in_specs=specs,
        out_specs=pl.BlockSpec((1, M, D), lambda i: (i, 0, 0)),
        compiler_params=_cparams(),
    )(*args)


# ----------------------------------------------------------------------------
# XLA layout glue (only for strided conv2: 9/stride^2 ~ 2.25x inflation)
# ----------------------------------------------------------------------------

def _im2col_strided_taps(xp, k, stride):
    # xp: (B, Hp, Wp, C) zero-padded.  Returns (B, k*k, Ho*Wo, C), Ho, Wo.
    B, Hp, Wp, C = xp.shape
    Ho = (Hp - k) // stride + 1
    Wo = (Wp - k) // stride + 1
    taps = []
    for kh in range(k):
        for kw in range(k):
            s = xp[:, kh:kh + (Ho - 1) * stride + 1:stride,
                      kw:kw + (Wo - 1) * stride + 1:stride, :]
            taps.append(s.reshape(B, Ho * Wo, C))
    return jnp.stack(taps, axis=1), Ho, Wo


# ----------------------------------------------------------------------------
# Parameter construction (deterministic, synthetic; eval-mode BN folded)
# ----------------------------------------------------------------------------

def _bn_params(key, c):
    k1, k2, k3, k4 = jax.random.split(key, 4)
    return dict(
        gamma=1.0 + 0.1 * jax.random.normal(k1, (c,), jnp.float32),
        beta=0.1 * jax.random.normal(k2, (c,), jnp.float32),
        mean=0.1 * jax.random.normal(k3, (c,), jnp.float32),
        var=1.0 + 0.1 * jax.random.uniform(k4, (c,), jnp.float32),
    )


def _fold_bn(bn):
    s = bn['gamma'] / jnp.sqrt(bn['var'] + EPS)
    b = bn['beta'] - bn['mean'] * s
    return s, b


def init_bottleneck_ir_se(key, in_channel, depth, stride, reduction=16):
    keys = jax.random.split(key, 9)
    raw = dict(
        bn0=_bn_params(keys[0], in_channel),
        w1=jax.random.normal(keys[1], (3, 3, in_channel, depth), jnp.float32)
        / math.sqrt(9 * in_channel),
        bn1=_bn_params(keys[2], depth),
        a1=jnp.full((depth,), 0.25, jnp.float32),      # PyTorch PReLU default
        w2=jax.random.normal(keys[3], (3, 3, depth, depth), jnp.float32)
        / math.sqrt(9 * depth),
        bn2=_bn_params(keys[4], depth),
        wf1=jax.random.normal(keys[5], (depth, depth // reduction), jnp.float32)
        / math.sqrt(depth),
        wf2=jax.random.normal(keys[6], (depth // reduction, depth), jnp.float32)
        / math.sqrt(depth // reduction),
    )
    if in_channel != depth:
        raw['wsc'] = (jax.random.normal(keys[7], (in_channel, depth), jnp.float32)
                      / math.sqrt(in_channel))
        raw['bnsc'] = _bn_params(keys[8], depth)
        shortcut = 'proj'
    else:
        shortcut = 'identity' if stride == 1 else 'pool'   # MaxPool2d(1, stride)

    s0, b0 = _fold_bn(raw['bn0'])
    s1, b1 = _fold_bn(raw['bn1'])
    s2, b2 = _fold_bn(raw['bn2'])
    P = dict(
        stride=stride, depth=depth, in_channel=in_channel, shortcut=shortcut,
        bn0_scale=s0.reshape(1, 1, 1, in_channel),
        bn0_bias=b0.reshape(1, 1, 1, in_channel),
        # Per-tap weight layout (9, Cin, D); BN scale folded into the weights.
        w1=(raw['w1'] * s1).reshape(9, in_channel, depth).astype(jnp.bfloat16),
        b1=b1.reshape(1, depth),
        a1=raw['a1'].reshape(1, depth),
        w2=(raw['w2'] * s2).reshape(9, depth, depth).astype(jnp.bfloat16),
        b2=b2.reshape(1, depth),
        wf1=raw['wf1'], wf2=raw['wf2'],
        raw=raw,
    )
    if shortcut == 'proj':
        ssc, bsc = _fold_bn(raw['bnsc'])
        P['wsc'] = (raw['wsc'] * ssc).astype(jnp.bfloat16)
        P['bsc'] = bsc.reshape(1, depth)
    return P


# ----------------------------------------------------------------------------
# Forward pass
# ----------------------------------------------------------------------------

def bottleneck_ir_se_forward_nhwc(x, P):
    """x: (B, H, W, Cin) NHWC (f32 or bf16).  Returns (B, Ho, Wo, depth) bf16."""
    stride, depth, Cin = P['stride'], P['depth'], P['in_channel']
    B, H, W, _ = x.shape
    xf = x.astype(jnp.float32)

    # --- res branch -----------------------------------------------------
    # BN0 (eval) + zero pad for conv1 (single fused XLA pass, bf16 output).
    xb = (xf * P['bn0_scale'] + P['bn0_bias']).astype(jnp.bfloat16)
    xbp = jnp.pad(xb, ((0, 0), (1, 1), (1, 1), (0, 0)))

    # Kernel A: conv1 + BN1 + PReLU (im2col built inside VMEM).
    y1 = _pcall_conv_bn_prelu(xbp, P['w1'], P['b1'], P['a1'], H, W)
    y1 = y1.reshape(B, H, W, depth)
    y1p = jnp.pad(y1, ((0, 0), (1, 1), (1, 1), (0, 0)))

    if stride == 1:
        p2, Ho, Wo, prebuilt = y1p, H, W, False
    else:
        # Strided conv2: per-tap stride-sampled slabs (B, 9, M, D) from XLA.
        p2, Ho, Wo = _im2col_strided_taps(y1p, 3, stride)
        prebuilt = True

    # Kernel B: conv2 + BN2 + SE + shortcut + residual add (bf16 output).
    if P['shortcut'] == 'proj':
        xs = xf[:, ::stride, ::stride, :].reshape(B, Ho * Wo, Cin)
        out = _pcall_conv_bn_se(
            p2, P['w2'], P['b2'], P['wf1'], P['wf2'],
            (xs.astype(jnp.bfloat16), P['wsc'], P['bsc']),
            Ho, Wo, prebuilt, proj=True)
    else:
        # identity (stride 1) or MaxPool2d(1, stride) == spatial subsample
        sc = x[:, ::stride, ::stride, :].reshape(B, Ho * Wo, depth)
        out = _pcall_conv_bn_se(
            p2, P['w2'], P['b2'], P['wf1'], P['wf2'],
            (sc.astype(jnp.bfloat16),),
            Ho, Wo, prebuilt, proj=False)

    return out.reshape(B, Ho, Wo, depth)


def bottleneck_ir_se_forward(x_nchw, P):
    """PyTorch-layout entry point (NCHW in / NCHW out)."""
    x = jnp.transpose(x_nchw, (0, 2, 3, 1))
    y = bottleneck_ir_se_forward_nhwc(x, P)
    return jnp.transpose(y, (0, 3, 1, 2))


# ----------------------------------------------------------------------------
# Pure-JAX f32 reference (uses the raw, unfolded parameters)
# ----------------------------------------------------------------------------

def _ref_bn(v, p):
    return (v - p['mean']) / jnp.sqrt(p['var'] + EPS) * p['gamma'] + p['beta']


def ref_bottleneck_ir_se(x_nchw, P):
    raw, stride = P['raw'], P['stride']
    x = jnp.transpose(x_nchw, (0, 2, 3, 1)).astype(jnp.float32)
    dn = ('NHWC', 'HWIO', 'NHWC')
    y = _ref_bn(x, raw['bn0'])
    y = jax.lax.conv_general_dilated(y, raw['w1'], (1, 1), ((1, 1), (1, 1)),
                                     dimension_numbers=dn)
    y = _ref_bn(y, raw['bn1'])
    y = jnp.where(y > 0, y, y * raw['a1'])
    y = jax.lax.conv_general_dilated(y, raw['w2'], (stride, stride),
                                     ((1, 1), (1, 1)), dimension_numbers=dn)
    y = _ref_bn(y, raw['bn2'])
    m = jnp.mean(y, axis=(1, 2), keepdims=True)
    h = jnp.maximum(jnp.einsum('bijc,cd->bijd', m, raw['wf1']), 0.0)
    g = jax.nn.sigmoid(jnp.einsum('bijd,dc->bijc', h, raw['wf2']))
    y = y * g
    if P['shortcut'] == 'proj':
        sc = jnp.einsum('bhwc,cd->bhwd', x[:, ::stride, ::stride, :], raw['wsc'])
        sc = _ref_bn(sc, raw['bnsc'])
    else:
        sc = x[:, ::stride, ::stride, :]
    return jnp.transpose(y + sc, (0, 3, 1, 2))


# ----------------------------------------------------------------------------

if __name__ == "__main__":
    key = jax.random.PRNGKey(0)
    kx, k1, k2, k3 = jax.random.split(key, 4)

    # Small shapes: batch=2, in_channel=32, spatial=16x16.
    x = jax.random.normal(kx, (2, 32, 16, 16), jnp.float32)

    # Three chained blocks exercise all three shortcut paths of the module:
    #   proj (in!=depth, stride 2), identity (stride 1), MaxPool(1,2).
    blocks = [
        init_bottleneck_ir_se(k1, in_channel=32, depth=64, stride=2),  # 16 -> 8
        init_bottleneck_ir_se(k2, in_channel=64, depth=64, stride=1),  #  8 -> 8
        init_bottleneck_ir_se(k3, in_channel=64, depth=64, stride=2),  #  8 -> 4
    ]

    def forward(inp_nchw):
        # NCHW <-> NHWC only at the network boundary; blocks chain in NHWC/bf16.
        h = jnp.transpose(inp_nchw, (0, 2, 3, 1))
        for bp in blocks:
            h = bottleneck_ir_se_forward_nhwc(h, bp)
        return jnp.transpose(h, (0, 3, 1, 2))

    fwd = jax.jit(forward)
    out = jax.block_until_ready(fwd(x))

    assert out.shape == (2, 64, 4, 4), out.shape
    out_f32 = out.astype(jnp.float32)
    assert bool(jnp.all(jnp.isfinite(out_f32)))

    # Compare against the pure-JAX f32 reference (loose tol: bf16 MXU inputs,
    # bf16 inter-block activations and bf16 shortcut streams).
    ref = x
    for bp in blocks:
        ref = ref_bottleneck_ir_se(ref, bp)
    rel = float(jnp.linalg.norm(out_f32 - ref) / (jnp.linalg.norm(ref) + 1e-12))
    assert rel < 4e-2, f"relative error too large: {rel}"

    print("KERNEL_OK")
</pallas_src>

<mosaic_0001>
module attributes {stable_mosaic.version = 11 : i64} {
  func.func @kernel(%arg0: i32, %arg1: memref<1x18x18x32xbf16, #tpu.memory_space<vmem>>, %arg2: memref<9x32x64xbf16, #tpu.memory_space<vmem>>, %arg3: memref<1x64xf32, #tpu.memory_space<vmem>>, %arg4: memref<1x64xf32, #tpu.memory_space<vmem>>, %arg5: memref<1x256x64xbf16, #tpu.memory_space<vmem>>) attributes {dimension_semantics = [#tpu.dimension_semantics<parallel>], iteration_bounds = array<i64: 2>, scalar_prefetch = 0 : i64, scratch_operands = 0 : i64, tpu.core_type = #tpu.core_type<tc>, window_params = [{transform_indices = @transform_0, window_bounds = array<i64: 1, 18, 18, 32>}, {pipeline_mode = #tpu.pipeline_mode<synchronous>, transform_indices = @transform_1, window_bounds = array<i64: 9, 32, 64>}, {pipeline_mode = #tpu.pipeline_mode<synchronous>, transform_indices = @transform_2, window_bounds = array<i64: 1, 64>}, {pipeline_mode = #tpu.pipeline_mode<synchronous>, transform_indices = @transform_3, window_bounds = array<i64: 1, 64>}, {transform_indices = @transform_4, window_bounds = array<i64: 1, 256, 64>}]} {
    %c0 = arith.constant 0 : index
    %c0_0 = arith.constant 0 : index
    %c0_1 = arith.constant 0 : index
    %c0_2 = arith.constant 0 : index
    %0 = vector.load %arg1[%c0, %c0_0, %c0_1, %c0_2] : memref<1x18x18x32xbf16, #tpu.memory_space<vmem>>, vector<1x18x18x32xbf16>
    %1 = vector.shape_cast %0 : vector<1x18x18x32xbf16> to vector<18x18x32xbf16>
    %2 = arith.extf %1 : vector<18x18x32xbf16> to vector<18x18x32xf32>
    %3 = vector.extract_strided_slice %2 {offsets = [0, 0, 0], sizes = [16, 16, 32], strides = [1, 1, 1]} : vector<18x18x32xf32> to vector<16x16x32xf32>
    %4 = vector.shape_cast %3 : vector<16x16x32xf32> to vector<256x32xf32>
    %5 = arith.truncf %4 : vector<256x32xf32> to vector<256x32xbf16>
    %c0_3 = arith.constant 0 : index
    %c0_4 = arith.constant 0 : index
    %c0_5 = arith.constant 0 : index
    %6 = vector.load %arg2[%c0_3, %c0_4, %c0_5] : memref<9x32x64xbf16, #tpu.memory_space<vmem>>, vector<1x32x64xbf16>
    %7 = vector.shape_cast %6 : vector<1x32x64xbf16> to vector<32x64xbf16>
    %cst = arith.constant dense<0.000000e+00> : vector<256x64xf32>
    %8 = tpu.matmul %5, %7, %cst {dimension_numbers = #tpu.dot_dimension_numbers<[1], [0], [0], [1], [0, 0, 1, 1], [], []>} : vector<256x32xbf16>, vector<32x64xbf16>, vector<256x64xf32> -> vector<256x64xf32>
    %9 = vector.extract_strided_slice %2 {offsets = [0, 1, 0], sizes = [16, 16, 32], strides = [1, 1, 1]} : vector<18x18x32xf32> to vector<16x16x32xf32>
    %10 = vector.shape_cast %9 : vector<16x16x32xf32> to vector<256x32xf32>
    %11 = arith.truncf %10 : vector<256x32xf32> to vector<256x32xbf16>
    %c1 = arith.constant 1 : index
    %c0_6 = arith.constant 0 : index
    %c0_7 = arith.constant 0 : index
    %12 = vector.load %arg2[%c1, %c0_6, %c0_7] : memref<9x32x64xbf16, #tpu.memory_space<vmem>>, vector<1x32x64xbf16>
    %13 = vector.shape_cast %12 : vector<1x32x64xbf16> to vector<32x64xbf16>
    %cst_8 = arith.constant dense<0.000000e+00> : vector<256x64xf32>
    %14 = tpu.matmul %11, %13, %cst_8 {dimension_numbers = #tpu.dot_dimension_numbers<[1], [0], [0], [1], [0, 0, 1, 1], [], []>} : vector<256x32xbf16>, vector<32x64xbf16>, vector<256x64xf32> -> vector<256x64xf32>
    %15 = arith.addf %8, %14 : vector<256x64xf32>
    %16 = vector.extract_strided_slice %2 {offsets = [0, 2, 0], sizes = [16, 16, 32], strides = [1, 1, 1]} : vector<18x18x32xf32> to vector<16x16x32xf32>
    %17 = vector.shape_cast %16 : vector<16x16x32xf32> to vector<256x32xf32>
    %18 = arith.truncf %17 : vector<256x32xf32> to vector<256x32xbf16>
    %c2 = arith.constant 2 : index
    %c0_9 = arith.constant 0 : index
    %c0_10 = arith.constant 0 : index
    %19 = vector.load %arg2[%c2, %c0_9, %c0_10] : memref<9x32x64xbf16, #tpu.memory_space<vmem>>, vector<1x32x64xbf16>
    %20 = vector.shape_cast %19 : vector<1x32x64xbf16> to vector<32x64xbf16>
    %cst_11 = arith.constant dense<0.000000e+00> : vector<256x64xf32>
    %21 = tpu.matmul %18, %20, %cst_11 {dimension_numbers = #tpu.dot_dimension_numbers<[1], [0], [0], [1], [0, 0, 1, 1], [], []>} : vector<256x32xbf16>, vector<32x64xbf16>, vector<256x64xf32> -> vector<256x64xf32>
    %22 = arith.addf %15, %21 : vector<256x64xf32>
    %23 = vector.extract_strided_slice %2 {offsets = [1, 0, 0], sizes = [16, 16, 32], strides = [1, 1, 1]} : vector<18x18x32xf32> to vector<16x16x32xf32>
    %24 = vector.shape_cast %23 : vector<16x16x32xf32> to vector<256x32xf32>
    %25 = arith.truncf %24 : vector<256x32xf32> to vector<256x32xbf16>
    %c3 = arith.constant 3 : index
    %c0_12 = arith.constant 0 : index
    %c0_13 = arith.constant 0 : index
    %26 = vector.load %arg2[%c3, %c0_12, %c0_13] : memref<9x32x64xbf16, #tpu.memory_space<vmem>>, vector<1x32x64xbf16>
    %27 = vector.shape_cast %26 : vector<1x32x64xbf16> to vector<32x64xbf16>
    %cst_14 = arith.constant dense<0.000000e+00> : vector<256x64xf32>
    %28 = tpu.matmul %25, %27, %cst_14 {dimension_numbers = #tpu.dot_dimension_numbers<[1], [0], [0], [1], [0, 0, 1, 1], [], []>} : vector<256x32xbf16>, vector<32x64xbf16>, vector<256x64xf32> -> vector<256x64xf32>
    %29 = arith.addf %22, %28 : vector<256x64xf32>
    %30 = vector.extract_strided_slice %2 {offsets = [1, 1, 0], sizes = [16, 16, 32], strides = [1, 1, 1]} : vector<18x18x32xf32> to vector<16x16x32xf32>
    %31 = vector.shape_cast %30 : vector<16x16x32xf32> to vector<256x32xf32>
    %32 = arith.truncf %31 : vector<256x32xf32> to vector<256x32xbf16>
    %c4 = arith.constant 4 : index
    %c0_15 = arith.constant 0 : index
    %c0_16 = arith.constant 0 : index
    %33 = vector.load %arg2[%c4, %c0_15, %c0_16] : memref<9x32x64xbf16, #tpu.memory_space<vmem>>, vector<1x32x64xbf16>
    %34 = vector.shape_cast %33 : vector<1x32x64xbf16> to vector<32x64xbf16>
    %cst_17 = arith.constant dense<0.000000e+00> : vector<256x64xf32>
    %35 = tpu.matmul %32, %34, %cst_17 {dimension_numbers = #tpu.dot_dimension_numbers<[1], [0], [0], [1], [0, 0, 1, 1], [], []>} : vector<256x32xbf16>, vector<32x64xbf16>, vector<256x64xf32> -> vector<256x64xf32>
    %36 = arith.addf %29, %35 : vector<256x64xf32>
    %37 = vector.extract_strided_slice %2 {offsets = [1, 2, 0], sizes = [16, 16, 32], strides = [1, 1, 1]} : vector<18x18x32xf32> to vector<16x16x32xf32>
    %38 = vector.shape_cast %37 : vector<16x16x32xf32> to vector<256x32xf32>
    %39 = arith.truncf %38 : vector<256x32xf32> to vector<256x32xbf16>
    %c5 = arith.constant 5 : index
    %c0_18 = arith.constant 0 : index
    %c0_19 = arith.constant 0 : index
    %40 = vector.load %arg2[%c5, %c0_18, %c0_19] : memref<9x32x64xbf16, #tpu.memory_space<vmem>>, vector<1x32x64xbf16>
    %41 = vector.shape_cast %40 : vector<1x32x64xbf16> to vector<32x64xbf16>
    %cst_20 = arith.constant dense<0.000000e+00> : vector<256x64xf32>
    %42 = tpu.matmul %39, %41, %cst_20 {dimension_numbers = #tpu.dot_dimension_numbers<[1], [0], [0], [1], [0, 0, 1, 1], [], []>} : vector<256x32xbf16>, vector<32x64xbf16>, vector<256x64xf32> -> vector<256x64xf32>
    %43 = arith.addf %36, %42 : vector<256x64xf32>
    %44 = vector.extract_strided_slice %2 {offsets = [2, 0, 0], sizes = [16, 16, 32], strides = [1, 1, 1]} : vector<18x18x32xf32> to vector<16x16x32xf32>
    %45 = vector.shape_cast %44 : vector<16x16x32xf32> to vector<256x32xf32>
    %46 = arith.truncf %45 : vector<256x32xf32> to vector<256x32xbf16>
    %c6 = arith.constant 6 : index
    %c0_21 = arith.constant 0 : index
    %c0_22 = arith.constant 0 : index
    %47 = vector.load %arg2[%c6, %c0_21, %c0_22] : memref<9x32x64xbf16, #tpu.memory_space<vmem>>, vector<1x32x64xbf16>
    %48 = vector.shape_cast %47 : vector<1x32x64xbf16> to vector<32x64xbf16>
    %cst_23 = arith.constant dense<0.000000e+00> : vector<256x64xf32>
    %49 = tpu.matmul %46, %48, %cst_23 {dimension_numbers = #tpu.dot_dimension_numbers<[1], [0], [0], [1], [0, 0, 1, 1], [], []>} : vector<256x32xbf16>, vector<32x64xbf16>, vector<256x64xf32> -> vector<256x64xf32>
    %50 = arith.addf %43, %49 : vector<256x64xf32>
    %51 = vector.extract_strided_slice %2 {offsets = [2, 1, 0], sizes = [16, 16, 32], strides = [1, 1, 1]} : vector<18x18x32xf32> to vector<16x16x32xf32>
    %52 = vector.shape_cast %51 : vector<16x16x32xf32> to vector<256x32xf32>
    %53 = arith.truncf %52 : vector<256x32xf32> to vector<256x32xbf16>
    %c7 = arith.constant 7 : index
    %c0_24 = arith.constant 0 : index
    %c0_25 = arith.constant 0 : index
    %54 = vector.load %arg2[%c7, %c0_24, %c0_25] : memref<9x32x64xbf16, #tpu.memory_space<vmem>>, vector<1x32x64xbf16>
    %55 = vector.shape_cast %54 : vector<1x32x64xbf16> to vector<32x64xbf16>
    %cst_26 = arith.constant dense<0.000000e+00> : vector<256x64xf32>
    %56 = tpu.matmul %53, %55, %cst_26 {dimension_numbers = #tpu.dot_dimension_numbers<[1], [0], [0], [1], [0, 0, 1, 1], [], []>} : vector<256x32xbf16>, vector<32x64xbf16>, vector<256x64xf32> -> vector<256x64xf32>
    %57 = arith.addf %50, %56 : vector<256x64xf32>
    %58 = vector.extract_strided_slice %2 {offsets = [2, 2, 0], sizes = [16, 16, 32], strides = [1, 1, 1]} : vector<18x18x32xf32> to vector<16x16x32xf32>
    %59 = vector.shape_cast %58 : vector<16x16x32xf32> to vector<256x32xf32>
    %60 = arith.truncf %59 : vector<256x32xf32> to vector<256x32xbf16>
    %c8 = arith.constant 8 : index
    %c0_27 = arith.constant 0 : index
    %c0_28 = arith.constant 0 : index
    %61 = vector.load %arg2[%c8, %c0_27, %c0_28] : memref<9x32x64xbf16, #tpu.memory_space<vmem>>, vector<1x32x64xbf16>
    %62 = vector.shape_cast %61 : vector<1x32x64xbf16> to vector<32x64xbf16>
    %cst_29 = arith.constant dense<0.000000e+00> : vector<256x64xf32>
    %63 = tpu.matmul %60, %62, %cst_29 {dimension_numbers = #tpu.dot_dimension_numbers<[1], [0], [0], [1], [0, 0, 1, 1], [], []>} : vector<256x32xbf16>, vector<32x64xbf16>, vector<256x64xf32> -> vector<256x64xf32>
    %64 = arith.addf %57, %63 : vector<256x64xf32>
    %c0_30 = arith.constant 0 : index
    %c0_31 = arith.constant 0 : index
    %65 = vector.load %arg3[%c0_30, %c0_31] : memref<1x64xf32, #tpu.memory_space<vmem>>, vector<1x64xf32>
    %66 = vector.broadcast %65 : vector<1x64xf32> to vector<256x64xf32>
    %67 = arith.addf %64, %66 : vector<256x64xf32>
    %cst_32 = arith.constant 0.000000e+00 : f32
    %68 = vector.broadcast %cst_32 : f32 to vector<256x64xf32>
    %69 = arith.cmpf ogt, %67, %68 : vector<256x64xf32>
    %c0_33 = arith.constant 0 : index
    %c0_34 = arith.constant 0 : index
    %70 = vector.load %arg4[%c0_33, %c0_34] : memref<1x64xf32, #tpu.memory_space<vmem>>, vector<1x64xf32>
    %71 = vector.broadcast %70 : vector<1x64xf32> to vector<256x64xf32>
    %72 = arith.mulf %67, %71 : vector<256x64xf32>
    %73 = arith.select %69, %67, %72 : vector<256x64xi1>, vector<256x64xf32>
    %74 = arith.truncf %73 : vector<256x64xf32> to vector<256x64xbf16>
    %c0_35 = arith.constant 0 : index
    %c0_36 = arith.constant 0 : index
    %c0_37 = arith.constant 0 : index
    %75 = vector.load %arg5[%c0_35, %c0_36, %c0_37] : memref<1x256x64xbf16, #tpu.memory_space<vmem>>, vector<1x256x64xbf16>
    %76 = vector.shape_cast %75 : vector<1x256x64xbf16> to vector<256x64xbf16>
    %77 = vector.shape_cast %74 : vector<256x64xbf16> to vector<1x256x64xbf16>
    tpu.vector_store %arg5[%c0_35, %c0_36, %c0_37], %77 {strides = array<i32>} : memref<1x256x64xbf16, #tpu.memory_space<vmem>>, vector<1x256x64xbf16>,
    return
  }
  func.func @transform_0(%arg0: i32) -> (i32, i32, i32, i32) {
    %c0_i32 = arith.constant 0 : i32
    %c0_i32_0 = arith.constant 0 : i32
    %c0_i32_1 = arith.constant 0 : i32
    %c0_i32_2 = arith.constant 0 : i32
    return %arg0, %c0_i32, %c0_i32_0, %c0_i32_1 : i32, i32, i32, i32
  }
  func.func @transform_1(%arg0: i32) -> (i32, i32, i32) {
    %c0_i32 = arith.constant 0 : i32
    %c0_i32_0 = arith.constant 0 : i32
    %c0_i32_1 = arith.constant 0 : i32
    %c0_i32_2 = arith.constant 0 : i32
    return %c0_i32, %c0_i32_0, %c0_i32_1 : i32, i32, i32
  }
  func.func @transform_2(%arg0: i32) -> (i32, i32) {
    %c0_i32 = arith.constant 0 : i32
    %c0_i32_0 = arith.constant 0 : i32
    %c0_i32_1 = arith.constant 0 : i32
    return %c0_i32, %c0_i32_0 : i32, i32
  }
  func.func @transform_3(%arg0: i32) -> (i32, i32) {
    %c0_i32 = arith.constant 0 : i32
    %c0_i32_0 = arith.constant 0 : i32
    %c0_i32_1 = arith.constant 0 : i32
    return %c0_i32, %c0_i32_0 : i32, i32
  }
  func.func @transform_4(%arg0: i32) -> (i32, i32, i32) {
    %c0_i32 = arith.constant 0 : i32
    %c0_i32_0 = arith.constant 0 : i32
    %c0_i32_1 = arith.constant 0 : i32
    return %arg0, %c0_i32, %c0_i32_0 : i32, i32, i32
  }
}

module attributes {stable_mosaic.version = 11 : i64} {
  func.func @kernel(%arg0: i32, %arg1: memref<1x10x10x64xbf16, #tpu.memory_space<vmem>>, %arg2: memref<9x64x64xbf16, #tpu.memory_space<vmem>>, %arg3: memref<1x64xf32, #tpu.memory_space<vmem>>, %arg4: memref<1x64xf32, #tpu.memory_space<vmem>>, %arg5: memref<1x64x64xbf16, #tpu.memory_space<vmem>>) attributes {dimension_semantics = [#tpu.dimension_semantics<parallel>], iteration_bounds = array<i64: 2>, scalar_prefetch = 0 : i64, scratch_operands = 0 : i64, tpu.core_type = #tpu.core_type<tc>, window_params = [{transform_indices = @transform_0, window_bounds = array<i64: 1, 10, 10, 64>}, {pipeline_mode = #tpu.pipeline_mode<synchronous>, transform_indices = @transform_1, window_bounds = array<i64: 9, 64, 64>}, {pipeline_mode = #tpu.pipeline_mode<synchronous>, transform_indices = @transform_2, window_bounds = array<i64: 1, 64>}, {pipeline_mode = #tpu.pipeline_mode<synchronous>, transform_indices = @transform_3, window_bounds = array<i64: 1, 64>}, {transform_indices = @transform_4, window_bounds = array<i64: 1, 64, 64>}]} {
    %c0 = arith.constant 0 : index
    %c0_0 = arith.constant 0 : index
    %c0_1 = arith.constant 0 : index
    %c0_2 = arith.constant 0 : index
    %0 = vector.load %arg1[%c0, %c0_0, %c0_1, %c0_2] : memref<1x10x10x64xbf16, #tpu.memory_space<vmem>>, vector<1x10x10x64xbf16>
    %1 = vector.shape_cast %0 : vector<1x10x10x64xbf16> to vector<10x10x64xbf16>
    %2 = arith.extf %1 : vector<10x10x64xbf16> to vector<10x10x64xf32>
    %3 = vector.extract_strided_slice %2 {offsets = [0, 0, 0], sizes = [8, 8, 64], strides = [1, 1, 1]} : vector<10x10x64xf32> to vector<8x8x64xf32>
    %4 = vector.shape_cast %3 : vector<8x8x64xf32> to vector<64x64xf32>
    %5 = arith.truncf %4 : vector<64x64xf32> to vector<64x64xbf16>
    %c0_3 = arith.constant 0 : index
    %c0_4 = arith.constant 0 : index
    %c0_5 = arith.constant 0 : index
    %6 = vector.load %arg2[%c0_3, %c0_4, %c0_5] : memref<9x64x64xbf16, #tpu.memory_space<vmem>>, vector<1x64x64xbf16>
    %7 = vector.shape_cast %6 : vector<1x64x64xbf16> to vector<64x64xbf16>
    %cst = arith.constant dense<0.000000e+00> : vector<64x64xf32>
    %8 = tpu.matmul %5, %7, %cst {dimension_numbers = #tpu.dot_dimension_numbers<[1], [0], [0], [1], [0, 0, 1, 1], [], []>} : vector<64x64xbf16>, vector<64x64xbf16>, vector<64x64xf32> -> vector<64x64xf32>
    %9 = vector.extract_strided_slice %2 {offsets = [0, 1, 0], sizes = [8, 8, 64], strides = [1, 1, 1]} : vector<10x10x64xf32> to vector<8x8x64xf32>
    %10 = vector.shape_cast %9 : vector<8x8x64xf32> to vector<64x64xf32>
    %11 = arith.truncf %10 : vector<64x64xf32> to vector<64x64xbf16>
    %c1 = arith.constant 1 : index
    %c0_6 = arith.constant 0 : index
    %c0_7 = arith.constant 0 : index
    %12 = vector.load %arg2[%c1, %c0_6, %c0_7] : memref<9x64x64xbf16, #tpu.memory_space<vmem>>, vector<1x64x64xbf16>
    %13 = vector.shape_cast %12 : vector<1x64x64xbf16> to vector<64x64xbf16>
    %cst_8 = arith.constant dense<0.000000e+00> : vector<64x64xf32>
    %14 = tpu.matmul %11, %13, %cst_8 {dimension_numbers = #tpu.dot_dimension_numbers<[1], [0], [0], [1], [0, 0, 1, 1], [], []>} : vector<64x64xbf16>, vector<64x64xbf16>, vector<64x64xf32> -> vector<64x64xf32>
    %15 = arith.addf %8, %14 : vector<64x64xf32>
    %16 = vector.extract_strided_slice %2 {offsets = [0, 2, 0], sizes = [8, 8, 64], strides = [1, 1, 1]} : vector<10x10x64xf32> to vector<8x8x64xf32>
    %17 = vector.shape_cast %16 : vector<8x8x64xf32> to vector<64x64xf32>
    %18 = arith.truncf %17 : vector<64x64xf32> to vector<64x64xbf16>
    %c2 = arith.constant 2 : index
    %c0_9 = arith.constant 0 : index
    %c0_10 = arith.constant 0 : index
    %19 = vector.load %arg2[%c2, %c0_9, %c0_10] : memref<9x64x64xbf16, #tpu.memory_space<vmem>>, vector<1x64x64xbf16>
    %20 = vector.shape_cast %19 : vector<1x64x64xbf16> to vector<64x64xbf16>
    %cst_11 = arith.constant dense<0.000000e+00> : vector<64x64xf32>
    %21 = tpu.matmul %18, %20, %cst_11 {dimension_numbers = #tpu.dot_dimension_numbers<[1], [0], [0], [1], [0, 0, 1, 1], [], []>} : vector<64x64xbf16>, vector<64x64xbf16>, vector<64x64xf32> -> vector<64x64xf32>
    %22 = arith.addf %15, %21 : vector<64x64xf32>
    %23 = vector.extract_strided_slice %2 {offsets = [1, 0, 0], sizes = [8, 8, 64], strides = [1, 1, 1]} : vector<10x10x64xf32> to vector<8x8x64xf32>
    %24 = vector.shape_cast %23 : vector<8x8x64xf32> to vector<64x64xf32>
    %25 = arith.truncf %24 : vector<64x64xf32> to vector<64x64xbf16>
    %c3 = arith.constant 3 : index
    %c0_12 = arith.constant 0 : index
    %c0_13 = arith.constant 0 : index
    %26 = vector.load %arg2[%c3, %c0_12, %c0_13] : memref<9x64x64xbf16, #tpu.memory_space<vmem>>, vector<1x64x64xbf16>
    %27 = vector.shape_cast %26 : vector<1x64x64xbf16> to vector<64x64xbf16>
    %cst_14 = arith.constant dense<0.000000e+00> : vector<64x64xf32>
    %28 = tpu.matmul %25, %27, %cst_14 {dimension_numbers = #tpu.dot_dimension_numbers<[1], [0], [0], [1], [0, 0, 1, 1], [], []>} : vector<64x64xbf16>, vector<64x64xbf16>, vector<64x64xf32> -> vector<64x64xf32>
    %29 = arith.addf %22, %28 : vector<64x64xf32>
    %30 = vector.extract_strided_slice %2 {offsets = [1, 1, 0], sizes = [8, 8, 64], strides = [1, 1, 1]} : vector<10x10x64xf32> to vector<8x8x64xf32>
    %31 = vector.shape_cast %30 : vector<8x8x64xf32> to vector<64x64xf32>
    %32 = arith.truncf %31 : vector<64x64xf32> to vector<64x64xbf16>
    %c4 = arith.constant 4 : index
    %c0_15 = arith.constant 0 : index
    %c0_16 = arith.constant 0 : index
    %33 = vector.load %arg2[%c4, %c0_15, %c0_16] : memref<9x64x64xbf16, #tpu.memory_space<vmem>>, vector<1x64x64xbf16>
    %34 = vector.shape_cast %33 : vector<1x64x64xbf16> to vector<64x64xbf16>
    %cst_17 = arith.constant dense<0.000000e+00> : vector<64x64xf32>
    %35 = tpu.matmul %32, %34, %cst_17 {dimension_numbers = #tpu.dot_dimension_numbers<[1], [0], [0], [1], [0, 0, 1, 1], [], []>} : vector<64x64xbf16>, vector<64x64xbf16>, vector<64x64xf32> -> vector<64x64xf32>
    %36 = arith.addf %29, %35 : vector<64x64xf32>
    %37 = vector.extract_strided_slice %2 {offsets = [1, 2, 0], sizes = [8, 8, 64], strides = [1, 1, 1]} : vector<10x10x64xf32> to vector<8x8x64xf32>
    %38 = vector.shape_cast %37 : vector<8x8x64xf32> to vector<64x64xf32>
    %39 = arith.truncf %38 : vector<64x64xf32> to vector<64x64xbf16>
    %c5 = arith.constant 5 : index
    %c0_18 = arith.constant 0 : index
    %c0_19 = arith.constant 0 : index
    %40 = vector.load %arg2[%c5, %c0_18, %c0_19] : memref<9x64x64xbf16, #tpu.memory_space<vmem>>, vector<1x64x64xbf16>
    %41 = vector.shape_cast %40 : vector<1x64x64xbf16> to vector<64x64xbf16>
    %cst_20 = arith.constant dense<0.000000e+00> : vector<64x64xf32>
    %42 = tpu.matmul %39, %41, %cst_20 {dimension_numbers = #tpu.dot_dimension_numbers<[1], [0], [0], [1], [0, 0, 1, 1], [], []>} : vector<64x64xbf16>, vector<64x64xbf16>, vector<64x64xf32> -> vector<64x64xf32>
    %43 = arith.addf %36, %42 : vector<64x64xf32>
    %44 = vector.extract_strided_slice %2 {offsets = [2, 0, 0], sizes = [8, 8, 64], strides = [1, 1, 1]} : vector<10x10x64xf32> to vector<8x8x64xf32>
    %45 = vector.shape_cast %44 : vector<8x8x64xf32> to vector<64x64xf32>
    %46 = arith.truncf %45 : vector<64x64xf32> to vector<64x64xbf16>
    %c6 = arith.constant 6 : index
    %c0_21 = arith.constant 0 : index
    %c0_22 = arith.constant 0 : index
    %47 = vector.load %arg2[%c6, %c0_21, %c0_22] : memref<9x64x64xbf16, #tpu.memory_space<vmem>>, vector<1x64x64xbf16>
    %48 = vector.shape_cast %47 : vector<1x64x64xbf16> to vector<64x64xbf16>
    %cst_23 = arith.constant dense<0.000000e+00> : vector<64x64xf32>
    %49 = tpu.matmul %46, %48, %cst_23 {dimension_numbers = #tpu.dot_dimension_numbers<[1], [0], [0], [1], [0, 0, 1, 1], [], []>} : vector<64x64xbf16>, vector<64x64xbf16>, vector<64x64xf32> -> vector<64x64xf32>
    %50 = arith.addf %43, %49 : vector<64x64xf32>
    %51 = vector.extract_strided_slice %2 {offsets = [2, 1, 0], sizes = [8, 8, 64], strides = [1, 1, 1]} : vector<10x10x64xf32> to vector<8x8x64xf32>
    %52 = vector.shape_cast %51 : vector<8x8x64xf32> to vector<64x64xf32>
    %53 = arith.truncf %52 : vector<64x64xf32> to vector<64x64xbf16>
    %c7 = arith.constant 7 : index
    %c0_24 = arith.constant 0 : index
    %c0_25 = arith.constant 0 : index
    %54 = vector.load %arg2[%c7, %c0_24, %c0_25] : memref<9x64x64xbf16, #tpu.memory_space<vmem>>, vector<1x64x64xbf16>
    %55 = vector.shape_cast %54 : vector<1x64x64xbf16> to vector<64x64xbf16>
    %cst_26 = arith.constant dense<0.000000e+00> : vector<64x64xf32>
    %56 = tpu.matmul %53, %55, %cst_26 {dimension_numbers = #tpu.dot_dimension_numbers<[1], [0], [0], [1], [0, 0, 1, 1], [], []>} : vector<64x64xbf16>, vector<64x64xbf16>, vector<64x64xf32> -> vector<64x64xf32>
    %57 = arith.addf %50, %56 : vector<64x64xf32>
    %58 = vector.extract_strided_slice %2 {offsets = [2, 2, 0], sizes = [8, 8, 64], strides = [1, 1, 1]} : vector<10x10x64xf32> to vector<8x8x64xf32>
    %59 = vector.shape_cast %58 : vector<8x8x64xf32> to vector<64x64xf32>
    %60 = arith.truncf %59 : vector<64x64xf32> to vector<64x64xbf16>
    %c8 = arith.constant 8 : index
    %c0_27 = arith.constant 0 : index
    %c0_28 = arith.constant 0 : index
    %61 = vector.load %arg2[%c8, %c0_27, %c0_28] : memref<9x64x64xbf16, #tpu.memory_space<vmem>>, vector<1x64x64xbf16>
    %62 = vector.shape_cast %61 : vector<1x64x64xbf16> to vector<64x64xbf16>
    %cst_29 = arith.constant dense<0.000000e+00> : vector<64x64xf32>
    %63 = tpu.matmul %60, %62, %cst_29 {dimension_numbers = #tpu.dot_dimension_numbers<[1], [0], [0], [1], [0, 0, 1, 1], [], []>} : vector<64x64xbf16>, vector<64x64xbf16>, vector<64x64xf32> -> vector<64x64xf32>
    %64 = arith.addf %57, %63 : vector<64x64xf32>
    %c0_30 = arith.constant 0 : index
    %c0_31 = arith.constant 0 : index
    %65 = vector.load %arg3[%c0_30, %c0_31] : memref<1x64xf32, #tpu.memory_space<vmem>>, vector<1x64xf32>
    %66 = vector.broadcast %65 : vector<1x64xf32> to vector<64x64xf32>
    %67 = arith.addf %64, %66 : vector<64x64xf32>
    %cst_32 = arith.constant 0.000000e+00 : f32
    %68 = vector.broadcast %cst_32 : f32 to vector<64x64xf32>
    %69 = arith.cmpf ogt, %67, %68 : vector<64x64xf32>
    %c0_33 = arith.constant 0 : index
    %c0_34 = arith.constant 0 : index
    %70 = vector.load %arg4[%c0_33, %c0_34] : memref<1x64xf32, #tpu.memory_space<vmem>>, vector<1x64xf32>
    %71 = vector.broadcast %70 : vector<1x64xf32> to vector<64x64xf32>
    %72 = arith.mulf %67, %71 : vector<64x64xf32>
    %73 = arith.select %69, %67, %72 : vector<64x64xi1>, vector<64x64xf32>
    %74 = arith.truncf %73 : vector<64x64xf32> to vector<64x64xbf16>
    %c0_35 = arith.constant 0 : index
    %c0_36 = arith.constant 0 : index
    %c0_37 = arith.constant 0 : index
    %75 = vector.load %arg5[%c0_35, %c0_36, %c0_37] : memref<1x64x64xbf16, #tpu.memory_space<vmem>>, vector<1x64x64xbf16>
    %76 = vector.shape_cast %75 : vector<1x64x64xbf16> to vector<64x64xbf16>
    %77 = vector.shape_cast %74 : vector<64x64xbf16> to vector<1x64x64xbf16>
    tpu.vector_store %arg5[%c0_35, %c0_36, %c0_37], %77 {strides = array<i32>} : memref<1x64x64xbf16, #tpu.memory_space<vmem>>, vector<1x64x64xbf16>,
    return
  }
  func.func @transform_0(%arg0: i32) -> (i32, i32, i32, i32) {
    %c0_i32 = arith.constant 0 : i32
    %c0_i32_0 = arith.constant 0 : i32
    %c0_i32_1 = arith.constant 0 : i32
    %c0_i32_2 = arith.constant 0 : i32
    return %arg0, %c0_i32, %c0_i32_0, %c0_i32_1 : i32, i32, i32, i32
  }
  func.func @transform_1(%arg0: i32) -> (i32, i32, i32) {
    %c0_i32 = arith.constant 0 : i32
    %c0_i32_0 = arith.constant 0 : i32
    %c0_i32_1 = arith.constant 0 : i32
    %c0_i32_2 = arith.constant 0 : i32
    return %c0_i32, %c0_i32_0, %c0_i32_1 : i32, i32, i32
  }
  func.func @transform_2(%arg0: i32) -> (i32, i32) {
    %c0_i32 = arith.constant 0 : i32
    %c0_i32_0 = arith.constant 0 : i32
    %c0_i32_1 = arith.constant 0 : i32
    return %c0_i32, %c0_i32_0 : i32, i32
  }
  func.func @transform_3(%arg0: i32) -> (i32, i32) {
    %c0_i32 = arith.constant 0 : i32
    %c0_i32_0 = arith.constant 0 : i32
    %c0_i32_1 = arith.constant 0 : i32
    return %c0_i32, %c0_i32_0 : i32, i32
  }
  func.func @transform_4(%arg0: i32) -> (i32, i32, i32) {
    %c0_i32 = arith.constant 0 : i32
    %c0_i32_0 = arith.constant 0 : i32
    %c0_i32_1 = arith.constant 0 : i32
    return %arg0, %c0_i32, %c0_i32_0 : i32, i32, i32
  }
}

module attributes {stable_mosaic.version = 11 : i64} {
  func.func @kernel(%arg0: i32, %arg1: memref<1x9x64x64xbf16, #tpu.memory_space<vmem>>, %arg2: memref<9x64x64xbf16, #tpu.memory_space<vmem>>, %arg3: memref<1x64xf32, #tpu.memory_space<vmem>>, %arg4: memref<64x4xf32, #tpu.memory_space<vmem>>, %arg5: memref<4x64xf32, #tpu.memory_space<vmem>>, %arg6: memref<1x64x32xbf16, #tpu.memory_space<vmem>>, %arg7: memref<32x64xbf16, #tpu.memory_space<vmem>>, %arg8: memref<1x64xf32, #tpu.memory_space<vmem>>, %arg9: memref<1x64x64xbf16, #tpu.memory_space<vmem>>) attributes {dimension_semantics = [#tpu.dimension_semantics<parallel>], iteration_bounds = array<i64: 2>, scalar_prefetch = 0 : i64, scratch_operands = 0 : i64, tpu.core_type = #tpu.core_type<tc>, window_params = [{transform_indices = @transform_0, window_bounds = array<i64: 1, 9, 64, 64>}, {pipeline_mode = #tpu.pipeline_mode<synchronous>, transform_indices = @transform_1, window_bounds = array<i64: 9, 64, 64>}, {pipeline_mode = #tpu.pipeline_mode<synchronous>, transform_indices = @transform_2, window_bounds = array<i64: 1, 64>}, {pipeline_mode = #tpu.pipeline_mode<synchronous>, transform_indices = @transform_3, window_bounds = array<i64: 64, 4>}, {pipeline_mode = #tpu.pipeline_mode<synchronous>, transform_indices = @transform_4, window_bounds = array<i64: 4, 64>}, {transform_indices = @transform_5, window_bounds = array<i64: 1, 64, 32>}, {pipeline_mode = #tpu.pipeline_mode<synchronous>, transform_indices = @transform_6, window_bounds = array<i64: 32, 64>}, {pipeline_mode = #tpu.pipeline_mode<synchronous>, transform_indices = @transform_7, window_bounds = array<i64: 1, 64>}, {transform_indices = @transform_8, window_bounds = array<i64: 1, 64, 64>}]} {
    %c0 = arith.constant 0 : index
    %c0_0 = arith.constant 0 : index
    %c0_1 = arith.constant 0 : index
    %c0_2 = arith.constant 0 : index
    %0 = vector.load %arg1[%c0, %c0_0, %c0_1, %c0_2] : memref<1x9x64x64xbf16, #tpu.memory_space<vmem>>, vector<1x1x64x64xbf16>
    %1 = vector.shape_cast %0 : vector<1x1x64x64xbf16> to vector<64x64xbf16>
    %c0_3 = arith.constant 0 : index
    %c0_4 = arith.constant 0 : index
    %c0_5 = arith.constant 0 : index
    %2 = vector.load %arg2[%c0_3, %c0_4, %c0_5] : memref<9x64x64xbf16, #tpu.memory_space<vmem>>, vector<1x64x64xbf16>
    %3 = vector.shape_cast %2 : vector<1x64x64xbf16> to vector<64x64xbf16>
    %cst = arith.constant dense<0.000000e+00> : vector<64x64xf32>
    %4 = tpu.matmul %1, %3, %cst {dimension_numbers = #tpu.dot_dimension_numbers<[1], [0], [0], [1], [0, 0, 1, 1], [], []>} : vector<64x64xbf16>, vector<64x64xbf16>, vector<64x64xf32> -> vector<64x64xf32>
    %c0_6 = arith.constant 0 : index
    %c1 = arith.constant 1 : index
    %c0_7 = arith.constant 0 : index
    %c0_8 = arith.constant 0 : index
    %5 = vector.load %arg1[%c0_6, %c1, %c0_7, %c0_8] : memref<1x9x64x64xbf16, #tpu.memory_space<vmem>>, vector<1x1x64x64xbf16>
    %6 = vector.shape_cast %5 : vector<1x1x64x64xbf16> to vector<64x64xbf16>
    %c1_9 = arith.constant 1 : index
    %c0_10 = arith.constant 0 : index
    %c0_11 = arith.constant 0 : index
    %7 = vector.load %arg2[%c1_9, %c0_10, %c0_11] : memref<9x64x64xbf16, #tpu.memory_space<vmem>>, vector<1x64x64xbf16>
    %8 = vector.shape_cast %7 : vector<1x64x64xbf16> to vector<64x64xbf16>
    %cst_12 = arith.constant dense<0.000000e+00> : vector<64x64xf32>
    %9 = tpu.matmul %6, %8, %cst_12 {dimension_numbers = #tpu.dot_dimension_numbers<[1], [0], [0], [1], [0, 0, 1, 1], [], []>} : vector<64x64xbf16>, vector<64x64xbf16>, vector<64x64xf32> -> vector<64x64xf32>
    %10 = arith.addf %4, %9 : vector<64x64xf32>
    %c0_13 = arith.constant 0 : index
    %c2 = arith.constant 2 : index
    %c0_14 = arith.constant 0 : index
    %c0_15 = arith.constant 0 : index
    %11 = vector.load %arg1[%c0_13, %c2, %c0_14, %c0_15] : memref<1x9x64x64xbf16, #tpu.memory_space<vmem>>, vector<1x1x64x64xbf16>
    %12 = vector.shape_cast %11 : vector<1x1x64x64xbf16> to vector<64x64xbf16>
    %c2_16 = arith.constant 2 : index
    %c0_17 = arith.constant 0 : index
    %c0_18 = arith.constant 0 : index
    %13 = vector.load %arg2[%c2_16, %c0_17, %c0_18] : memref<9x64x64xbf16, #tpu.memory_space<vmem>>, vector<1x64x64xbf16>
    %14 = vector.shape_cast %13 : vector<1x64x64xbf16> to vector<64x64xbf16>
    %cst_19 = arith.constant dense<0.000000e+00> : vector<64x64xf32>
    %15 = tpu.matmul %12, %14, %cst_19 {dimension_numbers = #tpu.dot_dimension_numbers<[1], [0], [0], [1], [0, 0, 1, 1], [], []>} : vector<64x64xbf16>, vector<64x64xbf16>, vector<64x64xf32> -> vector<64x64xf32>
    %16 = arith.addf %10, %15 : vector<64x64xf32>
    %c0_20 = arith.constant 0 : index
    %c3 = arith.constant 3 : index
    %c0_21 = arith.constant 0 : index
    %c0_22 = arith.constant 0 : index
    %17 = vector.load %arg1[%c0_20, %c3, %c0_21, %c0_22] : memref<1x9x64x64xbf16, #tpu.memory_space<vmem>>, vector<1x1x64x64xbf16>
    %18 = vector.shape_cast %17 : vector<1x1x64x64xbf16> to vector<64x64xbf16>
    %c3_23 = arith.constant 3 : index
    %c0_24 = arith.constant 0 : index
    %c0_25 = arith.constant 0 : index
    %19 = vector.load %arg2[%c3_23, %c0_24, %c0_25] : memref<9x64x64xbf16, #tpu.memory_space<vmem>>, vector<1x64x64xbf16>
    %20 = vector.shape_cast %19 : vector<1x64x64xbf16> to vector<64x64xbf16>
    %cst_26 = arith.constant dense<0.000000e+00> : vector<64x64xf32>
    %21 = tpu.matmul %18, %20, %cst_26 {dimension_numbers = #tpu.dot_dimension_numbers<[1], [0], [0], [1], [0, 0, 1, 1], [], []>} : vector<64x64xbf16>, vector<64x64xbf16>, vector<64x64xf32> -> vector<64x64xf32>
    %22 = arith.addf %16, %21 : vector<64x64xf32>
    %c0_27 = arith.constant 0 : index
    %c4 = arith.constant 4 : index
    %c0_28 = arith.constant 0 : index
    %c0_29 = arith.constant 0 : index
    %23 = vector.load %arg1[%c0_27, %c4, %c0_28, %c0_29] : memref<1x9x64x64xbf16, #tpu.memory_space<vmem>>, vector<1x1x64x64xbf16>
    %24 = vector.shape_cast %23 : vector<1x1x64x64xbf16> to vector<64x64xbf16>
    %c4_30 = arith.constant 4 : index
    %c0_31 = arith.constant 0 : index
    %c0_32 = arith.constant 0 : index
    %25 = vector.load %arg2[%c4_30, %c0_31, %c0_32] : memref<9x64x64xbf16, #tpu.memory_space<vmem>>, vector<1x64x64xbf16>
    %26 = vector.shape_cast %25 : vector<1x64x64xbf16> to vector<64x64xbf16>
    %cst_33 = arith.constant dense<0.000000e+00> : vector<64x64xf32>
    %27 = tpu.matmul %24, %26, %cst_33 {dimension_numbers = #tpu.dot_dimension_numbers<[1], [0], [0], [1], [0, 0, 1, 1], [], []>} : vector<64x64xbf16>, vector<64x64xbf16>, vector<64x64xf32> -> vector<64x64xf32>
    %28 = arith.addf %22, %27 : vector<64x64xf32>
    %c0_34 = arith.constant 0 : index
    %c5 = arith.constant 5 : index
    %c0_35 = arith.constant 0 : index
    %c0_36 = arith.constant 0 : index
    %29 = vector.load %arg1[%c0_34, %c5, %c0_35, %c0_36] : memref<1x9x64x64xbf16, #tpu.memory_space<vmem>>, vector<1x1x64x64xbf16>
    %30 = vector.shape_cast %29 : vector<1x1x64x64xbf16> to vector<64x64xbf16>
    %c5_37 = arith.constant 5 : index
    %c0_38 = arith.constant 0 : index
    %c0_39 = arith.constant 0 : index
    %31 = vector.load %arg2[%c5_37, %c0_38, %c0_39] : memref<9x64x64xbf16, #tpu.memory_space<vmem>>, vector<1x64x64xbf16>
    %32 = vector.shape_cast %31 : vector<1x64x64xbf16> to vector<64x64xbf16>
    %cst_40 = arith.constant dense<0.000000e+00> : vector<64x64xf32>
    %33 = tpu.matmul %30, %32, %cst_40 {dimension_numbers = #tpu.dot_dimension_numbers<[1], [0], [0], [1], [0, 0, 1, 1], [], []>} : vector<64x64xbf16>, vector<64x64xbf16>, vector<64x64xf32> -> vector<64x64xf32>
    %34 = arith.addf %28, %33 : vector<64x64xf32>
    %c0_41 = arith.constant 0 : index
    %c6 = arith.constant 6 : index
    %c0_42 = arith.constant 0 : index
    %c0_43 = arith.constant 0 : index
    %35 = vector.load %arg1[%c0_41, %c6, %c0_42, %c0_43] : memref<1x9x64x64xbf16, #tpu.memory_space<vmem>>, vector<1x1x64x64xbf16>
    %36 = vector.shape_cast %35 : vector<1x1x64x64xbf16> to vector<64x64xbf16>
    %c6_44 = arith.constant 6 : index
    %c0_45 = arith.constant 0 : index
    %c0_46 = arith.constant 0 : index
    %37 = vector.load %arg2[%c6_44, %c0_45, %c0_46] : memref<9x64x64xbf16, #tpu.memory_space<vmem>>, vector<1x64x64xbf16>
    %38 = vector.shape_cast %37 : vector<1x64x64xbf16> to vector<64x64xbf16>
    %cst_47 = arith.constant dense<0.000000e+00> : vector<64x64xf32>
    %39 = tpu.matmul %36, %38, %cst_47 {dimension_numbers = #tpu.dot_dimension_numbers<[1], [0], [0], [1], [0, 0, 1, 1], [], []>} : vector<64x64xbf16>, vector<64x64xbf16>, vector<64x64xf32> -> vector<64x64xf32>
    %40 = arith.addf %34, %39 : vector<64x64xf32>
    %c0_48 = arith.constant 0 : index
    %c7 = arith.constant 7 : index
    %c0_49 = arith.constant 0 : index
    %c0_50 = arith.constant 0 : index
    %41 = vector.load %arg1[%c0_48, %c7, %c0_49, %c0_50] : memref<1x9x64x64xbf16, #tpu.memory_space<vmem>>, vector<1x1x64x64xbf16>
    %42 = vector.shape_cast %41 : vector<1x1x64x64xbf16> to vector<64x64xbf16>
    %c7_51 = arith.constant 7 : index
    %c0_52 = arith.constant 0 : index
    %c0_53 = arith.constant 0 : index
    %43 = vector.load %arg2[%c7_51, %c0_52, %c0_53] : memref<9x64x64xbf16, #tpu.memory_space<vmem>>, vector<1x64x64xbf16>
    %44 = vector.shape_cast %43 : vector<1x64x64xbf16> to vector<64x64xbf16>
    %cst_54 = arith.constant dense<0.000000e+00> : vector<64x64xf32>
    %45 = tpu.matmul %42, %44, %cst_54 {dimension_numbers = #tpu.dot_dimension_numbers<[1], [0], [0], [1], [0, 0, 1, 1], [], []>} : vector<64x64xbf16>, vector<64x64xbf16>, vector<64x64xf32> -> vector<64x64xf32>
    %46 = arith.addf %40, %45 : vector<64x64xf32>
    %c0_55 = arith.constant 0 : index
    %c8 = arith.constant 8 : index
    %c0_56 = arith.constant 0 : index
    %c0_57 = arith.constant 0 : index
    %47 = vector.load %arg1[%c0_55, %c8, %c0_56, %c0_57] : memref<1x9x64x64xbf16, #tpu.memory_space<vmem>>, vector<1x1x64x64xbf16>
    %48 = vector.shape_cast %47 : vector<1x1x64x64xbf16> to vector<64x64xbf16>
    %c8_58 = arith.constant 8 : index
    %c0_59 = arith.constant 0 : index
    %c0_60 = arith.constant 0 : index
    %49 = vector.load %arg2[%c8_58, %c0_59, %c0_60] : memref<9x64x64xbf16, #tpu.memory_space<vmem>>, vector<1x64x64xbf16>
    %50 = vector.shape_cast %49 : vector<1x64x64xbf16> to vector<64x64xbf16>
    %cst_61 = arith.constant dense<0.000000e+00> : vector<64x64xf32>
    %51 = tpu.matmul %48, %50, %cst_61 {dimension_numbers = #tpu.dot_dimension_numbers<[1], [0], [0], [1], [0, 0, 1, 1], [], []>} : vector<64x64xbf16>, vector<64x64xbf16>, vector<64x64xf32> -> vector<64x64xf32>
    %52 = arith.addf %46, %51 : vector<64x64xf32>
    %c0_62 = arith.constant 0 : index
    %c0_63 = arith.constant 0 : index
    %53 = vector.load %arg3[%c0_62, %c0_63] : memref<1x64xf32, #tpu.memory_space<vmem>>, vector<1x64xf32>
    %54 = vector.broadcast %53 : vector<1x64xf32> to vector<64x64xf32>
    %55 = arith.addf %52, %54 : vector<64x64xf32>
    %cst_64 = arith.constant dense<0.000000e+00> : vector<64xf32>
    %56 = vector.multi_reduction <add>, %55, %cst_64 [0] : vector<64x64xf32> to vector<64xf32>
    %57 = vector.shape_cast %56 : vector<64xf32> to vector<1x64xf32>
    %cst_65 = arith.constant 6.400000e+01 : f32
    %58 = vector.broadcast %cst_65 : f32 to vector<1x64xf32>
    %59 = arith.divf %57, %58 : vector<1x64xf32>
    %c0_66 = arith.constant 0 : index
    %c0_67 = arith.constant 0 : index
    %60 = vector.load %arg4[%c0_66, %c0_67] : memref<64x4xf32, #tpu.memory_space<vmem>>, vector<64x4xf32>
    %cst_68 = arith.constant dense<0.000000e+00> : vector<1x4xf32>
    %61 = tpu.matmul %59, %60, %cst_68 {dimension_numbers = #tpu.dot_dimension_numbers<[1], [0], [0], [1], [0, 0, 1, 1], [], []>} : vector<1x64xf32>, vector<64x4xf32>, vector<1x4xf32> -> vector<1x4xf32>
    %cst_69 = arith.constant 0.000000e+00 : f32
    %62 = vector.broadcast %cst_69 : f32 to vector<1x4xf32>
    %63 = arith.maximumf %61, %62 : vector<1x4xf32>
    %c0_70 = arith.constant 0 : index
    %c0_71 = arith.constant 0 : index
    %64 = vector.load %arg5[%c0_70, %c0_71] : memref<4x64xf32, #tpu.memory_space<vmem>>, vector<4x64xf32>
    %cst_72 = arith.constant dense<0.000000e+00> : vector<1x64xf32>
    %65 = tpu.matmul %63, %64, %cst_72 {dimension_numbers = #tpu.dot_dimension_numbers<[1], [0], [0], [1], [0, 0, 1, 1], [], []>} : vector<1x4xf32>, vector<4x64xf32>, vector<1x64xf32> -> vector<1x64xf32>
    %cst_73 = arith.constant 0.000000e+00 : f32
    %66 = vector.broadcast %cst_73 : f32 to vector<1x64xf32>
    %67 = arith.subf %66, %65 : vector<1x64xf32>
    %68 = math.exp %67 : vector<1x64xf32>
    %cst_74 = arith.constant 1.000000e+00 : f32
    %69 = vector.broadcast %cst_74 : f32 to vector<1x64xf32>
    %70 = arith.addf %69, %68 : vector<1x64xf32>
    %cst_75 = arith.constant 1.000000e+00 : f32
    %71 = vector.broadcast %cst_75 : f32 to vector<1x64xf32>
    %72 = arith.divf %71, %70 : vector<1x64xf32>
    %c0_76 = arith.constant 0 : index
    %c0_77 = arith.constant 0 : index
    %c0_78 = arith.constant 0 : index
    %73 = vector.load %arg6[%c0_76, %c0_77, %c0_78] : memref<1x64x32xbf16, #tpu.memory_space<vmem>>, vector<1x64x32xbf16>
    %74 = vector.shape_cast %73 : vector<1x64x32xbf16> to vector<64x32xbf16>
    %c0_79 = arith.constant 0 : index
    %c0_80 = arith.constant 0 : index
    %75 = vector.load %arg7[%c0_79, %c0_80] : memref<32x64xbf16, #tpu.memory_space<vmem>>, vector<32x64xbf16>
    %cst_81 = arith.constant dense<0.000000e+00> : vector<64x64xf32>
    %76 = tpu.matmul %74, %75, %cst_81 {dimension_numbers = #tpu.dot_dimension_numbers<[1], [0], [0], [1], [0, 0, 1, 1], [], []>} : vector<64x32xbf16>, vector<32x64xbf16>, vector<64x64xf32> -> vector<64x64xf32>
    %c0_82 = arith.constant 0 : index
    %c0_83 = arith.constant 0 : index
    %77 = vector.load %arg8[%c0_82, %c0_83] : memref<1x64xf32, #tpu.memory_space<vmem>>, vector<1x64xf32>
    %78 = vector.broadcast %77 : vector<1x64xf32> to vector<64x64xf32>
    %79 = arith.addf %76, %78 : vector<64x64xf32>
    %80 = vector.broadcast %72 : vector<1x64xf32> to vector<64x64xf32>
    %81 = arith.mulf %55, %80 : vector<64x64xf32>
    %82 = arith.addf %81, %79 : vector<64x64xf32>
    %83 = arith.truncf %82 : vector<64x64xf32> to vector<64x64xbf16>
    %c0_84 = arith.constant 0 : index
    %c0_85 = arith.constant 0 : index
    %c0_86 = arith.constant 0 : index
    %84 = vector.load %arg9[%c0_84, %c0_85, %c0_86] : memref<1x64x64xbf16, #tpu.memory_space<vmem>>, vector<1x64x64xbf16>
    %85 = vector.shape_cast %84 : vector<1x64x64xbf16> to vector<64x64xbf16>
    %86 = vector.shape_cast %83 : vector<64x64xbf16> to vector<1x64x64xbf16>
    tpu.vector_store %arg9[%c0_84, %c0_85, %c0_86], %86 {strides = array<i32>} : memref<1x64x64xbf16, #tpu.memory_space<vmem>>, vector<1x64x64xbf16>,
    return
  }
  func.func @transform_0(%arg0: i32) -> (i32, i32, i32, i32) {
    %c0_i32 = arith.constant 0 : i32
    %c0_i32_0 = arith.constant 0 : i32
    %c0_i32_1 = arith.constant 0 : i32
    %c0_i32_2 = arith.constant 0 : i32
    return %arg0, %c0_i32, %c0_i32_0, %c0_i32_1 : i32, i32, i32, i32
  }
  func.func @transform_1(%arg0: i32) -> (i32, i32, i32) {
    %c0_i32 = arith.constant 0 : i32
    %c0_i32_0 = arith.constant 0 : i32
    %c0_i32_1 = arith.constant 0 : i32
    %c0_i32_2 = arith.constant 0 : i32
    return %c0_i32, %c0_i32_0, %c0_i32_1 : i32, i32, i32
  }
  func.func @transform_2(%arg0: i32) -> (i32, i32) {
    %c0_i32 = arith.constant 0 : i32
    %c0_i32_0 = arith.constant 0 : i32
    %c0_i32_1 = arith.constant 0 : i32
    return %c0_i32, %c0_i32_0 : i32, i32
  }
  func.func @transform_3(%arg0: i32) -> (i32, i32) {
    %c0_i32 = arith.constant 0 : i32
    %c0_i32_0 = arith.constant 0 : i32
    %c0_i32_1 = arith.constant 0 : i32
    return %c0_i32, %c0_i32_0 : i32, i32
  }
  func.func @transform_4(%arg0: i32) -> (i32, i32) {
    %c0_i32 = arith.constant 0 : i32
    %c0_i32_0 = arith.constant 0 : i32
    %c0_i32_1 = arith.constant 0 : i32
    return %c0_i32, %c0_i32_0 : i32, i32
  }
  func.func @transform_5(%arg0: i32) -> (i32, i32, i32) {
    %c0_i32 = arith.constant 0 : i32
    %c0_i32_0 = arith.constant 0 : i32
    %c0_i32_1 = arith.constant 0 : i32
    return %arg0, %c0_i32, %c0_i32_0 : i32, i32, i32
  }
  func.func @transform_6(%arg0: i32) -> (i32, i32) {
    %c0_i32 = arith.constant 0 : i32
    %c0_i32_0 = arith.constant 0 : i32
    %c0_i32_1 = arith.constant 0 : i32
    return %c0_i32, %c0_i32_0 : i32, i32
  }
  func.func @transform_7(%arg0: i32) -> (i32, i32) {
    %c0_i32 = arith.constant 0 : i32
    %c0_i32_0 = arith.constant 0 : i32
    %c0_i32_1 = arith.constant 0 : i32
    return %c0_i32, %c0_i32_0 : i32, i32
  }
  func.func @transform_8(%arg0: i32) -> (i32, i32, i32) {
    %c0_i32 = arith.constant 0 : i32
    %c0_i32_0 = arith.constant 0 : i32
    %c0_i32_1 = arith.constant 0 : i32
    return %arg0, %c0_i32, %c0_i32_0 : i32, i32, i32
  }
}

module attributes {stable_mosaic.version = 11 : i64} {
  func.func @kernel(%arg0: i32, %arg1: memref<1x10x10x64xbf16, #tpu.memory_space<vmem>>, %arg2: memref<9x64x64xbf16, #tpu.memory_space<vmem>>, %arg3: memref<1x64xf32, #tpu.memory_space<vmem>>, %arg4: memref<64x4xf32, #tpu.memory_space<vmem>>, %arg5: memref<4x64xf32, #tpu.memory_space<vmem>>, %arg6: memref<1x64x64xbf16, #tpu.memory_space<vmem>>, %arg7: memref<1x64x64xbf16, #tpu.memory_space<vmem>>) attributes {dimension_semantics = [#tpu.dimension_semantics<parallel>], iteration_bounds = array<i64: 2>, scalar_prefetch = 0 : i64, scratch_operands = 0 : i64, tpu.core_type = #tpu.core_type<tc>, window_params = [{transform_indices = @transform_0, window_bounds = array<i64: 1, 10, 10, 64>}, {pipeline_mode = #tpu.pipeline_mode<synchronous>, transform_indices = @transform_1, window_bounds = array<i64: 9, 64, 64>}, {pipeline_mode = #tpu.pipeline_mode<synchronous>, transform_indices = @transform_2, window_bounds = array<i64: 1, 64>}, {pipeline_mode = #tpu.pipeline_mode<synchronous>, transform_indices = @transform_3, window_bounds = array<i64: 64, 4>}, {pipeline_mode = #tpu.pipeline_mode<synchronous>, transform_indices = @transform_4, window_bounds = array<i64: 4, 64>}, {transform_indices = @transform_5, window_bounds = array<i64: 1, 64, 64>}, {transform_indices = @transform_6, window_bounds = array<i64: 1, 64, 64>}]} {
    %c0 = arith.constant 0 : index
    %c0_0 = arith.constant 0 : index
    %c0_1 = arith.constant 0 : index
    %c0_2 = arith.constant 0 : index
    %0 = vector.load %arg1[%c0, %c0_0, %c0_1, %c0_2] : memref<1x10x10x64xbf16, #tpu.memory_space<vmem>>, vector<1x10x10x64xbf16>
    %1 = vector.shape_cast %0 : vector<1x10x10x64xbf16> to vector<10x10x64xbf16>
    %2 = arith.extf %1 : vector<10x10x64xbf16> to vector<10x10x64xf32>
    %3 = vector.extract_strided_slice %2 {offsets = [0, 0, 0], sizes = [8, 8, 64], strides = [1, 1, 1]} : vector<10x10x64xf32> to vector<8x8x64xf32>
    %4 = vector.shape_cast %3 : vector<8x8x64xf32> to vector<64x64xf32>
    %5 = arith.truncf %4 : vector<64x64xf32> to vector<64x64xbf16>
    %c0_3 = arith.constant 0 : index
    %c0_4 = arith.constant 0 : index
    %c0_5 = arith.constant 0 : index
    %6 = vector.load %arg2[%c0_3, %c0_4, %c0_5] : memref<9x64x64xbf16, #tpu.memory_space<vmem>>, vector<1x64x64xbf16>
    %7 = vector.shape_cast %6 : vector<1x64x64xbf16> to vector<64x64xbf16>
    %cst = arith.constant dense<0.000000e+00> : vector<64x64xf32>
    %8 = tpu.matmul %5, %7, %cst {dimension_numbers = #tpu.dot_dimension_numbers<[1], [0], [0], [1], [0, 0, 1, 1], [], []>} : vector<64x64xbf16>, vector<64x64xbf16>, vector<64x64xf32> -> vector<64x64xf32>
    %9 = vector.extract_strided_slice %2 {offsets = [0, 1, 0], sizes = [8, 8, 64], strides = [1, 1, 1]} : vector<10x10x64xf32> to vector<8x8x64xf32>
    %10 = vector.shape_cast %9 : vector<8x8x64xf32> to vector<64x64xf32>
    %11 = arith.truncf %10 : vector<64x64xf32> to vector<64x64xbf16>
    %c1 = arith.constant 1 : index
    %c0_6 = arith.constant 0 : index
    %c0_7 = arith.constant 0 : index
    %12 = vector.load %arg2[%c1, %c0_6, %c0_7] : memref<9x64x64xbf16, #tpu.memory_space<vmem>>, vector<1x64x64xbf16>
    %13 = vector.shape_cast %12 : vector<1x64x64xbf16> to vector<64x64xbf16>
    %cst_8 = arith.constant dense<0.000000e+00> : vector<64x64xf32>
    %14 = tpu.matmul %11, %13, %cst_8 {dimension_numbers = #tpu.dot_dimension_numbers<[1], [0], [0], [1], [0, 0, 1, 1], [], []>} : vector<64x64xbf16>, vector<64x64xbf16>, vector<64x64xf32> -> vector<64x64xf32>
    %15 = arith.addf %8, %14 : vector<64x64xf32>
    %16 = vector.extract_strided_slice %2 {offsets = [0, 2, 0], sizes = [8, 8, 64], strides = [1, 1, 1]} : vector<10x10x64xf32> to vector<8x8x64xf32>
    %17 = vector.shape_cast %16 : vector<8x8x64xf32> to vector<64x64xf32>
    %18 = arith.truncf %17 : vector<64x64xf32> to vector<64x64xbf16>
    %c2 = arith.constant 2 : index
    %c0_9 = arith.constant 0 : index
    %c0_10 = arith.constant 0 : index
    %19 = vector.load %arg2[%c2, %c0_9, %c0_10] : memref<9x64x64xbf16, #tpu.memory_space<vmem>>, vector<1x64x64xbf16>
    %20 = vector.shape_cast %19 : vector<1x64x64xbf16> to vector<64x64xbf16>
    %cst_11 = arith.constant dense<0.000000e+00> : vector<64x64xf32>
    %21 = tpu.matmul %18, %20, %cst_11 {dimension_numbers = #tpu.dot_dimension_numbers<[1], [0], [0], [1], [0, 0, 1, 1], [], []>} : vector<64x64xbf16>, vector<64x64xbf16>, vector<64x64xf32> -> vector<64x64xf32>
    %22 = arith.addf %15, %21 : vector<64x64xf32>
    %23 = vector.extract_strided_slice %2 {offsets = [1, 0, 0], sizes = [8, 8, 64], strides = [1, 1, 1]} : vector<10x10x64xf32> to vector<8x8x64xf32>
    %24 = vector.shape_cast %23 : vector<8x8x64xf32> to vector<64x64xf32>
    %25 = arith.truncf %24 : vector<64x64xf32> to vector<64x64xbf16>
    %c3 = arith.constant 3 : index
    %c0_12 = arith.constant 0 : index
    %c0_13 = arith.constant 0 : index
    %26 = vector.load %arg2[%c3, %c0_12, %c0_13] : memref<9x64x64xbf16, #tpu.memory_space<vmem>>, vector<1x64x64xbf16>
    %27 = vector.shape_cast %26 : vector<1x64x64xbf16> to vector<64x64xbf16>
    %cst_14 = arith.constant dense<0.000000e+00> : vector<64x64xf32>
    %28 = tpu.matmul %25, %27, %cst_14 {dimension_numbers = #tpu.dot_dimension_numbers<[1], [0], [0], [1], [0, 0, 1, 1], [], []>} : vector<64x64xbf16>, vector<64x64xbf16>, vector<64x64xf32> -> vector<64x64xf32>
    %29 = arith.addf %22, %28 : vector<64x64xf32>
    %30 = vector.extract_strided_slice %2 {offsets = [1, 1, 0], sizes = [8, 8, 64], strides = [1, 1, 1]} : vector<10x10x64xf32> to vector<8x8x64xf32>
    %31 = vector.shape_cast %30 : vector<8x8x64xf32> to vector<64x64xf32>
    %32 = arith.truncf %31 : vector<64x64xf32> to vector<64x64xbf16>
    %c4 = arith.constant 4 : index
    %c0_15 = arith.constant 0 : index
    %c0_16 = arith.constant 0 : index
    %33 = vector.load %arg2[%c4, %c0_15, %c0_16] : memref<9x64x64xbf16, #tpu.memory_space<vmem>>, vector<1x64x64xbf16>
    %34 = vector.shape_cast %33 : vector<1x64x64xbf16> to vector<64x64xbf16>
    %cst_17 = arith.constant dense<0.000000e+00> : vector<64x64xf32>
    %35 = tpu.matmul %32, %34, %cst_17 {dimension_numbers = #tpu.dot_dimension_numbers<[1], [0], [0], [1], [0, 0, 1, 1], [], []>} : vector<64x64xbf16>, vector<64x64xbf16>, vector<64x64xf32> -> vector<64x64xf32>
    %36 = arith.addf %29, %35 : vector<64x64xf32>
    %37 = vector.extract_strided_slice %2 {offsets = [1, 2, 0], sizes = [8, 8, 64], strides = [1, 1, 1]} : vector<10x10x64xf32> to vector<8x8x64xf32>
    %38 = vector.shape_cast %37 : vector<8x8x64xf32> to vector<64x64xf32>
    %39 = arith.truncf %38 : vector<64x64xf32> to vector<64x64xbf16>
    %c5 = arith.constant 5 : index
    %c0_18 = arith.constant 0 : index
    %c0_19 = arith.constant 0 : index
    %40 = vector.load %arg2[%c5, %c0_18, %c0_19] : memref<9x64x64xbf16, #tpu.memory_space<vmem>>, vector<1x64x64xbf16>
    %41 = vector.shape_cast %40 : vector<1x64x64xbf16> to vector<64x64xbf16>
    %cst_20 = arith.constant dense<0.000000e+00> : vector<64x64xf32>
    %42 = tpu.matmul %39, %41, %cst_20 {dimension_numbers = #tpu.dot_dimension_numbers<[1], [0], [0], [1], [0, 0, 1, 1], [], []>} : vector<64x64xbf16>, vector<64x64xbf16>, vector<64x64xf32> -> vector<64x64xf32>
    %43 = arith.addf %36, %42 : vector<64x64xf32>
    %44 = vector.extract_strided_slice %2 {offsets = [2, 0, 0], sizes = [8, 8, 64], strides = [1, 1, 1]} : vector<10x10x64xf32> to vector<8x8x64xf32>
    %45 = vector.shape_cast %44 : vector<8x8x64xf32> to vector<64x64xf32>
    %46 = arith.truncf %45 : vector<64x64xf32> to vector<64x64xbf16>
    %c6 = arith.constant 6 : index
    %c0_21 = arith.constant 0 : index
    %c0_22 = arith.constant 0 : index
    %47 = vector.load %arg2[%c6, %c0_21, %c0_22] : memref<9x64x64xbf16, #tpu.memory_space<vmem>>, vector<1x64x64xbf16>
    %48 = vector.shape_cast %47 : vector<1x64x64xbf16> to vector<64x64xbf16>
    %cst_23 = arith.constant dense<0.000000e+00> : vector<64x64xf32>
    %49 = tpu.matmul %46, %48, %cst_23 {dimension_numbers = #tpu.dot_dimension_numbers<[1], [0], [0], [1], [0, 0, 1, 1], [], []>} : vector<64x64xbf16>, vector<64x64xbf16>, vector<64x64xf32> -> vector<64x64xf32>
    %50 = arith.addf %43, %49 : vector<64x64xf32>
    %51 = vector.extract_strided_slice %2 {offsets = [2, 1, 0], sizes = [8, 8, 64], strides = [1, 1, 1]} : vector<10x10x64xf32> to vector<8x8x64xf32>
    %52 = vector.shape_cast %51 : vector<8x8x64xf32> to vector<64x64xf32>
    %53 = arith.truncf %52 : vector<64x64xf32> to vector<64x64xbf16>
    %c7 = arith.constant 7 : index
    %c0_24 = arith.constant 0 : index
    %c0_25 = arith.constant 0 : index
    %54 = vector.load %arg2[%c7, %c0_24, %c0_25] : memref<9x64x64xbf16, #tpu.memory_space<vmem>>, vector<1x64x64xbf16>
    %55 = vector.shape_cast %54 : vector<1x64x64xbf16> to vector<64x64xbf16>
    %cst_26 = arith.constant dense<0.000000e+00> : vector<64x64xf32>
    %56 = tpu.matmul %53, %55, %cst_26 {dimension_numbers = #tpu.dot_dimension_numbers<[1], [0], [0], [1], [0, 0, 1, 1], [], []>} : vector<64x64xbf16>, vector<64x64xbf16>, vector<64x64xf32> -> vector<64x64xf32>
    %57 = arith.addf %50, %56 : vector<64x64xf32>
    %58 = vector.extract_strided_slice %2 {offsets = [2, 2, 0], sizes = [8, 8, 64], strides = [1, 1, 1]} : vector<10x10x64xf32> to vector<8x8x64xf32>
    %59 = vector.shape_cast %58 : vector<8x8x64xf32> to vector<64x64xf32>
    %60 = arith.truncf %59 : vector<64x64xf32> to vector<64x64xbf16>
    %c8 = arith.constant 8 : index
    %c0_27 = arith.constant 0 : index
    %c0_28 = arith.constant 0 : index
    %61 = vector.load %arg2[%c8, %c0_27, %c0_28] : memref<9x64x64xbf16, #tpu.memory_space<vmem>>, vector<1x64x64xbf16>
    %62 = vector.shape_cast %61 : vector<1x64x64xbf16> to vector<64x64xbf16>
    %cst_29 = arith.constant dense<0.000000e+00> : vector<64x64xf32>
    %63 = tpu.matmul %60, %62, %cst_29 {dimension_numbers = #tpu.dot_dimension_numbers<[1], [0], [0], [1], [0, 0, 1, 1], [], []>} : vector<64x64xbf16>, vector<64x64xbf16>, vector<64x64xf32> -> vector<64x64xf32>
    %64 = arith.addf %57, %63 : vector<64x64xf32>
    %c0_30 = arith.constant 0 : index
    %c0_31 = arith.constant 0 : index
    %65 = vector.load %arg3[%c0_30, %c0_31] : memref<1x64xf32, #tpu.memory_space<vmem>>, vector<1x64xf32>
    %66 = vector.broadcast %65 : vector<1x64xf32> to vector<64x64xf32>
    %67 = arith.addf %64, %66 : vector<64x64xf32>
    %cst_32 = arith.constant dense<0.000000e+00> : vector<64xf32>
    %68 = vector.multi_reduction <add>, %67, %cst_32 [0] : vector<64x64xf32> to vector<64xf32>
    %69 = vector.shape_cast %68 : vector<64xf32> to vector<1x64xf32>
    %cst_33 = arith.constant 6.400000e+01 : f32
    %70 = vector.broadcast %cst_33 : f32 to vector<1x64xf32>
    %71 = arith.divf %69, %70 : vector<1x64xf32>
    %c0_34 = arith.constant 0 : index
    %c0_35 = arith.constant 0 : index
    %72 = vector.load %arg4[%c0_34, %c0_35] : memref<64x4xf32, #tpu.memory_space<vmem>>, vector<64x4xf32>
    %cst_36 = arith.constant dense<0.000000e+00> : vector<1x4xf32>
    %73 = tpu.matmul %71, %72, %cst_36 {dimension_numbers = #tpu.dot_dimension_numbers<[1], [0], [0], [1], [0, 0, 1, 1], [], []>} : vector<1x64xf32>, vector<64x4xf32>, vector<1x4xf32> -> vector<1x4xf32>
    %cst_37 = arith.constant 0.000000e+00 : f32
    %74 = vector.broadcast %cst_37 : f32 to vector<1x4xf32>
    %75 = arith.maximumf %73, %74 : vector<1x4xf32>
    %c0_38 = arith.constant 0 : index
    %c0_39 = arith.constant 0 : index
    %76 = vector.load %arg5[%c0_38, %c0_39] : memref<4x64xf32, #tpu.memory_space<vmem>>, vector<4x64xf32>
    %cst_40 = arith.constant dense<0.000000e+00> : vector<1x64xf32>
    %77 = tpu.matmul %75, %76, %cst_40 {dimension_numbers = #tpu.dot_dimension_numbers<[1], [0], [0], [1], [0, 0, 1, 1], [], []>} : vector<1x4xf32>, vector<4x64xf32>, vector<1x64xf32> -> vector<1x64xf32>
    %cst_41 = arith.constant 0.000000e+00 : f32
    %78 = vector.broadcast %cst_41 : f32 to vector<1x64xf32>
    %79 = arith.subf %78, %77 : vector<1x64xf32>
    %80 = math.exp %79 : vector<1x64xf32>
    %cst_42 = arith.constant 1.000000e+00 : f32
    %81 = vector.broadcast %cst_42 : f32 to vector<1x64xf32>
    %82 = arith.addf %81, %80 : vector<1x64xf32>
    %cst_43 = arith.constant 1.000000e+00 : f32
    %83 = vector.broadcast %cst_43 : f32 to vector<1x64xf32>
    %84 = arith.divf %83, %82 : vector<1x64xf32>
    %85 = vector.broadcast %84 : vector<1x64xf32> to vector<64x64xf32>
    %86 = arith.mulf %67, %85 : vector<64x64xf32>
    %c0_44 = arith.constant 0 : index
    %c0_45 = arith.constant 0 : index
    %c0_46 = arith.constant 0 : index
    %87 = vector.load %arg6[%c0_44, %c0_45, %c0_46] : memref<1x64x64xbf16, #tpu.memory_space<vmem>>, vector<1x64x64xbf16>
    %88 = vector.shape_cast %87 : vector<1x64x64xbf16> to vector<64x64xbf16>
    %89 = arith.extf %88 : vector<64x64xbf16> to vector<64x64xf32>
    %90 = arith.addf %86, %89 : vector<64x64xf32>
    %91 = arith.truncf %90 : vector<64x64xf32> to vector<64x64xbf16>
    %c0_47 = arith.constant 0 : index
    %c0_48 = arith.constant 0 : index
    %c0_49 = arith.constant 0 : index
    %92 = vector.load %arg7[%c0_47, %c0_48, %c0_49] : memref<1x64x64xbf16, #tpu.memory_space<vmem>>, vector<1x64x64xbf16>
    %93 = vector.shape_cast %92 : vector<1x64x64xbf16> to vector<64x64xbf16>
    %94 = vector.shape_cast %91 : vector<64x64xbf16> to vector<1x64x64xbf16>
    tpu.vector_store %arg7[%c0_47, %c0_48, %c0_49], %94 {strides = array<i32>} : memref<1x64x64xbf16, #tpu.memory_space<vmem>>, vector<1x64x64xbf16>,
    return
  }
  func.func @transform_0(%arg0: i32) -> (i32, i32, i32, i32) {
    %c0_i32 = arith.constant 0 : i32
    %c0_i32_0 = arith.constant 0 : i32
    %c0_i32_1 = arith.constant 0 : i32
    %c0_i32_2 = arith.constant 0 : i32
    return %arg0, %c0_i32, %c0_i32_0, %c0_i32_1 : i32, i32, i32, i32
  }
  func.func @transform_1(%arg0: i32) -> (i32, i32, i32) {
    %c0_i32 = arith.constant 0 : i32
    %c0_i32_0 = arith.constant 0 : i32
    %c0_i32_1 = arith.constant 0 : i32
    %c0_i32_2 = arith.constant 0 : i32
    return %c0_i32, %c0_i32_0, %c0_i32_1 : i32, i32, i32
  }
  func.func @transform_2(%arg0: i32) -> (i32, i32) {
    %c0_i32 = arith.constant 0 : i32
    %c0_i32_0 = arith.constant 0 : i32
    %c0_i32_1 = arith.constant 0 : i32
    return %c0_i32, %c0_i32_0 : i32, i32
  }
  func.func @transform_3(%arg0: i32) -> (i32, i32) {
    %c0_i32 = arith.constant 0 : i32
    %c0_i32_0 = arith.constant 0 : i32
    %c0_i32_1 = arith.constant 0 : i32
    return %c0_i32, %c0_i32_0 : i32, i32
  }
  func.func @transform_4(%arg0: i32) -> (i32, i32) {
    %c0_i32 = arith.constant 0 : i32
    %c0_i32_0 = arith.constant 0 : i32
    %c0_i32_1 = arith.constant 0 : i32
    return %c0_i32, %c0_i32_0 : i32, i32
  }
  func.func @transform_5(%arg0: i32) -> (i32, i32, i32) {
    %c0_i32 = arith.constant 0 : i32
    %c0_i32_0 = arith.constant 0 : i32
    %c0_i32_1 = arith.constant 0 : i32
    return %arg0, %c0_i32, %c0_i32_0 : i32, i32, i32
  }
  func.func @transform_6(%arg0: i32) -> (i32, i32, i32) {
    %c0_i32 = arith.constant 0 : i32
    %c0_i32_0 = arith.constant 0 : i32
    %c0_i32_1 = arith.constant 0 : i32
    return %arg0, %c0_i32, %c0_i32_0 : i32, i32, i32
  }
}

module attributes {stable_mosaic.version = 11 : i64} {
  func.func @kernel(%arg0: i32, %arg1: memref<1x9x16x64xbf16, #tpu.memory_space<vmem>>, %arg2: memref<9x64x64xbf16, #tpu.memory_space<vmem>>, %arg3: memref<1x64xf32, #tpu.memory_space<vmem>>, %arg4: memref<64x4xf32, #tpu.memory_space<vmem>>, %arg5: memref<4x64xf32, #tpu.memory_space<vmem>>, %arg6: memref<1x16x64xbf16, #tpu.memory_space<vmem>>, %arg7: memref<1x16x64xbf16, #tpu.memory_space<vmem>>) attributes {dimension_semantics = [#tpu.dimension_semantics<parallel>], iteration_bounds = array<i64: 2>, scalar_prefetch = 0 : i64, scratch_operands = 0 : i64, tpu.core_type = #tpu.core_type<tc>, window_params = [{transform_indices = @transform_0, window_bounds = array<i64: 1, 9, 16, 64>}, {pipeline_mode = #tpu.pipeline_mode<synchronous>, transform_indices = @transform_1, window_bounds = array<i64: 9, 64, 64>}, {pipeline_mode = #tpu.pipeline_mode<synchronous>, transform_indices = @transform_2, window_bounds = array<i64: 1, 64>}, {pipeline_mode = #tpu.pipeline_mode<synchronous>, transform_indices = @transform_3, window_bounds = array<i64: 64, 4>}, {pipeline_mode = #tpu.pipeline_mode<synchronous>, transform_indices = @transform_4, window_bounds = array<i64: 4, 64>}, {transform_indices = @transform_5, window_bounds = array<i64: 1, 16, 64>}, {transform_indices = @transform_6, window_bounds = array<i64: 1, 16, 64>}]} {
    %c0 = arith.constant 0 : index
    %c0_0 = arith.constant 0 : index
    %c0_1 = arith.constant 0 : index
    %c0_2 = arith.constant 0 : index
    %0 = vector.load %arg1[%c0, %c0_0, %c0_1, %c0_2] : memref<1x9x16x64xbf16, #tpu.memory_space<vmem>>, vector<1x1x16x64xbf16>
    %1 = vector.shape_cast %0 : vector<1x1x16x64xbf16> to vector<16x64xbf16>
    %c0_3 = arith.constant 0 : index
    %c0_4 = arith.constant 0 : index
    %c0_5 = arith.constant 0 : index
    %2 = vector.load %arg2[%c0_3, %c0_4, %c0_5] : memref<9x64x64xbf16, #tpu.memory_space<vmem>>, vector<1x64x64xbf16>
    %3 = vector.shape_cast %2 : vector<1x64x64xbf16> to vector<64x64xbf16>
    %cst = arith.constant dense<0.000000e+00> : vector<16x64xf32>
    %4 = tpu.matmul %1, %3, %cst {dimension_numbers = #tpu.dot_dimension_numbers<[1], [0], [0], [1], [0, 0, 1, 1], [], []>} : vector<16x64xbf16>, vector<64x64xbf16>, vector<16x64xf32> -> vector<16x64xf32>
    %c0_6 = arith.constant 0 : index
    %c1 = arith.constant 1 : index
    %c0_7 = arith.constant 0 : index
    %c0_8 = arith.constant 0 : index
    %5 = vector.load %arg1[%c0_6, %c1, %c0_7, %c0_8] : memref<1x9x16x64xbf16, #tpu.memory_space<vmem>>, vector<1x1x16x64xbf16>
    %6 = vector.shape_cast %5 : vector<1x1x16x64xbf16> to vector<16x64xbf16>
    %c1_9 = arith.constant 1 : index
    %c0_10 = arith.constant 0 : index
    %c0_11 = arith.constant 0 : index
    %7 = vector.load %arg2[%c1_9, %c0_10, %c0_11] : memref<9x64x64xbf16, #tpu.memory_space<vmem>>, vector<1x64x64xbf16>
    %8 = vector.shape_cast %7 : vector<1x64x64xbf16> to vector<64x64xbf16>
    %cst_12 = arith.constant dense<0.000000e+00> : vector<16x64xf32>
    %9 = tpu.matmul %6, %8, %cst_12 {dimension_numbers = #tpu.dot_dimension_numbers<[1], [0], [0], [1], [0, 0, 1, 1], [], []>} : vector<16x64xbf16>, vector<64x64xbf16>, vector<16x64xf32> -> vector<16x64xf32>
    %10 = arith.addf %4, %9 : vector<16x64xf32>
    %c0_13 = arith.constant 0 : index
    %c2 = arith.constant 2 : index
    %c0_14 = arith.constant 0 : index
    %c0_15 = arith.constant 0 : index
    %11 = vector.load %arg1[%c0_13, %c2, %c0_14, %c0_15] : memref<1x9x16x64xbf16, #tpu.memory_space<vmem>>, vector<1x1x16x64xbf16>
    %12 = vector.shape_cast %11 : vector<1x1x16x64xbf16> to vector<16x64xbf16>
    %c2_16 = arith.constant 2 : index
    %c0_17 = arith.constant 0 : index
    %c0_18 = arith.constant 0 : index
    %13 = vector.load %arg2[%c2_16, %c0_17, %c0_18] : memref<9x64x64xbf16, #tpu.memory_space<vmem>>, vector<1x64x64xbf16>
    %14 = vector.shape_cast %13 : vector<1x64x64xbf16> to vector<64x64xbf16>
    %cst_19 = arith.constant dense<0.000000e+00> : vector<16x64xf32>
    %15 = tpu.matmul %12, %14, %cst_19 {dimension_numbers = #tpu.dot_dimension_numbers<[1], [0], [0], [1], [0, 0, 1, 1], [], []>} : vector<16x64xbf16>, vector<64x64xbf16>, vector<16x64xf32> -> vector<16x64xf32>
    %16 = arith.addf %10, %15 : vector<16x64xf32>
    %c0_20 = arith.constant 0 : index
    %c3 = arith.constant 3 : index
    %c0_21 = arith.constant 0 : index
    %c0_22 = arith.constant 0 : index
    %17 = vector.load %arg1[%c0_20, %c3, %c0_21, %c0_22] : memref<1x9x16x64xbf16, #tpu.memory_space<vmem>>, vector<1x1x16x64xbf16>
    %18 = vector.shape_cast %17 : vector<1x1x16x64xbf16> to vector<16x64xbf16>
    %c3_23 = arith.constant 3 : index
    %c0_24 = arith.constant 0 : index
    %c0_25 = arith.constant 0 : index
    %19 = vector.load %arg2[%c3_23, %c0_24, %c0_25] : memref<9x64x64xbf16, #tpu.memory_space<vmem>>, vector<1x64x64xbf16>
    %20 = vector.shape_cast %19 : vector<1x64x64xbf16> to vector<64x64xbf16>
    %cst_26 = arith.constant dense<0.000000e+00> : vector<16x64xf32>
    %21 = tpu.matmul %18, %20, %cst_26 {dimension_numbers = #tpu.dot_dimension_numbers<[1], [0], [0], [1], [0, 0, 1, 1], [], []>} : vector<16x64xbf16>, vector<64x64xbf16>, vector<16x64xf32> -> vector<16x64xf32>
    %22 = arith.addf %16, %21 : vector<16x64xf32>
    %c0_27 = arith.constant 0 : index
    %c4 = arith.constant 4 : index
    %c0_28 = arith.constant 0 : index
    %c0_29 = arith.constant 0 : index
    %23 = vector.load %arg1[%c0_27, %c4, %c0_28, %c0_29] : memref<1x9x16x64xbf16, #tpu.memory_space<vmem>>, vector<1x1x16x64xbf16>
    %24 = vector.shape_cast %23 : vector<1x1x16x64xbf16> to vector<16x64xbf16>
    %c4_30 = arith.constant 4 : index
    %c0_31 = arith.constant 0 : index
    %c0_32 = arith.constant 0 : index
    %25 = vector.load %arg2[%c4_30, %c0_31, %c0_32] : memref<9x64x64xbf16, #tpu.memory_space<vmem>>, vector<1x64x64xbf16>
    %26 = vector.shape_cast %25 : vector<1x64x64xbf16> to vector<64x64xbf16>
    %cst_33 = arith.constant dense<0.000000e+00> : vector<16x64xf32>
    %27 = tpu.matmul %24, %26, %cst_33 {dimension_numbers = #tpu.dot_dimension_numbers<[1], [0], [0], [1], [0, 0, 1, 1], [], []>} : vector<16x64xbf16>, vector<64x64xbf16>, vector<16x64xf32> -> vector<16x64xf32>
    %28 = arith.addf %22, %27 : vector<16x64xf32>
    %c0_34 = arith.constant 0 : index
    %c5 = arith.constant 5 : index
    %c0_35 = arith.constant 0 : index
    %c0_36 = arith.constant 0 : index
    %29 = vector.load %arg1[%c0_34, %c5, %c0_35, %c0_36] : memref<1x9x16x64xbf16, #tpu.memory_space<vmem>>, vector<1x1x16x64xbf16>
    %30 = vector.shape_cast %29 : vector<1x1x16x64xbf16> to vector<16x64xbf16>
    %c5_37 = arith.constant 5 : index
    %c0_38 = arith.constant 0 : index
    %c0_39 = arith.constant 0 : index
    %31 = vector.load %arg2[%c5_37, %c0_38, %c0_39] : memref<9x64x64xbf16, #tpu.memory_space<vmem>>, vector<1x64x64xbf16>
    %32 = vector.shape_cast %31 : vector<1x64x64xbf16> to vector<64x64xbf16>
    %cst_40 = arith.constant dense<0.000000e+00> : vector<16x64xf32>
    %33 = tpu.matmul %30, %32, %cst_40 {dimension_numbers = #tpu.dot_dimension_numbers<[1], [0], [0], [1], [0, 0, 1, 1], [], []>} : vector<16x64xbf16>, vector<64x64xbf16>, vector<16x64xf32> -> vector<16x64xf32>
    %34 = arith.addf %28, %33 : vector<16x64xf32>
    %c0_41 = arith.constant 0 : index
    %c6 = arith.constant 6 : index
    %c0_42 = arith.constant 0 : index
    %c0_43 = arith.constant 0 : index
    %35 = vector.load %arg1[%c0_41, %c6, %c0_42, %c0_43] : memref<1x9x16x64xbf16, #tpu.memory_space<vmem>>, vector<1x1x16x64xbf16>
    %36 = vector.shape_cast %35 : vector<1x1x16x64xbf16> to vector<16x64xbf16>
    %c6_44 = arith.constant 6 : index
    %c0_45 = arith.constant 0 : index
    %c0_46 = arith.constant 0 : index
    %37 = vector.load %arg2[%c6_44, %c0_45, %c0_46] : memref<9x64x64xbf16, #tpu.memory_space<vmem>>, vector<1x64x64xbf16>
    %38 = vector.shape_cast %37 : vector<1x64x64xbf16> to vector<64x64xbf16>
    %cst_47 = arith.constant dense<0.000000e+00> : vector<16x64xf32>
    %39 = tpu.matmul %36, %38, %cst_47 {dimension_numbers = #tpu.dot_dimension_numbers<[1], [0], [0], [1], [0, 0, 1, 1], [], []>} : vector<16x64xbf16>, vector<64x64xbf16>, vector<16x64xf32> -> vector<16x64xf32>
    %40 = arith.addf %34, %39 : vector<16x64xf32>
    %c0_48 = arith.constant 0 : index
    %c7 = arith.constant 7 : index
    %c0_49 = arith.constant 0 : index
    %c0_50 = arith.constant 0 : index
    %41 = vector.load %arg1[%c0_48, %c7, %c0_49, %c0_50] : memref<1x9x16x64xbf16, #tpu.memory_space<vmem>>, vector<1x1x16x64xbf16>
    %42 = vector.shape_cast %41 : vector<1x1x16x64xbf16> to vector<16x64xbf16>
    %c7_51 = arith.constant 7 : index
    %c0_52 = arith.constant 0 : index
    %c0_53 = arith.constant 0 : index
    %43 = vector.load %arg2[%c7_51, %c0_52, %c0_53] : memref<9x64x64xbf16, #tpu.memory_space<vmem>>, vector<1x64x64xbf16>
    %44 = vector.shape_cast %43 : vector<1x64x64xbf16> to vector<64x64xbf16>
    %cst_54 = arith.constant dense<0.000000e+00> : vector<16x64xf32>
    %45 = tpu.matmul %42, %44, %cst_54 {dimension_numbers = #tpu.dot_dimension_numbers<[1], [0], [0], [1], [0, 0, 1, 1], [], []>} : vector<16x64xbf16>, vector<64x64xbf16>, vector<16x64xf32> -> vector<16x64xf32>
    %46 = arith.addf %40, %45 : vector<16x64xf32>
    %c0_55 = arith.constant 0 : index
    %c8 = arith.constant 8 : index
    %c0_56 = arith.constant 0 : index
    %c0_57 = arith.constant 0 : index
    %47 = vector.load %arg1[%c0_55, %c8, %c0_56, %c0_57] : memref<1x9x16x64xbf16, #tpu.memory_space<vmem>>, vector<1x1x16x64xbf16>
    %48 = vector.shape_cast %47 : vector<1x1x16x64xbf16> to vector<16x64xbf16>
    %c8_58 = arith.constant 8 : index
    %c0_59 = arith.constant 0 : index
    %c0_60 = arith.constant 0 : index
    %49 = vector.load %arg2[%c8_58, %c0_59, %c0_60] : memref<9x64x64xbf16, #tpu.memory_space<vmem>>, vector<1x64x64xbf16>
    %50 = vector.shape_cast %49 : vector<1x64x64xbf16> to vector<64x64xbf16>
    %cst_61 = arith.constant dense<0.000000e+00> : vector<16x64xf32>
    %51 = tpu.matmul %48, %50, %cst_61 {dimension_numbers = #tpu.dot_dimension_numbers<[1], [0], [0], [1], [0, 0, 1, 1], [], []>} : vector<16x64xbf16>, vector<64x64xbf16>, vector<16x64xf32> -> vector<16x64xf32>
    %52 = arith.addf %46, %51 : vector<16x64xf32>
    %c0_62 = arith.constant 0 : index
    %c0_63 = arith.constant 0 : index
    %53 = vector.load %arg3[%c0_62, %c0_63] : memref<1x64xf32, #tpu.memory_space<vmem>>, vector<1x64xf32>
    %54 = vector.broadcast %53 : vector<1x64xf32> to vector<16x64xf32>
    %55 = arith.addf %52, %54 : vector<16x64xf32>
    %cst_64 = arith.constant dense<0.000000e+00> : vector<64xf32>
    %56 = vector.multi_reduction <add>, %55, %cst_64 [0] : vector<16x64xf32> to vector<64xf32>
    %57 = vector.shape_cast %56 : vector<64xf32> to vector<1x64xf32>
    %cst_65 = arith.constant 1.600000e+01 : f32
    %58 = vector.broadcast %cst_65 : f32 to vector<1x64xf32>
    %59 = arith.divf %57, %58 : vector<1x64xf32>
    %c0_66 = arith.constant 0 : index
    %c0_67 = arith.constant 0 : index
    %60 = vector.load %arg4[%c0_66, %c0_67] : memref<64x4xf32, #tpu.memory_space<vmem>>, vector<64x4xf32>
    %cst_68 = arith.constant dense<0.000000e+00> : vector<1x4xf32>
    %61 = tpu.matmul %59, %60, %cst_68 {dimension_numbers = #tpu.dot_dimension_numbers<[1], [0], [0], [1], [0, 0, 1, 1], [], []>} : vector<1x64xf32>, vector<64x4xf32>, vector<1x4xf32> -> vector<1x4xf32>
    %cst_69 = arith.constant 0.000000e+00 : f32
    %62 = vector.broadcast %cst_69 : f32 to vector<1x4xf32>
    %63 = arith.maximumf %61, %62 : vector<1x4xf32>
    %c0_70 = arith.constant 0 : index
    %c0_71 = arith.constant 0 : index
    %64 = vector.load %arg5[%c0_70, %c0_71] : memref<4x64xf32, #tpu.memory_space<vmem>>, vector<4x64xf32>
    %cst_72 = arith.constant dense<0.000000e+00> : vector<1x64xf32>
    %65 = tpu.matmul %63, %64, %cst_72 {dimension_numbers = #tpu.dot_dimension_numbers<[1], [0], [0], [1], [0, 0, 1, 1], [], []>} : vector<1x4xf32>, vector<4x64xf32>, vector<1x64xf32> -> vector<1x64xf32>
    %cst_73 = arith.constant 0.000000e+00 : f32
    %66 = vector.broadcast %cst_73 : f32 to vector<1x64xf32>
    %67 = arith.subf %66, %65 : vector<1x64xf32>
    %68 = math.exp %67 : vector<1x64xf32>
    %cst_74 = arith.constant 1.000000e+00 : f32
    %69 = vector.broadcast %cst_74 : f32 to vector<1x64xf32>
    %70 = arith.addf %69, %68 : vector<1x64xf32>
    %cst_75 = arith.constant 1.000000e+00 : f32
    %71 = vector.broadcast %cst_75 : f32 to vector<1x64xf32>
    %72 = arith.divf %71, %70 : vector<1x64xf32>
    %73 = vector.broadcast %72 : vector<1x64xf32> to vector<16x64xf32>
    %74 = arith.mulf %55, %73 : vector<16x64xf32>
    %c0_76 = arith.constant 0 : index
    %c0_77 = arith.constant 0 : index
    %c0_78 = arith.constant 0 : index
    %75 = vector.load %arg6[%c0_76, %c0_77, %c0_78] : memref<1x16x64xbf16, #tpu.memory_space<vmem>>, vector<1x16x64xbf16>
    %76 = vector.shape_cast %75 : vector<1x16x64xbf16> to vector<16x64xbf16>
    %77 = arith.extf %76 : vector<16x64xbf16> to vector<16x64xf32>
    %78 = arith.addf %74, %77 : vector<16x64xf32>
    %79 = arith.truncf %78 : vector<16x64xf32> to vector<16x64xbf16>
    %c0_79 = arith.constant 0 : index
    %c0_80 = arith.constant 0 : index
    %c0_81 = arith.constant 0 : index
    %80 = vector.load %arg7[%c0_79, %c0_80, %c0_81] : memref<1x16x64xbf16, #tpu.memory_space<vmem>>, vector<1x16x64xbf16>
    %81 = vector.shape_cast %80 : vector<1x16x64xbf16> to vector<16x64xbf16>
    %82 = vector.shape_cast %79 : vector<16x64xbf16> to vector<1x16x64xbf16>
    tpu.vector_store %arg7[%c0_79, %c0_80, %c0_81], %82 {strides = array<i32>} : memref<1x16x64xbf16, #tpu.memory_space<vmem>>, vector<1x16x64xbf16>,
    return
  }
  func.func @transform_0(%arg0: i32) -> (i32, i32, i32, i32) {
    %c0_i32 = arith.constant 0 : i32
    %c0_i32_0 = arith.constant 0 : i32
    %c0_i32_1 = arith.constant 0 : i32
    %c0_i32_2 = arith.constant 0 : i32
    return %arg0, %c0_i32, %c0_i32_0, %c0_i32_1 : i32, i32, i32, i32
  }
  func.func @transform_1(%arg0: i32) -> (i32, i32, i32) {
    %c0_i32 = arith.constant 0 : i32
    %c0_i32_0 = arith.constant 0 : i32
    %c0_i32_1 = arith.constant 0 : i32
    %c0_i32_2 = arith.constant 0 : i32
    return %c0_i32, %c0_i32_0, %c0_i32_1 : i32, i32, i32
  }
  func.func @transform_2(%arg0: i32) -> (i32, i32) {
    %c0_i32 = arith.constant 0 : i32
    %c0_i32_0 = arith.constant 0 : i32
    %c0_i32_1 = arith.constant 0 : i32
    return %c0_i32, %c0_i32_0 : i32, i32
  }
  func.func @transform_3(%arg0: i32) -> (i32, i32) {
    %c0_i32 = arith.constant 0 : i32
    %c0_i32_0 = arith.constant 0 : i32
    %c0_i32_1 = arith.constant 0 : i32
    return %c0_i32, %c0_i32_0 : i32, i32
  }
  func.func @transform_4(%arg0: i32) -> (i32, i32) {
    %c0_i32 = arith.constant 0 : i32
    %c0_i32_0 = arith.constant 0 : i32
    %c0_i32_1 = arith.constant 0 : i32
    return %c0_i32, %c0_i32_0 : i32, i32
  }
  func.func @transform_5(%arg0: i32) -> (i32, i32, i32) {
    %c0_i32 = arith.constant 0 : i32
    %c0_i32_0 = arith.constant 0 : i32
    %c0_i32_1 = arith.constant 0 : i32
    return %arg0, %c0_i32, %c0_i32_0 : i32, i32, i32
  }
  func.func @transform_6(%arg0: i32) -> (i32, i32, i32) {
    %c0_i32 = arith.constant 0 : i32
    %c0_i32_0 = arith.constant 0 : i32
    %c0_i32_1 = arith.constant 0 : i32
    return %arg0, %c0_i32, %c0_i32_0 : i32, i32, i32
  }
}

</mosaic_0001>

<llo_original>
// kernel: forward.8
$region0: #{forward.8}
  #allocation0 [shape = 'u32[]', space=smem, size = 0x4, offset = 0x4, fixed_abs, tag = 'smem constant byte address 0x4 - core index']
  #allocation1 [shape = 'u32[144,128]{1,0:T(1,128)}', space=vmem, size = 0x12000, scoped, tag = 'internal scratch']
  %s0 = inlined_call_operand.vmem [shape: bf16[2,10,10,64], index: 0, kind: input, shape index: {}]
  %s1 = inlined_call_operand.vmem [shape: bf16[9,64,64], index: 1, kind: input, shape index: {}]
  %s2 = inlined_call_operand.vmem [shape: f32[1,64], index: 2, kind: input, shape index: {}]
  %s3 = inlined_call_operand.vmem [shape: f32[1,64], index: 3, kind: input, shape index: {}]
  %s4 = inlined_call_operand.vmem [shape: bf16[2,64,64], index: 4, kind: output, shape index: {}]
  %s5 = sld [smem:[#allocation0]]
  $region49: #{forward.8} parent=0
    _
  %s7 = ssub.s32 1, %s5
  %s8 = scalar_select 0, %s7, %s5
  loop: start=0, step=1, limit=4
  $region2: #{forward.8} parent=0 // loop_pre_header
    _
  $region3: #{forward.8} parent=0 // loop_header
    %s10 = sphi 0, %s14
    %p11 = scmp.ge.s32.totalorder %s10, 4
    %s20 = sphi 0, %s22
    %s23 = sphi 0, %s20
    %s24 = sphi 0, %s23
    %s40 = sphi 0, %s24
    %s44 = sphi 0, %s44
    %s46 = sphi 0, %s44
    %s47 = sphi 0, %s46
    %s61 = sphi 0, %s47
    %s65 = sphi 0, %s65
    %s67 = sphi 0, %s65
    %s68 = sphi 0, %s67
    %s82 = sphi 0, %s68
    %s86 = sphi 0, %s86
    %s88 = sphi 0, %s86
    %s89 = sphi 0, %s88
    %s103 = sphi 0, %s89
    %s109 = sphi 0, %s111
    %s112 = sphi 0, %s109
    %s113 = sphi 0, %s112
    %s129 = sphi 0, %s113
  $region4: #{forward.8} parent=0 // loop_header_branch
    %13 = sbr.rel (%p11) target = $region8
  $region5: #{forward.8} parent=0 // loop_body
    %s15 = ssub.s32 %s10, 1
    %s16 = ssub.s32 %s10, 2
    %s17 = sadd.s32 %s10, 1
    %s18 = ssub.s32 %s10, %s17
    %p19 = scmp.eq.s32.totalorder %s18, 0
    %s21 = sadd.s32 %s20, 1
    %s22 = scalar_select %p19, %s20, %s21
    %p25 = pneg %p19
    %p26 = scmp.eq.s32.totalorder %s10, 1
    %p27 = por %p25, %p26
    %p28 = scmp.ne.s32.totalorder %s20, %s23
    %p29 = scmp.eq.s32.totalorder %s10, 0
    %p30 = por %p28, %p29
    %p31 = scmp.ne.s32.totalorder %s20, %s23
    %p32 = scmp.eq.s32.totalorder %s15, 1
    %p33 = por %p31, %p32
    %p34 = scmp.ne.s32.totalorder %s23, %s24
    %p35 = scmp.eq.s32.totalorder %s15, 0
    %p36 = por %p34, %p35
    %p37 = scmp.ne.s32.totalorder %s23, %s24
    %p38 = scmp.eq.s32.totalorder %s16, 1
    %p39 = por %p37, %p38
    %p41 = scmp.ne.s32.totalorder %s24, %s40
    %p42 = scmp.eq.s32.totalorder %s16, 0
    %p43 = por %p41, %p42
    %s45 = sadd.s32 %s44, 1
    %p48 = scmp.eq.s32.totalorder %s10, 1
    %p49 = scmp.ne.s32.totalorder %s44, %s46
    %p50 = scmp.eq.s32.totalorder %s10, 0
    %p51 = por %p49, %p50
    %p52 = scmp.ne.s32.totalorder %s44, %s46
    %p53 = scmp.eq.s32.totalorder %s15, 1
    %p54 = por %p52, %p53
    %p55 = scmp.ne.s32.totalorder %s46, %s47
    %p56 = scmp.eq.s32.totalorder %s15, 0
    %p57 = por %p55, %p56
    %p58 = scmp.ne.s32.totalorder %s46, %s47
    %p59 = scmp.eq.s32.totalorder %s16, 1
    %p60 = por %p58, %p59
    %p62 = scmp.ne.s32.totalorder %s47, %s61
    %p63 = scmp.eq.s32.totalorder %s16, 0
    %p64 = por %p62, %p63
    %s66 = sadd.s32 %s65, 1
    %p69 = scmp.eq.s32.totalorder %s10, 1
    %p70 = scmp.ne.s32.totalorder %s65, %s67
    %p71 = scmp.eq.s32.totalorder %s10, 0
    %p72 = por %p70, %p71
    %p73 = scmp.ne.s32.totalorder %s65, %s67
    %p74 = scmp.eq.s32.totalorder %s15, 1
    %p75 = por %p73, %p74
    %p76 = scmp.ne.s32.totalorder %s67, %s68
    %p77 = scmp.eq.s32.totalorder %s15, 0
    %p78 = por %p76, %p77
    %p79 = scmp.ne.s32.totalorder %s67, %s68
    %p80 = scmp.eq.s32.totalorder %s16, 1
    %p81 = por %p79, %p80
    %p83 = scmp.ne.s32.totalorder %s68, %s82
    %p84 = scmp.eq.s32.totalorder %s16, 0
    %p85 = por %p83, %p84
    %s87 = sadd.s32 %s86, 1
    %p90 = scmp.eq.s32.totalorder %s10, 1
    %p91 = scmp.ne.s32.totalorder %s86, %s88
    %p92 = scmp.eq.s32.totalorder %s10, 0
    %p93 = por %p91, %p92
    %p94 = scmp.ne.s32.totalorder %s86, %s88
    %p95 = scmp.eq.s32.totalorder %s15, 1
    %p96 = por %p94, %p95
    %p97 = scmp.ne.s32.totalorder %s88, %s89
    %p98 = scmp.eq.s32.totalorder %s15, 0
    %p99 = por %p97, %p98
    %p100 = scmp.ne.s32.totalorder %s88, %s89
    %p101 = scmp.eq.s32.totalorder %s16, 1
    %p102 = por %p100, %p101
    %p104 = scmp.ne.s32.totalorder %s89, %s103
    %p105 = scmp.eq.s32.totalorder %s16, 0
    %p106 = por %p104, %p105
    %s107 = ssub.s32 %s10, %s17
    %p108 = scmp.eq.s32.totalorder %s107, 0
    %s110 = sadd.s32 %s109, 1
    %s111 = scalar_select %p108, %s109, %s110
    %p114 = pneg %p108
    %p115 = scmp.eq.s32.totalorder %s10, 1
    %p116 = por %p114, %p115
    %p117 = scmp.ne.s32.totalorder %s109, %s112
    %p118 = scmp.eq.s32.totalorder %s10, 0
    %p119 = por %p117, %p118
    %p120 = scmp.ne.s32.totalorder %s109, %s112
    %p121 = scmp.eq.s32.totalorder %s15, 1
    %p122 = por %p120, %p121
    %p123 = scmp.ne.s32.totalorder %s112, %s113
    %p124 = scmp.eq.s32.totalorder %s15, 0
    %p125 = por %p123, %p124
    %p126 = scmp.ne.s32.totalorder %s112, %s113
    %p127 = scmp.eq.s32.totalorder %s16, 1
    %p128 = por %p126, %p127
    %p130 = scmp.ne.s32.totalorder %s113, %s129
    %p131 = scmp.eq.s32.totalorder %s16, 0
    %p132 = por %p130, %p131
    %p133 = scmp.le.s32.totalorder 1, %s10
    %p134 = scmp.lt.s32.totalorder %s10, 3
    %p135 = pnand %p133, %p134
    %p136 = pneg %p135
    // Predicated region
    $region9: #{forward.8} parent=5 // pred_check
      _
    $region10: #{forward.8} parent=5 // pred_check_branch
      %138 = sbr.rel (%p135) target = $region12
    $region11: #{forward.8} parent=5 // pred_region
      %s139 = ssub.s32 %s10, 1
      // Predicated region
      $region13: #{forward.8} parent=11 // pred_check
        %p140 = pneg %p57
      $region14: #{forward.8} parent=11 // pred_check_branch
        %142 = sbr.rel (%p140) target = $region16
      $region15: #{forward.8} parent=11 // pred_region
        _
      $region16: #{forward.8} parent=11 // pred_fallthru
        _
      // Predicated region
      $region17: #{forward.8} parent=11 // pred_check
        %p143 = pneg %p78
      $region18: #{forward.8} parent=11 // pred_check_branch
        %145 = sbr.rel (%p143) target = $region20
      $region19: #{forward.8} parent=11 // pred_region
        _
      $region20: #{forward.8} parent=11 // pred_fallthru
        _
      // Predicated region
      $region21: #{forward.8} parent=11 // pred_check
        %p146 = pneg %p99
      $region22: #{forward.8} parent=11 // pred_check_branch
        %148 = sbr.rel (%p146) target = $region24
      $region23: #{forward.8} parent=11 // pred_region
        _
      $region24: #{forward.8} parent=11 // pred_fallthru
        _
    $region12: #{forward.8} parent=5 // pred_fallthru
      _
    %p149 = scmp.lt.s32.totalorder %s10, 2
    // Predicated region
    $region25: #{forward.8} parent=5 // pred_check
      %p150 = pneg %p149
    $region26: #{forward.8} parent=5 // pred_check_branch
      %152 = sbr.rel (%p150) target = $region28
    $region27: #{forward.8} parent=5 // pred_region
      // Predicated region
      $region29: #{forward.8} parent=27 // pred_check
        %p153 = pneg %p30
      $region30: #{forward.8} parent=27 // pred_check_branch
        %155 = sbr.rel (%p153) target = $region32
      $region31: #{forward.8} parent=27 // pred_region
        %p156 = scmp.lt.s32.totalorder %s10, 1
        %s157 = scalar_select %p156, %s10, 1
        %s158 = smul.addr %s157, 20
        %s159 = smul.addr %s158, 4
        %s160 = scalar_lea.vmem %s0, %s159
      $region32: #{forward.8} parent=27 // pred_fallthru
        _
    $region28: #{forward.8} parent=5 // pred_fallthru
      _
    %p161 = scmp.le.s32.totalorder 1, %s10
    %p162 = scmp.lt.s32.totalorder %s10, 3
    %p163 = pnand %p161, %p162
    %p164 = pneg %p163
    // Predicated region
    $region33: #{forward.8} parent=5 // pred_check
      _
    $region34: #{forward.8} parent=5 // pred_check_branch
      %166 = sbr.rel (%p163) target = $region36
    $region35: #{forward.8} parent=5 // pred_region
      %s167 = ssub.s32 %s10, 1
      %p168 = scmp.lt.s32.totalorder %s15, 1
      %s169 = scalar_select %p168, %s15, 1
      %s170 = smul.addr %s169, 20
      %s171 = smul.addr %s170, 4
      %s172 = scalar_lea.vmem %s0, %s171
      %p173 = pneg %p36
      %p174 = pneg %p33
      %p175 = pneg %p57
      %p176 = pneg %p54
      %p177 = pneg %p78
      %p178 = pneg %p75
      %p179 = pneg %p99
      %p180 = pneg %p96
      %p181 = pneg %p125
      %p182 = pneg %p122
      %p183 = scmp.lt.s32.totalorder %s15, 1
      %s184 = scalar_select %p183, %s15, 1
      %s185 = smul.addr %s184, 8
      %s186 = smul.addr %s185, 4
      %s187 = scalar_lea.vmem %s4, %s186
      %p188 = scmp.lt.s32.totalorder %s15, 1
      %s189 = scalar_select %p188, %s15, 1
      %s190 = smul.addr %s189, 20
      %s191 = smul.addr %s190, 4
      %s192 = scalar_lea.vmem %s0, %s191
      %p193 = scmp.lt.s32.totalorder %s15, 1
      %s194 = scalar_select %p193, %s15, 1
      %s195 = smul.addr %s194, 8
      %s196 = smul.addr %s195, 4
      %s197 = scalar_lea.vmem %s4, %s196
      %v199 = vld [vmem:[%s192] sm:$0xf]
      %v200 = vld [vmem:[%s192 + $0x4] sm:$0x1]
      %v201 = vld [vmem:[%s192 + $0x8] sm:$0xf]
      %v202 = vld [vmem:[%s192 + $0xc] sm:$0x1]
      %v203 = vld [vmem:[%s192 + $0x10] sm:$0xf]
      %v204 = vld [vmem:[%s192 + $0x14] sm:$0x1]
      %v205 = vld [vmem:[%s192 + $0x18] sm:$0xf]
      %v206 = vld [vmem:[%s192 + $0x1c] sm:$0x1]
      %v207 = vld [vmem:[%s192 + $0x20] sm:$0xf]
      %v208 = vld [vmem:[%s192 + $0x24] sm:$0x1]
      %v209 = vld [vmem:[%s192 + $0x28] sm:$0xf]
      %v210 = vld [vmem:[%s192 + $0x2c] sm:$0x1]
      %v211 = vld [vmem:[%s192 + $0x30] sm:$0xf]
      %v212 = vld [vmem:[%s192 + $0x34] sm:$0x1]
      %v213 = vld [vmem:[%s192 + $0x38] sm:$0xf]
      %v214 = vld [vmem:[%s192 + $0x3c] sm:$0x1]
      %v215 = vld [vmem:[%s192 + $0x40] sm:$0xf]
      %v216 = vld [vmem:[%s192 + $0x44] sm:$0x1]
      %v217 = vld [vmem:[%s192 + $0x48] sm:$0xf]
      %v218 = vld [vmem:[%s192 + $0x4c] sm:$0x1]
      %v219 = vunpack.c.l.bf16 %v199
      %v220 = vunpack.c.l.bf16 %v200
      %v221 = vunpack.c.l.bf16 %v201
      %v222 = vunpack.c.l.bf16 %v202
      %v223 = vunpack.c.l.bf16 %v203
      %v224 = vunpack.c.l.bf16 %v204
      %v225 = vunpack.c.l.bf16 %v205
      %v226 = vunpack.c.l.bf16 %v206
      %v227 = vunpack.c.l.bf16 %v207
      %v228 = vunpack.c.l.bf16 %v208
      %v229 = vunpack.c.l.bf16 %v209
      %v230 = vunpack.c.l.bf16 %v210
      %v231 = vunpack.c.l.bf16 %v211
      %v232 = vunpack.c.l.bf16 %v212
      %v233 = vunpack.c.l.bf16 %v213
      %v234 = vunpack.c.l.bf16 %v214
      %v235 = vunpack.c.l.bf16 %v215
      %v236 = vunpack.c.l.bf16 %v216
      %v237 = vunpack.c.l.bf16 %v217
      %v238 = vunpack.c.l.bf16 %v218
      %v239 = vpack.c.bf16 %v221, %v219
      %v240 = vpack.c.bf16 %v225, %v223
      %v241 = vpack.c.bf16 %v229, %v227
      %v242 = vpack.c.bf16 %v233, %v231
      %v243 = vld [vmem:[%s1] sm:$0xf]
      %v244 = vld [vmem:[%s1 + $0x4] sm:$0xf]
      %v245 = vld [vmem:[%s1 + $0x8] sm:$0xf]
      %v246 = vld [vmem:[%s1 + $0xc] sm:$0xf]
      %v247 = vld [vmem:[%s1 + $0x10] sm:$0xf]
      %v248 = vld [vmem:[%s1 + $0x14] sm:$0xf]
      %v249 = vld [vmem:[%s1 + $0x18] sm:$0xf]
      %v250 = vld [vmem:[%s1 + $0x1c] sm:$0xf]
      %vm267 = vcmask 1046528
      %v268 = vrot.slane %v219, 1
      %v269 = vrot.slane %v220, 1
      %v270 = vsel %vm267, %v268, %v269
      %v271 = vrot.slane %v221, 1
      %v272 = vrot.slane %v222, 1
      %v273 = vsel %vm267, %v271, %v272
      %v274 = vrot.slane %v223, 1
      %v275 = vrot.slane %v224, 1
      %v276 = vsel %vm267, %v274, %v275
      %v277 = vrot.slane %v225, 1
      %v278 = vrot.slane %v226, 1
      %v279 = vsel %vm267, %v277, %v278
      %v280 = vrot.slane %v227, 1
      %v281 = vrot.slane %v228, 1
      %v282 = vsel %vm267, %v280, %v281
      %v283 = vrot.slane %v229, 1
      %v284 = vrot.slane %v230, 1
      %v285 = vsel %vm267, %v283, %v284
      %v286 = vrot.slane %v231, 1
      %v287 = vrot.slane %v232, 1
      %v288 = vsel %vm267, %v286, %v287
      %v289 = vrot.slane %v233, 1
      %v290 = vrot.slane %v234, 1
      %v291 = vsel %vm267, %v289, %v290
      %v300 = vpack.c.bf16 %v273, %v270
      %v301 = vpack.c.bf16 %v279, %v276
      %v302 = vpack.c.bf16 %v285, %v282
      %v303 = vpack.c.bf16 %v291, %v288
      %s304 = scalar_lea.vmem %s1, 32
      %v305 = vld [vmem:[%s304] sm:$0xf]
      %v306 = vld [vmem:[%s304 + $0x4] sm:$0xf]
      %v307 = vld [vmem:[%s304 + $0x8] sm:$0xf]
      %v308 = vld [vmem:[%s304 + $0xc] sm:$0xf]
      %v309 = vld [vmem:[%s304 + $0x10] sm:$0xf]
      %v310 = vld [vmem:[%s304 + $0x14] sm:$0xf]
      %v311 = vld [vmem:[%s304 + $0x18] sm:$0xf]
      %v312 = vld [vmem:[%s304 + $0x1c] sm:$0xf]
      %v321 = vunpack.c.l.b16 %v305
      %v322 = vunpack.c.l.b16 %v306
      %v323 = vunpack.c.l.b16 %v307
      %v324 = vunpack.c.l.b16 %v308
      %v325 = vunpack.c.l.b16 %v309
      %v326 = vunpack.c.l.b16 %v310
      %v327 = vunpack.c.l.b16 %v311
      %v328 = vunpack.c.l.b16 %v312
      %v329 = vpack.c.b16 %v322, %v321
      %v330 = vpack.c.b16 %v324, %v323
      %v331 = vpack.c.b16 %v326, %v325
      %v332 = vpack.c.b16 %v328, %v327
      %vm337 = vcmask 523264
      %v339 = vsel %vm337, %v300, 0
      %v342 = vsel %vm337, %v301, 0
      %v345 = vsel %vm337, %v302, 0
      %v348 = vsel %vm337, %v303, 0
      %350 = vmatprep.subr.bf16.mxu0 0
      %351 = vmatpush1.bf16.msra.mxu0 %v329
      %352 = vmatprep.subr.bf16.mxu0 0
      %353 = vmatpush1.bf16.msra.mxu0 %v330
      %354 = vmatprep.subr.bf16.mxu0 0
      %355 = vmatpush1.bf16.msra.mxu0 %v331
      %356 = vmatprep.subr.bf16.mxu0 0
      %357 = vmatpush1.bf16.msra.mxu0 %v332
      %358 = vmatprep.subr.bf16.mxu0 0
      %359 = vmatpush1.bf16.msra.mxu0 0
      %360 = vmatprep.subr.bf16.mxu0 0
      %361 = vmatpush1.bf16.msra.mxu0 0
      %362 = vmatprep.subr.bf16.mxu0 0
      %363 = vmatpush1.bf16.msra.mxu0 0
      %364 = vmatprep.subr.bf16.mxu0 0
      %365 = vmatpush1.bf16.msra.mxu0 0
      %366 = vmatprep.subr.bf16.mxu0 0
      %367 = vmatpush1.bf16.msra.mxu0 0
      %368 = vmatprep.subr.bf16.mxu0 0
      %369 = vmatpush1.bf16.msra.mxu0 0
      %370 = vmatprep.subr.bf16.mxu0 0
      %371 = vmatpush1.bf16.msra.mxu0 0
      %372 = vmatprep.subr.bf16.mxu0 0
      %373 = vmatpush1.bf16.msra.mxu0 0
      %374 = vmatprep.subr.bf16.mxu0 0
      %375 = vmatpush1.bf16.msra.mxu0 0
      %376 = vmatprep.subr.bf16.mxu0 0
      %377 = vmatpush1.bf16.msra.mxu0 0
      %378 = vmatprep.subr.bf16.mxu0 0
      %379 = vmatpush1.bf16.msra.mxu0 0
      %380 = vmatprep.subr.bf16.mxu0 0
      %381 = vmatpush1.bf16.msra.mxu0 0
      %382 = vmatprep.mubr.bf16.mxu0 0
      %383 = vmatmul.mubr.bf16.gmra.mrb[0].mxu0 %v339
      %v384 = vpop.f32.mrb[0].mxu0
      %v385 = vadd.f32 0.0, %v384
      %v386 = vpop.f32.mrb[0].mxu0
      %v387 = vpop.f32.mrb[0].mxu0
      %v388 = vadd.f32 0.0, %v387
      %v389 = vpop.f32.mrb[0].mxu0
      %390 = vmatprep.mubr.bf16.mxu0 0
      %391 = vmatmul.mubr.bf16.gmra.mrb[0].mxu0 %v342
      %v392 = vpop.f32.mrb[0].mxu0
      %v393 = vadd.f32 0.0, %v392
      %v394 = vpop.f32.mrb[0].mxu0
      %v395 = vpop.f32.mrb[0].mxu0
      %v396 = vadd.f32 0.0, %v395
      %v397 = vpop.f32.mrb[0].mxu0
      %398 = vmatprep.mubr.bf16.mxu0 0
      %399 = vmatmul.mubr.bf16.gmra.mrb[0].mxu0 %v345
      %v400 = vpop.f32.mrb[0].mxu0
      %v401 = vadd.f32 0.0, %v400
      %v402 = vpop.f32.mrb[0].mxu0
      %v403 = vpop.f32.mrb[0].mxu0
      %v404 = vadd.f32 0.0, %v403
      %v405 = vpop.f32.mrb[0].mxu0
      %406 = vmatprep.mubr.bf16.mxu0 0
      %407 = vmatmul.mubr.bf16.gmra.mrb[0].mxu0 %v348
      %v408 = vpop.f32.mrb[0].mxu0
      %v409 = vadd.f32 0.0, %v408
      %v410 = vpop.f32.mrb[0].mxu0
      %v411 = vpop.f32.mrb[0].mxu0
      %v412 = vadd.f32 0.0, %v411
      %v413 = vpop.f32.mrb[0].mxu0
      %414 = vdwg.mxu0
      %v423 = vunpack.c.l.b16 %v243
      %v424 = vunpack.c.l.b16 %v244
      %v425 = vunpack.c.l.b16 %v245
      %v426 = vunpack.c.l.b16 %v246
      %v427 = vunpack.c.l.b16 %v247
      %v428 = vunpack.c.l.b16 %v248
      %v429 = vunpack.c.l.b16 %v249
      %v430 = vunpack.c.l.b16 %v250
      %v431 = vpack.c.b16 %v424, %v423
      %v432 = vpack.c.b16 %v426, %v425
      %v433 = vpack.c.b16 %v428, %v427
      %v434 = vpack.c.b16 %v430, %v429
      %v440 = vsel %vm337, %v239, 0
      %v443 = vsel %vm337, %v240, 0
      %v446 = vsel %vm337, %v241, 0
      %v449 = vsel %vm337, %v242, 0
      %451 = vmatprep.subr.bf16.mxu0 0
      %452 = vmatpush1.bf16.msra.mxu0 %v431
      %453 = vmatprep.subr.bf16.mxu0 0
      %454 = vmatpush1.bf16.msra.mxu0 %v432
      %455 = vmatprep.subr.bf16.mxu0 0
      %456 = vmatpush1.bf16.msra.mxu0 %v433
      %457 = vmatprep.subr.bf16.mxu0 0
      %458 = vmatpush1.bf16.msra.mxu0 %v434
      %459 = vmatprep.subr.bf16.mxu0 0
      %460 = vmatpush1.bf16.msra.mxu0 0
      %461 = vmatprep.subr.bf16.mxu0 0
      %462 = vmatpush1.bf16.msra.mxu0 0
      %463 = vmatprep.subr.bf16.mxu0 0
      %464 = vmatpush1.bf16.msra.mxu0 0
      %465 = vmatprep.subr.bf16.mxu0 0
      %466 = vmatpush1.bf16.msra.mxu0 0
      %467 = vmatprep.subr.bf16.mxu0 0
      %468 = vmatpush1.bf16.msra.mxu0 0
      %469 = vmatprep.subr.bf16.mxu0 0
      %470 = vmatpush1.bf16.msra.mxu0 0
      %471 = vmatprep.subr.bf16.mxu0 0
      %472 = vmatpush1.bf16.msra.mxu0 0
      %473 = vmatprep.subr.bf16.mxu0 0
      %474 = vmatpush1.bf16.msra.mxu0 0
      %475 = vmatprep.subr.bf16.mxu0 0
      %476 = vmatpush1.bf16.msra.mxu0 0
      %477 = vmatprep.subr.bf16.mxu0 0
      %478 = vmatpush1.bf16.msra.mxu0 0
      %479 = vmatprep.subr.bf16.mxu0 0
      %480 = vmatpush1.bf16.msra.mxu0 0
      %481 = vmatprep.subr.bf16.mxu0 0
      %482 = vmatpush1.bf16.msra.mxu0 0
      %483 = vmatprep.mubr.bf16.mxu0 0
      %484 = vmatmul.mubr.bf16.gmra.mrb[0].mxu0 %v440
      %v485 = vpop.f32.mrb[0].mxu0
      %v486 = vadd.f32 %v385, %v485
      %v487 = vpop.f32.mrb[0].mxu0
      %v488 = vpop.f32.mrb[0].mxu0
      %v489 = vadd.f32 %v388, %v488
      %v490 = vpop.f32.mrb[0].mxu0
      %491 = vmatprep.mubr.bf16.mxu0 0
      %492 = vmatmul.mubr.bf16.gmra.mrb[0].mxu0 %v443
      %v493 = vpop.f32.mrb[0].mxu0
      %v494 = vadd.f32 %v393, %v493
      %v495 = vpop.f32.mrb[0].mxu0
      %v496 = vpop.f32.mrb[0].mxu0
      %v497 = vadd.f32 %v396, %v496
      %v498 = vpop.f32.mrb[0].mxu0
      %499 = vmatprep.mubr.bf16.mxu0 0
      %500 = vmatmul.mubr.bf16.gmra.mrb[0].mxu0 %v446
      %v501 = vpop.f32.mrb[0].mxu0
      %v502 = vadd.f32 %v401, %v501
      %v503 = vpop.f32.mrb[0].mxu0
      %v504 = vpop.f32.mrb[0].mxu0
      %v505 = vadd.f32 %v404, %v504
      %v506 = vpop.f32.mrb[0].mxu0
      %507 = vmatprep.mubr.bf16.mxu0 0
      %508 = vmatmul.mubr.bf16.gmra.mrb[0].mxu0 %v449
      %v509 = vpop.f32.mrb[0].mxu0
      %v510 = vadd.f32 %v409, %v509
      %v511 = vpop.f32.mrb[0].mxu0
      %v512 = vpop.f32.mrb[0].mxu0
      %v513 = vadd.f32 %v412, %v512
      %v514 = vpop.f32.mrb[0].mxu0
      %515 = vdwg.mxu0
      %vm516 = vcmask 1045504
      %v517 = vrot.slane %v219, 2
      %v518 = vrot.slane %v220, 2
      %v519 = vsel %vm516, %v517, %v518
      %v520 = vrot.slane %v221, 2
      %v521 = vrot.slane %v222, 2
      %v522 = vsel %vm516, %v520, %v521
      %v523 = vrot.slane %v223, 2
      %v524 = vrot.slane %v224, 2
      %v525 = vsel %vm516, %v523, %v524
      %v526 = vrot.slane %v225, 2
      %v527 = vrot.slane %v226, 2
      %v528 = vsel %vm516, %v526, %v527
      %v529 = vrot.slane %v227, 2
      %v530 = vrot.slane %v228, 2
      %v531 = vsel %vm516, %v529, %v530
      %v532 = vrot.slane %v229, 2
      %v533 = vrot.slane %v230, 2
      %v534 = vsel %vm516, %v532, %v533
      %v535 = vrot.slane %v231, 2
      %v536 = vrot.slane %v232, 2
      %v537 = vsel %vm516, %v535, %v536
      %v538 = vrot.slane %v233, 2
      %v539 = vrot.slane %v234, 2
      %v540 = vsel %vm516, %v538, %v539
      %v549 = vpack.c.bf16 %v522, %v519
      %v550 = vpack.c.bf16 %v528, %v525
      %v551 = vpack.c.bf16 %v534, %v531
      %v552 = vpack.c.bf16 %v540, %v537
      %s553 = scalar_lea.vmem %s1, 64
      %v554 = vld [vmem:[%s553] sm:$0xf]
      %v555 = vld [vmem:[%s553 + $0x4] sm:$0xf]
      %v556 = vld [vmem:[%s553 + $0x8] sm:$0xf]
      %v557 = vld [vmem:[%s553 + $0xc] sm:$0xf]
      %v558 = vld [vmem:[%s553 + $0x10] sm:$0xf]
      %v559 = vld [vmem:[%s553 + $0x14] sm:$0xf]
      %v560 = vld [vmem:[%s553 + $0x18] sm:$0xf]
      %v561 = vld [vmem:[%s553 + $0x1c] sm:$0xf]
      %v570 = vunpack.c.l.b16 %v554
      %v571 = vunpack.c.l.b16 %v555
      %v572 = vunpack.c.l.b16 %v556
      %v573 = vunpack.c.l.b16 %v557
      %v574 = vunpack.c.l.b16 %v558
      %v575 = vunpack.c.l.b16 %v559
      %v576 = vunpack.c.l.b16 %v560
      %v577 = vunpack.c.l.b16 %v561
      %v578 = vpack.c.b16 %v571, %v570
      %v579 = vpack.c.b16 %v573, %v572
      %v580 = vpack.c.b16 %v575, %v574
      %v581 = vpack.c.b16 %v577, %v576
      %v587 = vsel %vm337, %v549, 0
      %v590 = vsel %vm337, %v550, 0
      %v593 = vsel %vm337, %v551, 0
      %v596 = vsel %vm337, %v552, 0
      %598 = vmatprep.subr.bf16.mxu0 0
      %599 = vmatpush1.bf16.msra.mxu0 %v578
      %600 = vmatprep.subr.bf16.mxu0 0
      %601 = vmatpush1.bf16.msra.mxu0 %v579
      %602 = vmatprep.subr.bf16.mxu0 0
      %603 = vmatpush1.bf16.msra.mxu0 %v580
      %604 = vmatprep.subr.bf16.mxu0 0
      %605 = vmatpush1.bf16.msra.mxu0 %v581
      %606 = vmatprep.subr.bf16.mxu0 0
      %607 = vmatpush1.bf16.msra.mxu0 0
      %608 = vmatprep.subr.bf16.mxu0 0
      %609 = vmatpush1.bf16.msra.mxu0 0
      %610 = vmatprep.subr.bf16.mxu0 0
      %611 = vmatpush1.bf16.msra.mxu0 0
      %612 = vmatprep.subr.bf16.mxu0 0
      %613 = vmatpush1.bf16.msra.mxu0 0
      %614 = vmatprep.subr.bf16.mxu0 0
      %615 = vmatpush1.bf16.msra.mxu0 0
      %616 = vmatprep.subr.bf16.mxu0 0
      %617 = vmatpush1.bf16.msra.mxu0 0
      %618 = vmatprep.subr.bf16.mxu0 0
      %619 = vmatpush1.bf16.msra.mxu0 0
      %620 = vmatprep.subr.bf16.mxu0 0
      %621 = vmatpush1.bf16.msra.mxu0 0
      %622 = vmatprep.subr.bf16.mxu0 0
      %623 = vmatpush1.bf16.msra.mxu0 0
      %624 = vmatprep.subr.bf16.mxu0 0
      %625 = vmatpush1.bf16.msra.mxu0 0
      %626 = vmatprep.subr.bf16.mxu0 0
      %627 = vmatpush1.bf16.msra.mxu0 0
      %628 = vmatprep.subr.bf16.mxu0 0
      %629 = vmatpush1.bf16.msra.mxu0 0
      %630 = vmatprep.mubr.bf16.mxu0 0
      %631 = vmatmul.mubr.bf16.gmra.mrb[0].mxu0 %v587
      %v632 = vpop.f32.mrb[0].mxu0
      %v633 = vadd.f32 0.0, %v632
      %v634 = vpop.f32.mrb[0].mxu0
      %v635 = vpop.f32.mrb[0].mxu0
      %v636 = vadd.f32 0.0, %v635
      %v637 = vpop.f32.mrb[0].mxu0
      %638 = vmatprep.mubr.bf16.mxu0 0
      %639 = vmatmul.mubr.bf16.gmra.mrb[0].mxu0 %v590
      %v640 = vpop.f32.mrb[0].mxu0
      %v641 = vadd.f32 0.0, %v640
      %v642 = vpop.f32.mrb[0].mxu0
      %v643 = vpop.f32.mrb[0].mxu0
      %v644 = vadd.f32 0.0, %v643
      %v645 = vpop.f32.mrb[0].mxu0
      %646 = vmatprep.mubr.bf16.mxu0 0
      %647 = vmatmul.mubr.bf16.gmra.mrb[0].mxu0 %v593
      %v648 = vpop.f32.mrb[0].mxu0
      %v649 = vadd.f32 0.0, %v648
      %v650 = vpop.f32.mrb[0].mxu0
      %v651 = vpop.f32.mrb[0].mxu0
      %v652 = vadd.f32 0.0, %v651
      %v653 = vpop.f32.mrb[0].mxu0
      %654 = vmatprep.mubr.bf16.mxu0 0
      %655 = vmatmul.mubr.bf16.gmra.mrb[0].mxu0 %v596
      %v656 = vpop.f32.mrb[0].mxu0
      %v657 = vadd.f32 0.0, %v656
      %v658 = vpop.f32.mrb[0].mxu0
      %v659 = vpop.f32.mrb[0].mxu0
      %v660 = vadd.f32 0.0, %v659
      %v661 = vpop.f32.mrb[0].mxu0
      %662 = vdwg.mxu0
      %v663 = vadd.f32 %v486, %v633
      %v664 = vadd.f32 %v489, %v636
      %v665 = vadd.f32 %v494, %v641
      %v666 = vadd.f32 %v497, %v644
      %v667 = vadd.f32 %v502, %v649
      %v668 = vadd.f32 %v505, %v652
      %v669 = vadd.f32 %v510, %v657
      %v670 = vadd.f32 %v513, %v660
      %v671 = vpack.c.bf16 %v223, %v221
      %v672 = vpack.c.bf16 %v227, %v225
      %v673 = vpack.c.bf16 %v231, %v229
      %v674 = vpack.c.bf16 %v235, %v233
      %s675 = scalar_lea.vmem %s1, 96
      %v676 = vld [vmem:[%s675] sm:$0xf]
      %v677 = vld [vmem:[%s675 + $0x4] sm:$0xf]
      %v678 = vld [vmem:[%s675 + $0x8] sm:$0xf]
      %v679 = vld [vmem:[%s675 + $0xc] sm:$0xf]
      %v680 = vld [vmem:[%s675 + $0x10] sm:$0xf]
      %v681 = vld [vmem:[%s675 + $0x14] sm:$0xf]
      %v682 = vld [vmem:[%s675 + $0x18] sm:$0xf]
      %v683 = vld [vmem:[%s675 + $0x1c] sm:$0xf]
      %v692 = vunpack.c.l.b16 %v676
      %v693 = vunpack.c.l.b16 %v677
      %v694 = vunpack.c.l.b16 %v678
      %v695 = vunpack.c.l.b16 %v679
      %v696 = vunpack.c.l.b16 %v680
      %v697 = vunpack.c.l.b16 %v681
      %v698 = vunpack.c.l.b16 %v682
      %v699 = vunpack.c.l.b16 %v683
      %v700 = vpack.c.b16 %v693, %v692
      %v701 = vpack.c.b16 %v695, %v694
      %v702 = vpack.c.b16 %v697, %v696
      %v703 = vpack.c.b16 %v699, %v698
      %v709 = vsel %vm337, %v671, 0
      %v712 = vsel %vm337, %v672, 0
      %v715 = vsel %vm337, %v673, 0
      %v718 = vsel %vm337, %v674, 0
      %720 = vmatprep.subr.bf16.mxu0 0
      %721 = vmatpush1.bf16.msra.mxu0 %v700
      %722 = vmatprep.subr.bf16.mxu0 0
      %723 = vmatpush1.bf16.msra.mxu0 %v701
      %724 = vmatprep.subr.bf16.mxu0 0
      %725 = vmatpush1.bf16.msra.mxu0 %v702
      %726 = vmatprep.subr.bf16.mxu0 0
      %727 = vmatpush1.bf16.msra.mxu0 %v703
      %728 = vmatprep.subr.bf16.mxu0 0
      %729 = vmatpush1.bf16.msra.mxu0 0
      %730 = vmatprep.subr.bf16.mxu0 0
      %731 = vmatpush1.bf16.msra.mxu0 0
      %732 = vmatprep.subr.bf16.mxu0 0
      %733 = vmatpush1.bf16.msra.mxu0 0
      %734 = vmatprep.subr.bf16.mxu0 0
      %735 = vmatpush1.bf16.msra.mxu0 0
      %736 = vmatprep.subr.bf16.mxu0 0
      %737 = vmatpush1.bf16.msra.mxu0 0
      %738 = vmatprep.subr.bf16.mxu0 0
      %739 = vmatpush1.bf16.msra.mxu0 0
      %740 = vmatprep.subr.bf16.mxu0 0
      %741 = vmatpush1.bf16.msra.mxu0 0
      %742 = vmatprep.subr.bf16.mxu0 0
      %743 = vmatpush1.bf16.msra.mxu0 0
      %744 = vmatprep.subr.bf16.mxu0 0
      %745 = vmatpush1.bf16.msra.mxu0 0
      %746 = vmatprep.subr.bf16.mxu0 0
      %747 = vmatpush1.bf16.msra.mxu0 0
      %748 = vmatprep.subr.bf16.mxu0 0
      %749 = vmatpush1.bf16.msra.mxu0 0
      %750 = vmatprep.subr.bf16.mxu0 0
      %751 = vmatpush1.bf16.msra.mxu0 0
      %752 = vmatprep.mubr.bf16.mxu0 0
      %753 = vmatmul.mubr.bf16.gmra.mrb[0].mxu0 %v709
      %v754 = vpop.f32.mrb[0].mxu0
      %v755 = vadd.f32 0.0, %v754
      %v756 = vpop.f32.mrb[0].mxu0
      %v757 = vpop.f32.mrb[0].mxu0
      %v758 = vadd.f32 0.0, %v757
      %v759 = vpop.f32.mrb[0].mxu0
      %760 = vmatprep.mubr.bf16.mxu0 0
      %761 = vmatmul.mubr.bf16.gmra.mrb[0].mxu0 %v712
      %v762 = vpop.f32.mrb[0].mxu0
      %v763 = vadd.f32 0.0, %v762
      %v764 = vpop.f32.mrb[0].mxu0
      %v765 = vpop.f32.mrb[0].mxu0
      %v766 = vadd.f32 0.0, %v765
      %v767 = vpop.f32.mrb[0].mxu0
      %768 = vmatprep.mubr.bf16.mxu0 0
      %769 = vmatmul.mubr.bf16.gmra.mrb[0].mxu0 %v715
      %v770 = vpop.f32.mrb[0].mxu0
      %v771 = vadd.f32 0.0, %v770
      %v772 = vpop.f32.mrb[0].mxu0
      %v773 = vpop.f32.mrb[0].mxu0
      %v774 = vadd.f32 0.0, %v773
      %v775 = vpop.f32.mrb[0].mxu0
      %776 = vmatprep.mubr.bf16.mxu0 0
      %777 = vmatmul.mubr.bf16.gmra.mrb[0].mxu0 %v718
      %v778 = vpop.f32.mrb[0].mxu0
      %v779 = vadd.f32 0.0, %v778
      %v780 = vpop.f32.mrb[0].mxu0
      %v781 = vpop.f32.mrb[0].mxu0
      %v782 = vadd.f32 0.0, %v781
      %v783 = vpop.f32.mrb[0].mxu0
      %784 = vdwg.mxu0
      %v785 = vadd.f32 %v663, %v755
      %v786 = vadd.f32 %v664, %v758
      %v787 = vadd.f32 %v665, %v763
      %v788 = vadd.f32 %v666, %v766
      %v789 = vadd.f32 %v667, %v771
      %v790 = vadd.f32 %v668, %v774
      %v791 = vadd.f32 %v669, %v779
      %v792 = vadd.f32 %v670, %v782
      %v795 = vrot.slane %v235, 1
      %v796 = vrot.slane %v236, 1
      %v797 = vsel %vm267, %v795, %v796
      %v799 = vpack.c.bf16 %v276, %v273
      %v800 = vpack.c.bf16 %v282, %v279
      %v801 = vpack.c.bf16 %v288, %v285
      %v802 = vpack.c.bf16 %v797, %v291
      %s803 = scalar_lea.vmem %s1, 128
      %v804 = vld [vmem:[%s803] sm:$0xf]
      %v805 = vld [vmem:[%s803 + $0x4] sm:$0xf]
      %v806 = vld [vmem:[%s803 + $0x8] sm:$0xf]
      %v807 = vld [vmem:[%s803 + $0xc] sm:$0xf]
      %v808 = vld [vmem:[%s803 + $0x10] sm:$0xf]
      %v809 = vld [vmem:[%s803 + $0x14] sm:$0xf]
      %v810 = vld [vmem:[%s803 + $0x18] sm:$0xf]
      %v811 = vld [vmem:[%s803 + $0x1c] sm:$0xf]
      %v820 = vunpack.c.l.b16 %v804
      %v821 = vunpack.c.l.b16 %v805
      %v822 = vunpack.c.l.b16 %v806
      %v823 = vunpack.c.l.b16 %v807
      %v824 = vunpack.c.l.b16 %v808
      %v825 = vunpack.c.l.b16 %v809
      %v826 = vunpack.c.l.b16 %v810
      %v827 = vunpack.c.l.b16 %v811
      %v828 = vpack.c.b16 %v821, %v820
      %v829 = vpack.c.b16 %v823, %v822
      %v830 = vpack.c.b16 %v825, %v824
      %v831 = vpack.c.b16 %v827, %v826
      %v837 = vsel %vm337, %v799, 0
      %v840 = vsel %vm337, %v800, 0
      %v843 = vsel %vm337, %v801, 0
      %v846 = vsel %vm337, %v802, 0
      %848 = vmatprep.subr.bf16.mxu0 0
      %849 = vmatpush1.bf16.msra.mxu0 %v828
      %850 = vmatprep.subr.bf16.mxu0 0
      %851 = vmatpush1.bf16.msra.mxu0 %v829
      %852 = vmatprep.subr.bf16.mxu0 0
      %853 = vmatpush1.bf16.msra.mxu0 %v830
      %854 = vmatprep.subr.bf16.mxu0 0
      %855 = vmatpush1.bf16.msra.mxu0 %v831
      %856 = vmatprep.subr.bf16.mxu0 0
      %857 = vmatpush1.bf16.msra.mxu0 0
      %858 = vmatprep.subr.bf16.mxu0 0
      %859 = vmatpush1.bf16.msra.mxu0 0
      %860 = vmatprep.subr.bf16.mxu0 0
      %861 = vmatpush1.bf16.msra.mxu0 0
      %862 = vmatprep.subr.bf16.mxu0 0
      %863 = vmatpush1.bf16.msra.mxu0 0
      %864 = vmatprep.subr.bf16.mxu0 0
      %865 = vmatpush1.bf16.msra.mxu0 0
      %866 = vmatprep.subr.bf16.mxu0 0
      %867 = vmatpush1.bf16.msra.mxu0 0
      %868 = vmatprep.subr.bf16.mxu0 0
      %869 = vmatpush1.bf16.msra.mxu0 0
      %870 = vmatprep.subr.bf16.mxu0 0
      %871 = vmatpush1.bf16.msra.mxu0 0
      %872 = vmatprep.subr.bf16.mxu0 0
      %873 = vmatpush1.bf16.msra.mxu0 0
      %874 = vmatprep.subr.bf16.mxu0 0
      %875 = vmatpush1.bf16.msra.mxu0 0
      %876 = vmatprep.subr.bf16.mxu0 0
      %877 = vmatpush1.bf16.msra.mxu0 0
      %878 = vmatprep.subr.bf16.mxu0 0
      %879 = vmatpush1.bf16.msra.mxu0 0
      %880 = vmatprep.mubr.bf16.mxu0 0
      %881 = vmatmul.mubr.bf16.gmra.mrb[0].mxu0 %v837
      %v882 = vpop.f32.mrb[0].mxu0
      %v883 = vadd.f32 0.0, %v882
      %v884 = vpop.f32.mrb[0].mxu0
      %v885 = vpop.f32.mrb[0].mxu0
      %v886 = vadd.f32 0.0, %v885
      %v887 = vpop.f32.mrb[0].mxu0
      %888 = vmatprep.mubr.bf16.mxu0 0
      %889 = vmatmul.mubr.bf16.gmra.mrb[0].mxu0 %v840
      %v890 = vpop.f32.mrb[0].mxu0
      %v891 = vadd.f32 0.0, %v890
      %v892 = vpop.f32.mrb[0].mxu0
      %v893 = vpop.f32.mrb[0].mxu0
      %v894 = vadd.f32 0.0, %v893
      %v895 = vpop.f32.mrb[0].mxu0
      %896 = vmatprep.mubr.bf16.mxu0 0
      %897 = vmatmul.mubr.bf16.gmra.mrb[0].mxu0 %v843
      %v898 = vpop.f32.mrb[0].mxu0
      %v899 = vadd.f32 0.0, %v898
      %v900 = vpop.f32.mrb[0].mxu0
      %v901 = vpop.f32.mrb[0].mxu0
      %v902 = vadd.f32 0.0, %v901
      %v903 = vpop.f32.mrb[0].mxu0
      %904 = vmatprep.mubr.bf16.mxu0 0
      %905 = vmatmul.mubr.bf16.gmra.mrb[0].mxu0 %v846
      %v906 = vpop.f32.mrb[0].mxu0
      %v907 = vadd.f32 0.0, %v906
      %v908 = vpop.f32.mrb[0].mxu0
      %v909 = vpop.f32.mrb[0].mxu0
      %v910 = vadd.f32 0.0, %v909
      %v911 = vpop.f32.mrb[0].mxu0
      %912 = vdwg.mxu0
      %v913 = vadd.f32 %v785, %v883
      %v914 = vadd.f32 %v786, %v886
      %v915 = vadd.f32 %v787, %v891
      %v916 = vadd.f32 %v788, %v894
      %v917 = vadd.f32 %v789, %v899
      %v918 = vadd.f32 %v790, %v902
      %v919 = vadd.f32 %v791, %v907
      %v920 = vadd.f32 %v792, %v910
      %v921 = vrot.slane %v235, 2
      %v922 = vrot.slane %v236, 2
      %v923 = vsel %vm516, %v921, %v922
      %v925 = vpack.c.bf16 %v525, %v522
      %v926 = vpack.c.bf16 %v531, %v528
      %v927 = vpack.c.bf16 %v537, %v534
      %v928 = vpack.c.bf16 %v923, %v540
      %s929 = scalar_lea.vmem %s1, 160
      %v930 = vld [vmem:[%s929] sm:$0xf]
      %v931 = vld [vmem:[%s929 + $0x4] sm:$0xf]
      %v932 = vld [vmem:[%s929 + $0x8] sm:$0xf]
      %v933 = vld [vmem:[%s929 + $0xc] sm:$0xf]
      %v934 = vld [vmem:[%s929 + $0x10] sm:$0xf]
      %v935 = vld [vmem:[%s929 + $0x14] sm:$0xf]
      %v936 = vld [vmem:[%s929 + $0x18] sm:$0xf]
      %v937 = vld [vmem:[%s929 + $0x1c] sm:$0xf]
      %v946 = vunpack.c.l.b16 %v930
      %v947 = vunpack.c.l.b16 %v931
      %v948 = vunpack.c.l.b16 %v932
      %v949 = vunpack.c.l.b16 %v933
      %v950 = vunpack.c.l.b16 %v934
      %v951 = vunpack.c.l.b16 %v935
      %v952 = vunpack.c.l.b16 %v936
      %v953 = vunpack.c.l.b16 %v937
      %v954 = vpack.c.b16 %v947, %v946
      %v955 = vpack.c.b16 %v949, %v948
      %v956 = vpack.c.b16 %v951, %v950
      %v957 = vpack.c.b16 %v953, %v952
      %v963 = vsel %vm337, %v925, 0
      %v966 = vsel %vm337, %v926, 0
      %v969 = vsel %vm337, %v927, 0
      %v972 = vsel %vm337, %v928, 0
      %974 = vmatprep.subr.bf16.mxu0 0
      %975 = vmatpush1.bf16.msra.mxu0 %v954
      %976 = vmatprep.subr.bf16.mxu0 0
      %977 = vmatpush1.bf16.msra.mxu0 %v955
      %978 = vmatprep.subr.bf16.mxu0 0
      %979 = vmatpush1.bf16.msra.mxu0 %v956
      %980 = vmatprep.subr.bf16.mxu0 0
      %981 = vmatpush1.bf16.msra.mxu0 %v957
      %982 = vmatprep.subr.bf16.mxu0 0
      %983 = vmatpush1.bf16.msra.mxu0 0
      %984 = vmatprep.subr.bf16.mxu0 0
      %985 = vmatpush1.bf16.msra.mxu0 0
      %986 = vmatprep.subr.bf16.mxu0 0
      %987 = vmatpush1.bf16.msra.mxu0 0
      %988 = vmatprep.subr.bf16.mxu0 0
      %989 = vmatpush1.bf16.msra.mxu0 0
      %990 = vmatprep.subr.bf16.mxu0 0
      %991 = vmatpush1.bf16.msra.mxu0 0
      %992 = vmatprep.subr.bf16.mxu0 0
      %993 = vmatpush1.bf16.msra.mxu0 0
      %994 = vmatprep.subr.bf16.mxu0 0
      %995 = vmatpush1.bf16.msra.mxu0 0
      %996 = vmatprep.subr.bf16.mxu0 0
      %997 = vmatpush1.bf16.msra.mxu0 0
      %998 = vmatprep.subr.bf16.mxu0 0
      %999 = vmatpush1.bf16.msra.mxu0 0
      %1000 = vmatprep.subr.bf16.mxu0 0
      %1001 = vmatpush1.bf16.msra.mxu0 0
      %1002 = vmatprep.subr.bf16.mxu0 0
      %1003 = vmatpush1.bf16.msra.mxu0 0
      %1004 = vmatprep.subr.bf16.mxu0 0
      %1005 = vmatpush1.bf16.msra.mxu0 0
      %1006 = vmatprep.mubr.bf16.mxu0 0
      %1007 = vmatmul.mubr.bf16.gmra.mrb[0].mxu0 %v963
      %v1008 = vpop.f32.mrb[0].mxu0
      %v1009 = vadd.f32 0.0, %v1008
      %v1010 = vpop.f32.mrb[0].mxu0
      %v1011 = vpop.f32.mrb[0].mxu0
      %v1012 = vadd.f32 0.0, %v1011
      %v1013 = vpop.f32.mrb[0].mxu0
      %1014 = vmatprep.mubr.bf16.mxu0 0
      %1015 = vmatmul.mubr.bf16.gmra.mrb[0].mxu0 %v966
      %v1016 = vpop.f32.mrb[0].mxu0
      %v1017 = vadd.f32 0.0, %v1016
      %v1018 = vpop.f32.mrb[0].mxu0
      %v1019 = vpop.f32.mrb[0].mxu0
      %v1020 = vadd.f32 0.0, %v1019
      %v1021 = vpop.f32.mrb[0].mxu0
      %1022 = vmatprep.mubr.bf16.mxu0 0
      %1023 = vmatmul.mubr.bf16.gmra.mrb[0].mxu0 %v969
      %v1024 = vpop.f32.mrb[0].mxu0
      %v1025 = vadd.f32 0.0, %v1024
      %v1026 = vpop.f32.mrb[0].mxu0
      %v1027 = vpop.f32.mrb[0].mxu0
      %v1028 = vadd.f32 0.0, %v1027
      %v1029 = vpop.f32.mrb[0].mxu0
      %1030 = vmatprep.mubr.bf16.mxu0 0
      %1031 = vmatmul.mubr.bf16.gmra.mrb[0].mxu0 %v972
      %v1032 = vpop.f32.mrb[0].mxu0
      %v1033 = vadd.f32 0.0, %v1032
      %v1034 = vpop.f32.mrb[0].mxu0
      %v1035 = vpop.f32.mrb[0].mxu0
      %v1036 = vadd.f32 0.0, %v1035
      %v1037 = vpop.f32.mrb[0].mxu0
      %1038 = vdwg.mxu0
      %v1039 = vadd.f32 %v913, %v1009
      %v1040 = vadd.f32 %v914, %v1012
      %v1041 = vadd.f32 %v915, %v1017
      %v1042 = vadd.f32 %v916, %v1020
      %v1043 = vadd.f32 %v917, %v1025
      %v1044 = vadd.f32 %v918, %v1028
      %v1045 = vadd.f32 %v919, %v1033
      %v1046 = vadd.f32 %v920, %v1036
      %v1047 = vpack.c.bf16 %v237, %v235
      %s1048 = scalar_lea.vmem %s1, 192
      %v1049 = vld [vmem:[%s1048] sm:$0xf]
      %v1050 = vld [vmem:[%s1048 + $0x4] sm:$0xf]
      %v1051 = vld [vmem:[%s1048 + $0x8] sm:$0xf]
      %v1052 = vld [vmem:[%s1048 + $0xc] sm:$0xf]
      %v1053 = vld [vmem:[%s1048 + $0x10] sm:$0xf]
      %v1054 = vld [vmem:[%s1048 + $0x14] sm:$0xf]
      %v1055 = vld [vmem:[%s1048 + $0x18] sm:$0xf]
      %v1056 = vld [vmem:[%s1048 + $0x1c] sm:$0xf]
      %v1065 = vunpack.c.l.b16 %v1049
      %v1066 = vunpack.c.l.b16 %v1050
      %v1067 = vunpack.c.l.b16 %v1051
      %v1068 = vunpack.c.l.b16 %v1052
      %v1069 = vunpack.c.l.b16 %v1053
      %v1070 = vunpack.c.l.b16 %v1054
      %v1071 = vunpack.c.l.b16 %v1055
      %v1072 = vunpack.c.l.b16 %v1056
      %v1073 = vpack.c.b16 %v1066, %v1065
      %v1074 = vpack.c.b16 %v1068, %v1067
      %v1075 = vpack.c.b16 %v1070, %v1069
      %v1076 = vpack.c.b16 %v1072, %v1071
      %v1082 = vsel %vm337, %v1047, 0
      %1084 = vmatprep.subr.bf16.mxu0 0
      %1085 = vmatpush1.bf16.msra.mxu0 %v1073
      %1086 = vmatprep.subr.bf16.mxu0 0
      %1087 = vmatpush1.bf16.msra.mxu0 %v1074
      %1088 = vmatprep.subr.bf16.mxu0 0
      %1089 = vmatpush1.bf16.msra.mxu0 %v1075
      %1090 = vmatprep.subr.bf16.mxu0 0
      %1091 = vmatpush1.bf16.msra.mxu0 %v1076
      %1092 = vmatprep.subr.bf16.mxu0 0
      %1093 = vmatpush1.bf16.msra.mxu0 0
      %1094 = vmatprep.subr.bf16.mxu0 0
      %1095 = vmatpush1.bf16.msra.mxu0 0
      %1096 = vmatprep.subr.bf16.mxu0 0
      %1097 = vmatpush1.bf16.msra.mxu0 0
      %1098 = vmatprep.subr.bf16.mxu0 0
      %1099 = vmatpush1.bf16.msra.mxu0 0
      %1100 = vmatprep.subr.bf16.mxu0 0
      %1101 = vmatpush1.bf16.msra.mxu0 0
      %1102 = vmatprep.subr.bf16.mxu0 0
      %1103 = vmatpush1.bf16.msra.mxu0 0
      %1104 = vmatprep.subr.bf16.mxu0 0
      %1105 = vmatpush1.bf16.msra.mxu0 0
      %1106 = vmatprep.subr.bf16.mxu0 0
      %1107 = vmatpush1.bf16.msra.mxu0 0
      %1108 = vmatprep.subr.bf16.mxu0 0
      %1109 = vmatpush1.bf16.msra.mxu0 0
      %1110 = vmatprep.subr.bf16.mxu0 0
      %1111 = vmatpush1.bf16.msra.mxu0 0
      %1112 = vmatprep.subr.bf16.mxu0 0
      %1113 = vmatpush1.bf16.msra.mxu0 0
      %1114 = vmatprep.subr.bf16.mxu0 0
      %1115 = vmatpush1.bf16.msra.mxu0 0
      %1116 = vmatprep.mubr.bf16.mxu0 0
      %1117 = vmatmul.mubr.bf16.gmra.mrb[0].mxu0 %v443
      %v1118 = vpop.f32.mrb[0].mxu0
      %v1119 = vadd.f32 0.0, %v1118
      %v1120 = vpop.f32.mrb[0].mxu0
      %v1121 = vpop.f32.mrb[0].mxu0
      %v1122 = vadd.f32 0.0, %v1121
      %v1123 = vpop.f32.mrb[0].mxu0
      %1124 = vmatprep.mubr.bf16.mxu0 0
      %1125 = vmatmul.mubr.bf16.gmra.mrb[0].mxu0 %v446
      %v1126 = vpop.f32.mrb[0].mxu0
      %v1127 = vadd.f32 0.0, %v1126
      %v1128 = vpop.f32.mrb[0].mxu0
      %v1129 = vpop.f32.mrb[0].mxu0
      %v1130 = vadd.f32 0.0, %v1129
      %v1131 = vpop.f32.mrb[0].mxu0
      %1132 = vmatprep.mubr.bf16.mxu0 0
      %1133 = vmatmul.mubr.bf16.gmra.mrb[0].mxu0 %v449
      %v1134 = vpop.f32.mrb[0].mxu0
      %v1135 = vadd.f32 0.0, %v1134
      %v1136 = vpop.f32.mrb[0].mxu0
      %v1137 = vpop.f32.mrb[0].mxu0
      %v1138 = vadd.f32 0.0, %v1137
      %v1139 = vpop.f32.mrb[0].mxu0
      %1140 = vmatprep.mubr.bf16.mxu0 0
      %1141 = vmatmul.mubr.bf16.gmra.mrb[0].mxu0 %v1082
      %v1142 = vpop.f32.mrb[0].mxu0
      %v1143 = vadd.f32 0.0, %v1142
      %v1144 = vpop.f32.mrb[0].mxu0
      %v1145 = vpop.f32.mrb[0].mxu0
      %v1146 = vadd.f32 0.0, %v1145
      %v1147 = vpop.f32.mrb[0].mxu0
      %1148 = vdwg.mxu0
      %v1149 = vadd.f32 %v1039, %v1119
      %v1150 = vadd.f32 %v1040, %v1122
      %v1151 = vadd.f32 %v1041, %v1127
      %v1152 = vadd.f32 %v1042, %v1130
      %v1153 = vadd.f32 %v1043, %v1135
      %v1154 = vadd.f32 %v1044, %v1138
      %v1155 = vadd.f32 %v1045, %v1143
      %v1156 = vadd.f32 %v1046, %v1146
      %v1159 = vrot.slane %v237, 1
      %v1160 = vrot.slane %v238, 1
      %v1161 = vsel %vm267, %v1159, %v1160
      %v1163 = vpack.c.bf16 %v1161, %v797
      %s1164 = scalar_lea.vmem %s1, 224
      %v1165 = vld [vmem:[%s1164] sm:$0xf]
      %v1166 = vld [vmem:[%s1164 + $0x4] sm:$0xf]
      %v1167 = vld [vmem:[%s1164 + $0x8] sm:$0xf]
      %v1168 = vld [vmem:[%s1164 + $0xc] sm:$0xf]
      %v1169 = vld [vmem:[%s1164 + $0x10] sm:$0xf]
      %v1170 = vld [vmem:[%s1164 + $0x14] sm:$0xf]
      %v1171 = vld [vmem:[%s1164 + $0x18] sm:$0xf]
      %v1172 = vld [vmem:[%s1164 + $0x1c] sm:$0xf]
      %v1181 = vunpack.c.l.b16 %v1165
      %v1182 = vunpack.c.l.b16 %v1166
      %v1183 = vunpack.c.l.b16 %v1167
      %v1184 = vunpack.c.l.b16 %v1168
      %v1185 = vunpack.c.l.b16 %v1169
      %v1186 = vunpack.c.l.b16 %v1170
      %v1187 = vunpack.c.l.b16 %v1171
      %v1188 = vunpack.c.l.b16 %v1172
      %v1189 = vpack.c.b16 %v1182, %v1181
      %v1190 = vpack.c.b16 %v1184, %v1183
      %v1191 = vpack.c.b16 %v1186, %v1185
      %v1192 = vpack.c.b16 %v1188, %v1187
      %v1198 = vsel %vm337, %v1163, 0
      %1200 = vmatprep.subr.bf16.mxu0 0
      %1201 = vmatpush1.bf16.msra.mxu0 %v1189
      %1202 = vmatprep.subr.bf16.mxu0 0
      %1203 = vmatpush1.bf16.msra.mxu0 %v1190
      %1204 = vmatprep.subr.bf16.mxu0 0
      %1205 = vmatpush1.bf16.msra.mxu0 %v1191
      %1206 = vmatprep.subr.bf16.mxu0 0
      %1207 = vmatpush1.bf16.msra.mxu0 %v1192
      %1208 = vmatprep.subr.bf16.mxu0 0
      %1209 = vmatpush1.bf16.msra.mxu0 0
      %1210 = vmatprep.subr.bf16.mxu0 0
      %1211 = vmatpush1.bf16.msra.mxu0 0
      %1212 = vmatprep.subr.bf16.mxu0 0
      %1213 = vmatpush1.bf16.msra.mxu0 0
      %1214 = vmatprep.subr.bf16.mxu0 0
      %1215 = vmatpush1.bf16.msra.mxu0 0
      %1216 = vmatprep.subr.bf16.mxu0 0
      %1217 = vmatpush1.bf16.msra.mxu0 0
      %1218 = vmatprep.subr.bf16.mxu0 0
      %1219 = vmatpush1.bf16.msra.mxu0 0
      %1220 = vmatprep.subr.bf16.mxu0 0
      %1221 = vmatpush1.bf16.msra.mxu0 0
      %1222 = vmatprep.subr.bf16.mxu0 0
      %1223 = vmatpush1.bf16.msra.mxu0 0
      %1224 = vmatprep.subr.bf16.mxu0 0
      %1225 = vmatpush1.bf16.msra.mxu0 0
      %1226 = vmatprep.subr.bf16.mxu0 0
      %1227 = vmatpush1.bf16.msra.mxu0 0
      %1228 = vmatprep.subr.bf16.mxu0 0
      %1229 = vmatpush1.bf16.msra.mxu0 0
      %1230 = vmatprep.subr.bf16.mxu0 0
      %1231 = vmatpush1.bf16.msra.mxu0 0
      %1232 = vmatprep.mubr.bf16.mxu0 0
      %1233 = vmatmul.mubr.bf16.gmra.mrb[0].mxu0 %v342
      %v1234 = vpop.f32.mrb[0].mxu0
      %v1235 = vadd.f32 0.0, %v1234
      %v1236 = vpop.f32.mrb[0].mxu0
      %v1237 = vpop.f32.mrb[0].mxu0
      %v1238 = vadd.f32 0.0, %v1237
      %v1239 = vpop.f32.mrb[0].mxu0
      %1240 = vmatprep.mubr.bf16.mxu0 0
      %1241 = vmatmul.mubr.bf16.gmra.mrb[0].mxu0 %v345
      %v1242 = vpop.f32.mrb[0].mxu0
      %v1243 = vadd.f32 0.0, %v1242
      %v1244 = vpop.f32.mrb[0].mxu0
      %v1245 = vpop.f32.mrb[0].mxu0
      %v1246 = vadd.f32 0.0, %v1245
      %v1247 = vpop.f32.mrb[0].mxu0
      %1248 = vmatprep.mubr.bf16.mxu0 0
      %1249 = vmatmul.mubr.bf16.gmra.mrb[0].mxu0 %v348
      %v1250 = vpop.f32.mrb[0].mxu0
      %v1251 = vadd.f32 0.0, %v1250
      %v1252 = vpop.f32.mrb[0].mxu0
      %v1253 = vpop.f32.mrb[0].mxu0
      %v1254 = vadd.f32 0.0, %v1253
      %v1255 = vpop.f32.mrb[0].mxu0
      %1256 = vmatprep.mubr.bf16.mxu0 0
      %1257 = vmatmul.mubr.bf16.gmra.mrb[0].mxu0 %v1198
      %v1258 = vpop.f32.mrb[0].mxu0
      %v1259 = vadd.f32 0.0, %v1258
      %v1260 = vpop.f32.mrb[0].mxu0
      %v1261 = vpop.f32.mrb[0].mxu0
      %v1262 = vadd.f32 0.0, %v1261
      %v1263 = vpop.f32.mrb[0].mxu0
      %1264 = vdwg.mxu0
      %v1265 = vadd.f32 %v1149, %v1235
      %v1266 = vadd.f32 %v1150, %v1238
      %v1267 = vadd.f32 %v1151, %v1243
      %v1268 = vadd.f32 %v1152, %v1246
      %v1269 = vadd.f32 %v1153, %v1251
      %v1270 = vadd.f32 %v1154, %v1254
      %v1271 = vadd.f32 %v1155, %v1259
      %v1272 = vadd.f32 %v1156, %v1262
      %v1273 = vrot.slane %v237, 2
      %v1274 = vrot.slane %v238, 2
      %v1275 = vsel %vm516, %v1273, %v1274
      %v1277 = vpack.c.bf16 %v1275, %v923
      %s1278 = scalar_lea.vmem %s1, 256
      %v1279 = vld [vmem:[%s1278] sm:$0xf]
      %v1280 = vld [vmem:[%s1278 + $0x4] sm:$0xf]
      %v1281 = vld [vmem:[%s1278 + $0x8] sm:$0xf]
      %v1282 = vld [vmem:[%s1278 + $0xc] sm:$0xf]
      %v1283 = vld [vmem:[%s1278 + $0x10] sm:$0xf]
      %v1284 = vld [vmem:[%s1278 + $0x14] sm:$0xf]
      %v1285 = vld [vmem:[%s1278 + $0x18] sm:$0xf]
      %v1286 = vld [vmem:[%s1278 + $0x1c] sm:$0xf]
      %v1295 = vunpack.c.l.b16 %v1279
      %v1296 = vunpack.c.l.b16 %v1280
      %v1297 = vunpack.c.l.b16 %v1281
      %v1298 = vunpack.c.l.b16 %v1282
      %v1299 = vunpack.c.l.b16 %v1283
      %v1300 = vunpack.c.l.b16 %v1284
      %v1301 = vunpack.c.l.b16 %v1285
      %v1302 = vunpack.c.l.b16 %v1286
      %v1303 = vpack.c.b16 %v1296, %v1295
      %v1304 = vpack.c.b16 %v1298, %v1297
      %v1305 = vpack.c.b16 %v1300, %v1299
      %v1306 = vpack.c.b16 %v1302, %v1301
      %v1312 = vsel %vm337, %v1277, 0
      %1314 = vmatprep.subr.bf16.mxu0 0
      %1315 = vmatpush1.bf16.msra.mxu0 %v1303
      %1316 = vmatprep.subr.bf16.mxu0 0
      %1317 = vmatpush1.bf16.msra.mxu0 %v1304
      %1318 = vmatprep.subr.bf16.mxu0 0
      %1319 = vmatpush1.bf16.msra.mxu0 %v1305
      %1320 = vmatprep.subr.bf16.mxu0 0
      %1321 = vmatpush1.bf16.msra.mxu0 %v1306
      %1322 = vmatprep.subr.bf16.mxu0 0
      %1323 = vmatpush1.bf16.msra.mxu0 0
      %1324 = vmatprep.subr.bf16.mxu0 0
      %1325 = vmatpush1.bf16.msra.mxu0 0
      %1326 = vmatprep.subr.bf16.mxu0 0
      %1327 = vmatpush1.bf16.msra.mxu0 0
      %1328 = vmatprep.subr.bf16.mxu0 0
      %1329 = vmatpush1.bf16.msra.mxu0 0
      %1330 = vmatprep.subr.bf16.mxu0 0
      %1331 = vmatpush1.bf16.msra.mxu0 0
      %1332 = vmatprep.subr.bf16.mxu0 0
      %1333 = vmatpush1.bf16.msra.mxu0 0
      %1334 = vmatprep.subr.bf16.mxu0 0
      %1335 = vmatpush1.bf16.msra.mxu0 0
      %1336 = vmatprep.subr.bf16.mxu0 0
      %1337 = vmatpush1.bf16.msra.mxu0 0
      %1338 = vmatprep.subr.bf16.mxu0 0
      %1339 = vmatpush1.bf16.msra.mxu0 0
      %1340 = vmatprep.subr.bf16.mxu0 0
      %1341 = vmatpush1.bf16.msra.mxu0 0
      %1342 = vmatprep.subr.bf16.mxu0 0
      %1343 = vmatpush1.bf16.msra.mxu0 0
      %1344 = vmatprep.subr.bf16.mxu0 0
      %1345 = vmatpush1.bf16.msra.mxu0 0
      %1346 = vmatprep.mubr.bf16.mxu0 0
      %1347 = vmatmul.mubr.bf16.gmra.mrb[0].mxu0 %v590
      %v1348 = vpop.f32.mrb[0].mxu0
      %v1349 = vadd.f32 0.0, %v1348
      %v1350 = vpop.f32.mrb[0].mxu0
      %v1351 = vpop.f32.mrb[0].mxu0
      %v1352 = vadd.f32 0.0, %v1351
      %v1353 = vpop.f32.mrb[0].mxu0
      %1354 = vmatprep.mubr.bf16.mxu0 0
      %1355 = vmatmul.mubr.bf16.gmra.mrb[0].mxu0 %v593
      %v1356 = vpop.f32.mrb[0].mxu0
      %v1357 = vadd.f32 0.0, %v1356
      %v1358 = vpop.f32.mrb[0].mxu0
      %v1359 = vpop.f32.mrb[0].mxu0
      %v1360 = vadd.f32 0.0, %v1359
      %v1361 = vpop.f32.mrb[0].mxu0
      %1362 = vmatprep.mubr.bf16.mxu0 0
      %1363 = vmatmul.mubr.bf16.gmra.mrb[0].mxu0 %v596
      %v1364 = vpop.f32.mrb[0].mxu0
      %v1365 = vadd.f32 0.0, %v1364
      %v1366 = vpop.f32.mrb[0].mxu0
      %v1367 = vpop.f32.mrb[0].mxu0
      %v1368 = vadd.f32 0.0, %v1367
      %v1369 = vpop.f32.mrb[0].mxu0
      %1370 = vmatprep.mubr.bf16.mxu0 0
      %1371 = vmatmul.mubr.bf16.gmra.mrb[0].mxu0 %v1312
      %v1372 = vpop.f32.mrb[0].mxu0
      %v1373 = vadd.f32 0.0, %v1372
      %v1374 = vpop.f32.mrb[0].mxu0
      %v1375 = vpop.f32.mrb[0].mxu0
      %v1376 = vadd.f32 0.0, %v1375
      %v1377 = vpop.f32.mrb[0].mxu0
      %1378 = vdwg.mxu0
      %v1379 = vadd.f32 %v1265, %v1349
      %v1380 = vadd.f32 %v1266, %v1352
      %v1381 = vadd.f32 %v1267, %v1357
      %v1382 = vadd.f32 %v1268, %v1360
      %v1383 = vadd.f32 %v1269, %v1365
      %v1384 = vadd.f32 %v1270, %v1368
      %v1385 = vadd.f32 %v1271, %v1373
      %v1386 = vadd.f32 %v1272, %v1376
      %v1387 = vld [vmem:[%s2] sm:$0x1]
      %v1389 = vlaneseq
      %v1390 = vshrl.u32 %v1389, 7
      %v1391 = vsub.s32 0, %v1390
      %v1392 = vrot.slane %v1387, %v1391
      %v1394 = vadd.f32 %v1379, %v1392
      %v1395 = vadd.f32 %v1380, %v1392
      %v1396 = vadd.f32 %v1381, %v1392
      %v1397 = vadd.f32 %v1382, %v1392
      %v1398 = vadd.f32 %v1383, %v1392
      %v1399 = vadd.f32 %v1384, %v1392
      %v1400 = vadd.f32 %v1385, %v1392
      %v1401 = vadd.f32 %v1386, %v1392
      %vm1402 = vcmp.gt.f32.partialorder %v1394, 0.0
      %vm1403 = vcmp.gt.f32.partialorder %v1395, 0.0
      %vm1404 = vcmp.gt.f32.partialorder %v1396, 0.0
      %vm1405 = vcmp.gt.f32.partialorder %v1397, 0.0
      %vm1406 = vcmp.gt.f32.partialorder %v1398, 0.0
      %vm1407 = vcmp.gt.f32.partialorder %v1399, 0.0
      %vm1408 = vcmp.gt.f32.partialorder %v1400, 0.0
      %vm1409 = vcmp.gt.f32.partialorder %v1401, 0.0
      %v1410 = vld [vmem:[%s3] sm:$0x1]
      %v1412 = vlaneseq
      %v1413 = vshrl.u32 %v1412, 7
      %v1414 = vsub.s32 0, %v1413
      %v1415 = vrot.slane %v1410, %v1414
      %v1417 = vmul.f32 %v1394, %v1415
      %v1418 = vmul.f32 %v1395, %v1415
      %v1419 = vmul.f32 %v1396, %v1415
      %v1420 = vmul.f32 %v1397, %v1415
      %v1421 = vmul.f32 %v1398, %v1415
      %v1422 = vmul.f32 %v1399, %v1415
      %v1423 = vmul.f32 %v1400, %v1415
      %v1424 = vmul.f32 %v1401, %v1415
      %v1425 = vsel %vm1402, %v1394, %v1417
      %v1426 = vsel %vm1403, %v1395, %v1418
      %v1427 = vsel %vm1404, %v1396, %v1419
      %v1428 = vsel %vm1405, %v1397, %v1420
      %v1429 = vsel %vm1406, %v1398, %v1421
      %v1430 = vsel %vm1407, %v1399, %v1422
      %v1431 = vsel %vm1408, %v1400, %v1423
      %v1432 = vsel %vm1409, %v1401, %v1424
      %v1433 = vpack.c.bf16 %v1426, %v1425
      %v1434 = vpack.c.bf16 %v1428, %v1427
      %v1435 = vpack.c.bf16 %v1430, %v1429
      %v1436 = vpack.c.bf16 %v1432, %v1431
      %v1441 = vunpack.c.l.b16 %v1433
      %v1442 = vunpack.c.h.b16 %v1433
      %v1443 = vunpack.c.l.b16 %v1434
      %v1444 = vunpack.c.h.b16 %v1434
      %v1445 = vunpack.c.l.b16 %v1435
      %v1446 = vunpack.c.h.b16 %v1435
      %v1447 = vunpack.c.l.b16 %v1436
      %v1448 = vunpack.c.h.b16 %v1436
      %v1449 = vpack.c.b16 %v1441, %v1441
      %v1450 = vpack.c.b16 %v1442, %v1442
      %v1451 = vpack.c.b16 %v1443, %v1443
      %v1452 = vpack.c.b16 %v1444, %v1444
      %v1453 = vpack.c.b16 %v1445, %v1445
      %v1454 = vpack.c.b16 %v1446, %v1446
      %v1455 = vpack.c.b16 %v1447, %v1447
      %v1456 = vpack.c.b16 %v1448, %v1448
      %vm1465 = vcmask 519168
      %1466 = vst.msk [vmem:[%s197] sm:$0xf] %vm1465, %v1449
      %1467 = vst.msk [vmem:[%s197 + $0x4] sm:$0xf] %vm1465, %v1450
      %1468 = vst.msk [vmem:[%s197 + $0x8] sm:$0xf] %vm1465, %v1451
      %1469 = vst.msk [vmem:[%s197 + $0xc] sm:$0xf] %vm1465, %v1452
      %1470 = vst.msk [vmem:[%s197 + $0x10] sm:$0xf] %vm1465, %v1453
      %1471 = vst.msk [vmem:[%s197 + $0x14] sm:$0xf] %vm1465, %v1454
      %1472 = vst.msk [vmem:[%s197 + $0x18] sm:$0xf] %vm1465, %v1455
      %1473 = vst.msk [vmem:[%s197 + $0x1c] sm:$0xf] %vm1465, %v1456
      %p1474 = scmp.lt.s32.totalorder %s15, 1
      %s1475 = scalar_select %p1474, %s15, 1
      %s1476 = smul.addr %s1475, 8
      %s1477 = smul.addr %s1476, 4
      %s1478 = scalar_lea.vmem %s4, %s1477
      // Predicated region
      $region37: #{forward.8} parent=35 // pred_check
        %p1479 = pneg %p122
      $region38: #{forward.8} parent=35 // pred_check_branch
        %1481 = sbr.rel (%p1479) target = $region40
      $region39: #{forward.8} parent=35 // pred_region
        _
      $region40: #{forward.8} parent=35 // pred_fallthru
        _
    $region36: #{forward.8} parent=5 // pred_fallthru
      _
    %p1482 = scmp.le.s32.totalorder 2, %s10
    // Predicated region
    $region41: #{forward.8} parent=5 // pred_check
      %p1483 = pneg %p1482
    $region42: #{forward.8} parent=5 // pred_check_branch
      %1485 = sbr.rel (%p1483) target = $region44
    $region43: #{forward.8} parent=5 // pred_region
      %s1486 = ssub.s32 %s10, 2
      // Predicated region
      $region45: #{forward.8} parent=43 // pred_check
        %p1487 = pneg %p128
      $region46: #{forward.8} parent=43 // pred_check_branch
        %1489 = sbr.rel (%p1487) target = $region48
      $region47: #{forward.8} parent=43 // pred_region
        %p1490 = scmp.lt.s32.totalorder %s16, 1
        %s1491 = scalar_select %p1490, %s16, 1
        %s1492 = smul.addr %s1491, 8
        %s1493 = smul.addr %s1492, 4
        %s1494 = scalar_lea.vmem %s4, %s1493
      $region48: #{forward.8} parent=43 // pred_fallthru
        _
    $region44: #{forward.8} parent=5 // pred_fallthru
      _
  $region6: #{forward.8} parent=0 // loop_footer
    %s14 = sadd.s32 1, %s10
  $region7: #{forward.8} parent=0 // loop_footer_branch
    %9 = sbr.rel target = $region3
  $region8: #{forward.8} parent=0 // loop_exit
    _

// kernel: forward.9
$region0: #{forward.9}
  #allocation0 [shape = 'u32[]', space=smem, size = 0x4, offset = 0x4, fixed_abs, tag = 'smem constant byte address 0x4 - core index']
  #allocation1 [shape = 'u32[144,128]{1,0:T(1,128)}', space=vmem, size = 0x12000, scoped, tag = 'internal scratch']
  %s0 = inlined_call_operand.vmem [shape: bf16[2,10,10,64], index: 0, kind: input, shape index: {}]
  %s1 = inlined_call_operand.vmem [shape: bf16[9,64,64], index: 1, kind: input, shape index: {}]
  %s2 = inlined_call_operand.vmem [shape: f32[1,64], index: 2, kind: input, shape index: {}]
  %s3 = inlined_call_operand.vmem [shape: f32[64,4], index: 3, kind: input, shape index: {}]
  %s4 = inlined_call_operand.vmem [shape: f32[4,64], index: 4, kind: input, shape index: {}]
  %s5 = inlined_call_operand.vmem [shape: bf16[2,64,64], index: 5, kind: input, shape index: {}]
  %s6 = inlined_call_operand.vmem [shape: bf16[2,64,64], index: 6, kind: output, shape index: {}]
  %s7 = sld [smem:[#allocation0]]
  $region57: #{forward.9} parent=0
    _
  %s9 = ssub.s32 1, %s7
  %s10 = scalar_select 0, %s9, %s7
  loop: start=0, step=1, limit=4
  $region2: #{forward.9} parent=0 // loop_pre_header
    _
  $region3: #{forward.9} parent=0 // loop_header
    %s12 = sphi 0, %s16
    %p13 = scmp.ge.s32.totalorder %s12, 4
    %s22 = sphi 0, %s24
    %s25 = sphi 0, %s22
    %s26 = sphi 0, %s25
    %s42 = sphi 0, %s26
    %s46 = sphi 0, %s46
    %s48 = sphi 0, %s46
    %s49 = sphi 0, %s48
    %s63 = sphi 0, %s49
    %s67 = sphi 0, %s67
    %s69 = sphi 0, %s67
    %s70 = sphi 0, %s69
    %s84 = sphi 0, %s70
    %s88 = sphi 0, %s88
    %s90 = sphi 0, %s88
    %s91 = sphi 0, %s90
    %s105 = sphi 0, %s91
    %s109 = sphi 0, %s109
    %s111 = sphi 0, %s109
    %s112 = sphi 0, %s111
    %s126 = sphi 0, %s112
    %s132 = sphi 0, %s134
    %s135 = sphi 0, %s132
    %s136 = sphi 0, %s135
    %s152 = sphi 0, %s136
    %s158 = sphi 0, %s160
    %s161 = sphi 0, %s158
    %s162 = sphi 0, %s161
    %s178 = sphi 0, %s162
  $region4: #{forward.9} parent=0 // loop_header_branch
    %15 = sbr.rel (%p13) target = $region8
  $region5: #{forward.9} parent=0 // loop_body
    %s17 = ssub.s32 %s12, 1
    %s18 = ssub.s32 %s12, 2
    %s19 = sadd.s32 %s12, 1
    %s20 = ssub.s32 %s12, %s19
    %p21 = scmp.eq.s32.totalorder %s20, 0
    %s23 = sadd.s32 %s22, 1
    %s24 = scalar_select %p21, %s22, %s23
    %p27 = pneg %p21
    %p28 = scmp.eq.s32.totalorder %s12, 1
    %p29 = por %p27, %p28
    %p30 = scmp.ne.s32.totalorder %s22, %s25
    %p31 = scmp.eq.s32.totalorder %s12, 0
    %p32 = por %p30, %p31
    %p33 = scmp.ne.s32.totalorder %s22, %s25
    %p34 = scmp.eq.s32.totalorder %s17, 1
    %p35 = por %p33, %p34
    %p36 = scmp.ne.s32.totalorder %s25, %s26
    %p37 = scmp.eq.s32.totalorder %s17, 0
    %p38 = por %p36, %p37
    %p39 = scmp.ne.s32.totalorder %s25, %s26
    %p40 = scmp.eq.s32.totalorder %s18, 1
    %p41 = por %p39, %p40
    %p43 = scmp.ne.s32.totalorder %s26, %s42
    %p44 = scmp.eq.s32.totalorder %s18, 0
    %p45 = por %p43, %p44
    %s47 = sadd.s32 %s46, 1
    %p50 = scmp.eq.s32.totalorder %s12, 1
    %p51 = scmp.ne.s32.totalorder %s46, %s48
    %p52 = scmp.eq.s32.totalorder %s12, 0
    %p53 = por %p51, %p52
    %p54 = scmp.ne.s32.totalorder %s46, %s48
    %p55 = scmp.eq.s32.totalorder %s17, 1
    %p56 = por %p54, %p55
    %p57 = scmp.ne.s32.totalorder %s48, %s49
    %p58 = scmp.eq.s32.totalorder %s17, 0
    %p59 = por %p57, %p58
    %p60 = scmp.ne.s32.totalorder %s48, %s49
    %p61 = scmp.eq.s32.totalorder %s18, 1
    %p62 = por %p60, %p61
    %p64 = scmp.ne.s32.totalorder %s49, %s63
    %p65 = scmp.eq.s32.totalorder %s18, 0
    %p66 = por %p64, %p65
    %s68 = sadd.s32 %s67, 1
    %p71 = scmp.eq.s32.totalorder %s12, 1
    %p72 = scmp.ne.s32.totalorder %s67, %s69
    %p73 = scmp.eq.s32.totalorder %s12, 0
    %p74 = por %p72, %p73
    %p75 = scmp.ne.s32.totalorder %s67, %s69
    %p76 = scmp.eq.s32.totalorder %s17, 1
    %p77 = por %p75, %p76
    %p78 = scmp.ne.s32.totalorder %s69, %s70
    %p79 = scmp.eq.s32.totalorder %s17, 0
    %p80 = por %p78, %p79
    %p81 = scmp.ne.s32.totalorder %s69, %s70
    %p82 = scmp.eq.s32.totalorder %s18, 1
    %p83 = por %p81, %p82
    %p85 = scmp.ne.s32.totalorder %s70, %s84
    %p86 = scmp.eq.s32.totalorder %s18, 0
    %p87 = por %p85, %p86
    %s89 = sadd.s32 %s88, 1
    %p92 = scmp.eq.s32.totalorder %s12, 1
    %p93 = scmp.ne.s32.totalorder %s88, %s90
    %p94 = scmp.eq.s32.totalorder %s12, 0
    %p95 = por %p93, %p94
    %p96 = scmp.ne.s32.totalorder %s88, %s90
    %p97 = scmp.eq.s32.totalorder %s17, 1
    %p98 = por %p96, %p97
    %p99 = scmp.ne.s32.totalorder %s90, %s91
    %p100 = scmp.eq.s32.totalorder %s17, 0
    %p101 = por %p99, %p100
    %p102 = scmp.ne.s32.totalorder %s90, %s91
    %p103 = scmp.eq.s32.totalorder %s18, 1
    %p104 = por %p102, %p103
    %p106 = scmp.ne.s32.totalorder %s91, %s105
    %p107 = scmp.eq.s32.totalorder %s18, 0
    %p108 = por %p106, %p107
    %s110 = sadd.s32 %s109, 1
    %p113 = scmp.eq.s32.totalorder %s12, 1
    %p114 = scmp.ne.s32.totalorder %s109, %s111
    %p115 = scmp.eq.s32.totalorder %s12, 0
    %p116 = por %p114, %p115
    %p117 = scmp.ne.s32.totalorder %s109, %s111
    %p118 = scmp.eq.s32.totalorder %s17, 1
    %p119 = por %p117, %p118
    %p120 = scmp.ne.s32.totalorder %s111, %s112
    %p121 = scmp.eq.s32.totalorder %s17, 0
    %p122 = por %p120, %p121
    %p123 = scmp.ne.s32.totalorder %s111, %s112
    %p124 = scmp.eq.s32.totalorder %s18, 1
    %p125 = por %p123, %p124
    %p127 = scmp.ne.s32.totalorder %s112, %s126
    %p128 = scmp.eq.s32.totalorder %s18, 0
    %p129 = por %p127, %p128
    %s130 = ssub.s32 %s12, %s19
    %p131 = scmp.eq.s32.totalorder %s130, 0
    %s133 = sadd.s32 %s132, 1
    %s134 = scalar_select %p131, %s132, %s133
    %p137 = pneg %p131
    %p138 = scmp.eq.s32.totalorder %s12, 1
    %p139 = por %p137, %p138
    %p140 = scmp.ne.s32.totalorder %s132, %s135
    %p141 = scmp.eq.s32.totalorder %s12, 0
    %p142 = por %p140, %p141
    %p143 = scmp.ne.s32.totalorder %s132, %s135
    %p144 = scmp.eq.s32.totalorder %s17, 1
    %p145 = por %p143, %p144
    %p146 = scmp.ne.s32.totalorder %s135, %s136
    %p147 = scmp.eq.s32.totalorder %s17, 0
    %p148 = por %p146, %p147
    %p149 = scmp.ne.s32.totalorder %s135, %s136
    %p150 = scmp.eq.s32.totalorder %s18, 1
    %p151 = por %p149, %p150
    %p153 = scmp.ne.s32.totalorder %s136, %s152
    %p154 = scmp.eq.s32.totalorder %s18, 0
    %p155 = por %p153, %p154
    %s156 = ssub.s32 %s12, %s19
    %p157 = scmp.eq.s32.totalorder %s156, 0
    %s159 = sadd.s32 %s158, 1
    %s160 = scalar_select %p157, %s158, %s159
    %p163 = pneg %p157
    %p164 = scmp.eq.s32.totalorder %s12, 1
    %p165 = por %p163, %p164
    %p166 = scmp.ne.s32.totalorder %s158, %s161
    %p167 = scmp.eq.s32.totalorder %s12, 0
    %p168 = por %p166, %p167
    %p169 = scmp.ne.s32.totalorder %s158, %s161
    %p170 = scmp.eq.s32.totalorder %s17, 1
    %p171 = por %p169, %p170
    %p172 = scmp.ne.s32.totalorder %s161, %s162
    %p173 = scmp.eq.s32.totalorder %s17, 0
    %p174 = por %p172, %p173
    %p175 = scmp.ne.s32.totalorder %s161, %s162
    %p176 = scmp.eq.s32.totalorder %s18, 1
    %p177 = por %p175, %p176
    %p179 = scmp.ne.s32.totalorder %s162, %s178
    %p180 = scmp.eq.s32.totalorder %s18, 0
    %p181 = por %p179, %p180
    %p182 = scmp.le.s32.totalorder 1, %s12
    %p183 = scmp.lt.s32.totalorder %s12, 3
    %p184 = pnand %p182, %p183
    %p185 = pneg %p184
    // Predicated region
    $region9: #{forward.9} parent=5 // pred_check
      _
    $region10: #{forward.9} parent=5 // pred_check_branch
      %187 = sbr.rel (%p184) target = $region12
    $region11: #{forward.9} parent=5 // pred_region
      %s188 = ssub.s32 %s12, 1
      // Predicated region
      $region13: #{forward.9} parent=11 // pred_check
        %p189 = pneg %p59
      $region14: #{forward.9} parent=11 // pred_check_branch
        %191 = sbr.rel (%p189) target = $region16
      $region15: #{forward.9} parent=11 // pred_region
        _
      $region16: #{forward.9} parent=11 // pred_fallthru
        _
      // Predicated region
      $region17: #{forward.9} parent=11 // pred_check
        %p192 = pneg %p80
      $region18: #{forward.9} parent=11 // pred_check_branch
        %194 = sbr.rel (%p192) target = $region20
      $region19: #{forward.9} parent=11 // pred_region
        _
      $region20: #{forward.9} parent=11 // pred_fallthru
        _
      // Predicated region
      $region21: #{forward.9} parent=11 // pred_check
        %p195 = pneg %p101
      $region22: #{forward.9} parent=11 // pred_check_branch
        %197 = sbr.rel (%p195) target = $region24
      $region23: #{forward.9} parent=11 // pred_region
        _
      $region24: #{forward.9} parent=11 // pred_fallthru
        _
      // Predicated region
      $region25: #{forward.9} parent=11 // pred_check
        %p198 = pneg %p122
      $region26: #{forward.9} parent=11 // pred_check_branch
        %200 = sbr.rel (%p198) target = $region28
      $region27: #{forward.9} parent=11 // pred_region
        _
      $region28: #{forward.9} parent=11 // pred_fallthru
        _
    $region12: #{forward.9} parent=5 // pred_fallthru
      _
    %p201 = scmp.lt.s32.totalorder %s12, 2
    // Predicated region
    $region29: #{forward.9} parent=5 // pred_check
      %p202 = pneg %p201
    $region30: #{forward.9} parent=5 // pred_check_branch
      %204 = sbr.rel (%p202) target = $region32
    $region31: #{forward.9} parent=5 // pred_region
      // Predicated region
      $region33: #{forward.9} parent=31 // pred_check
        %p205 = pneg %p32
      $region34: #{forward.9} parent=31 // pred_check_branch
        %207 = sbr.rel (%p205) target = $region36
      $region35: #{forward.9} parent=31 // pred_region
        %p208 = scmp.lt.s32.totalorder %s12, 1
        %s209 = scalar_select %p208, %s12, 1
        %s210 = smul.addr %s209, 20
        %s211 = smul.addr %s210, 4
        %s212 = scalar_lea.vmem %s0, %s211
      $region36: #{forward.9} parent=31 // pred_fallthru
        _
      // Predicated region
      $region37: #{forward.9} parent=31 // pred_check
        %p213 = pneg %p142
      $region38: #{forward.9} parent=31 // pred_check_branch
        %215 = sbr.rel (%p213) target = $region40
      $region39: #{forward.9} parent=31 // pred_region
        %p216 = scmp.lt.s32.totalorder %s12, 1
        %s217 = scalar_select %p216, %s12, 1
        %s218 = smul.addr %s217, 8
        %s219 = smul.addr %s218, 4
        %s220 = scalar_lea.vmem %s5, %s219
      $region40: #{forward.9} parent=31 // pred_fallthru
        _
    $region32: #{forward.9} parent=5 // pred_fallthru
      _
    %p221 = scmp.le.s32.totalorder 1, %s12
    %p222 = scmp.lt.s32.totalorder %s12, 3
    %p223 = pnand %p221, %p222
    %p224 = pneg %p223
    // Predicated region
    $region41: #{forward.9} parent=5 // pred_check
      _
    $region42: #{forward.9} parent=5 // pred_check_branch
      %226 = sbr.rel (%p223) target = $region44
    $region43: #{forward.9} parent=5 // pred_region
      %s227 = ssub.s32 %s12, 1
      %p228 = scmp.lt.s32.totalorder %s17, 1
      %s229 = scalar_select %p228, %s17, 1
      %s230 = smul.addr %s229, 20
      %s231 = smul.addr %s230, 4
      %s232 = scalar_lea.vmem %s0, %s231
      %p233 = pneg %p38
      %p234 = pneg %p35
      %p235 = pneg %p59
      %p236 = pneg %p56
      %p237 = pneg %p80
      %p238 = pneg %p77
      %p239 = pneg %p101
      %p240 = pneg %p98
      %p241 = pneg %p122
      %p242 = pneg %p119
      %p243 = scmp.lt.s32.totalorder %s17, 1
      %s244 = scalar_select %p243, %s17, 1
      %s245 = smul.addr %s244, 8
      %s246 = smul.addr %s245, 4
      %s247 = scalar_lea.vmem %s5, %s246
      %p248 = pneg %p148
      %p249 = pneg %p145
      %p250 = pneg %p174
      %p251 = pneg %p171
      %p252 = scmp.lt.s32.totalorder %s17, 1
      %s253 = scalar_select %p252, %s17, 1
      %s254 = smul.addr %s253, 8
      %s255 = smul.addr %s254, 4
      %s256 = scalar_lea.vmem %s6, %s255
      %p257 = scmp.lt.s32.totalorder %s17, 1
      %s258 = scalar_select %p257, %s17, 1
      %s259 = smul.addr %s258, 20
      %s260 = smul.addr %s259, 4
      %s261 = scalar_lea.vmem %s0, %s260
      %p262 = scmp.lt.s32.totalorder %s17, 1
      %s263 = scalar_select %p262, %s17, 1
      %s264 = smul.addr %s263, 8
      %s265 = smul.addr %s264, 4
      %s266 = scalar_lea.vmem %s5, %s265
      %p267 = scmp.lt.s32.totalorder %s17, 1
      %s268 = scalar_select %p267, %s17, 1
      %s269 = smul.addr %s268, 8
      %s270 = smul.addr %s269, 4
      %s271 = scalar_lea.vmem %s6, %s270
      %v273 = vld [vmem:[%s261] sm:$0xf]
      %v274 = vld [vmem:[%s261 + $0x4] sm:$0x1]
      %v275 = vld [vmem:[%s261 + $0x8] sm:$0xf]
      %v276 = vld [vmem:[%s261 + $0xc] sm:$0x1]
      %v277 = vld [vmem:[%s261 + $0x10] sm:$0xf]
      %v278 = vld [vmem:[%s261 + $0x14] sm:$0x1]
      %v279 = vld [vmem:[%s261 + $0x18] sm:$0xf]
      %v280 = vld [vmem:[%s261 + $0x1c] sm:$0x1]
      %v281 = vld [vmem:[%s261 + $0x20] sm:$0xf]
      %v282 = vld [vmem:[%s261 + $0x24] sm:$0x1]
      %v283 = vld [vmem:[%s261 + $0x28] sm:$0xf]
      %v284 = vld [vmem:[%s261 + $0x2c] sm:$0x1]
      %v285 = vld [vmem:[%s261 + $0x30] sm:$0xf]
      %v286 = vld [vmem:[%s261 + $0x34] sm:$0x1]
      %v287 = vld [vmem:[%s261 + $0x38] sm:$0xf]
      %v288 = vld [vmem:[%s261 + $0x3c] sm:$0x1]
      %v289 = vld [vmem:[%s261 + $0x40] sm:$0xf]
      %v290 = vld [vmem:[%s261 + $0x44] sm:$0x1]
      %v291 = vld [vmem:[%s261 + $0x48] sm:$0xf]
      %v292 = vld [vmem:[%s261 + $0x4c] sm:$0x1]
      %v293 = vunpack.c.l.bf16 %v273
      %v294 = vunpack.c.l.bf16 %v274
      %v295 = vunpack.c.l.bf16 %v275
      %v296 = vunpack.c.l.bf16 %v276
      %v297 = vunpack.c.l.bf16 %v277
      %v298 = vunpack.c.l.bf16 %v278
      %v299 = vunpack.c.l.bf16 %v279
      %v300 = vunpack.c.l.bf16 %v280
      %v301 = vunpack.c.l.bf16 %v281
      %v302 = vunpack.c.l.bf16 %v282
      %v303 = vunpack.c.l.bf16 %v283
      %v304 = vunpack.c.l.bf16 %v284
      %v305 = vunpack.c.l.bf16 %v285
      %v306 = vunpack.c.l.bf16 %v286
      %v307 = vunpack.c.l.bf16 %v287
      %v308 = vunpack.c.l.bf16 %v288
      %v309 = vunpack.c.l.bf16 %v289
      %v310 = vunpack.c.l.bf16 %v290
      %v311 = vunpack.c.l.bf16 %v291
      %v312 = vunpack.c.l.bf16 %v292
      %v313 = vpack.c.bf16 %v295, %v293
      %v314 = vpack.c.bf16 %v299, %v297
      %v315 = vpack.c.bf16 %v303, %v301
      %v316 = vpack.c.bf16 %v307, %v305
      %v317 = vld [vmem:[%s1] sm:$0xf]
      %v318 = vld [vmem:[%s1 + $0x4] sm:$0xf]
      %v319 = vld [vmem:[%s1 + $0x8] sm:$0xf]
      %v320 = vld [vmem:[%s1 + $0xc] sm:$0xf]
      %v321 = vld [vmem:[%s1 + $0x10] sm:$0xf]
      %v322 = vld [vmem:[%s1 + $0x14] sm:$0xf]
      %v323 = vld [vmem:[%s1 + $0x18] sm:$0xf]
      %v324 = vld [vmem:[%s1 + $0x1c] sm:$0xf]
      %vm341 = vcmask 1046528
      %v342 = vrot.slane %v293, 1
      %v343 = vrot.slane %v294, 1
      %v344 = vsel %vm341, %v342, %v343
      %v345 = vrot.slane %v295, 1
      %v346 = vrot.slane %v296, 1
      %v347 = vsel %vm341, %v345, %v346
      %v348 = vrot.slane %v297, 1
      %v349 = vrot.slane %v298, 1
      %v350 = vsel %vm341, %v348, %v349
      %v351 = vrot.slane %v299, 1
      %v352 = vrot.slane %v300, 1
      %v353 = vsel %vm341, %v351, %v352
      %v354 = vrot.slane %v301, 1
      %v355 = vrot.slane %v302, 1
      %v356 = vsel %vm341, %v354, %v355
      %v357 = vrot.slane %v303, 1
      %v358 = vrot.slane %v304, 1
      %v359 = vsel %vm341, %v357, %v358
      %v360 = vrot.slane %v305, 1
      %v361 = vrot.slane %v306, 1
      %v362 = vsel %vm341, %v360, %v361
      %v363 = vrot.slane %v307, 1
      %v364 = vrot.slane %v308, 1
      %v365 = vsel %vm341, %v363, %v364
      %v374 = vpack.c.bf16 %v347, %v344
      %v375 = vpack.c.bf16 %v353, %v350
      %v376 = vpack.c.bf16 %v359, %v356
      %v377 = vpack.c.bf16 %v365, %v362
      %s378 = scalar_lea.vmem %s1, 32
      %v379 = vld [vmem:[%s378] sm:$0xf]
      %v380 = vld [vmem:[%s378 + $0x4] sm:$0xf]
      %v381 = vld [vmem:[%s378 + $0x8] sm:$0xf]
      %v382 = vld [vmem:[%s378 + $0xc] sm:$0xf]
      %v383 = vld [vmem:[%s378 + $0x10] sm:$0xf]
      %v384 = vld [vmem:[%s378 + $0x14] sm:$0xf]
      %v385 = vld [vmem:[%s378 + $0x18] sm:$0xf]
      %v386 = vld [vmem:[%s378 + $0x1c] sm:$0xf]
      %v395 = vunpack.c.l.b16 %v379
      %v396 = vunpack.c.l.b16 %v380
      %v397 = vunpack.c.l.b16 %v381
      %v398 = vunpack.c.l.b16 %v382
      %v399 = vunpack.c.l.b16 %v383
      %v400 = vunpack.c.l.b16 %v384
      %v401 = vunpack.c.l.b16 %v385
      %v402 = vunpack.c.l.b16 %v386
      %v403 = vpack.c.b16 %v396, %v395
      %v404 = vpack.c.b16 %v398, %v397
      %v405 = vpack.c.b16 %v400, %v399
      %v406 = vpack.c.b16 %v402, %v401
      %vm411 = vcmask 523264
      %v413 = vsel %vm411, %v374, 0
      %v416 = vsel %vm411, %v375, 0
      %v419 = vsel %vm411, %v376, 0
      %v422 = vsel %vm411, %v377, 0
      %424 = vmatprep.subr.bf16.mxu0 0
      %425 = vmatpush1.bf16.msra.mxu0 %v403
      %426 = vmatprep.subr.bf16.mxu0 0
      %427 = vmatpush1.bf16.msra.mxu0 %v404
      %428 = vmatprep.subr.bf16.mxu0 0
      %429 = vmatpush1.bf16.msra.mxu0 %v405
      %430 = vmatprep.subr.bf16.mxu0 0
      %431 = vmatpush1.bf16.msra.mxu0 %v406
      %432 = vmatprep.subr.bf16.mxu0 0
      %433 = vmatpush1.bf16.msra.mxu0 0
      %434 = vmatprep.subr.bf16.mxu0 0
      %435 = vmatpush1.bf16.msra.mxu0 0
      %436 = vmatprep.subr.bf16.mxu0 0
      %437 = vmatpush1.bf16.msra.mxu0 0
      %438 = vmatprep.subr.bf16.mxu0 0
      %439 = vmatpush1.bf16.msra.mxu0 0
      %440 = vmatprep.subr.bf16.mxu0 0
      %441 = vmatpush1.bf16.msra.mxu0 0
      %442 = vmatprep.subr.bf16.mxu0 0
      %443 = vmatpush1.bf16.msra.mxu0 0
      %444 = vmatprep.subr.bf16.mxu0 0
      %445 = vmatpush1.bf16.msra.mxu0 0
      %446 = vmatprep.subr.bf16.mxu0 0
      %447 = vmatpush1.bf16.msra.mxu0 0
      %448 = vmatprep.subr.bf16.mxu0 0
      %449 = vmatpush1.bf16.msra.mxu0 0
      %450 = vmatprep.subr.bf16.mxu0 0
      %451 = vmatpush1.bf16.msra.mxu0 0
      %452 = vmatprep.subr.bf16.mxu0 0
      %453 = vmatpush1.bf16.msra.mxu0 0
      %454 = vmatprep.subr.bf16.mxu0 0
      %455 = vmatpush1.bf16.msra.mxu0 0
      %456 = vmatprep.mubr.bf16.mxu0 0
      %457 = vmatmul.mubr.bf16.gmra.mrb[0].mxu0 %v413
      %v458 = vpop.f32.mrb[0].mxu0
      %v459 = vadd.f32 0.0, %v458
      %v460 = vpop.f32.mrb[0].mxu0
      %v461 = vpop.f32.mrb[0].mxu0
      %v462 = vadd.f32 0.0, %v461
      %v463 = vpop.f32.mrb[0].mxu0
      %464 = vmatprep.mubr.bf16.mxu0 0
      %465 = vmatmul.mubr.bf16.gmra.mrb[0].mxu0 %v416
      %v466 = vpop.f32.mrb[0].mxu0
      %v467 = vadd.f32 0.0, %v466
      %v468 = vpop.f32.mrb[0].mxu0
      %v469 = vpop.f32.mrb[0].mxu0
      %v470 = vadd.f32 0.0, %v469
      %v471 = vpop.f32.mrb[0].mxu0
      %472 = vmatprep.mubr.bf16.mxu0 0
      %473 = vmatmul.mubr.bf16.gmra.mrb[0].mxu0 %v419
      %v474 = vpop.f32.mrb[0].mxu0
      %v475 = vadd.f32 0.0, %v474
      %v476 = vpop.f32.mrb[0].mxu0
      %v477 = vpop.f32.mrb[0].mxu0
      %v478 = vadd.f32 0.0, %v477
      %v479 = vpop.f32.mrb[0].mxu0
      %480 = vmatprep.mubr.bf16.mxu0 0
      %481 = vmatmul.mubr.bf16.gmra.mrb[0].mxu0 %v422
      %v482 = vpop.f32.mrb[0].mxu0
      %v483 = vadd.f32 0.0, %v482
      %v484 = vpop.f32.mrb[0].mxu0
      %v485 = vpop.f32.mrb[0].mxu0
      %v486 = vadd.f32 0.0, %v485
      %v487 = vpop.f32.mrb[0].mxu0
      %488 = vdwg.mxu0
      %v497 = vunpack.c.l.b16 %v317
      %v498 = vunpack.c.l.b16 %v318
      %v499 = vunpack.c.l.b16 %v319
      %v500 = vunpack.c.l.b16 %v320
      %v501 = vunpack.c.l.b16 %v321
      %v502 = vunpack.c.l.b16 %v322
      %v503 = vunpack.c.l.b16 %v323
      %v504 = vunpack.c.l.b16 %v324
      %v505 = vpack.c.b16 %v498, %v497
      %v506 = vpack.c.b16 %v500, %v499
      %v507 = vpack.c.b16 %v502, %v501
      %v508 = vpack.c.b16 %v504, %v503
      %v514 = vsel %vm411, %v313, 0
      %v517 = vsel %vm411, %v314, 0
      %v520 = vsel %vm411, %v315, 0
      %v523 = vsel %vm411, %v316, 0
      %525 = vmatprep.subr.bf16.mxu0 0
      %526 = vmatpush1.bf16.msra.mxu0 %v505
      %527 = vmatprep.subr.bf16.mxu0 0
      %528 = vmatpush1.bf16.msra.mxu0 %v506
      %529 = vmatprep.subr.bf16.mxu0 0
      %530 = vmatpush1.bf16.msra.mxu0 %v507
      %531 = vmatprep.subr.bf16.mxu0 0
      %532 = vmatpush1.bf16.msra.mxu0 %v508
      %533 = vmatprep.subr.bf16.mxu0 0
      %534 = vmatpush1.bf16.msra.mxu0 0
      %535 = vmatprep.subr.bf16.mxu0 0
      %536 = vmatpush1.bf16.msra.mxu0 0
      %537 = vmatprep.subr.bf16.mxu0 0
      %538 = vmatpush1.bf16.msra.mxu0 0
      %539 = vmatprep.subr.bf16.mxu0 0
      %540 = vmatpush1.bf16.msra.mxu0 0
      %541 = vmatprep.subr.bf16.mxu0 0
      %542 = vmatpush1.bf16.msra.mxu0 0
      %543 = vmatprep.subr.bf16.mxu0 0
      %544 = vmatpush1.bf16.msra.mxu0 0
      %545 = vmatprep.subr.bf16.mxu0 0
      %546 = vmatpush1.bf16.msra.mxu0 0
      %547 = vmatprep.subr.bf16.mxu0 0
      %548 = vmatpush1.bf16.msra.mxu0 0
      %549 = vmatprep.subr.bf16.mxu0 0
      %550 = vmatpush1.bf16.msra.mxu0 0
      %551 = vmatprep.subr.bf16.mxu0 0
      %552 = vmatpush1.bf16.msra.mxu0 0
      %553 = vmatprep.subr.bf16.mxu0 0
      %554 = vmatpush1.bf16.msra.mxu0 0
      %555 = vmatprep.subr.bf16.mxu0 0
      %556 = vmatpush1.bf16.msra.mxu0 0
      %557 = vmatprep.mubr.bf16.mxu0 0
      %558 = vmatmul.mubr.bf16.gmra.mrb[0].mxu0 %v514
      %v559 = vpop.f32.mrb[0].mxu0
      %v560 = vadd.f32 %v459, %v559
      %v561 = vpop.f32.mrb[0].mxu0
      %v562 = vpop.f32.mrb[0].mxu0
      %v563 = vadd.f32 %v462, %v562
      %v564 = vpop.f32.mrb[0].mxu0
      %565 = vmatprep.mubr.bf16.mxu0 0
      %566 = vmatmul.mubr.bf16.gmra.mrb[0].mxu0 %v517
      %v567 = vpop.f32.mrb[0].mxu0
      %v568 = vadd.f32 %v467, %v567
      %v569 = vpop.f32.mrb[0].mxu0
      %v570 = vpop.f32.mrb[0].mxu0
      %v571 = vadd.f32 %v470, %v570
      %v572 = vpop.f32.mrb[0].mxu0
      %573 = vmatprep.mubr.bf16.mxu0 0
      %574 = vmatmul.mubr.bf16.gmra.mrb[0].mxu0 %v520
      %v575 = vpop.f32.mrb[0].mxu0
      %v576 = vadd.f32 %v475, %v575
      %v577 = vpop.f32.mrb[0].mxu0
      %v578 = vpop.f32.mrb[0].mxu0
      %v579 = vadd.f32 %v478, %v578
      %v580 = vpop.f32.mrb[0].mxu0
      %581 = vmatprep.mubr.bf16.mxu0 0
      %582 = vmatmul.mubr.bf16.gmra.mrb[0].mxu0 %v523
      %v583 = vpop.f32.mrb[0].mxu0
      %v584 = vadd.f32 %v483, %v583
      %v585 = vpop.f32.mrb[0].mxu0
      %v586 = vpop.f32.mrb[0].mxu0
      %v587 = vadd.f32 %v486, %v586
      %v588 = vpop.f32.mrb[0].mxu0
      %589 = vdwg.mxu0
      %vm590 = vcmask 1045504
      %v591 = vrot.slane %v293, 2
      %v592 = vrot.slane %v294, 2
      %v593 = vsel %vm590, %v591, %v592
      %v594 = vrot.slane %v295, 2
      %v595 = vrot.slane %v296, 2
      %v596 = vsel %vm590, %v594, %v595
      %v597 = vrot.slane %v297, 2
      %v598 = vrot.slane %v298, 2
      %v599 = vsel %vm590, %v597, %v598
      %v600 = vrot.slane %v299, 2
      %v601 = vrot.slane %v300, 2
      %v602 = vsel %vm590, %v600, %v601
      %v603 = vrot.slane %v301, 2
      %v604 = vrot.slane %v302, 2
      %v605 = vsel %vm590, %v603, %v604
      %v606 = vrot.slane %v303, 2
      %v607 = vrot.slane %v304, 2
      %v608 = vsel %vm590, %v606, %v607
      %v609 = vrot.slane %v305, 2
      %v610 = vrot.slane %v306, 2
      %v611 = vsel %vm590, %v609, %v610
      %v612 = vrot.slane %v307, 2
      %v613 = vrot.slane %v308, 2
      %v614 = vsel %vm590, %v612, %v613
      %v623 = vpack.c.bf16 %v596, %v593
      %v624 = vpack.c.bf16 %v602, %v599
      %v625 = vpack.c.bf16 %v608, %v605
      %v626 = vpack.c.bf16 %v614, %v611
      %s627 = scalar_lea.vmem %s1, 64
      %v628 = vld [vmem:[%s627] sm:$0xf]
      %v629 = vld [vmem:[%s627 + $0x4] sm:$0xf]
      %v630 = vld [vmem:[%s627 + $0x8] sm:$0xf]
      %v631 = vld [vmem:[%s627 + $0xc] sm:$0xf]
      %v632 = vld [vmem:[%s627 + $0x10] sm:$0xf]
      %v633 = vld [vmem:[%s627 + $0x14] sm:$0xf]
      %v634 = vld [vmem:[%s627 + $0x18] sm:$0xf]
      %v635 = vld [vmem:[%s627 + $0x1c] sm:$0xf]
      %v644 = vunpack.c.l.b16 %v628
      %v645 = vunpack.c.l.b16 %v629
      %v646 = vunpack.c.l.b16 %v630
      %v647 = vunpack.c.l.b16 %v631
      %v648 = vunpack.c.l.b16 %v632
      %v649 = vunpack.c.l.b16 %v633
      %v650 = vunpack.c.l.b16 %v634
      %v651 = vunpack.c.l.b16 %v635
      %v652 = vpack.c.b16 %v645, %v644
      %v653 = vpack.c.b16 %v647, %v646
      %v654 = vpack.c.b16 %v649, %v648
      %v655 = vpack.c.b16 %v651, %v650
      %v661 = vsel %vm411, %v623, 0
      %v664 = vsel %vm411, %v624, 0
      %v667 = vsel %vm411, %v625, 0
      %v670 = vsel %vm411, %v626, 0
      %672 = vmatprep.subr.bf16.mxu0 0
      %673 = vmatpush1.bf16.msra.mxu0 %v652
      %674 = vmatprep.subr.bf16.mxu0 0
      %675 = vmatpush1.bf16.msra.mxu0 %v653
      %676 = vmatprep.subr.bf16.mxu0 0
      %677 = vmatpush1.bf16.msra.mxu0 %v654
      %678 = vmatprep.subr.bf16.mxu0 0
      %679 = vmatpush1.bf16.msra.mxu0 %v655
      %680 = vmatprep.subr.bf16.mxu0 0
      %681 = vmatpush1.bf16.msra.mxu0 0
      %682 = vmatprep.subr.bf16.mxu0 0
      %683 = vmatpush1.bf16.msra.mxu0 0
      %684 = vmatprep.subr.bf16.mxu0 0
      %685 = vmatpush1.bf16.msra.mxu0 0
      %686 = vmatprep.subr.bf16.mxu0 0
      %687 = vmatpush1.bf16.msra.mxu0 0
      %688 = vmatprep.subr.bf16.mxu0 0
      %689 = vmatpush1.bf16.msra.mxu0 0
      %690 = vmatprep.subr.bf16.mxu0 0
      %691 = vmatpush1.bf16.msra.mxu0 0
      %692 = vmatprep.subr.bf16.mxu0 0
      %693 = vmatpush1.bf16.msra.mxu0 0
      %694 = vmatprep.subr.bf16.mxu0 0
      %695 = vmatpush1.bf16.msra.mxu0 0
      %696 = vmatprep.subr.bf16.mxu0 0
      %697 = vmatpush1.bf16.msra.mxu0 0
      %698 = vmatprep.subr.bf16.mxu0 0
      %699 = vmatpush1.bf16.msra.mxu0 0
      %700 = vmatprep.subr.bf16.mxu0 0
      %701 = vmatpush1.bf16.msra.mxu0 0
      %702 = vmatprep.subr.bf16.mxu0 0
      %703 = vmatpush1.bf16.msra.mxu0 0
      %704 = vmatprep.mubr.bf16.mxu0 0
      %705 = vmatmul.mubr.bf16.gmra.mrb[0].mxu0 %v661
      %v706 = vpop.f32.mrb[0].mxu0
      %v707 = vadd.f32 0.0, %v706
      %v708 = vpop.f32.mrb[0].mxu0
      %v709 = vpop.f32.mrb[0].mxu0
      %v710 = vadd.f32 0.0, %v709
      %v711 = vpop.f32.mrb[0].mxu0
      %712 = vmatprep.mubr.bf16.mxu0 0
      %713 = vmatmul.mubr.bf16.gmra.mrb[0].mxu0 %v664
      %v714 = vpop.f32.mrb[0].mxu0
      %v715 = vadd.f32 0.0, %v714
      %v716 = vpop.f32.mrb[0].mxu0
      %v717 = vpop.f32.mrb[0].mxu0
      %v718 = vadd.f32 0.0, %v717
      %v719 = vpop.f32.mrb[0].mxu0
      %720 = vmatprep.mubr.bf16.mxu0 0
      %721 = vmatmul.mubr.bf16.gmra.mrb[0].mxu0 %v667
      %v722 = vpop.f32.mrb[0].mxu0
      %v723 = vadd.f32 0.0, %v722
      %v724 = vpop.f32.mrb[0].mxu0
      %v725 = vpop.f32.mrb[0].mxu0
      %v726 = vadd.f32 0.0, %v725
      %v727 = vpop.f32.mrb[0].mxu0
      %728 = vmatprep.mubr.bf16.mxu0 0
      %729 = vmatmul.mubr.bf16.gmra.mrb[0].mxu0 %v670
      %v730 = vpop.f32.mrb[0].mxu0
      %v731 = vadd.f32 0.0, %v730
      %v732 = vpop.f32.mrb[0].mxu0
      %v733 = vpop.f32.mrb[0].mxu0
      %v734 = vadd.f32 0.0, %v733
      %v735 = vpop.f32.mrb[0].mxu0
      %736 = vdwg.mxu0
      %v737 = vadd.f32 %v560, %v707
      %v738 = vadd.f32 %v563, %v710
      %v739 = vadd.f32 %v568, %v715
      %v740 = vadd.f32 %v571, %v718
      %v741 = vadd.f32 %v576, %v723
      %v742 = vadd.f32 %v579, %v726
      %v743 = vadd.f32 %v584, %v731
      %v744 = vadd.f32 %v587, %v734
      %v745 = vpack.c.bf16 %v297, %v295
      %v746 = vpack.c.bf16 %v301, %v299
      %v747 = vpack.c.bf16 %v305, %v303
      %v748 = vpack.c.bf16 %v309, %v307
      %s749 = scalar_lea.vmem %s1, 96
      %v750 = vld [vmem:[%s749] sm:$0xf]
      %v751 = vld [vmem:[%s749 + $0x4] sm:$0xf]
      %v752 = vld [vmem:[%s749 + $0x8] sm:$0xf]
      %v753 = vld [vmem:[%s749 + $0xc] sm:$0xf]
      %v754 = vld [vmem:[%s749 + $0x10] sm:$0xf]
      %v755 = vld [vmem:[%s749 + $0x14] sm:$0xf]
      %v756 = vld [vmem:[%s749 + $0x18] sm:$0xf]
      %v757 = vld [vmem:[%s749 + $0x1c] sm:$0xf]
      %v766 = vunpack.c.l.b16 %v750
      %v767 = vunpack.c.l.b16 %v751
      %v768 = vunpack.c.l.b16 %v752
      %v769 = vunpack.c.l.b16 %v753
      %v770 = vunpack.c.l.b16 %v754
      %v771 = vunpack.c.l.b16 %v755
      %v772 = vunpack.c.l.b16 %v756
      %v773 = vunpack.c.l.b16 %v757
      %v774 = vpack.c.b16 %v767, %v766
      %v775 = vpack.c.b16 %v769, %v768
      %v776 = vpack.c.b16 %v771, %v770
      %v777 = vpack.c.b16 %v773, %v772
      %v783 = vsel %vm411, %v745, 0
      %v786 = vsel %vm411, %v746, 0
      %v789 = vsel %vm411, %v747, 0
      %v792 = vsel %vm411, %v748, 0
      %794 = vmatprep.subr.bf16.mxu0 0
      %795 = vmatpush1.bf16.msra.mxu0 %v774
      %796 = vmatprep.subr.bf16.mxu0 0
      %797 = vmatpush1.bf16.msra.mxu0 %v775
      %798 = vmatprep.subr.bf16.mxu0 0
      %799 = vmatpush1.bf16.msra.mxu0 %v776
      %800 = vmatprep.subr.bf16.mxu0 0
      %801 = vmatpush1.bf16.msra.mxu0 %v777
      %802 = vmatprep.subr.bf16.mxu0 0
      %803 = vmatpush1.bf16.msra.mxu0 0
      %804 = vmatprep.subr.bf16.mxu0 0
      %805 = vmatpush1.bf16.msra.mxu0 0
      %806 = vmatprep.subr.bf16.mxu0 0
      %807 = vmatpush1.bf16.msra.mxu0 0
      %808 = vmatprep.subr.bf16.mxu0 0
      %809 = vmatpush1.bf16.msra.mxu0 0
      %810 = vmatprep.subr.bf16.mxu0 0
      %811 = vmatpush1.bf16.msra.mxu0 0
      %812 = vmatprep.subr.bf16.mxu0 0
      %813 = vmatpush1.bf16.msra.mxu0 0
      %814 = vmatprep.subr.bf16.mxu0 0
      %815 = vmatpush1.bf16.msra.mxu0 0
      %816 = vmatprep.subr.bf16.mxu0 0
      %817 = vmatpush1.bf16.msra.mxu0 0
      %818 = vmatprep.subr.bf16.mxu0 0
      %819 = vmatpush1.bf16.msra.mxu0 0
      %820 = vmatprep.subr.bf16.mxu0 0
      %821 = vmatpush1.bf16.msra.mxu0 0
      %822 = vmatprep.subr.bf16.mxu0 0
      %823 = vmatpush1.bf16.msra.mxu0 0
      %824 = vmatprep.subr.bf16.mxu0 0
      %825 = vmatpush1.bf16.msra.mxu0 0
      %826 = vmatprep.mubr.bf16.mxu0 0
      %827 = vmatmul.mubr.bf16.gmra.mrb[0].mxu0 %v783
      %v828 = vpop.f32.mrb[0].mxu0
      %v829 = vadd.f32 0.0, %v828
      %v830 = vpop.f32.mrb[0].mxu0
      %v831 = vpop.f32.mrb[0].mxu0
      %v832 = vadd.f32 0.0, %v831
      %v833 = vpop.f32.mrb[0].mxu0
      %834 = vmatprep.mubr.bf16.mxu0 0
      %835 = vmatmul.mubr.bf16.gmra.mrb[0].mxu0 %v786
      %v836 = vpop.f32.mrb[0].mxu0
      %v837 = vadd.f32 0.0, %v836
      %v838 = vpop.f32.mrb[0].mxu0
      %v839 = vpop.f32.mrb[0].mxu0
      %v840 = vadd.f32 0.0, %v839
      %v841 = vpop.f32.mrb[0].mxu0
      %842 = vmatprep.mubr.bf16.mxu0 0
      %843 = vmatmul.mubr.bf16.gmra.mrb[0].mxu0 %v789
      %v844 = vpop.f32.mrb[0].mxu0
      %v845 = vadd.f32 0.0, %v844
      %v846 = vpop.f32.mrb[0].mxu0
      %v847 = vpop.f32.mrb[0].mxu0
      %v848 = vadd.f32 0.0, %v847
      %v849 = vpop.f32.mrb[0].mxu0
      %850 = vmatprep.mubr.bf16.mxu0 0
      %851 = vmatmul.mubr.bf16.gmra.mrb[0].mxu0 %v792
      %v852 = vpop.f32.mrb[0].mxu0
      %v853 = vadd.f32 0.0, %v852
      %v854 = vpop.f32.mrb[0].mxu0
      %v855 = vpop.f32.mrb[0].mxu0
      %v856 = vadd.f32 0.0, %v855
      %v857 = vpop.f32.mrb[0].mxu0
      %858 = vdwg.mxu0
      %v859 = vadd.f32 %v737, %v829
      %v860 = vadd.f32 %v738, %v832
      %v861 = vadd.f32 %v739, %v837
      %v862 = vadd.f32 %v740, %v840
      %v863 = vadd.f32 %v741, %v845
      %v864 = vadd.f32 %v742, %v848
      %v865 = vadd.f32 %v743, %v853
      %v866 = vadd.f32 %v744, %v856
      %v869 = vrot.slane %v309, 1
      %v870 = vrot.slane %v310, 1
      %v871 = vsel %vm341, %v869, %v870
      %v873 = vpack.c.bf16 %v350, %v347
      %v874 = vpack.c.bf16 %v356, %v353
      %v875 = vpack.c.bf16 %v362, %v359
      %v876 = vpack.c.bf16 %v871, %v365
      %s877 = scalar_lea.vmem %s1, 128
      %v878 = vld [vmem:[%s877] sm:$0xf]
      %v879 = vld [vmem:[%s877 + $0x4] sm:$0xf]
      %v880 = vld [vmem:[%s877 + $0x8] sm:$0xf]
      %v881 = vld [vmem:[%s877 + $0xc] sm:$0xf]
      %v882 = vld [vmem:[%s877 + $0x10] sm:$0xf]
      %v883 = vld [vmem:[%s877 + $0x14] sm:$0xf]
      %v884 = vld [vmem:[%s877 + $0x18] sm:$0xf]
      %v885 = vld [vmem:[%s877 + $0x1c] sm:$0xf]
      %v894 = vunpack.c.l.b16 %v878
      %v895 = vunpack.c.l.b16 %v879
      %v896 = vunpack.c.l.b16 %v880
      %v897 = vunpack.c.l.b16 %v881
      %v898 = vunpack.c.l.b16 %v882
      %v899 = vunpack.c.l.b16 %v883
      %v900 = vunpack.c.l.b16 %v884
      %v901 = vunpack.c.l.b16 %v885
      %v902 = vpack.c.b16 %v895, %v894
      %v903 = vpack.c.b16 %v897, %v896
      %v904 = vpack.c.b16 %v899, %v898
      %v905 = vpack.c.b16 %v901, %v900
      %v911 = vsel %vm411, %v873, 0
      %v914 = vsel %vm411, %v874, 0
      %v917 = vsel %vm411, %v875, 0
      %v920 = vsel %vm411, %v876, 0
      %922 = vmatprep.subr.bf16.mxu0 0
      %923 = vmatpush1.bf16.msra.mxu0 %v902
      %924 = vmatprep.subr.bf16.mxu0 0
      %925 = vmatpush1.bf16.msra.mxu0 %v903
      %926 = vmatprep.subr.bf16.mxu0 0
      %927 = vmatpush1.bf16.msra.mxu0 %v904
      %928 = vmatprep.subr.bf16.mxu0 0
      %929 = vmatpush1.bf16.msra.mxu0 %v905
      %930 = vmatprep.subr.bf16.mxu0 0
      %931 = vmatpush1.bf16.msra.mxu0 0
      %932 = vmatprep.subr.bf16.mxu0 0
      %933 = vmatpush1.bf16.msra.mxu0 0
      %934 = vmatprep.subr.bf16.mxu0 0
      %935 = vmatpush1.bf16.msra.mxu0 0
      %936 = vmatprep.subr.bf16.mxu0 0
      %937 = vmatpush1.bf16.msra.mxu0 0
      %938 = vmatprep.subr.bf16.mxu0 0
      %939 = vmatpush1.bf16.msra.mxu0 0
      %940 = vmatprep.subr.bf16.mxu0 0
      %941 = vmatpush1.bf16.msra.mxu0 0
      %942 = vmatprep.subr.bf16.mxu0 0
      %943 = vmatpush1.bf16.msra.mxu0 0
      %944 = vmatprep.subr.bf16.mxu0 0
      %945 = vmatpush1.bf16.msra.mxu0 0
      %946 = vmatprep.subr.bf16.mxu0 0
      %947 = vmatpush1.bf16.msra.mxu0 0
      %948 = vmatprep.subr.bf16.mxu0 0
      %949 = vmatpush1.bf16.msra.mxu0 0
      %950 = vmatprep.subr.bf16.mxu0 0
      %951 = vmatpush1.bf16.msra.mxu0 0
      %952 = vmatprep.subr.bf16.mxu0 0
      %953 = vmatpush1.bf16.msra.mxu0 0
      %954 = vmatprep.mubr.bf16.mxu0 0
      %955 = vmatmul.mubr.bf16.gmra.mrb[0].mxu0 %v911
      %v956 = vpop.f32.mrb[0].mxu0
      %v957 = vadd.f32 0.0, %v956
      %v958 = vpop.f32.mrb[0].mxu0
      %v959 = vpop.f32.mrb[0].mxu0
      %v960 = vadd.f32 0.0, %v959
      %v961 = vpop.f32.mrb[0].mxu0
      %962 = vmatprep.mubr.bf16.mxu0 0
      %963 = vmatmul.mubr.bf16.gmra.mrb[0].mxu0 %v914
      %v964 = vpop.f32.mrb[0].mxu0
      %v965 = vadd.f32 0.0, %v964
      %v966 = vpop.f32.mrb[0].mxu0
      %v967 = vpop.f32.mrb[0].mxu0
      %v968 = vadd.f32 0.0, %v967
      %v969 = vpop.f32.mrb[0].mxu0
      %970 = vmatprep.mubr.bf16.mxu0 0
      %971 = vmatmul.mubr.bf16.gmra.mrb[0].mxu0 %v917
      %v972 = vpop.f32.mrb[0].mxu0
      %v973 = vadd.f32 0.0, %v972
      %v974 = vpop.f32.mrb[0].mxu0
      %v975 = vpop.f32.mrb[0].mxu0
      %v976 = vadd.f32 0.0, %v975
      %v977 = vpop.f32.mrb[0].mxu0
      %978 = vmatprep.mubr.bf16.mxu0 0
      %979 = vmatmul.mubr.bf16.gmra.mrb[0].mxu0 %v920
      %v980 = vpop.f32.mrb[0].mxu0
      %v981 = vadd.f32 0.0, %v980
      %v982 = vpop.f32.mrb[0].mxu0
      %v983 = vpop.f32.mrb[0].mxu0
      %v984 = vadd.f32 0.0, %v983
      %v985 = vpop.f32.mrb[0].mxu0
      %986 = vdwg.mxu0
      %v987 = vadd.f32 %v859, %v957
      %v988 = vadd.f32 %v860, %v960
      %v989 = vadd.f32 %v861, %v965
      %v990 = vadd.f32 %v862, %v968
      %v991 = vadd.f32 %v863, %v973
      %v992 = vadd.f32 %v864, %v976
      %v993 = vadd.f32 %v865, %v981
      %v994 = vadd.f32 %v866, %v984
      %v995 = vrot.slane %v309, 2
      %v996 = vrot.slane %v310, 2
      %v997 = vsel %vm590, %v995, %v996
      %v999 = vpack.c.bf16 %v599, %v596
      %v1000 = vpack.c.bf16 %v605, %v602
      %v1001 = vpack.c.bf16 %v611, %v608
      %v1002 = vpack.c.bf16 %v997, %v614
      %s1003 = scalar_lea.vmem %s1, 160
      %v1004 = vld [vmem:[%s1003] sm:$0xf]
      %v1005 = vld [vmem:[%s1003 + $0x4] sm:$0xf]
      %v1006 = vld [vmem:[%s1003 + $0x8] sm:$0xf]
      %v1007 = vld [vmem:[%s1003 + $0xc] sm:$0xf]
      %v1008 = vld [vmem:[%s1003 + $0x10] sm:$0xf]
      %v1009 = vld [vmem:[%s1003 + $0x14] sm:$0xf]
      %v1010 = vld [vmem:[%s1003 + $0x18] sm:$0xf]
      %v1011 = vld [vmem:[%s1003 + $0x1c] sm:$0xf]
      %v1020 = vunpack.c.l.b16 %v1004
      %v1021 = vunpack.c.l.b16 %v1005
      %v1022 = vunpack.c.l.b16 %v1006
      %v1023 = vunpack.c.l.b16 %v1007
      %v1024 = vunpack.c.l.b16 %v1008
      %v1025 = vunpack.c.l.b16 %v1009
      %v1026 = vunpack.c.l.b16 %v1010
      %v1027 = vunpack.c.l.b16 %v1011
      %v1028 = vpack.c.b16 %v1021, %v1020
      %v1029 = vpack.c.b16 %v1023, %v1022
      %v1030 = vpack.c.b16 %v1025, %v1024
      %v1031 = vpack.c.b16 %v1027, %v1026
      %v1037 = vsel %vm411, %v999, 0
      %v1040 = vsel %vm411, %v1000, 0
      %v1043 = vsel %vm411, %v1001, 0
      %v1046 = vsel %vm411, %v1002, 0
      %1048 = vmatprep.subr.bf16.mxu0 0
      %1049 = vmatpush1.bf16.msra.mxu0 %v1028
      %1050 = vmatprep.subr.bf16.mxu0 0
      %1051 = vmatpush1.bf16.msra.mxu0 %v1029
      %1052 = vmatprep.subr.bf16.mxu0 0
      %1053 = vmatpush1.bf16.msra.mxu0 %v1030
      %1054 = vmatprep.subr.bf16.mxu0 0
      %1055 = vmatpush1.bf16.msra.mxu0 %v1031
      %1056 = vmatprep.subr.bf16.mxu0 0
      %1057 = vmatpush1.bf16.msra.mxu0 0
      %1058 = vmatprep.subr.bf16.mxu0 0
      %1059 = vmatpush1.bf16.msra.mxu0 0
      %1060 = vmatprep.subr.bf16.mxu0 0
      %1061 = vmatpush1.bf16.msra.mxu0 0
      %1062 = vmatprep.subr.bf16.mxu0 0
      %1063 = vmatpush1.bf16.msra.mxu0 0
      %1064 = vmatprep.subr.bf16.mxu0 0
      %1065 = vmatpush1.bf16.msra.mxu0 0
      %1066 = vmatprep.subr.bf16.mxu0 0
      %1067 = vmatpush1.bf16.msra.mxu0 0
      %1068 = vmatprep.subr.bf16.mxu0 0
      %1069 = vmatpush1.bf16.msra.mxu0 0
      %1070 = vmatprep.subr.bf16.mxu0 0
      %1071 = vmatpush1.bf16.msra.mxu0 0
      %1072 = vmatprep.subr.bf16.mxu0 0
      %1073 = vmatpush1.bf16.msra.mxu0 0
      %1074 = vmatprep.subr.bf16.mxu0 0
      %1075 = vmatpush1.bf16.msra.mxu0 0
      %1076 = vmatprep.subr.bf16.mxu0 0
      %1077 = vmatpush1.bf16.msra.mxu0 0
      %1078 = vmatprep.subr.bf16.mxu0 0
      %1079 = vmatpush1.bf16.msra.mxu0 0
      %1080 = vmatprep.mubr.bf16.mxu0 0
      %1081 = vmatmul.mubr.bf16.gmra.mrb[0].mxu0 %v1037
      %v1082 = vpop.f32.mrb[0].mxu0
      %v1083 = vadd.f32 0.0, %v1082
      %v1084 = vpop.f32.mrb[0].mxu0
      %v1085 = vpop.f32.mrb[0].mxu0
      %v1086 = vadd.f32 0.0, %v1085
      %v1087 = vpop.f32.mrb[0].mxu0
      %1088 = vmatprep.mubr.bf16.mxu0 0
      %1089 = vmatmul.mubr.bf16.gmra.mrb[0].mxu0 %v1040
      %v1090 = vpop.f32.mrb[0].mxu0
      %v1091 = vadd.f32 0.0, %v1090
      %v1092 = vpop.f32.mrb[0].mxu0
      %v1093 = vpop.f32.mrb[0].mxu0
      %v1094 = vadd.f32 0.0, %v1093
      %v1095 = vpop.f32.mrb[0].mxu0
      %1096 = vmatprep.mubr.bf16.mxu0 0
      %1097 = vmatmul.mubr.bf16.gmra.mrb[0].mxu0 %v1043
      %v1098 = vpop.f32.mrb[0].mxu0
      %v1099 = vadd.f32 0.0, %v1098
      %v1100 = vpop.f32.mrb[0].mxu0
      %v1101 = vpop.f32.mrb[0].mxu0
      %v1102 = vadd.f32 0.0, %v1101
      %v1103 = vpop.f32.mrb[0].mxu0
      %1104 = vmatprep.mubr.bf16.mxu0 0
      %1105 = vmatmul.mubr.bf16.gmra.mrb[0].mxu0 %v1046
      %v1106 = vpop.f32.mrb[0].mxu0
      %v1107 = vadd.f32 0.0, %v1106
      %v1108 = vpop.f32.mrb[0].mxu0
      %v1109 = vpop.f32.mrb[0].mxu0
      %v1110 = vadd.f32 0.0, %v1109
      %v1111 = vpop.f32.mrb[0].mxu0
      %1112 = vdwg.mxu0
      %v1113 = vadd.f32 %v987, %v1083
      %v1114 = vadd.f32 %v988, %v1086
      %v1115 = vadd.f32 %v989, %v1091
      %v1116 = vadd.f32 %v990, %v1094
      %v1117 = vadd.f32 %v991, %v1099
      %v1118 = vadd.f32 %v992, %v1102
      %v1119 = vadd.f32 %v993, %v1107
      %v1120 = vadd.f32 %v994, %v1110
      %v1121 = vpack.c.bf16 %v311, %v309
      %s1122 = scalar_lea.vmem %s1, 192
      %v1123 = vld [vmem:[%s1122] sm:$0xf]
      %v1124 = vld [vmem:[%s1122 + $0x4] sm:$0xf]
      %v1125 = vld [vmem:[%s1122 + $0x8] sm:$0xf]
      %v1126 = vld [vmem:[%s1122 + $0xc] sm:$0xf]
      %v1127 = vld [vmem:[%s1122 + $0x10] sm:$0xf]
      %v1128 = vld [vmem:[%s1122 + $0x14] sm:$0xf]
      %v1129 = vld [vmem:[%s1122 + $0x18] sm:$0xf]
      %v1130 = vld [vmem:[%s1122 + $0x1c] sm:$0xf]
      %v1139 = vunpack.c.l.b16 %v1123
      %v1140 = vunpack.c.l.b16 %v1124
      %v1141 = vunpack.c.l.b16 %v1125
      %v1142 = vunpack.c.l.b16 %v1126
      %v1143 = vunpack.c.l.b16 %v1127
      %v1144 = vunpack.c.l.b16 %v1128
      %v1145 = vunpack.c.l.b16 %v1129
      %v1146 = vunpack.c.l.b16 %v1130
      %v1147 = vpack.c.b16 %v1140, %v1139
      %v1148 = vpack.c.b16 %v1142, %v1141
      %v1149 = vpack.c.b16 %v1144, %v1143
      %v1150 = vpack.c.b16 %v1146, %v1145
      %v1156 = vsel %vm411, %v1121, 0
      %1158 = vmatprep.subr.bf16.mxu0 0
      %1159 = vmatpush1.bf16.msra.mxu0 %v1147
      %1160 = vmatprep.subr.bf16.mxu0 0
      %1161 = vmatpush1.bf16.msra.mxu0 %v1148
      %1162 = vmatprep.subr.bf16.mxu0 0
      %1163 = vmatpush1.bf16.msra.mxu0 %v1149
      %1164 = vmatprep.subr.bf16.mxu0 0
      %1165 = vmatpush1.bf16.msra.mxu0 %v1150
      %1166 = vmatprep.subr.bf16.mxu0 0
      %1167 = vmatpush1.bf16.msra.mxu0 0
      %1168 = vmatprep.subr.bf16.mxu0 0
      %1169 = vmatpush1.bf16.msra.mxu0 0
      %1170 = vmatprep.subr.bf16.mxu0 0
      %1171 = vmatpush1.bf16.msra.mxu0 0
      %1172 = vmatprep.subr.bf16.mxu0 0
      %1173 = vmatpush1.bf16.msra.mxu0 0
      %1174 = vmatprep.subr.bf16.mxu0 0
      %1175 = vmatpush1.bf16.msra.mxu0 0
      %1176 = vmatprep.subr.bf16.mxu0 0
      %1177 = vmatpush1.bf16.msra.mxu0 0
      %1178 = vmatprep.subr.bf16.mxu0 0
      %1179 = vmatpush1.bf16.msra.mxu0 0
      %1180 = vmatprep.subr.bf16.mxu0 0
      %1181 = vmatpush1.bf16.msra.mxu0 0
      %1182 = vmatprep.subr.bf16.mxu0 0
      %1183 = vmatpush1.bf16.msra.mxu0 0
      %1184 = vmatprep.subr.bf16.mxu0 0
      %1185 = vmatpush1.bf16.msra.mxu0 0
      %1186 = vmatprep.subr.bf16.mxu0 0
      %1187 = vmatpush1.bf16.msra.mxu0 0
      %1188 = vmatprep.subr.bf16.mxu0 0
      %1189 = vmatpush1.bf16.msra.mxu0 0
      %1190 = vmatprep.mubr.bf16.mxu0 0
      %1191 = vmatmul.mubr.bf16.gmra.mrb[0].mxu0 %v517
      %v1192 = vpop.f32.mrb[0].mxu0
      %v1193 = vadd.f32 0.0, %v1192
      %v1194 = vpop.f32.mrb[0].mxu0
      %v1195 = vpop.f32.mrb[0].mxu0
      %v1196 = vadd.f32 0.0, %v1195
      %v1197 = vpop.f32.mrb[0].mxu0
      %1198 = vmatprep.mubr.bf16.mxu0 0
      %1199 = vmatmul.mubr.bf16.gmra.mrb[0].mxu0 %v520
      %v1200 = vpop.f32.mrb[0].mxu0
      %v1201 = vadd.f32 0.0, %v1200
      %v1202 = vpop.f32.mrb[0].mxu0
      %v1203 = vpop.f32.mrb[0].mxu0
      %v1204 = vadd.f32 0.0, %v1203
      %v1205 = vpop.f32.mrb[0].mxu0
      %1206 = vmatprep.mubr.bf16.mxu0 0
      %1207 = vmatmul.mubr.bf16.gmra.mrb[0].mxu0 %v523
      %v1208 = vpop.f32.mrb[0].mxu0
      %v1209 = vadd.f32 0.0, %v1208
      %v1210 = vpop.f32.mrb[0].mxu0
      %v1211 = vpop.f32.mrb[0].mxu0
      %v1212 = vadd.f32 0.0, %v1211
      %v1213 = vpop.f32.mrb[0].mxu0
      %1214 = vmatprep.mubr.bf16.mxu0 0
      %1215 = vmatmul.mubr.bf16.gmra.mrb[0].mxu0 %v1156
      %v1216 = vpop.f32.mrb[0].mxu0
      %v1217 = vadd.f32 0.0, %v1216
      %v1218 = vpop.f32.mrb[0].mxu0
      %v1219 = vpop.f32.mrb[0].mxu0
      %v1220 = vadd.f32 0.0, %v1219
      %v1221 = vpop.f32.mrb[0].mxu0
      %1222 = vdwg.mxu0
      %v1223 = vadd.f32 %v1113, %v1193
      %v1224 = vadd.f32 %v1114, %v1196
      %v1225 = vadd.f32 %v1115, %v1201
      %v1226 = vadd.f32 %v1116, %v1204
      %v1227 = vadd.f32 %v1117, %v1209
      %v1228 = vadd.f32 %v1118, %v1212
      %v1229 = vadd.f32 %v1119, %v1217
      %v1230 = vadd.f32 %v1120, %v1220
      %v1233 = vrot.slane %v311, 1
      %v1234 = vrot.slane %v312, 1
      %v1235 = vsel %vm341, %v1233, %v1234
      %v1237 = vpack.c.bf16 %v1235, %v871
      %s1238 = scalar_lea.vmem %s1, 224
      %v1239 = vld [vmem:[%s1238] sm:$0xf]
      %v1240 = vld [vmem:[%s1238 + $0x4] sm:$0xf]
      %v1241 = vld [vmem:[%s1238 + $0x8] sm:$0xf]
      %v1242 = vld [vmem:[%s1238 + $0xc] sm:$0xf]
      %v1243 = vld [vmem:[%s1238 + $0x10] sm:$0xf]
      %v1244 = vld [vmem:[%s1238 + $0x14] sm:$0xf]
      %v1245 = vld [vmem:[%s1238 + $0x18] sm:$0xf]
      %v1246 = vld [vmem:[%s1238 + $0x1c] sm:$0xf]
      %v1255 = vunpack.c.l.b16 %v1239
      %v1256 = vunpack.c.l.b16 %v1240
      %v1257 = vunpack.c.l.b16 %v1241
      %v1258 = vunpack.c.l.b16 %v1242
      %v1259 = vunpack.c.l.b16 %v1243
      %v1260 = vunpack.c.l.b16 %v1244
      %v1261 = vunpack.c.l.b16 %v1245
      %v1262 = vunpack.c.l.b16 %v1246
      %v1263 = vpack.c.b16 %v1256, %v1255
      %v1264 = vpack.c.b16 %v1258, %v1257
      %v1265 = vpack.c.b16 %v1260, %v1259
      %v1266 = vpack.c.b16 %v1262, %v1261
      %v1272 = vsel %vm411, %v1237, 0
      %1274 = vmatprep.subr.bf16.mxu0 0
      %1275 = vmatpush1.bf16.msra.mxu0 %v1263
      %1276 = vmatprep.subr.bf16.mxu0 0
      %1277 = vmatpush1.bf16.msra.mxu0 %v1264
      %1278 = vmatprep.subr.bf16.mxu0 0
      %1279 = vmatpush1.bf16.msra.mxu0 %v1265
      %1280 = vmatprep.subr.bf16.mxu0 0
      %1281 = vmatpush1.bf16.msra.mxu0 %v1266
      %1282 = vmatprep.subr.bf16.mxu0 0
      %1283 = vmatpush1.bf16.msra.mxu0 0
      %1284 = vmatprep.subr.bf16.mxu0 0
      %1285 = vmatpush1.bf16.msra.mxu0 0
      %1286 = vmatprep.subr.bf16.mxu0 0
      %1287 = vmatpush1.bf16.msra.mxu0 0
      %1288 = vmatprep.subr.bf16.mxu0 0
      %1289 = vmatpush1.bf16.msra.mxu0 0
      %1290 = vmatprep.subr.bf16.mxu0 0
      %1291 = vmatpush1.bf16.msra.mxu0 0
      %1292 = vmatprep.subr.bf16.mxu0 0
      %1293 = vmatpush1.bf16.msra.mxu0 0
      %1294 = vmatprep.subr.bf16.mxu0 0
      %1295 = vmatpush1.bf16.msra.mxu0 0
      %1296 = vmatprep.subr.bf16.mxu0 0
      %1297 = vmatpush1.bf16.msra.mxu0 0
      %1298 = vmatprep.subr.bf16.mxu0 0
      %1299 = vmatpush1.bf16.msra.mxu0 0
      %1300 = vmatprep.subr.bf16.mxu0 0
      %1301 = vmatpush1.bf16.msra.mxu0 0
      %1302 = vmatprep.subr.bf16.mxu0 0
      %1303 = vmatpush1.bf16.msra.mxu0 0
      %1304 = vmatprep.subr.bf16.mxu0 0
      %1305 = vmatpush1.bf16.msra.mxu0 0
      %1306 = vmatprep.mubr.bf16.mxu0 0
      %1307 = vmatmul.mubr.bf16.gmra.mrb[0].mxu0 %v416
      %v1308 = vpop.f32.mrb[0].mxu0
      %v1309 = vadd.f32 0.0, %v1308
      %v1310 = vpop.f32.mrb[0].mxu0
      %v1311 = vpop.f32.mrb[0].mxu0
      %v1312 = vadd.f32 0.0, %v1311
      %v1313 = vpop.f32.mrb[0].mxu0
      %1314 = vmatprep.mubr.bf16.mxu0 0
      %1315 = vmatmul.mubr.bf16.gmra.mrb[0].mxu0 %v419
      %v1316 = vpop.f32.mrb[0].mxu0
      %v1317 = vadd.f32 0.0, %v1316
      %v1318 = vpop.f32.mrb[0].mxu0
      %v1319 = vpop.f32.mrb[0].mxu0
      %v1320 = vadd.f32 0.0, %v1319
      %v1321 = vpop.f32.mrb[0].mxu0
      %1322 = vmatprep.mubr.bf16.mxu0 0
      %1323 = vmatmul.mubr.bf16.gmra.mrb[0].mxu0 %v422
      %v1324 = vpop.f32.mrb[0].mxu0
      %v1325 = vadd.f32 0.0, %v1324
      %v1326 = vpop.f32.mrb[0].mxu0
      %v1327 = vpop.f32.mrb[0].mxu0
      %v1328 = vadd.f32 0.0, %v1327
      %v1329 = vpop.f32.mrb[0].mxu0
      %1330 = vmatprep.mubr.bf16.mxu0 0
      %1331 = vmatmul.mubr.bf16.gmra.mrb[0].mxu0 %v1272
      %v1332 = vpop.f32.mrb[0].mxu0
      %v1333 = vadd.f32 0.0, %v1332
      %v1334 = vpop.f32.mrb[0].mxu0
      %v1335 = vpop.f32.mrb[0].mxu0
      %v1336 = vadd.f32 0.0, %v1335
      %v1337 = vpop.f32.mrb[0].mxu0
      %1338 = vdwg.mxu0
      %v1339 = vadd.f32 %v1223, %v1309
      %v1340 = vadd.f32 %v1224, %v1312
      %v1341 = vadd.f32 %v1225, %v1317
      %v1342 = vadd.f32 %v1226, %v1320
      %v1343 = vadd.f32 %v1227, %v1325
      %v1344 = vadd.f32 %v1228, %v1328
      %v1345 = vadd.f32 %v1229, %v1333
      %v1346 = vadd.f32 %v1230, %v1336
      %v1347 = vrot.slane %v311, 2
      %v1348 = vrot.slane %v312, 2
      %v1349 = vsel %vm590, %v1347, %v1348
      %v1351 = vpack.c.bf16 %v1349, %v997
      %s1352 = scalar_lea.vmem %s1, 256
      %v1353 = vld [vmem:[%s1352] sm:$0xf]
      %v1354 = vld [vmem:[%s1352 + $0x4] sm:$0xf]
      %v1355 = vld [vmem:[%s1352 + $0x8] sm:$0xf]
      %v1356 = vld [vmem:[%s1352 + $0xc] sm:$0xf]
      %v1357 = vld [vmem:[%s1352 + $0x10] sm:$0xf]
      %v1358 = vld [vmem:[%s1352 + $0x14] sm:$0xf]
      %v1359 = vld [vmem:[%s1352 + $0x18] sm:$0xf]
      %v1360 = vld [vmem:[%s1352 + $0x1c] sm:$0xf]
      %v1369 = vunpack.c.l.b16 %v1353
      %v1370 = vunpack.c.l.b16 %v1354
      %v1371 = vunpack.c.l.b16 %v1355
      %v1372 = vunpack.c.l.b16 %v1356
      %v1373 = vunpack.c.l.b16 %v1357
      %v1374 = vunpack.c.l.b16 %v1358
      %v1375 = vunpack.c.l.b16 %v1359
      %v1376 = vunpack.c.l.b16 %v1360
      %v1377 = vpack.c.b16 %v1370, %v1369
      %v1378 = vpack.c.b16 %v1372, %v1371
      %v1379 = vpack.c.b16 %v1374, %v1373
      %v1380 = vpack.c.b16 %v1376, %v1375
      %v1386 = vsel %vm411, %v1351, 0
      %1388 = vmatprep.subr.bf16.mxu0 0
      %1389 = vmatpush1.bf16.msra.mxu0 %v1377
      %1390 = vmatprep.subr.bf16.mxu0 0
      %1391 = vmatpush1.bf16.msra.mxu0 %v1378
      %1392 = vmatprep.subr.bf16.mxu0 0
      %1393 = vmatpush1.bf16.msra.mxu0 %v1379
      %1394 = vmatprep.subr.bf16.mxu0 0
      %1395 = vmatpush1.bf16.msra.mxu0 %v1380
      %1396 = vmatprep.subr.bf16.mxu0 0
      %1397 = vmatpush1.bf16.msra.mxu0 0
      %1398 = vmatprep.subr.bf16.mxu0 0
      %1399 = vmatpush1.bf16.msra.mxu0 0
      %1400 = vmatprep.subr.bf16.mxu0 0
      %1401 = vmatpush1.bf16.msra.mxu0 0
      %1402 = vmatprep.subr.bf16.mxu0 0
      %1403 = vmatpush1.bf16.msra.mxu0 0
      %1404 = vmatprep.subr.bf16.mxu0 0
      %1405 = vmatpush1.bf16.msra.mxu0 0
      %1406 = vmatprep.subr.bf16.mxu0 0
      %1407 = vmatpush1.bf16.msra.mxu0 0
      %1408 = vmatprep.subr.bf16.mxu0 0
      %1409 = vmatpush1.bf16.msra.mxu0 0
      %1410 = vmatprep.subr.bf16.mxu0 0
      %1411 = vmatpush1.bf16.msra.mxu0 0
      %1412 = vmatprep.subr.bf16.mxu0 0
      %1413 = vmatpush1.bf16.msra.mxu0 0
      %1414 = vmatprep.subr.bf16.mxu0 0
      %1415 = vmatpush1.bf16.msra.mxu0 0
      %1416 = vmatprep.subr.bf16.mxu0 0
      %1417 = vmatpush1.bf16.msra.mxu0 0
      %1418 = vmatprep.subr.bf16.mxu0 0
      %1419 = vmatpush1.bf16.msra.mxu0 0
      %1420 = vmatprep.mubr.bf16.mxu0 0
      %1421 = vmatmul.mubr.bf16.gmra.mrb[0].mxu0 %v664
      %v1422 = vpop.f32.mrb[0].mxu0
      %v1423 = vadd.f32 0.0, %v1422
      %v1424 = vpop.f32.mrb[0].mxu0
      %v1425 = vpop.f32.mrb[0].mxu0
      %v1426 = vadd.f32 0.0, %v1425
      %v1427 = vpop.f32.mrb[0].mxu0
      %1428 = vmatprep.mubr.bf16.mxu0 0
      %1429 = vmatmul.mubr.bf16.gmra.mrb[0].mxu0 %v667
      %v1430 = vpop.f32.mrb[0].mxu0
      %v1431 = vadd.f32 0.0, %v1430
      %v1432 = vpop.f32.mrb[0].mxu0
      %v1433 = vpop.f32.mrb[0].mxu0
      %v1434 = vadd.f32 0.0, %v1433
      %v1435 = vpop.f32.mrb[0].mxu0
      %1436 = vmatprep.mubr.bf16.mxu0 0
      %1437 = vmatmul.mubr.bf16.gmra.mrb[0].mxu0 %v670
      %v1438 = vpop.f32.mrb[0].mxu0
      %v1439 = vadd.f32 0.0, %v1438
      %v1440 = vpop.f32.mrb[0].mxu0
      %v1441 = vpop.f32.mrb[0].mxu0
      %v1442 = vadd.f32 0.0, %v1441
      %v1443 = vpop.f32.mrb[0].mxu0
      %1444 = vmatprep.mubr.bf16.mxu0 0
      %1445 = vmatmul.mubr.bf16.gmra.mrb[0].mxu0 %v1386
      %v1446 = vpop.f32.mrb[0].mxu0
      %v1447 = vadd.f32 0.0, %v1446
      %v1448 = vpop.f32.mrb[0].mxu0
      %v1449 = vpop.f32.mrb[0].mxu0
      %v1450 = vadd.f32 0.0, %v1449
      %v1451 = vpop.f32.mrb[0].mxu0
      %1452 = vdwg.mxu0
      %v1453 = vadd.f32 %v1339, %v1423
      %v1454 = vadd.f32 %v1340, %v1426
      %v1455 = vadd.f32 %v1341, %v1431
      %v1456 = vadd.f32 %v1342, %v1434
      %v1457 = vadd.f32 %v1343, %v1439
      %v1458 = vadd.f32 %v1344, %v1442
      %v1459 = vadd.f32 %v1345, %v1447
      %v1460 = vadd.f32 %v1346, %v1450
      %v1461 = vld [vmem:[%s2] sm:$0x1]
      %v1463 = vlaneseq
      %v1464 = vshrl.u32 %v1463, 7
      %v1465 = vsub.s32 0, %v1464
      %v1466 = vrot.slane %v1461, %v1465
      %v1468 = vadd.f32 %v1453, %v1466
      %v1469 = vadd.f32 %v1454, %v1466
      %v1470 = vadd.f32 %v1455, %v1466
      %v1471 = vadd.f32 %v1456, %v1466
      %v1472 = vadd.f32 %v1457, %v1466
      %v1473 = vadd.f32 %v1458, %v1466
      %v1474 = vadd.f32 %v1459, %v1466
      %v1475 = vadd.f32 %v1460, %v1466
      %v1476 = vsel %vm411, %v1468, 0.0
      %v1477 = vsel %vm411, %v1469, 0.0
      %v1478 = vadd.f32 %v1476, %v1477
      %v1479 = vsel %vm411, %v1470, 0.0
      %v1480 = vadd.f32 %v1478, %v1479
      %v1481 = vsel %vm411, %v1471, 0.0
      %v1482 = vadd.f32 %v1480, %v1481
      %v1483 = vsel %vm411, %v1472, 0.0
      %v1484 = vadd.f32 %v1482, %v1483
      %v1485 = vsel %vm411, %v1473, 0.0
      %v1486 = vadd.f32 %v1484, %v1485
      %v1487 = vsel %vm411, %v1474, 0.0
      %v1488 = vadd.f32 %v1486, %v1487
      %v1489 = vsel %vm411, %v1475, 0.0
      %v1490 = vadd.f32 %v1488, %v1489
      %v1491 = vrot.slane %v1490, 4
      %v1492 = vadd.f32 %v1490, %v1491
      %v1493 = vrot.slane %v1492, 2
      %v1494 = vadd.f32 %v1492, %v1493
      %v1495 = vrot.slane %v1494, 1
      %v1496 = vadd.f32 %v1494, %v1495
      %v1497 = vrcp.pop 64.0
      %v1498 = vmul.f32 %v1496, %v1497
      %v1499 = vld [vmem:[%s3] sm:$0xff]
      %v1500 = vld [vmem:[%s3 + $0x8] sm:$0xff]
      %v1501 = vld [vmem:[%s3 + $0x10] sm:$0xff]
      %v1502 = vld [vmem:[%s3 + $0x18] sm:$0xff]
      %v1503 = vld [vmem:[%s3 + $0x20] sm:$0xff]
      %v1504 = vld [vmem:[%s3 + $0x28] sm:$0xff]
      %v1505 = vld [vmem:[%s3 + $0x30] sm:$0xff]
      %v1506 = vld [vmem:[%s3 + $0x38] sm:$0xff]
      %v1508 = vsel %vm411, %v1498, 0
      %1510 = vmatprep.subr.mxu0 0.0
      %1511 = vmatpush1.msra.mxu0 %v1499
      %1512 = vmatprep.subr.mxu0 0.0
      %1513 = vmatpush1.msra.mxu0 %v1500
      %1514 = vmatprep.subr.mxu0 0.0
      %1515 = vmatpush1.msra.mxu0 %v1501
      %1516 = vmatprep.subr.mxu0 0.0
      %1517 = vmatpush1.msra.mxu0 %v1502
      %1518 = vmatprep.subr.mxu0 0.0
      %1519 = vmatpush1.msra.mxu0 %v1503
      %1520 = vmatprep.subr.mxu0 0.0
      %1521 = vmatpush1.msra.mxu0 %v1504
      %1522 = vmatprep.subr.mxu0 0.0
      %1523 = vmatpush1.msra.mxu0 %v1505
      %1524 = vmatprep.subr.mxu0 0.0
      %1525 = vmatpush1.msra.mxu0 %v1506
      %1526 = vmatprep.subr.mxu0 0.0
      %1527 = vmatpush1.msra.mxu0 0.0
      %1528 = vmatprep.subr.mxu0 0.0
      %1529 = vmatpush1.msra.mxu0 0.0
      %1530 = vmatprep.subr.mxu0 0.0
      %1531 = vmatpush1.msra.mxu0 0.0
      %1532 = vmatprep.subr.mxu0 0.0
      %1533 = vmatpush1.msra.mxu0 0.0
      %1534 = vmatprep.subr.mxu0 0.0
      %1535 = vmatpush1.msra.mxu0 0.0
      %1536 = vmatprep.subr.mxu0 0.0
      %1537 = vmatpush1.msra.mxu0 0.0
      %1538 = vmatprep.subr.mxu0 0.0
      %1539 = vmatpush1.msra.mxu0 0.0
      %1540 = vmatprep.subr.mxu0 0.0
      %1541 = vmatpush1.msra.mxu0 0.0
      %1542 = vmatprep.subr.mxu0 0.0
      %1543 = vmatpush1.msra.mxu0 0.0
      %1544 = vmatprep.subr.mxu0 0.0
      %1545 = vmatpush1.msra.mxu0 0.0
      %1546 = vmatprep.subr.mxu0 0.0
      %1547 = vmatpush1.msra.mxu0 0.0
      %1548 = vmatprep.subr.mxu0 0.0
      %1549 = vmatpush1.msra.mxu0 0.0
      %1550 = vmatprep.subr.mxu0 0.0
      %1551 = vmatpush1.msra.mxu0 0.0
      %1552 = vmatprep.subr.mxu0 0.0
      %1553 = vmatpush1.msra.mxu0 0.0
      %1554 = vmatprep.subr.mxu0 0.0
      %1555 = vmatpush1.msra.mxu0 0.0
      %1556 = vmatprep.subr.mxu0 0.0
      %1557 = vmatpush1.msra.mxu0 0.0
      %1558 = vmatprep.subr.mxu0 0.0
      %1559 = vmatpush1.msra.mxu0 0.0
      %1560 = vmatprep.subr.mxu0 0.0
      %1561 = vmatpush1.msra.mxu0 0.0
      %1562 = vmatprep.subr.mxu0 0.0
      %1563 = vmatpush1.msra.mxu0 0.0
      %1564 = vmatprep.subr.mxu0 0.0
      %1565 = vmatpush1.msra.mxu0 0.0
      %1566 = vmatprep.subr.mxu0 0.0
      %1567 = vmatpush1.msra.mxu0 0.0
      %1568 = vmatprep.subr.mxu0 0.0
      %1569 = vmatpush1.msra.mxu0 0.0
      %1570 = vmatprep.subr.mxu0 0.0
      %1571 = vmatpush1.msra.mxu0 0.0
      %1572 = vmatprep.subr.mxu0 0.0
      %1573 = vmatpush1.msra.mxu0 0.0
      %1574 = vmatprep.mubr.f32.mxu0 0.0
      %1575 = vmatmul.mubr.f32.gmra.mrb[0].mxu0 %v1508
      %v1576 = vpop.f32.mrb[0].mxu0
      %v1577 = vadd.f32 0.0, %v1576
      %v1578 = vpop.f32.mrb[0].mxu0
      %1579 = vdwg.mxu0
      %v1580 = vmax.f32 %v1577, 0.0
      %v1581 = vld [vmem:[%s4] sm:$0xf]
      %vm1582 = vcmask 31744
      %v1584 = vsel %vm1582, %v1580, 0
      %vm1586 = vcmask 1043456
      %v1588 = vsel %vm1586, %v1581, 0
      %1590 = vmatprep.subr.mxu0 0.0
      %1591 = vmatpush1.msra.mxu0 %v1588
      %1592 = vmatprep.subr.mxu0 0.0
      %1593 = vmatpush1.msra.mxu0 0.0
      %1594 = vmatprep.subr.mxu0 0.0
      %1595 = vmatpush1.msra.mxu0 0.0
      %1596 = vmatprep.subr.mxu0 0.0
      %1597 = vmatpush1.msra.mxu0 0.0
      %1598 = vmatprep.subr.mxu0 0.0
      %1599 = vmatpush1.msra.mxu0 0.0
      %1600 = vmatprep.subr.mxu0 0.0
      %1601 = vmatpush1.msra.mxu0 0.0
      %1602 = vmatprep.subr.mxu0 0.0
      %1603 = vmatpush1.msra.mxu0 0.0
      %1604 = vmatprep.subr.mxu0 0.0
      %1605 = vmatpush1.msra.mxu0 0.0
      %1606 = vmatprep.subr.mxu0 0.0
      %1607 = vmatpush1.msra.mxu0 0.0
      %1608 = vmatprep.subr.mxu0 0.0
      %1609 = vmatpush1.msra.mxu0 0.0
      %1610 = vmatprep.subr.mxu0 0.0
      %1611 = vmatpush1.msra.mxu0 0.0
      %1612 = vmatprep.subr.mxu0 0.0
      %1613 = vmatpush1.msra.mxu0 0.0
      %1614 = vmatprep.subr.mxu0 0.0
      %1615 = vmatpush1.msra.mxu0 0.0
      %1616 = vmatprep.subr.mxu0 0.0
      %1617 = vmatpush1.msra.mxu0 0.0
      %1618 = vmatprep.subr.mxu0 0.0
      %1619 = vmatpush1.msra.mxu0 0.0
      %1620 = vmatprep.subr.mxu0 0.0
      %1621 = vmatpush1.msra.mxu0 0.0
      %1622 = vmatprep.subr.mxu0 0.0
      %1623 = vmatpush1.msra.mxu0 0.0
      %1624 = vmatprep.subr.mxu0 0.0
      %1625 = vmatpush1.msra.mxu0 0.0
      %1626 = vmatprep.subr.mxu0 0.0
      %1627 = vmatpush1.msra.mxu0 0.0
      %1628 = vmatprep.subr.mxu0 0.0
      %1629 = vmatpush1.msra.mxu0 0.0
      %1630 = vmatprep.subr.mxu0 0.0
      %1631 = vmatpush1.msra.mxu0 0.0
      %1632 = vmatprep.subr.mxu0 0.0
      %1633 = vmatpush1.msra.mxu0 0.0
      %1634 = vmatprep.subr.mxu0 0.0
      %1635 = vmatpush1.msra.mxu0 0.0
      %1636 = vmatprep.subr.mxu0 0.0
      %1637 = vmatpush1.msra.mxu0 0.0
      %1638 = vmatprep.subr.mxu0 0.0
      %1639 = vmatpush1.msra.mxu0 0.0
      %1640 = vmatprep.subr.mxu0 0.0
      %1641 = vmatpush1.msra.mxu0 0.0
      %1642 = vmatprep.subr.mxu0 0.0
      %1643 = vmatpush1.msra.mxu0 0.0
      %1644 = vmatprep.subr.mxu0 0.0
      %1645 = vmatpush1.msra.mxu0 0.0
      %1646 = vmatprep.subr.mxu0 0.0
      %1647 = vmatpush1.msra.mxu0 0.0
      %1648 = vmatprep.subr.mxu0 0.0
      %1649 = vmatpush1.msra.mxu0 0.0
      %1650 = vmatprep.subr.mxu0 0.0
      %1651 = vmatpush1.msra.mxu0 0.0
      %1652 = vmatprep.subr.mxu0 0.0
      %1653 = vmatpush1.msra.mxu0 0.0
      %1654 = vmatprep.mubr.f32.mxu0 0.0
      %1655 = vmatmul.mubr.f32.gmra.mrb[0].mxu0 %v1584
      %v1656 = vpop.f32.mrb[0].mxu0
      %v1657 = vadd.f32 0.0, %v1656
      %v1658 = vpop.f32.mrb[0].mxu0
      %1659 = vdwg.mxu0
      %v1660 = vsub.f32 0.0, %v1657
      %v1661 = vmul.f32 %v1660, 1.442695
      %v1662 = vpow.pop %v1661
      %v1663 = vadd.f32 %v1662, 1.0
      %v1664 = vrcp.pop %v1663
      %v1665 = vmul.f32 1.0, %v1664
      %v1666 = vlaneseq
      %v1667 = vshrl.u32 %v1666, 7
      %v1668 = vsub.s32 0, %v1667
      %v1669 = vrot.slane %v1665, %v1668
      %v1670 = vmul.f32 %v1468, %v1669
      %v1671 = vmul.f32 %v1469, %v1669
      %v1672 = vmul.f32 %v1470, %v1669
      %v1673 = vmul.f32 %v1471, %v1669
      %v1674 = vmul.f32 %v1472, %v1669
      %v1675 = vmul.f32 %v1473, %v1669
      %v1676 = vmul.f32 %v1474, %v1669
      %v1677 = vmul.f32 %v1475, %v1669
      %v1678 = vld [vmem:[%s266] sm:$0xf]
      %v1679 = vld [vmem:[%s266 + $0x4] sm:$0xf]
      %v1680 = vld [vmem:[%s266 + $0x8] sm:$0xf]
      %v1681 = vld [vmem:[%s266 + $0xc] sm:$0xf]
      %v1682 = vld [vmem:[%s266 + $0x10] sm:$0xf]
      %v1683 = vld [vmem:[%s266 + $0x14] sm:$0xf]
      %v1684 = vld [vmem:[%s266 + $0x18] sm:$0xf]
      %v1685 = vld [vmem:[%s266 + $0x1c] sm:$0xf]
      %v1686 = vunpack.c.l.bf16 %v1678
      %v1687 = vunpack.c.l.bf16 %v1679
      %v1688 = vunpack.c.l.bf16 %v1680
      %v1689 = vunpack.c.l.bf16 %v1681
      %v1690 = vunpack.c.l.bf16 %v1682
      %v1691 = vunpack.c.l.bf16 %v1683
      %v1692 = vunpack.c.l.bf16 %v1684
      %v1693 = vunpack.c.l.bf16 %v1685
      %v1694 = vadd.f32 %v1670, %v1686
      %v1695 = vadd.f32 %v1671, %v1687
      %v1696 = vadd.f32 %v1672, %v1688
      %v1697 = vadd.f32 %v1673, %v1689
      %v1698 = vadd.f32 %v1674, %v1690
      %v1699 = vadd.f32 %v1675, %v1691
      %v1700 = vadd.f32 %v1676, %v1692
      %v1701 = vadd.f32 %v1677, %v1693
      %v1702 = vpack.c.bf16 %v1695, %v1694
      %v1703 = vpack.c.bf16 %v1697, %v1696
      %v1704 = vpack.c.bf16 %v1699, %v1698
      %v1705 = vpack.c.bf16 %v1701, %v1700
      %v1710 = vunpack.c.l.b16 %v1702
      %v1711 = vunpack.c.h.b16 %v1702
      %v1712 = vunpack.c.l.b16 %v1703
      %v1713 = vunpack.c.h.b16 %v1703
      %v1714 = vunpack.c.l.b16 %v1704
      %v1715 = vunpack.c.h.b16 %v1704
      %v1716 = vunpack.c.l.b16 %v1705
      %v1717 = vunpack.c.h.b16 %v1705
      %v1718 = vpack.c.b16 %v1710, %v1710
      %v1719 = vpack.c.b16 %v1711, %v1711
      %v1720 = vpack.c.b16 %v1712, %v1712
      %v1721 = vpack.c.b16 %v1713, %v1713
      %v1722 = vpack.c.b16 %v1714, %v1714
      %v1723 = vpack.c.b16 %v1715, %v1715
      %v1724 = vpack.c.b16 %v1716, %v1716
      %v1725 = vpack.c.b16 %v1717, %v1717
      %vm1734 = vcmask 519168
      %1735 = vst.msk [vmem:[%s271] sm:$0xf] %vm1734, %v1718
      %1736 = vst.msk [vmem:[%s271 + $0x4] sm:$0xf] %vm1734, %v1719
      %1737 = vst.msk [vmem:[%s271 + $0x8] sm:$0xf] %vm1734, %v1720
      %1738 = vst.msk [vmem:[%s271 + $0xc] sm:$0xf] %vm1734, %v1721
      %1739 = vst.msk [vmem:[%s271 + $0x10] sm:$0xf] %vm1734, %v1722
      %1740 = vst.msk [vmem:[%s271 + $0x14] sm:$0xf] %vm1734, %v1723
      %1741 = vst.msk [vmem:[%s271 + $0x18] sm:$0xf] %vm1734, %v1724
      %1742 = vst.msk [vmem:[%s271 + $0x1c] sm:$0xf] %vm1734, %v1725
      %p1743 = scmp.lt.s32.totalorder %s17, 1
      %s1744 = scalar_select %p1743, %s17, 1
      %s1745 = smul.addr %s1744, 8
      %s1746 = smul.addr %s1745, 4
      %s1747 = scalar_lea.vmem %s6, %s1746
      // Predicated region
      $region45: #{forward.9} parent=43 // pred_check
        %p1748 = pneg %p171
      $region46: #{forward.9} parent=43 // pred_check_branch
        %1750 = sbr.rel (%p1748) target = $region48
      $region47: #{forward.9} parent=43 // pred_region
        _
      $region48: #{forward.9} parent=43 // pred_fallthru
        _
    $region44: #{forward.9} parent=5 // pred_fallthru
      _
    %p1751 = scmp.le.s32.totalorder 2, %s12
    // Predicated region
    $region49: #{forward.9} parent=5 // pred_check
      %p1752 = pneg %p1751
    $region50: #{forward.9} parent=5 // pred_check_branch
      %1754 = sbr.rel (%p1752) target = $region52
    $region51: #{forward.9} parent=5 // pred_region
      %s1755 = ssub.s32 %s12, 2
      // Predicated region
      $region53: #{forward.9} parent=51 // pred_check
        %p1756 = pneg %p177
      $region54: #{forward.9} parent=51 // pred_check_branch
        %1758 = sbr.rel (%p1756) target = $region56
      $region55: #{forward.9} parent=51 // pred_region
        %p1759 = scmp.lt.s32.totalorder %s18, 1
        %s1760 = scalar_select %p1759, %s18, 1
        %s1761 = smul.addr %s1760, 8
        %s1762 = smul.addr %s1761, 4
        %s1763 = scalar_lea.vmem %s6, %s1762
      $region56: #{forward.9} parent=51 // pred_fallthru
        _
    $region52: #{forward.9} parent=5 // pred_fallthru
      _
  $region6: #{forward.9} parent=0 // loop_footer
    %s16 = sadd.s32 1, %s12
  $region7: #{forward.9} parent=0 // loop_footer_branch
    %11 = sbr.rel target = $region3
  $region8: #{forward.9} parent=0 // loop_exit
    _

// kernel: forward.6
$region0: #{forward.6}
  #allocation0 [shape = 'u32[]', space=smem, size = 0x4, offset = 0x4, fixed_abs, tag = 'smem constant byte address 0x4 - core index']
  #allocation1 [shape = 'u32[144,128]{1,0:T(1,128)}', space=vmem, size = 0x12000, scoped, tag = 'internal scratch']
  %s0 = inlined_call_operand.vmem [shape: bf16[2,18,18,32], index: 0, kind: input, shape index: {}]
  %s1 = inlined_call_operand.vmem [shape: bf16[9,32,64], index: 1, kind: input, shape index: {}]
  %s2 = inlined_call_operand.vmem [shape: f32[1,64], index: 2, kind: input, shape index: {}]
  %s3 = inlined_call_operand.vmem [shape: f32[1,64], index: 3, kind: input, shape index: {}]
  %s4 = inlined_call_operand.vmem [shape: bf16[2,256,64], index: 4, kind: output, shape index: {}]
  %s5 = sld [smem:[#allocation0]]
  $region49: #{forward.6} parent=0
    _
  %s7 = ssub.s32 1, %s5
  %s8 = scalar_select 0, %s7, %s5
  loop: start=0, step=1, limit=4
  $region2: #{forward.6} parent=0 // loop_pre_header
    _
  $region3: #{forward.6} parent=0 // loop_header
    %s10 = sphi 0, %s14
    %p11 = scmp.ge.s32.totalorder %s10, 4
    %s20 = sphi 0, %s22
    %s23 = sphi 0, %s20
    %s24 = sphi 0, %s23
    %s40 = sphi 0, %s24
    %s44 = sphi 0, %s44
    %s46 = sphi 0, %s44
    %s47 = sphi 0, %s46
    %s61 = sphi 0, %s47
    %s65 = sphi 0, %s65
    %s67 = sphi 0, %s65
    %s68 = sphi 0, %s67
    %s82 = sphi 0, %s68
    %s86 = sphi 0, %s86
    %s88 = sphi 0, %s86
    %s89 = sphi 0, %s88
    %s103 = sphi 0, %s89
    %s109 = sphi 0, %s111
    %s112 = sphi 0, %s109
    %s113 = sphi 0, %s112
    %s129 = sphi 0, %s113
  $region4: #{forward.6} parent=0 // loop_header_branch
    %13 = sbr.rel (%p11) target = $region8
  $region5: #{forward.6} parent=0 // loop_body
    %s15 = ssub.s32 %s10, 1
    %s16 = ssub.s32 %s10, 2
    %s17 = sadd.s32 %s10, 1
    %s18 = ssub.s32 %s10, %s17
    %p19 = scmp.eq.s32.totalorder %s18, 0
    %s21 = sadd.s32 %s20, 1
    %s22 = scalar_select %p19, %s20, %s21
    %p25 = pneg %p19
    %p26 = scmp.eq.s32.totalorder %s10, 1
    %p27 = por %p25, %p26
    %p28 = scmp.ne.s32.totalorder %s20, %s23
    %p29 = scmp.eq.s32.totalorder %s10, 0
    %p30 = por %p28, %p29
    %p31 = scmp.ne.s32.totalorder %s20, %s23
    %p32 = scmp.eq.s32.totalorder %s15, 1
    %p33 = por %p31, %p32
    %p34 = scmp.ne.s32.totalorder %s23, %s24
    %p35 = scmp.eq.s32.totalorder %s15, 0
    %p36 = por %p34, %p35
    %p37 = scmp.ne.s32.totalorder %s23, %s24
    %p38 = scmp.eq.s32.totalorder %s16, 1
    %p39 = por %p37, %p38
    %p41 = scmp.ne.s32.totalorder %s24, %s40
    %p42 = scmp.eq.s32.totalorder %s16, 0
    %p43 = por %p41, %p42
    %s45 = sadd.s32 %s44, 1
    %p48 = scmp.eq.s32.totalorder %s10, 1
    %p49 = scmp.ne.s32.totalorder %s44, %s46
    %p50 = scmp.eq.s32.totalorder %s10, 0
    %p51 = por %p49, %p50
    %p52 = scmp.ne.s32.totalorder %s44, %s46
    %p53 = scmp.eq.s32.totalorder %s15, 1
    %p54 = por %p52, %p53
    %p55 = scmp.ne.s32.totalorder %s46, %s47
    %p56 = scmp.eq.s32.totalorder %s15, 0
    %p57 = por %p55, %p56
    %p58 = scmp.ne.s32.totalorder %s46, %s47
    %p59 = scmp.eq.s32.totalorder %s16, 1
    %p60 = por %p58, %p59
    %p62 = scmp.ne.s32.totalorder %s47, %s61
    %p63 = scmp.eq.s32.totalorder %s16, 0
    %p64 = por %p62, %p63
    %s66 = sadd.s32 %s65, 1
    %p69 = scmp.eq.s32.totalorder %s10, 1
    %p70 = scmp.ne.s32.totalorder %s65, %s67
    %p71 = scmp.eq.s32.totalorder %s10, 0
    %p72 = por %p70, %p71
    %p73 = scmp.ne.s32.totalorder %s65, %s67
    %p74 = scmp.eq.s32.totalorder %s15, 1
    %p75 = por %p73, %p74
    %p76 = scmp.ne.s32.totalorder %s67, %s68
    %p77 = scmp.eq.s32.totalorder %s15, 0
    %p78 = por %p76, %p77
    %p79 = scmp.ne.s32.totalorder %s67, %s68
    %p80 = scmp.eq.s32.totalorder %s16, 1
    %p81 = por %p79, %p80
    %p83 = scmp.ne.s32.totalorder %s68, %s82
    %p84 = scmp.eq.s32.totalorder %s16, 0
    %p85 = por %p83, %p84
    %s87 = sadd.s32 %s86, 1
    %p90 = scmp.eq.s32.totalorder %s10, 1
    %p91 = scmp.ne.s32.totalorder %s86, %s88
    %p92 = scmp.eq.s32.totalorder %s10, 0
    %p93 = por %p91, %p92
    %p94 = scmp.ne.s32.totalorder %s86, %s88
    %p95 = scmp.eq.s32.totalorder %s15, 1
    %p96 = por %p94, %p95
    %p97 = scmp.ne.s32.totalorder %s88, %s89
    %p98 = scmp.eq.s32.totalorder %s15, 0
    %p99 = por %p97, %p98
    %p100 = scmp.ne.s32.totalorder %s88, %s89
    %p101 = scmp.eq.s32.totalorder %s16, 1
    %p102 = por %p100, %p101
    %p104 = scmp.ne.s32.totalorder %s89, %s103
    %p105 = scmp.eq.s32.totalorder %s16, 0
    %p106 = por %p104, %p105
    %s107 = ssub.s32 %s10, %s17
    %p108 = scmp.eq.s32.totalorder %s107, 0
    %s110 = sadd.s32 %s109, 1
    %s111 = scalar_select %p108, %s109, %s110
    %p114 = pneg %p108
    %p115 = scmp.eq.s32.totalorder %s10, 1
    %p116 = por %p114, %p115
    %p117 = scmp.ne.s32.totalorder %s109, %s112
    %p118 = scmp.eq.s32.totalorder %s10, 0
    %p119 = por %p117, %p118
    %p120 = scmp.ne.s32.totalorder %s109, %s112
    %p121 = scmp.eq.s32.totalorder %s15, 1
    %p122 = por %p120, %p121
    %p123 = scmp.ne.s32.totalorder %s112, %s113
    %p124 = scmp.eq.s32.totalorder %s15, 0
    %p125 = por %p123, %p124
    %p126 = scmp.ne.s32.totalorder %s112, %s113
    %p127 = scmp.eq.s32.totalorder %s16, 1
    %p128 = por %p126, %p127
    %p130 = scmp.ne.s32.totalorder %s113, %s129
    %p131 = scmp.eq.s32.totalorder %s16, 0
    %p132 = por %p130, %p131
    %p133 = scmp.le.s32.totalorder 1, %s10
    %p134 = scmp.lt.s32.totalorder %s10, 3
    %p135 = pnand %p133, %p134
    %p136 = pneg %p135
    // Predicated region
    $region9: #{forward.6} parent=5 // pred_check
      _
    $region10: #{forward.6} parent=5 // pred_check_branch
      %138 = sbr.rel (%p135) target = $region12
    $region11: #{forward.6} parent=5 // pred_region
      %s139 = ssub.s32 %s10, 1
      // Predicated region
      $region13: #{forward.6} parent=11 // pred_check
        %p140 = pneg %p57
      $region14: #{forward.6} parent=11 // pred_check_branch
        %142 = sbr.rel (%p140) target = $region16
      $region15: #{forward.6} parent=11 // pred_region
        _
      $region16: #{forward.6} parent=11 // pred_fallthru
        _
      // Predicated region
      $region17: #{forward.6} parent=11 // pred_check
        %p143 = pneg %p78
      $region18: #{forward.6} parent=11 // pred_check_branch
        %145 = sbr.rel (%p143) target = $region20
      $region19: #{forward.6} parent=11 // pred_region
        _
      $region20: #{forward.6} parent=11 // pred_fallthru
        _
      // Predicated region
      $region21: #{forward.6} parent=11 // pred_check
        %p146 = pneg %p99
      $region22: #{forward.6} parent=11 // pred_check_branch
        %148 = sbr.rel (%p146) target = $region24
      $region23: #{forward.6} parent=11 // pred_region
        _
      $region24: #{forward.6} parent=11 // pred_fallthru
        _
    $region12: #{forward.6} parent=5 // pred_fallthru
      _
    %p149 = scmp.lt.s32.totalorder %s10, 2
    // Predicated region
    $region25: #{forward.6} parent=5 // pred_check
      %p150 = pneg %p149
    $region26: #{forward.6} parent=5 // pred_check_branch
      %152 = sbr.rel (%p150) target = $region28
    $region27: #{forward.6} parent=5 // pred_region
      // Predicated region
      $region29: #{forward.6} parent=27 // pred_check
        %p153 = pneg %p30
      $region30: #{forward.6} parent=27 // pred_check_branch
        %155 = sbr.rel (%p153) target = $region32
      $region31: #{forward.6} parent=27 // pred_region
        %p156 = scmp.lt.s32.totalorder %s10, 1
        %s157 = scalar_select %p156, %s10, 1
        %s158 = smul.addr %s157, 54
        %s159 = smul.addr %s158, 4
        %s160 = scalar_lea.vmem %s0, %s159
      $region32: #{forward.6} parent=27 // pred_fallthru
        _
    $region28: #{forward.6} parent=5 // pred_fallthru
      _
    %p161 = scmp.le.s32.totalorder 1, %s10
    %p162 = scmp.lt.s32.totalorder %s10, 3
    %p163 = pnand %p161, %p162
    %p164 = pneg %p163
    // Predicated region
    $region33: #{forward.6} parent=5 // pred_check
      _
    $region34: #{forward.6} parent=5 // pred_check_branch
      %166 = sbr.rel (%p163) target = $region36
    $region35: #{forward.6} parent=5 // pred_region
      %s167 = ssub.s32 %s10, 1
      %p168 = scmp.lt.s32.totalorder %s15, 1
      %s169 = scalar_select %p168, %s15, 1
      %s170 = smul.addr %s169, 54
      %s171 = smul.addr %s170, 4
      %s172 = scalar_lea.vmem %s0, %s171
      %p173 = pneg %p36
      %p174 = pneg %p33
      %p175 = pneg %p57
      %p176 = pneg %p54
      %p177 = pneg %p78
      %p178 = pneg %p75
      %p179 = pneg %p99
      %p180 = pneg %p96
      %p181 = pneg %p125
      %p182 = pneg %p122
      %p183 = scmp.lt.s32.totalorder %s15, 1
      %s184 = scalar_select %p183, %s15, 1
      %s185 = smul.addr %s184, 32
      %s186 = smul.addr %s185, 4
      %s187 = scalar_lea.vmem %s4, %s186
      %p188 = scmp.lt.s32.totalorder %s15, 1
      %s189 = scalar_select %p188, %s15, 1
      %s190 = smul.addr %s189, 54
      %s191 = smul.addr %s190, 4
      %s192 = scalar_lea.vmem %s0, %s191
      %p193 = scmp.lt.s32.totalorder %s15, 1
      %s194 = scalar_select %p193, %s15, 1
      %s195 = smul.addr %s194, 32
      %s196 = smul.addr %s195, 4
      %s197 = scalar_lea.vmem %s4, %s196
      %v199 = vld [vmem:[%s192] sm:$0xf]
      %v200 = vld [vmem:[%s192 + $0x4] sm:$0xf]
      %v201 = vld [vmem:[%s192 + $0x8] sm:$0x1]
      %v202 = vld [vmem:[%s192 + $0xc] sm:$0xf]
      %v203 = vld [vmem:[%s192 + $0x10] sm:$0xf]
      %v204 = vld [vmem:[%s192 + $0x14] sm:$0x1]
      %v205 = vld [vmem:[%s192 + $0x18] sm:$0xf]
      %v206 = vld [vmem:[%s192 + $0x1c] sm:$0xf]
      %v207 = vld [vmem:[%s192 + $0x20] sm:$0x1]
      %v208 = vld [vmem:[%s192 + $0x24] sm:$0xf]
      %v209 = vld [vmem:[%s192 + $0x28] sm:$0xf]
      %v210 = vld [vmem:[%s192 + $0x2c] sm:$0x1]
      %v211 = vld [vmem:[%s192 + $0x30] sm:$0xf]
      %v212 = vld [vmem:[%s192 + $0x34] sm:$0xf]
      %v213 = vld [vmem:[%s192 + $0x38] sm:$0x1]
      %v214 = vld [vmem:[%s192 + $0x3c] sm:$0xf]
      %v215 = vld [vmem:[%s192 + $0x40] sm:$0xf]
      %v216 = vld [vmem:[%s192 + $0x44] sm:$0x1]
      %v217 = vld [vmem:[%s192 + $0x48] sm:$0xf]
      %v218 = vld [vmem:[%s192 + $0x4c] sm:$0xf]
      %v219 = vld [vmem:[%s192 + $0x50] sm:$0x1]
      %v220 = vld [vmem:[%s192 + $0x54] sm:$0xf]
      %v221 = vld [vmem:[%s192 + $0x58] sm:$0xf]
      %v222 = vld [vmem:[%s192 + $0x5c] sm:$0x1]
      %v223 = vld [vmem:[%s192 + $0x60] sm:$0xf]
      %v224 = vld [vmem:[%s192 + $0x64] sm:$0xf]
      %v225 = vld [vmem:[%s192 + $0x68] sm:$0x1]
      %v226 = vld [vmem:[%s192 + $0x6c] sm:$0xf]
      %v227 = vld [vmem:[%s192 + $0x70] sm:$0xf]
      %v228 = vld [vmem:[%s192 + $0x74] sm:$0x1]
      %v229 = vld [vmem:[%s192 + $0x78] sm:$0xf]
      %v230 = vld [vmem:[%s192 + $0x7c] sm:$0xf]
      %v231 = vld [vmem:[%s192 + $0x80] sm:$0x1]
      %v232 = vld [vmem:[%s192 + $0x84] sm:$0xf]
      %v233 = vld [vmem:[%s192 + $0x88] sm:$0xf]
      %v234 = vld [vmem:[%s192 + $0x8c] sm:$0x1]
      %v235 = vld [vmem:[%s192 + $0x90] sm:$0xf]
      %v236 = vld [vmem:[%s192 + $0x94] sm:$0xf]
      %v237 = vld [vmem:[%s192 + $0x98] sm:$0x1]
      %v238 = vld [vmem:[%s192 + $0x9c] sm:$0xf]
      %v239 = vld [vmem:[%s192 + $0xa0] sm:$0xf]
      %v240 = vld [vmem:[%s192 + $0xa4] sm:$0x1]
      %v241 = vld [vmem:[%s192 + $0xa8] sm:$0xf]
      %v242 = vld [vmem:[%s192 + $0xac] sm:$0xf]
      %v243 = vld [vmem:[%s192 + $0xb0] sm:$0x1]
      %v244 = vld [vmem:[%s192 + $0xb4] sm:$0xf]
      %v245 = vld [vmem:[%s192 + $0xb8] sm:$0xf]
      %v246 = vld [vmem:[%s192 + $0xbc] sm:$0x1]
      %v247 = vld [vmem:[%s192 + $0xc0] sm:$0xf]
      %v248 = vld [vmem:[%s192 + $0xc4] sm:$0xf]
      %v249 = vld [vmem:[%s192 + $0xc8] sm:$0x1]
      %v250 = vld [vmem:[%s192 + $0xcc] sm:$0xf]
      %v251 = vld [vmem:[%s192 + $0xd0] sm:$0xf]
      %v252 = vld [vmem:[%s192 + $0xd4] sm:$0x1]
      %v253 = vunpack.c.l.bf16 %v199
      %v254 = vunpack.c.l.bf16 %v200
      %v255 = vunpack.c.l.bf16 %v201
      %v256 = vunpack.c.l.bf16 %v202
      %v257 = vunpack.c.l.bf16 %v203
      %v258 = vunpack.c.l.bf16 %v204
      %v259 = vunpack.c.l.bf16 %v205
      %v260 = vunpack.c.l.bf16 %v206
      %v261 = vunpack.c.l.bf16 %v207
      %v262 = vunpack.c.l.bf16 %v208
      %v263 = vunpack.c.l.bf16 %v209
      %v264 = vunpack.c.l.bf16 %v210
      %v265 = vunpack.c.l.bf16 %v211
      %v266 = vunpack.c.l.bf16 %v212
      %v267 = vunpack.c.l.bf16 %v213
      %v268 = vunpack.c.l.bf16 %v214
      %v269 = vunpack.c.l.bf16 %v215
      %v270 = vunpack.c.l.bf16 %v216
      %v271 = vunpack.c.l.bf16 %v217
      %v272 = vunpack.c.l.bf16 %v218
      %v273 = vunpack.c.l.bf16 %v219
      %v274 = vunpack.c.l.bf16 %v220
      %v275 = vunpack.c.l.bf16 %v221
      %v276 = vunpack.c.l.bf16 %v222
      %v277 = vunpack.c.l.bf16 %v223
      %v278 = vunpack.c.l.bf16 %v224
      %v279 = vunpack.c.l.bf16 %v225
      %v280 = vunpack.c.l.bf16 %v226
      %v281 = vunpack.c.l.bf16 %v227
      %v282 = vunpack.c.l.bf16 %v228
      %v283 = vunpack.c.l.bf16 %v229
      %v284 = vunpack.c.l.bf16 %v230
      %v285 = vunpack.c.l.bf16 %v231
      %v286 = vunpack.c.l.bf16 %v232
      %v287 = vunpack.c.l.bf16 %v233
      %v288 = vunpack.c.l.bf16 %v234
      %v289 = vunpack.c.l.bf16 %v235
      %v290 = vunpack.c.l.bf16 %v236
      %v291 = vunpack.c.l.bf16 %v237
      %v292 = vunpack.c.l.bf16 %v238
      %v293 = vunpack.c.l.bf16 %v239
      %v294 = vunpack.c.l.bf16 %v240
      %v295 = vunpack.c.l.bf16 %v241
      %v296 = vunpack.c.l.bf16 %v242
      %v297 = vunpack.c.l.bf16 %v243
      %v298 = vunpack.c.l.bf16 %v244
      %v299 = vunpack.c.l.bf16 %v245
      %v300 = vunpack.c.l.bf16 %v246
      %v301 = vunpack.c.l.bf16 %v247
      %v302 = vunpack.c.l.bf16 %v248
      %v303 = vunpack.c.l.bf16 %v249
      %v304 = vunpack.c.l.bf16 %v250
      %v305 = vunpack.c.l.bf16 %v251
      %v306 = vunpack.c.l.bf16 %v252
      %v307 = vpack.c.bf16 %v254, %v253
      %v308 = vpack.c.bf16 %v257, %v256
      %v309 = vpack.c.bf16 %v260, %v259
      %v310 = vpack.c.bf16 %v263, %v262
      %v311 = vpack.c.bf16 %v266, %v265
      %v312 = vpack.c.bf16 %v269, %v268
      %v313 = vpack.c.bf16 %v272, %v271
      %v314 = vpack.c.bf16 %v275, %v274
      %v315 = vpack.c.bf16 %v278, %v277
      %v316 = vpack.c.bf16 %v281, %v280
      %v317 = vpack.c.bf16 %v284, %v283
      %v318 = vpack.c.bf16 %v287, %v286
      %v319 = vpack.c.bf16 %v290, %v289
      %v320 = vpack.c.bf16 %v293, %v292
      %v321 = vpack.c.bf16 %v296, %v295
      %v322 = vpack.c.bf16 %v299, %v298
      %v323 = vld [vmem:[%s1] sm:$0xf]
      %v324 = vld [vmem:[%s1 + $0x4] sm:$0xf]
      %v325 = vld [vmem:[%s1 + $0x8] sm:$0xf]
      %v326 = vld [vmem:[%s1 + $0xc] sm:$0xf]
      %vm375 = vcmask 1046528
      %v376 = vrot.slane %v253, 1
      %v377 = vrot.slane %v254, 1
      %v378 = vsel %vm375, %v376, %v377
      %v379 = vrot.slane %v255, 1
      %v380 = vsel %vm375, %v377, %v379
      %v381 = vrot.slane %v256, 1
      %v382 = vrot.slane %v257, 1
      %v383 = vsel %vm375, %v381, %v382
      %v384 = vrot.slane %v258, 1
      %v385 = vsel %vm375, %v382, %v384
      %v386 = vrot.slane %v259, 1
      %v387 = vrot.slane %v260, 1
      %v388 = vsel %vm375, %v386, %v387
      %v389 = vrot.slane %v261, 1
      %v390 = vsel %vm375, %v387, %v389
      %v391 = vrot.slane %v262, 1
      %v392 = vrot.slane %v263, 1
      %v393 = vsel %vm375, %v391, %v392
      %v394 = vrot.slane %v264, 1
      %v395 = vsel %vm375, %v392, %v394
      %v396 = vrot.slane %v265, 1
      %v397 = vrot.slane %v266, 1
      %v398 = vsel %vm375, %v396, %v397
      %v399 = vrot.slane %v267, 1
      %v400 = vsel %vm375, %v397, %v399
      %v401 = vrot.slane %v268, 1
      %v402 = vrot.slane %v269, 1
      %v403 = vsel %vm375, %v401, %v402
      %v404 = vrot.slane %v270, 1
      %v405 = vsel %vm375, %v402, %v404
      %v406 = vrot.slane %v271, 1
      %v407 = vrot.slane %v272, 1
      %v408 = vsel %vm375, %v406, %v407
      %v409 = vrot.slane %v273, 1
      %v410 = vsel %vm375, %v407, %v409
      %v411 = vrot.slane %v274, 1
      %v412 = vrot.slane %v275, 1
      %v413 = vsel %vm375, %v411, %v412
      %v414 = vrot.slane %v276, 1
      %v415 = vsel %vm375, %v412, %v414
      %v416 = vrot.slane %v277, 1
      %v417 = vrot.slane %v278, 1
      %v418 = vsel %vm375, %v416, %v417
      %v419 = vrot.slane %v279, 1
      %v420 = vsel %vm375, %v417, %v419
      %v421 = vrot.slane %v280, 1
      %v422 = vrot.slane %v281, 1
      %v423 = vsel %vm375, %v421, %v422
      %v424 = vrot.slane %v282, 1
      %v425 = vsel %vm375, %v422, %v424
      %v426 = vrot.slane %v283, 1
      %v427 = vrot.slane %v284, 1
      %v428 = vsel %vm375, %v426, %v427
      %v429 = vrot.slane %v285, 1
      %v430 = vsel %vm375, %v427, %v429
      %v431 = vrot.slane %v286, 1
      %v432 = vrot.slane %v287, 1
      %v433 = vsel %vm375, %v431, %v432
      %v434 = vrot.slane %v288, 1
      %v435 = vsel %vm375, %v432, %v434
      %v436 = vrot.slane %v289, 1
      %v437 = vrot.slane %v290, 1
      %v438 = vsel %vm375, %v436, %v437
      %v439 = vrot.slane %v291, 1
      %v440 = vsel %vm375, %v437, %v439
      %v441 = vrot.slane %v292, 1
      %v442 = vrot.slane %v293, 1
      %v443 = vsel %vm375, %v441, %v442
      %v444 = vrot.slane %v294, 1
      %v445 = vsel %vm375, %v442, %v444
      %v446 = vrot.slane %v295, 1
      %v447 = vrot.slane %v296, 1
      %v448 = vsel %vm375, %v446, %v447
      %v449 = vrot.slane %v297, 1
      %v450 = vsel %vm375, %v447, %v449
      %v451 = vrot.slane %v298, 1
      %v452 = vrot.slane %v299, 1
      %v453 = vsel %vm375, %v451, %v452
      %v454 = vrot.slane %v300, 1
      %v455 = vsel %vm375, %v452, %v454
      %v488 = vpack.c.bf16 %v380, %v378
      %v489 = vpack.c.bf16 %v385, %v383
      %v490 = vpack.c.bf16 %v390, %v388
      %v491 = vpack.c.bf16 %v395, %v393
      %v492 = vpack.c.bf16 %v400, %v398
      %v493 = vpack.c.bf16 %v405, %v403
      %v494 = vpack.c.bf16 %v410, %v408
      %v495 = vpack.c.bf16 %v415, %v413
      %v496 = vpack.c.bf16 %v420, %v418
      %v497 = vpack.c.bf16 %v425, %v423
      %v498 = vpack.c.bf16 %v430, %v428
      %v499 = vpack.c.bf16 %v435, %v433
      %v500 = vpack.c.bf16 %v440, %v438
      %v501 = vpack.c.bf16 %v445, %v443
      %v502 = vpack.c.bf16 %v450, %v448
      %v503 = vpack.c.bf16 %v455, %v453
      %s504 = scalar_lea.vmem %s1, 16
      %v505 = vld [vmem:[%s504] sm:$0xf]
      %v506 = vld [vmem:[%s504 + $0x4] sm:$0xf]
      %v507 = vld [vmem:[%s504 + $0x8] sm:$0xf]
      %v508 = vld [vmem:[%s504 + $0xc] sm:$0xf]
      %v513 = vunpack.c.l.b16 %v505
      %v514 = vunpack.c.l.b16 %v506
      %v515 = vunpack.c.l.b16 %v507
      %v516 = vunpack.c.l.b16 %v508
      %v517 = vpack.c.b16 %v514, %v513
      %v518 = vpack.c.b16 %v516, %v515
      %vm521 = vcmask 261120
      %v523 = vsel %vm521, %v488, 0
      %v526 = vsel %vm521, %v489, 0
      %v529 = vsel %vm521, %v490, 0
      %v532 = vsel %vm521, %v491, 0
      %v535 = vsel %vm521, %v492, 0
      %v538 = vsel %vm521, %v493, 0
      %v541 = vsel %vm521, %v494, 0
      %v544 = vsel %vm521, %v495, 0
      %v547 = vsel %vm521, %v496, 0
      %v550 = vsel %vm521, %v497, 0
      %v553 = vsel %vm521, %v498, 0
      %v556 = vsel %vm521, %v499, 0
      %v559 = vsel %vm521, %v500, 0
      %v562 = vsel %vm521, %v501, 0
      %v565 = vsel %vm521, %v502, 0
      %v568 = vsel %vm521, %v503, 0
      %570 = vmatprep.subr.bf16.mxu0 0
      %571 = vmatpush1.bf16.msra.mxu0 %v517
      %572 = vmatprep.subr.bf16.mxu0 0
      %573 = vmatpush1.bf16.msra.mxu0 %v518
      %574 = vmatprep.subr.bf16.mxu0 0
      %575 = vmatpush1.bf16.msra.mxu0 0
      %576 = vmatprep.subr.bf16.mxu0 0
      %577 = vmatpush1.bf16.msra.mxu0 0
      %578 = vmatprep.subr.bf16.mxu0 0
      %579 = vmatpush1.bf16.msra.mxu0 0
      %580 = vmatprep.subr.bf16.mxu0 0
      %581 = vmatpush1.bf16.msra.mxu0 0
      %582 = vmatprep.subr.bf16.mxu0 0
      %583 = vmatpush1.bf16.msra.mxu0 0
      %584 = vmatprep.subr.bf16.mxu0 0
      %585 = vmatpush1.bf16.msra.mxu0 0
      %586 = vmatprep.subr.bf16.mxu0 0
      %587 = vmatpush1.bf16.msra.mxu0 0
      %588 = vmatprep.subr.bf16.mxu0 0
      %589 = vmatpush1.bf16.msra.mxu0 0
      %590 = vmatprep.subr.bf16.mxu0 0
      %591 = vmatpush1.bf16.msra.mxu0 0
      %592 = vmatprep.subr.bf16.mxu0 0
      %593 = vmatpush1.bf16.msra.mxu0 0
      %594 = vmatprep.subr.bf16.mxu0 0
      %595 = vmatpush1.bf16.msra.mxu0 0
      %596 = vmatprep.subr.bf16.mxu0 0
      %597 = vmatpush1.bf16.msra.mxu0 0
      %598 = vmatprep.subr.bf16.mxu0 0
      %599 = vmatpush1.bf16.msra.mxu0 0
      %600 = vmatprep.subr.bf16.mxu0 0
      %601 = vmatpush1.bf16.msra.mxu0 0
      %602 = vmatprep.mubr.bf16.mxu0 0
      %603 = vmatmul.mubr.bf16.gmra.mrb[0].mxu0 %v523
      %v604 = vpop.f32.mrb[0].mxu0
      %v605 = vadd.f32 0.0, %v604
      %v606 = vpop.f32.mrb[0].mxu0
      %v607 = vpop.f32.mrb[0].mxu0
      %v608 = vadd.f32 0.0, %v607
      %v609 = vpop.f32.mrb[0].mxu0
      %610 = vmatprep.mubr.bf16.mxu0 0
      %611 = vmatmul.mubr.bf16.gmra.mrb[0].mxu0 %v526
      %v612 = vpop.f32.mrb[0].mxu0
      %v613 = vadd.f32 0.0, %v612
      %v614 = vpop.f32.mrb[0].mxu0
      %v615 = vpop.f32.mrb[0].mxu0
      %v616 = vadd.f32 0.0, %v615
      %v617 = vpop.f32.mrb[0].mxu0
      %618 = vmatprep.mubr.bf16.mxu0 0
      %619 = vmatmul.mubr.bf16.gmra.mrb[0].mxu0 %v529
      %v620 = vpop.f32.mrb[0].mxu0
      %v621 = vadd.f32 0.0, %v620
      %v622 = vpop.f32.mrb[0].mxu0
      %v623 = vpop.f32.mrb[0].mxu0
      %v624 = vadd.f32 0.0, %v623
      %v625 = vpop.f32.mrb[0].mxu0
      %626 = vmatprep.mubr.bf16.mxu0 0
      %627 = vmatmul.mubr.bf16.gmra.mrb[0].mxu0 %v532
      %v628 = vpop.f32.mrb[0].mxu0
      %v629 = vadd.f32 0.0, %v628
      %v630 = vpop.f32.mrb[0].mxu0
      %v631 = vpop.f32.mrb[0].mxu0
      %v632 = vadd.f32 0.0, %v631
      %v633 = vpop.f32.mrb[0].mxu0
      %634 = vmatprep.mubr.bf16.mxu0 0
      %635 = vmatmul.mubr.bf16.gmra.mrb[0].mxu0 %v535
      %v636 = vpop.f32.mrb[0].mxu0
      %v637 = vadd.f32 0.0, %v636
      %v638 = vpop.f32.mrb[0].mxu0
      %v639 = vpop.f32.mrb[0].mxu0
      %v640 = vadd.f32 0.0, %v639
      %v641 = vpop.f32.mrb[0].mxu0
      %642 = vmatprep.mubr.bf16.mxu0 0
      %643 = vmatmul.mubr.bf16.gmra.mrb[0].mxu0 %v538
      %v644 = vpop.f32.mrb[0].mxu0
      %v645 = vadd.f32 0.0, %v644
      %v646 = vpop.f32.mrb[0].mxu0
      %v647 = vpop.f32.mrb[0].mxu0
      %v648 = vadd.f32 0.0, %v647
      %v649 = vpop.f32.mrb[0].mxu0
      %650 = vmatprep.mubr.bf16.mxu0 0
      %651 = vmatmul.mubr.bf16.gmra.mrb[0].mxu0 %v541
      %v652 = vpop.f32.mrb[0].mxu0
      %v653 = vadd.f32 0.0, %v652
      %v654 = vpop.f32.mrb[0].mxu0
      %v655 = vpop.f32.mrb[0].mxu0
      %v656 = vadd.f32 0.0, %v655
      %v657 = vpop.f32.mrb[0].mxu0
      %658 = vmatprep.mubr.bf16.mxu0 0
      %659 = vmatmul.mubr.bf16.gmra.mrb[0].mxu0 %v544
      %v660 = vpop.f32.mrb[0].mxu0
      %v661 = vadd.f32 0.0, %v660
      %v662 = vpop.f32.mrb[0].mxu0
      %v663 = vpop.f32.mrb[0].mxu0
      %v664 = vadd.f32 0.0, %v663
      %v665 = vpop.f32.mrb[0].mxu0
      %666 = vmatprep.mubr.bf16.mxu0 0
      %667 = vmatmul.mubr.bf16.gmra.mrb[0].mxu0 %v547
      %v668 = vpop.f32.mrb[0].mxu0
      %v669 = vadd.f32 0.0, %v668
      %v670 = vpop.f32.mrb[0].mxu0
      %v671 = vpop.f32.mrb[0].mxu0
      %v672 = vadd.f32 0.0, %v671
      %v673 = vpop.f32.mrb[0].mxu0
      %674 = vmatprep.mubr.bf16.mxu0 0
      %675 = vmatmul.mubr.bf16.gmra.mrb[0].mxu0 %v550
      %v676 = vpop.f32.mrb[0].mxu0
      %v677 = vadd.f32 0.0, %v676
      %v678 = vpop.f32.mrb[0].mxu0
      %v679 = vpop.f32.mrb[0].mxu0
      %v680 = vadd.f32 0.0, %v679
      %v681 = vpop.f32.mrb[0].mxu0
      %682 = vmatprep.mubr.bf16.mxu0 0
      %683 = vmatmul.mubr.bf16.gmra.mrb[0].mxu0 %v553
      %v684 = vpop.f32.mrb[0].mxu0
      %v685 = vadd.f32 0.0, %v684
      %v686 = vpop.f32.mrb[0].mxu0
      %v687 = vpop.f32.mrb[0].mxu0
      %v688 = vadd.f32 0.0, %v687
      %v689 = vpop.f32.mrb[0].mxu0
      %690 = vmatprep.mubr.bf16.mxu0 0
      %691 = vmatmul.mubr.bf16.gmra.mrb[0].mxu0 %v556
      %v692 = vpop.f32.mrb[0].mxu0
      %v693 = vadd.f32 0.0, %v692
      %v694 = vpop.f32.mrb[0].mxu0
      %v695 = vpop.f32.mrb[0].mxu0
      %v696 = vadd.f32 0.0, %v695
      %v697 = vpop.f32.mrb[0].mxu0
      %698 = vmatprep.mubr.bf16.mxu0 0
      %699 = vmatmul.mubr.bf16.gmra.mrb[0].mxu0 %v559
      %v700 = vpop.f32.mrb[0].mxu0
      %v701 = vadd.f32 0.0, %v700
      %v702 = vpop.f32.mrb[0].mxu0
      %v703 = vpop.f32.mrb[0].mxu0
      %v704 = vadd.f32 0.0, %v703
      %v705 = vpop.f32.mrb[0].mxu0
      %706 = vmatprep.mubr.bf16.mxu0 0
      %707 = vmatmul.mubr.bf16.gmra.mrb[0].mxu0 %v562
      %v708 = vpop.f32.mrb[0].mxu0
      %v709 = vadd.f32 0.0, %v708
      %v710 = vpop.f32.mrb[0].mxu0
      %v711 = vpop.f32.mrb[0].mxu0
      %v712 = vadd.f32 0.0, %v711
      %v713 = vpop.f32.mrb[0].mxu0
      %714 = vmatprep.mubr.bf16.mxu0 0
      %715 = vmatmul.mubr.bf16.gmra.mrb[0].mxu0 %v565
      %v716 = vpop.f32.mrb[0].mxu0
      %v717 = vadd.f32 0.0, %v716
      %v718 = vpop.f32.mrb[0].mxu0
      %v719 = vpop.f32.mrb[0].mxu0
      %v720 = vadd.f32 0.0, %v719
      %v721 = vpop.f32.mrb[0].mxu0
      %722 = vmatprep.mubr.bf16.mxu0 0
      %723 = vmatmul.mubr.bf16.gmra.mrb[0].mxu0 %v568
      %v724 = vpop.f32.mrb[0].mxu0
      %v725 = vadd.f32 0.0, %v724
      %v726 = vpop.f32.mrb[0].mxu0
      %v727 = vpop.f32.mrb[0].mxu0
      %v728 = vadd.f32 0.0, %v727
      %v729 = vpop.f32.mrb[0].mxu0
      %730 = vdwg.mxu0
      %v735 = vunpack.c.l.b16 %v323
      %v736 = vunpack.c.l.b16 %v324
      %v737 = vunpack.c.l.b16 %v325
      %v738 = vunpack.c.l.b16 %v326
      %v739 = vpack.c.b16 %v736, %v735
      %v740 = vpack.c.b16 %v738, %v737
      %v744 = vsel %vm521, %v307, 0
      %v747 = vsel %vm521, %v308, 0
      %v750 = vsel %vm521, %v309, 0
      %v753 = vsel %vm521, %v310, 0
      %v756 = vsel %vm521, %v311, 0
      %v759 = vsel %vm521, %v312, 0
      %v762 = vsel %vm521, %v313, 0
      %v765 = vsel %vm521, %v314, 0
      %v768 = vsel %vm521, %v315, 0
      %v771 = vsel %vm521, %v316, 0
      %v774 = vsel %vm521, %v317, 0
      %v777 = vsel %vm521, %v318, 0
      %v780 = vsel %vm521, %v319, 0
      %v783 = vsel %vm521, %v320, 0
      %v786 = vsel %vm521, %v321, 0
      %v789 = vsel %vm521, %v322, 0
      %791 = vmatprep.subr.bf16.mxu0 0
      %792 = vmatpush1.bf16.msra.mxu0 %v739
      %793 = vmatprep.subr.bf16.mxu0 0
      %794 = vmatpush1.bf16.msra.mxu0 %v740
      %795 = vmatprep.subr.bf16.mxu0 0
      %796 = vmatpush1.bf16.msra.mxu0 0
      %797 = vmatprep.subr.bf16.mxu0 0
      %798 = vmatpush1.bf16.msra.mxu0 0
      %799 = vmatprep.subr.bf16.mxu0 0
      %800 = vmatpush1.bf16.msra.mxu0 0
      %801 = vmatprep.subr.bf16.mxu0 0
      %802 = vmatpush1.bf16.msra.mxu0 0
      %803 = vmatprep.subr.bf16.mxu0 0
      %804 = vmatpush1.bf16.msra.mxu0 0
      %805 = vmatprep.subr.bf16.mxu0 0
      %806 = vmatpush1.bf16.msra.mxu0 0
      %807 = vmatprep.subr.bf16.mxu0 0
      %808 = vmatpush1.bf16.msra.mxu0 0
      %809 = vmatprep.subr.bf16.mxu0 0
      %810 = vmatpush1.bf16.msra.mxu0 0
      %811 = vmatprep.subr.bf16.mxu0 0
      %812 = vmatpush1.bf16.msra.mxu0 0
      %813 = vmatprep.subr.bf16.mxu0 0
      %814 = vmatpush1.bf16.msra.mxu0 0
      %815 = vmatprep.subr.bf16.mxu0 0
      %816 = vmatpush1.bf16.msra.mxu0 0
      %817 = vmatprep.subr.bf16.mxu0 0
      %818 = vmatpush1.bf16.msra.mxu0 0
      %819 = vmatprep.subr.bf16.mxu0 0
      %820 = vmatpush1.bf16.msra.mxu0 0
      %821 = vmatprep.subr.bf16.mxu0 0
      %822 = vmatpush1.bf16.msra.mxu0 0
      %823 = vmatprep.mubr.bf16.mxu0 0
      %824 = vmatmul.mubr.bf16.gmra.mrb[0].mxu0 %v744
      %v825 = vpop.f32.mrb[0].mxu0
      %v826 = vadd.f32 %v605, %v825
      %v827 = vpop.f32.mrb[0].mxu0
      %v828 = vpop.f32.mrb[0].mxu0
      %v829 = vadd.f32 %v608, %v828
      %v830 = vpop.f32.mrb[0].mxu0
      %831 = vmatprep.mubr.bf16.mxu0 0
      %832 = vmatmul.mubr.bf16.gmra.mrb[0].mxu0 %v747
      %v833 = vpop.f32.mrb[0].mxu0
      %v834 = vadd.f32 %v613, %v833
      %v835 = vpop.f32.mrb[0].mxu0
      %v836 = vpop.f32.mrb[0].mxu0
      %v837 = vadd.f32 %v616, %v836
      %v838 = vpop.f32.mrb[0].mxu0
      %839 = vmatprep.mubr.bf16.mxu0 0
      %840 = vmatmul.mubr.bf16.gmra.mrb[0].mxu0 %v750
      %v841 = vpop.f32.mrb[0].mxu0
      %v842 = vadd.f32 %v621, %v841
      %v843 = vpop.f32.mrb[0].mxu0
      %v844 = vpop.f32.mrb[0].mxu0
      %v845 = vadd.f32 %v624, %v844
      %v846 = vpop.f32.mrb[0].mxu0
      %847 = vmatprep.mubr.bf16.mxu0 0
      %848 = vmatmul.mubr.bf16.gmra.mrb[0].mxu0 %v753
      %v849 = vpop.f32.mrb[0].mxu0
      %v850 = vadd.f32 %v629, %v849
      %v851 = vpop.f32.mrb[0].mxu0
      %v852 = vpop.f32.mrb[0].mxu0
      %v853 = vadd.f32 %v632, %v852
      %v854 = vpop.f32.mrb[0].mxu0
      %855 = vmatprep.mubr.bf16.mxu0 0
      %856 = vmatmul.mubr.bf16.gmra.mrb[0].mxu0 %v756
      %v857 = vpop.f32.mrb[0].mxu0
      %v858 = vadd.f32 %v637, %v857
      %v859 = vpop.f32.mrb[0].mxu0
      %v860 = vpop.f32.mrb[0].mxu0
      %v861 = vadd.f32 %v640, %v860
      %v862 = vpop.f32.mrb[0].mxu0
      %863 = vmatprep.mubr.bf16.mxu0 0
      %864 = vmatmul.mubr.bf16.gmra.mrb[0].mxu0 %v759
      %v865 = vpop.f32.mrb[0].mxu0
      %v866 = vadd.f32 %v645, %v865
      %v867 = vpop.f32.mrb[0].mxu0
      %v868 = vpop.f32.mrb[0].mxu0
      %v869 = vadd.f32 %v648, %v868
      %v870 = vpop.f32.mrb[0].mxu0
      %871 = vmatprep.mubr.bf16.mxu0 0
      %872 = vmatmul.mubr.bf16.gmra.mrb[0].mxu0 %v762
      %v873 = vpop.f32.mrb[0].mxu0
      %v874 = vadd.f32 %v653, %v873
      %v875 = vpop.f32.mrb[0].mxu0
      %v876 = vpop.f32.mrb[0].mxu0
      %v877 = vadd.f32 %v656, %v876
      %v878 = vpop.f32.mrb[0].mxu0
      %879 = vmatprep.mubr.bf16.mxu0 0
      %880 = vmatmul.mubr.bf16.gmra.mrb[0].mxu0 %v765
      %v881 = vpop.f32.mrb[0].mxu0
      %v882 = vadd.f32 %v661, %v881
      %v883 = vpop.f32.mrb[0].mxu0
      %v884 = vpop.f32.mrb[0].mxu0
      %v885 = vadd.f32 %v664, %v884
      %v886 = vpop.f32.mrb[0].mxu0
      %887 = vmatprep.mubr.bf16.mxu0 0
      %888 = vmatmul.mubr.bf16.gmra.mrb[0].mxu0 %v768
      %v889 = vpop.f32.mrb[0].mxu0
      %v890 = vadd.f32 %v669, %v889
      %v891 = vpop.f32.mrb[0].mxu0
      %v892 = vpop.f32.mrb[0].mxu0
      %v893 = vadd.f32 %v672, %v892
      %v894 = vpop.f32.mrb[0].mxu0
      %895 = vmatprep.mubr.bf16.mxu0 0
      %896 = vmatmul.mubr.bf16.gmra.mrb[0].mxu0 %v771
      %v897 = vpop.f32.mrb[0].mxu0
      %v898 = vadd.f32 %v677, %v897
      %v899 = vpop.f32.mrb[0].mxu0
      %v900 = vpop.f32.mrb[0].mxu0
      %v901 = vadd.f32 %v680, %v900
      %v902 = vpop.f32.mrb[0].mxu0
      %903 = vmatprep.mubr.bf16.mxu0 0
      %904 = vmatmul.mubr.bf16.gmra.mrb[0].mxu0 %v774
      %v905 = vpop.f32.mrb[0].mxu0
      %v906 = vadd.f32 %v685, %v905
      %v907 = vpop.f32.mrb[0].mxu0
      %v908 = vpop.f32.mrb[0].mxu0
      %v909 = vadd.f32 %v688, %v908
      %v910 = vpop.f32.mrb[0].mxu0
      %911 = vmatprep.mubr.bf16.mxu0 0
      %912 = vmatmul.mubr.bf16.gmra.mrb[0].mxu0 %v777
      %v913 = vpop.f32.mrb[0].mxu0
      %v914 = vadd.f32 %v693, %v913
      %v915 = vpop.f32.mrb[0].mxu0
      %v916 = vpop.f32.mrb[0].mxu0
      %v917 = vadd.f32 %v696, %v916
      %v918 = vpop.f32.mrb[0].mxu0
      %919 = vmatprep.mubr.bf16.mxu0 0
      %920 = vmatmul.mubr.bf16.gmra.mrb[0].mxu0 %v780
      %v921 = vpop.f32.mrb[0].mxu0
      %v922 = vadd.f32 %v701, %v921
      %v923 = vpop.f32.mrb[0].mxu0
      %v924 = vpop.f32.mrb[0].mxu0
      %v925 = vadd.f32 %v704, %v924
      %v926 = vpop.f32.mrb[0].mxu0
      %927 = vmatprep.mubr.bf16.mxu0 0
      %928 = vmatmul.mubr.bf16.gmra.mrb[0].mxu0 %v783
      %v929 = vpop.f32.mrb[0].mxu0
      %v930 = vadd.f32 %v709, %v929
      %v931 = vpop.f32.mrb[0].mxu0
      %v932 = vpop.f32.mrb[0].mxu0
      %v933 = vadd.f32 %v712, %v932
      %v934 = vpop.f32.mrb[0].mxu0
      %935 = vmatprep.mubr.bf16.mxu0 0
      %936 = vmatmul.mubr.bf16.gmra.mrb[0].mxu0 %v786
      %v937 = vpop.f32.mrb[0].mxu0
      %v938 = vadd.f32 %v717, %v937
      %v939 = vpop.f32.mrb[0].mxu0
      %v940 = vpop.f32.mrb[0].mxu0
      %v941 = vadd.f32 %v720, %v940
      %v942 = vpop.f32.mrb[0].mxu0
      %943 = vmatprep.mubr.bf16.mxu0 0
      %944 = vmatmul.mubr.bf16.gmra.mrb[0].mxu0 %v789
      %v945 = vpop.f32.mrb[0].mxu0
      %v946 = vadd.f32 %v725, %v945
      %v947 = vpop.f32.mrb[0].mxu0
      %v948 = vpop.f32.mrb[0].mxu0
      %v949 = vadd.f32 %v728, %v948
      %v950 = vpop.f32.mrb[0].mxu0
      %951 = vdwg.mxu0
      %vm952 = vcmask 1045504
      %v953 = vrot.slane %v253, 2
      %v954 = vrot.slane %v254, 2
      %v955 = vsel %vm952, %v953, %v954
      %v956 = vrot.slane %v255, 2
      %v957 = vsel %vm952, %v954, %v956
      %v958 = vrot.slane %v256, 2
      %v959 = vrot.slane %v257, 2
      %v960 = vsel %vm952, %v958, %v959
      %v961 = vrot.slane %v258, 2
      %v962 = vsel %vm952, %v959, %v961
      %v963 = vrot.slane %v259, 2
      %v964 = vrot.slane %v260, 2
      %v965 = vsel %vm952, %v963, %v964
      %v966 = vrot.slane %v261, 2
      %v967 = vsel %vm952, %v964, %v966
      %v968 = vrot.slane %v262, 2
      %v969 = vrot.slane %v263, 2
      %v970 = vsel %vm952, %v968, %v969
      %v971 = vrot.slane %v264, 2
      %v972 = vsel %vm952, %v969, %v971
      %v973 = vrot.slane %v265, 2
      %v974 = vrot.slane %v266, 2
      %v975 = vsel %vm952, %v973, %v974
      %v976 = vrot.slane %v267, 2
      %v977 = vsel %vm952, %v974, %v976
      %v978 = vrot.slane %v268, 2
      %v979 = vrot.slane %v269, 2
      %v980 = vsel %vm952, %v978, %v979
      %v981 = vrot.slane %v270, 2
      %v982 = vsel %vm952, %v979, %v981
      %v983 = vrot.slane %v271, 2
      %v984 = vrot.slane %v272, 2
      %v985 = vsel %vm952, %v983, %v984
      %v986 = vrot.slane %v273, 2
      %v987 = vsel %vm952, %v984, %v986
      %v988 = vrot.slane %v274, 2
      %v989 = vrot.slane %v275, 2
      %v990 = vsel %vm952, %v988, %v989
      %v991 = vrot.slane %v276, 2
      %v992 = vsel %vm952, %v989, %v991
      %v993 = vrot.slane %v277, 2
      %v994 = vrot.slane %v278, 2
      %v995 = vsel %vm952, %v993, %v994
      %v996 = vrot.slane %v279, 2
      %v997 = vsel %vm952, %v994, %v996
      %v998 = vrot.slane %v280, 2
      %v999 = vrot.slane %v281, 2
      %v1000 = vsel %vm952, %v998, %v999
      %v1001 = vrot.slane %v282, 2
      %v1002 = vsel %vm952, %v999, %v1001
      %v1003 = vrot.slane %v283, 2
      %v1004 = vrot.slane %v284, 2
      %v1005 = vsel %vm952, %v1003, %v1004
      %v1006 = vrot.slane %v285, 2
      %v1007 = vsel %vm952, %v1004, %v1006
      %v1008 = vrot.slane %v286, 2
      %v1009 = vrot.slane %v287, 2
      %v1010 = vsel %vm952, %v1008, %v1009
      %v1011 = vrot.slane %v288, 2
      %v1012 = vsel %vm952, %v1009, %v1011
      %v1013 = vrot.slane %v289, 2
      %v1014 = vrot.slane %v290, 2
      %v1015 = vsel %vm952, %v1013, %v1014
      %v1016 = vrot.slane %v291, 2
      %v1017 = vsel %vm952, %v1014, %v1016
      %v1018 = vrot.slane %v292, 2
      %v1019 = vrot.slane %v293, 2
      %v1020 = vsel %vm952, %v1018, %v1019
      %v1021 = vrot.slane %v294, 2
      %v1022 = vsel %vm952, %v1019, %v1021
      %v1023 = vrot.slane %v295, 2
      %v1024 = vrot.slane %v296, 2
      %v1025 = vsel %vm952, %v1023, %v1024
      %v1026 = vrot.slane %v297, 2
      %v1027 = vsel %vm952, %v1024, %v1026
      %v1028 = vrot.slane %v298, 2
      %v1029 = vrot.slane %v299, 2
      %v1030 = vsel %vm952, %v1028, %v1029
      %v1031 = vrot.slane %v300, 2
      %v1032 = vsel %vm952, %v1029, %v1031
      %v1065 = vpack.c.bf16 %v957, %v955
      %v1066 = vpack.c.bf16 %v962, %v960
      %v1067 = vpack.c.bf16 %v967, %v965
      %v1068 = vpack.c.bf16 %v972, %v970
      %v1069 = vpack.c.bf16 %v977, %v975
      %v1070 = vpack.c.bf16 %v982, %v980
      %v1071 = vpack.c.bf16 %v987, %v985
      %v1072 = vpack.c.bf16 %v992, %v990
      %v1073 = vpack.c.bf16 %v997, %v995
      %v1074 = vpack.c.bf16 %v1002, %v1000
      %v1075 = vpack.c.bf16 %v1007, %v1005
      %v1076 = vpack.c.bf16 %v1012, %v1010
      %v1077 = vpack.c.bf16 %v1017, %v1015
      %v1078 = vpack.c.bf16 %v1022, %v1020
      %v1079 = vpack.c.bf16 %v1027, %v1025
      %v1080 = vpack.c.bf16 %v1032, %v1030
      %s1081 = scalar_lea.vmem %s1, 32
      %v1082 = vld [vmem:[%s1081] sm:$0xf]
      %v1083 = vld [vmem:[%s1081 + $0x4] sm:$0xf]
      %v1084 = vld [vmem:[%s1081 + $0x8] sm:$0xf]
      %v1085 = vld [vmem:[%s1081 + $0xc] sm:$0xf]
      %v1090 = vunpack.c.l.b16 %v1082
      %v1091 = vunpack.c.l.b16 %v1083
      %v1092 = vunpack.c.l.b16 %v1084
      %v1093 = vunpack.c.l.b16 %v1085
      %v1094 = vpack.c.b16 %v1091, %v1090
      %v1095 = vpack.c.b16 %v1093, %v1092
      %v1099 = vsel %vm521, %v1065, 0
      %v1102 = vsel %vm521, %v1066, 0
      %v1105 = vsel %vm521, %v1067, 0
      %v1108 = vsel %vm521, %v1068, 0
      %v1111 = vsel %vm521, %v1069, 0
      %v1114 = vsel %vm521, %v1070, 0
      %v1117 = vsel %vm521, %v1071, 0
      %v1120 = vsel %vm521, %v1072, 0
      %v1123 = vsel %vm521, %v1073, 0
      %v1126 = vsel %vm521, %v1074, 0
      %v1129 = vsel %vm521, %v1075, 0
      %v1132 = vsel %vm521, %v1076, 0
      %v1135 = vsel %vm521, %v1077, 0
      %v1138 = vsel %vm521, %v1078, 0
      %v1141 = vsel %vm521, %v1079, 0
      %v1144 = vsel %vm521, %v1080, 0
      %1146 = vmatprep.subr.bf16.mxu0 0
      %1147 = vmatpush1.bf16.msra.mxu0 %v1094
      %1148 = vmatprep.subr.bf16.mxu0 0
      %1149 = vmatpush1.bf16.msra.mxu0 %v1095
      %1150 = vmatprep.subr.bf16.mxu0 0
      %1151 = vmatpush1.bf16.msra.mxu0 0
      %1152 = vmatprep.subr.bf16.mxu0 0
      %1153 = vmatpush1.bf16.msra.mxu0 0
      %1154 = vmatprep.subr.bf16.mxu0 0
      %1155 = vmatpush1.bf16.msra.mxu0 0
      %1156 = vmatprep.subr.bf16.mxu0 0
      %1157 = vmatpush1.bf16.msra.mxu0 0
      %1158 = vmatprep.subr.bf16.mxu0 0
      %1159 = vmatpush1.bf16.msra.mxu0 0
      %1160 = vmatprep.subr.bf16.mxu0 0
      %1161 = vmatpush1.bf16.msra.mxu0 0
      %1162 = vmatprep.subr.bf16.mxu0 0
      %1163 = vmatpush1.bf16.msra.mxu0 0
      %1164 = vmatprep.subr.bf16.mxu0 0
      %1165 = vmatpush1.bf16.msra.mxu0 0
      %1166 = vmatprep.subr.bf16.mxu0 0
      %1167 = vmatpush1.bf16.msra.mxu0 0
      %1168 = vmatprep.subr.bf16.mxu0 0
      %1169 = vmatpush1.bf16.msra.mxu0 0
      %1170 = vmatprep.subr.bf16.mxu0 0
      %1171 = vmatpush1.bf16.msra.mxu0 0
      %1172 = vmatprep.subr.bf16.mxu0 0
      %1173 = vmatpush1.bf16.msra.mxu0 0
      %1174 = vmatprep.subr.bf16.mxu0 0
      %1175 = vmatpush1.bf16.msra.mxu0 0
      %1176 = vmatprep.subr.bf16.mxu0 0
      %1177 = vmatpush1.bf16.msra.mxu0 0
      %1178 = vmatprep.mubr.bf16.mxu0 0
      %1179 = vmatmul.mubr.bf16.gmra.mrb[0].mxu0 %v1099
      %v1180 = vpop.f32.mrb[0].mxu0
      %v1181 = vadd.f32 0.0, %v1180
      %v1182 = vpop.f32.mrb[0].mxu0
      %v1183 = vpop.f32.mrb[0].mxu0
      %v1184 = vadd.f32 0.0, %v1183
      %v1185 = vpop.f32.mrb[0].mxu0
      %1186 = vmatprep.mubr.bf16.mxu0 0
      %1187 = vmatmul.mubr.bf16.gmra.mrb[0].mxu0 %v1102
      %v1188 = vpop.f32.mrb[0].mxu0
      %v1189 = vadd.f32 0.0, %v1188
      %v1190 = vpop.f32.mrb[0].mxu0
      %v1191 = vpop.f32.mrb[0].mxu0
      %v1192 = vadd.f32 0.0, %v1191
      %v1193 = vpop.f32.mrb[0].mxu0
      %1194 = vmatprep.mubr.bf16.mxu0 0
      %1195 = vmatmul.mubr.bf16.gmra.mrb[0].mxu0 %v1105
      %v1196 = vpop.f32.mrb[0].mxu0
      %v1197 = vadd.f32 0.0, %v1196
      %v1198 = vpop.f32.mrb[0].mxu0
      %v1199 = vpop.f32.mrb[0].mxu0
      %v1200 = vadd.f32 0.0, %v1199
      %v1201 = vpop.f32.mrb[0].mxu0
      %1202 = vmatprep.mubr.bf16.mxu0 0
      %1203 = vmatmul.mubr.bf16.gmra.mrb[0].mxu0 %v1108
      %v1204 = vpop.f32.mrb[0].mxu0
      %v1205 = vadd.f32 0.0, %v1204
      %v1206 = vpop.f32.mrb[0].mxu0
      %v1207 = vpop.f32.mrb[0].mxu0
      %v1208 = vadd.f32 0.0, %v1207
      %v1209 = vpop.f32.mrb[0].mxu0
      %1210 = vmatprep.mubr.bf16.mxu0 0
      %1211 = vmatmul.mubr.bf16.gmra.mrb[0].mxu0 %v1111
      %v1212 = vpop.f32.mrb[0].mxu0
      %v1213 = vadd.f32 0.0, %v1212
      %v1214 = vpop.f32.mrb[0].mxu0
      %v1215 = vpop.f32.mrb[0].mxu0
      %v1216 = vadd.f32 0.0, %v1215
      %v1217 = vpop.f32.mrb[0].mxu0
      %1218 = vmatprep.mubr.bf16.mxu0 0
      %1219 = vmatmul.mubr.bf16.gmra.mrb[0].mxu0 %v1114
      %v1220 = vpop.f32.mrb[0].mxu0
      %v1221 = vadd.f32 0.0, %v1220
      %v1222 = vpop.f32.mrb[0].mxu0
      %v1223 = vpop.f32.mrb[0].mxu0
      %v1224 = vadd.f32 0.0, %v1223
      %v1225 = vpop.f32.mrb[0].mxu0
      %1226 = vmatprep.mubr.bf16.mxu0 0
      %1227 = vmatmul.mubr.bf16.gmra.mrb[0].mxu0 %v1117
      %v1228 = vpop.f32.mrb[0].mxu0
      %v1229 = vadd.f32 0.0, %v1228
      %v1230 = vpop.f32.mrb[0].mxu0
      %v1231 = vpop.f32.mrb[0].mxu0
      %v1232 = vadd.f32 0.0, %v1231
      %v1233 = vpop.f32.mrb[0].mxu0
      %1234 = vmatprep.mubr.bf16.mxu0 0
      %1235 = vmatmul.mubr.bf16.gmra.mrb[0].mxu0 %v1120
      %v1236 = vpop.f32.mrb[0].mxu0
      %v1237 = vadd.f32 0.0, %v1236
      %v1238 = vpop.f32.mrb[0].mxu0
      %v1239 = vpop.f32.mrb[0].mxu0
      %v1240 = vadd.f32 0.0, %v1239
      %v1241 = vpop.f32.mrb[0].mxu0
      %1242 = vmatprep.mubr.bf16.mxu0 0
      %1243 = vmatmul.mubr.bf16.gmra.mrb[0].mxu0 %v1123
      %v1244 = vpop.f32.mrb[0].mxu0
      %v1245 = vadd.f32 0.0, %v1244
      %v1246 = vpop.f32.mrb[0].mxu0
      %v1247 = vpop.f32.mrb[0].mxu0
      %v1248 = vadd.f32 0.0, %v1247
      %v1249 = vpop.f32.mrb[0].mxu0
      %1250 = vmatprep.mubr.bf16.mxu0 0
      %1251 = vmatmul.mubr.bf16.gmra.mrb[0].mxu0 %v1126
      %v1252 = vpop.f32.mrb[0].mxu0
      %v1253 = vadd.f32 0.0, %v1252
      %v1254 = vpop.f32.mrb[0].mxu0
      %v1255 = vpop.f32.mrb[0].mxu0
      %v1256 = vadd.f32 0.0, %v1255
      %v1257 = vpop.f32.mrb[0].mxu0
      %1258 = vmatprep.mubr.bf16.mxu0 0
      %1259 = vmatmul.mubr.bf16.gmra.mrb[0].mxu0 %v1129
      %v1260 = vpop.f32.mrb[0].mxu0
      %v1261 = vadd.f32 0.0, %v1260
      %v1262 = vpop.f32.mrb[0].mxu0
      %v1263 = vpop.f32.mrb[0].mxu0
      %v1264 = vadd.f32 0.0, %v1263
      %v1265 = vpop.f32.mrb[0].mxu0
      %1266 = vmatprep.mubr.bf16.mxu0 0
      %1267 = vmatmul.mubr.bf16.gmra.mrb[0].mxu0 %v1132
      %v1268 = vpop.f32.mrb[0].mxu0
      %v1269 = vadd.f32 0.0, %v1268
      %v1270 = vpop.f32.mrb[0].mxu0
      %v1271 = vpop.f32.mrb[0].mxu0
      %v1272 = vadd.f32 0.0, %v1271
      %v1273 = vpop.f32.mrb[0].mxu0
      %1274 = vmatprep.mubr.bf16.mxu0 0
      %1275 = vmatmul.mubr.bf16.gmra.mrb[0].mxu0 %v1135
      %v1276 = vpop.f32.mrb[0].mxu0
      %v1277 = vadd.f32 0.0, %v1276
      %v1278 = vpop.f32.mrb[0].mxu0
      %v1279 = vpop.f32.mrb[0].mxu0
      %v1280 = vadd.f32 0.0, %v1279
      %v1281 = vpop.f32.mrb[0].mxu0
      %1282 = vmatprep.mubr.bf16.mxu0 0
      %1283 = vmatmul.mubr.bf16.gmra.mrb[0].mxu0 %v1138
      %v1284 = vpop.f32.mrb[0].mxu0
      %v1285 = vadd.f32 0.0, %v1284
      %v1286 = vpop.f32.mrb[0].mxu0
      %v1287 = vpop.f32.mrb[0].mxu0
      %v1288 = vadd.f32 0.0, %v1287
      %v1289 = vpop.f32.mrb[0].mxu0
      %1290 = vmatprep.mubr.bf16.mxu0 0
      %1291 = vmatmul.mubr.bf16.gmra.mrb[0].mxu0 %v1141
      %v1292 = vpop.f32.mrb[0].mxu0
      %v1293 = vadd.f32 0.0, %v1292
      %v1294 = vpop.f32.mrb[0].mxu0
      %v1295 = vpop.f32.mrb[0].mxu0
      %v1296 = vadd.f32 0.0, %v1295
      %v1297 = vpop.f32.mrb[0].mxu0
      %1298 = vmatprep.mubr.bf16.mxu0 0
      %1299 = vmatmul.mubr.bf16.gmra.mrb[0].mxu0 %v1144
      %v1300 = vpop.f32.mrb[0].mxu0
      %v1301 = vadd.f32 0.0, %v1300
      %v1302 = vpop.f32.mrb[0].mxu0
      %v1303 = vpop.f32.mrb[0].mxu0
      %v1304 = vadd.f32 0.0, %v1303
      %v1305 = vpop.f32.mrb[0].mxu0
      %1306 = vdwg.mxu0
      %v1307 = vadd.f32 %v826, %v1181
      %v1308 = vadd.f32 %v829, %v1184
      %v1309 = vadd.f32 %v834, %v1189
      %v1310 = vadd.f32 %v837, %v1192
      %v1311 = vadd.f32 %v842, %v1197
      %v1312 = vadd.f32 %v845, %v1200
      %v1313 = vadd.f32 %v850, %v1205
      %v1314 = vadd.f32 %v853, %v1208
      %v1315 = vadd.f32 %v858, %v1213
      %v1316 = vadd.f32 %v861, %v1216
      %v1317 = vadd.f32 %v866, %v1221
      %v1318 = vadd.f32 %v869, %v1224
      %v1319 = vadd.f32 %v874, %v1229
      %v1320 = vadd.f32 %v877, %v1232
      %v1321 = vadd.f32 %v882, %v1237
      %v1322 = vadd.f32 %v885, %v1240
      %v1323 = vadd.f32 %v890, %v1245
      %v1324 = vadd.f32 %v893, %v1248
      %v1325 = vadd.f32 %v898, %v1253
      %v1326 = vadd.f32 %v901, %v1256
      %v1327 = vadd.f32 %v906, %v1261
      %v1328 = vadd.f32 %v909, %v1264
      %v1329 = vadd.f32 %v914, %v1269
      %v1330 = vadd.f32 %v917, %v1272
      %v1331 = vadd.f32 %v922, %v1277
      %v1332 = vadd.f32 %v925, %v1280
      %v1333 = vadd.f32 %v930, %v1285
      %v1334 = vadd.f32 %v933, %v1288
      %v1335 = vadd.f32 %v938, %v1293
      %v1336 = vadd.f32 %v941, %v1296
      %v1337 = vadd.f32 %v946, %v1301
      %v1338 = vadd.f32 %v949, %v1304
      %v1339 = vpack.c.bf16 %v302, %v301
      %s1340 = scalar_lea.vmem %s1, 48
      %v1341 = vld [vmem:[%s1340] sm:$0xf]
      %v1342 = vld [vmem:[%s1340 + $0x4] sm:$0xf]
      %v1343 = vld [vmem:[%s1340 + $0x8] sm:$0xf]
      %v1344 = vld [vmem:[%s1340 + $0xc] sm:$0xf]
      %v1349 = vunpack.c.l.b16 %v1341
      %v1350 = vunpack.c.l.b16 %v1342
      %v1351 = vunpack.c.l.b16 %v1343
      %v1352 = vunpack.c.l.b16 %v1344
      %v1353 = vpack.c.b16 %v1350, %v1349
      %v1354 = vpack.c.b16 %v1352, %v1351
      %v1358 = vsel %vm521, %v1339, 0
      %1360 = vmatprep.subr.bf16.mxu0 0
      %1361 = vmatpush1.bf16.msra.mxu0 %v1353
      %1362 = vmatprep.subr.bf16.mxu0 0
      %1363 = vmatpush1.bf16.msra.mxu0 %v1354
      %1364 = vmatprep.subr.bf16.mxu0 0
      %1365 = vmatpush1.bf16.msra.mxu0 0
      %1366 = vmatprep.subr.bf16.mxu0 0
      %1367 = vmatpush1.bf16.msra.mxu0 0
      %1368 = vmatprep.subr.bf16.mxu0 0
      %1369 = vmatpush1.bf16.msra.mxu0 0
      %1370 = vmatprep.subr.bf16.mxu0 0
      %1371 = vmatpush1.bf16.msra.mxu0 0
      %1372 = vmatprep.subr.bf16.mxu0 0
      %1373 = vmatpush1.bf16.msra.mxu0 0
      %1374 = vmatprep.subr.bf16.mxu0 0
      %1375 = vmatpush1.bf16.msra.mxu0 0
      %1376 = vmatprep.subr.bf16.mxu0 0
      %1377 = vmatpush1.bf16.msra.mxu0 0
      %1378 = vmatprep.subr.bf16.mxu0 0
      %1379 = vmatpush1.bf16.msra.mxu0 0
      %1380 = vmatprep.subr.bf16.mxu0 0
      %1381 = vmatpush1.bf16.msra.mxu0 0
      %1382 = vmatprep.subr.bf16.mxu0 0
      %1383 = vmatpush1.bf16.msra.mxu0 0
      %1384 = vmatprep.subr.bf16.mxu0 0
      %1385 = vmatpush1.bf16.msra.mxu0 0
      %1386 = vmatprep.subr.bf16.mxu0 0
      %1387 = vmatpush1.bf16.msra.mxu0 0
      %1388 = vmatprep.subr.bf16.mxu0 0
      %1389 = vmatpush1.bf16.msra.mxu0 0
      %1390 = vmatprep.subr.bf16.mxu0 0
      %1391 = vmatpush1.bf16.msra.mxu0 0
      %1392 = vmatprep.mubr.bf16.mxu0 0
      %1393 = vmatmul.mubr.bf16.gmra.mrb[0].mxu0 %v747
      %v1394 = vpop.f32.mrb[0].mxu0
      %v1395 = vadd.f32 0.0, %v1394
      %v1396 = vpop.f32.mrb[0].mxu0
      %v1397 = vpop.f32.mrb[0].mxu0
      %v1398 = vadd.f32 0.0, %v1397
      %v1399 = vpop.f32.mrb[0].mxu0
      %1400 = vmatprep.mubr.bf16.mxu0 0
      %1401 = vmatmul.mubr.bf16.gmra.mrb[0].mxu0 %v750
      %v1402 = vpop.f32.mrb[0].mxu0
      %v1403 = vadd.f32 0.0, %v1402
      %v1404 = vpop.f32.mrb[0].mxu0
      %v1405 = vpop.f32.mrb[0].mxu0
      %v1406 = vadd.f32 0.0, %v1405
      %v1407 = vpop.f32.mrb[0].mxu0
      %1408 = vmatprep.mubr.bf16.mxu0 0
      %1409 = vmatmul.mubr.bf16.gmra.mrb[0].mxu0 %v753
      %v1410 = vpop.f32.mrb[0].mxu0
      %v1411 = vadd.f32 0.0, %v1410
      %v1412 = vpop.f32.mrb[0].mxu0
      %v1413 = vpop.f32.mrb[0].mxu0
      %v1414 = vadd.f32 0.0, %v1413
      %v1415 = vpop.f32.mrb[0].mxu0
      %1416 = vmatprep.mubr.bf16.mxu0 0
      %1417 = vmatmul.mubr.bf16.gmra.mrb[0].mxu0 %v756
      %v1418 = vpop.f32.mrb[0].mxu0
      %v1419 = vadd.f32 0.0, %v1418
      %v1420 = vpop.f32.mrb[0].mxu0
      %v1421 = vpop.f32.mrb[0].mxu0
      %v1422 = vadd.f32 0.0, %v1421
      %v1423 = vpop.f32.mrb[0].mxu0
      %1424 = vmatprep.mubr.bf16.mxu0 0
      %1425 = vmatmul.mubr.bf16.gmra.mrb[0].mxu0 %v759
      %v1426 = vpop.f32.mrb[0].mxu0
      %v1427 = vadd.f32 0.0, %v1426
      %v1428 = vpop.f32.mrb[0].mxu0
      %v1429 = vpop.f32.mrb[0].mxu0
      %v1430 = vadd.f32 0.0, %v1429
      %v1431 = vpop.f32.mrb[0].mxu0
      %1432 = vmatprep.mubr.bf16.mxu0 0
      %1433 = vmatmul.mubr.bf16.gmra.mrb[0].mxu0 %v762
      %v1434 = vpop.f32.mrb[0].mxu0
      %v1435 = vadd.f32 0.0, %v1434
      %v1436 = vpop.f32.mrb[0].mxu0
      %v1437 = vpop.f32.mrb[0].mxu0
      %v1438 = vadd.f32 0.0, %v1437
      %v1439 = vpop.f32.mrb[0].mxu0
      %1440 = vmatprep.mubr.bf16.mxu0 0
      %1441 = vmatmul.mubr.bf16.gmra.mrb[0].mxu0 %v765
      %v1442 = vpop.f32.mrb[0].mxu0
      %v1443 = vadd.f32 0.0, %v1442
      %v1444 = vpop.f32.mrb[0].mxu0
      %v1445 = vpop.f32.mrb[0].mxu0
      %v1446 = vadd.f32 0.0, %v1445
      %v1447 = vpop.f32.mrb[0].mxu0
      %1448 = vmatprep.mubr.bf16.mxu0 0
      %1449 = vmatmul.mubr.bf16.gmra.mrb[0].mxu0 %v768
      %v1450 = vpop.f32.mrb[0].mxu0
      %v1451 = vadd.f32 0.0, %v1450
      %v1452 = vpop.f32.mrb[0].mxu0
      %v1453 = vpop.f32.mrb[0].mxu0
      %v1454 = vadd.f32 0.0, %v1453
      %v1455 = vpop.f32.mrb[0].mxu0
      %1456 = vmatprep.mubr.bf16.mxu0 0
      %1457 = vmatmul.mubr.bf16.gmra.mrb[0].mxu0 %v771
      %v1458 = vpop.f32.mrb[0].mxu0
      %v1459 = vadd.f32 0.0, %v1458
      %v1460 = vpop.f32.mrb[0].mxu0
      %v1461 = vpop.f32.mrb[0].mxu0
      %v1462 = vadd.f32 0.0, %v1461
      %v1463 = vpop.f32.mrb[0].mxu0
      %1464 = vmatprep.mubr.bf16.mxu0 0
      %1465 = vmatmul.mubr.bf16.gmra.mrb[0].mxu0 %v774
      %v1466 = vpop.f32.mrb[0].mxu0
      %v1467 = vadd.f32 0.0, %v1466
      %v1468 = vpop.f32.mrb[0].mxu0
      %v1469 = vpop.f32.mrb[0].mxu0
      %v1470 = vadd.f32 0.0, %v1469
      %v1471 = vpop.f32.mrb[0].mxu0
      %1472 = vmatprep.mubr.bf16.mxu0 0
      %1473 = vmatmul.mubr.bf16.gmra.mrb[0].mxu0 %v777
      %v1474 = vpop.f32.mrb[0].mxu0
      %v1475 = vadd.f32 0.0, %v1474
      %v1476 = vpop.f32.mrb[0].mxu0
      %v1477 = vpop.f32.mrb[0].mxu0
      %v1478 = vadd.f32 0.0, %v1477
      %v1479 = vpop.f32.mrb[0].mxu0
      %1480 = vmatprep.mubr.bf16.mxu0 0
      %1481 = vmatmul.mubr.bf16.gmra.mrb[0].mxu0 %v780
      %v1482 = vpop.f32.mrb[0].mxu0
      %v1483 = vadd.f32 0.0, %v1482
      %v1484 = vpop.f32.mrb[0].mxu0
      %v1485 = vpop.f32.mrb[0].mxu0
      %v1486 = vadd.f32 0.0, %v1485
      %v1487 = vpop.f32.mrb[0].mxu0
      %1488 = vmatprep.mubr.bf16.mxu0 0
      %1489 = vmatmul.mubr.bf16.gmra.mrb[0].mxu0 %v783
      %v1490 = vpop.f32.mrb[0].mxu0
      %v1491 = vadd.f32 0.0, %v1490
      %v1492 = vpop.f32.mrb[0].mxu0
      %v1493 = vpop.f32.mrb[0].mxu0
      %v1494 = vadd.f32 0.0, %v1493
      %v1495 = vpop.f32.mrb[0].mxu0
      %1496 = vmatprep.mubr.bf16.mxu0 0
      %1497 = vmatmul.mubr.bf16.gmra.mrb[0].mxu0 %v786
      %v1498 = vpop.f32.mrb[0].mxu0
      %v1499 = vadd.f32 0.0, %v1498
      %v1500 = vpop.f32.mrb[0].mxu0
      %v1501 = vpop.f32.mrb[0].mxu0
      %v1502 = vadd.f32 0.0, %v1501
      %v1503 = vpop.f32.mrb[0].mxu0
      %1504 = vmatprep.mubr.bf16.mxu0 0
      %1505 = vmatmul.mubr.bf16.gmra.mrb[0].mxu0 %v789
      %v1506 = vpop.f32.mrb[0].mxu0
      %v1507 = vadd.f32 0.0, %v1506
      %v1508 = vpop.f32.mrb[0].mxu0
      %v1509 = vpop.f32.mrb[0].mxu0
      %v1510 = vadd.f32 0.0, %v1509
      %v1511 = vpop.f32.mrb[0].mxu0
      %1512 = vmatprep.mubr.bf16.mxu0 0
      %1513 = vmatmul.mubr.bf16.gmra.mrb[0].mxu0 %v1358
      %v1514 = vpop.f32.mrb[0].mxu0
      %v1515 = vadd.f32 0.0, %v1514
      %v1516 = vpop.f32.mrb[0].mxu0
      %v1517 = vpop.f32.mrb[0].mxu0
      %v1518 = vadd.f32 0.0, %v1517
      %v1519 = vpop.f32.mrb[0].mxu0
      %1520 = vdwg.mxu0
      %v1521 = vadd.f32 %v1307, %v1395
      %v1522 = vadd.f32 %v1308, %v1398
      %v1523 = vadd.f32 %v1309, %v1403
      %v1524 = vadd.f32 %v1310, %v1406
      %v1525 = vadd.f32 %v1311, %v1411
      %v1526 = vadd.f32 %v1312, %v1414
      %v1527 = vadd.f32 %v1313, %v1419
      %v1528 = vadd.f32 %v1314, %v1422
      %v1529 = vadd.f32 %v1315, %v1427
      %v1530 = vadd.f32 %v1316, %v1430
      %v1531 = vadd.f32 %v1317, %v1435
      %v1532 = vadd.f32 %v1318, %v1438
      %v1533 = vadd.f32 %v1319, %v1443
      %v1534 = vadd.f32 %v1320, %v1446
      %v1535 = vadd.f32 %v1321, %v1451
      %v1536 = vadd.f32 %v1322, %v1454
      %v1537 = vadd.f32 %v1323, %v1459
      %v1538 = vadd.f32 %v1324, %v1462
      %v1539 = vadd.f32 %v1325, %v1467
      %v1540 = vadd.f32 %v1326, %v1470
      %v1541 = vadd.f32 %v1327, %v1475
      %v1542 = vadd.f32 %v1328, %v1478
      %v1543 = vadd.f32 %v1329, %v1483
      %v1544 = vadd.f32 %v1330, %v1486
      %v1545 = vadd.f32 %v1331, %v1491
      %v1546 = vadd.f32 %v1332, %v1494
      %v1547 = vadd.f32 %v1333, %v1499
      %v1548 = vadd.f32 %v1334, %v1502
      %v1549 = vadd.f32 %v1335, %v1507
      %v1550 = vadd.f32 %v1336, %v1510
      %v1551 = vadd.f32 %v1337, %v1515
      %v1552 = vadd.f32 %v1338, %v1518
      %v1556 = vrot.slane %v301, 1
      %v1557 = vrot.slane %v302, 1
      %v1558 = vsel %vm375, %v1556, %v1557
      %v1559 = vrot.slane %v303, 1
      %v1560 = vsel %vm375, %v1557, %v1559
      %v1563 = vpack.c.bf16 %v1560, %v1558
      %s1564 = scalar_lea.vmem %s1, 64
      %v1565 = vld [vmem:[%s1564] sm:$0xf]
      %v1566 = vld [vmem:[%s1564 + $0x4] sm:$0xf]
      %v1567 = vld [vmem:[%s1564 + $0x8] sm:$0xf]
      %v1568 = vld [vmem:[%s1564 + $0xc] sm:$0xf]
      %v1573 = vunpack.c.l.b16 %v1565
      %v1574 = vunpack.c.l.b16 %v1566
      %v1575 = vunpack.c.l.b16 %v1567
      %v1576 = vunpack.c.l.b16 %v1568
      %v1577 = vpack.c.b16 %v1574, %v1573
      %v1578 = vpack.c.b16 %v1576, %v1575
      %v1582 = vsel %vm521, %v1563, 0
      %1584 = vmatprep.subr.bf16.mxu0 0
      %1585 = vmatpush1.bf16.msra.mxu0 %v1577
      %1586 = vmatprep.subr.bf16.mxu0 0
      %1587 = vmatpush1.bf16.msra.mxu0 %v1578
      %1588 = vmatprep.subr.bf16.mxu0 0
      %1589 = vmatpush1.bf16.msra.mxu0 0
      %1590 = vmatprep.subr.bf16.mxu0 0
      %1591 = vmatpush1.bf16.msra.mxu0 0
      %1592 = vmatprep.subr.bf16.mxu0 0
      %1593 = vmatpush1.bf16.msra.mxu0 0
      %1594 = vmatprep.subr.bf16.mxu0 0
      %1595 = vmatpush1.bf16.msra.mxu0 0
      %1596 = vmatprep.subr.bf16.mxu0 0
      %1597 = vmatpush1.bf16.msra.mxu0 0
      %1598 = vmatprep.subr.bf16.mxu0 0
      %1599 = vmatpush1.bf16.msra.mxu0 0
      %1600 = vmatprep.subr.bf16.mxu0 0
      %1601 = vmatpush1.bf16.msra.mxu0 0
      %1602 = vmatprep.subr.bf16.mxu0 0
      %1603 = vmatpush1.bf16.msra.mxu0 0
      %1604 = vmatprep.subr.bf16.mxu0 0
      %1605 = vmatpush1.bf16.msra.mxu0 0
      %1606 = vmatprep.subr.bf16.mxu0 0
      %1607 = vmatpush1.bf16.msra.mxu0 0
      %1608 = vmatprep.subr.bf16.mxu0 0
      %1609 = vmatpush1.bf16.msra.mxu0 0
      %1610 = vmatprep.subr.bf16.mxu0 0
      %1611 = vmatpush1.bf16.msra.mxu0 0
      %1612 = vmatprep.subr.bf16.mxu0 0
      %1613 = vmatpush1.bf16.msra.mxu0 0
      %1614 = vmatprep.subr.bf16.mxu0 0
      %1615 = vmatpush1.bf16.msra.mxu0 0
      %1616 = vmatprep.mubr.bf16.mxu0 0
      %1617 = vmatmul.mubr.bf16.gmra.mrb[0].mxu0 %v526
      %v1618 = vpop.f32.mrb[0].mxu0
      %v1619 = vadd.f32 0.0, %v1618
      %v1620 = vpop.f32.mrb[0].mxu0
      %v1621 = vpop.f32.mrb[0].mxu0
      %v1622 = vadd.f32 0.0, %v1621
      %v1623 = vpop.f32.mrb[0].mxu0
      %1624 = vmatprep.mubr.bf16.mxu0 0
      %1625 = vmatmul.mubr.bf16.gmra.mrb[0].mxu0 %v529
      %v1626 = vpop.f32.mrb[0].mxu0
      %v1627 = vadd.f32 0.0, %v1626
      %v1628 = vpop.f32.mrb[0].mxu0
      %v1629 = vpop.f32.mrb[0].mxu0
      %v1630 = vadd.f32 0.0, %v1629
      %v1631 = vpop.f32.mrb[0].mxu0
      %1632 = vmatprep.mubr.bf16.mxu0 0
      %1633 = vmatmul.mubr.bf16.gmra.mrb[0].mxu0 %v532
      %v1634 = vpop.f32.mrb[0].mxu0
      %v1635 = vadd.f32 0.0, %v1634
      %v1636 = vpop.f32.mrb[0].mxu0
      %v1637 = vpop.f32.mrb[0].mxu0
      %v1638 = vadd.f32 0.0, %v1637
      %v1639 = vpop.f32.mrb[0].mxu0
      %1640 = vmatprep.mubr.bf16.mxu0 0
      %1641 = vmatmul.mubr.bf16.gmra.mrb[0].mxu0 %v535
      %v1642 = vpop.f32.mrb[0].mxu0
      %v1643 = vadd.f32 0.0, %v1642
      %v1644 = vpop.f32.mrb[0].mxu0
      %v1645 = vpop.f32.mrb[0].mxu0
      %v1646 = vadd.f32 0.0, %v1645
      %v1647 = vpop.f32.mrb[0].mxu0
      %1648 = vmatprep.mubr.bf16.mxu0 0
      %1649 = vmatmul.mubr.bf16.gmra.mrb[0].mxu0 %v538
      %v1650 = vpop.f32.mrb[0].mxu0
      %v1651 = vadd.f32 0.0, %v1650
      %v1652 = vpop.f32.mrb[0].mxu0
      %v1653 = vpop.f32.mrb[0].mxu0
      %v1654 = vadd.f32 0.0, %v1653
      %v1655 = vpop.f32.mrb[0].mxu0
      %1656 = vmatprep.mubr.bf16.mxu0 0
      %1657 = vmatmul.mubr.bf16.gmra.mrb[0].mxu0 %v541
      %v1658 = vpop.f32.mrb[0].mxu0
      %v1659 = vadd.f32 0.0, %v1658
      %v1660 = vpop.f32.mrb[0].mxu0
      %v1661 = vpop.f32.mrb[0].mxu0
      %v1662 = vadd.f32 0.0, %v1661
      %v1663 = vpop.f32.mrb[0].mxu0
      %1664 = vmatprep.mubr.bf16.mxu0 0
      %1665 = vmatmul.mubr.bf16.gmra.mrb[0].mxu0 %v544
      %v1666 = vpop.f32.mrb[0].mxu0
      %v1667 = vadd.f32 0.0, %v1666
      %v1668 = vpop.f32.mrb[0].mxu0
      %v1669 = vpop.f32.mrb[0].mxu0
      %v1670 = vadd.f32 0.0, %v1669
      %v1671 = vpop.f32.mrb[0].mxu0
      %1672 = vmatprep.mubr.bf16.mxu0 0
      %1673 = vmatmul.mubr.bf16.gmra.mrb[0].mxu0 %v547
      %v1674 = vpop.f32.mrb[0].mxu0
      %v1675 = vadd.f32 0.0, %v1674
      %v1676 = vpop.f32.mrb[0].mxu0
      %v1677 = vpop.f32.mrb[0].mxu0
      %v1678 = vadd.f32 0.0, %v1677
      %v1679 = vpop.f32.mrb[0].mxu0
      %1680 = vmatprep.mubr.bf16.mxu0 0
      %1681 = vmatmul.mubr.bf16.gmra.mrb[0].mxu0 %v550
      %v1682 = vpop.f32.mrb[0].mxu0
      %v1683 = vadd.f32 0.0, %v1682
      %v1684 = vpop.f32.mrb[0].mxu0
      %v1685 = vpop.f32.mrb[0].mxu0
      %v1686 = vadd.f32 0.0, %v1685
      %v1687 = vpop.f32.mrb[0].mxu0
      %1688 = vmatprep.mubr.bf16.mxu0 0
      %1689 = vmatmul.mubr.bf16.gmra.mrb[0].mxu0 %v553
      %v1690 = vpop.f32.mrb[0].mxu0
      %v1691 = vadd.f32 0.0, %v1690
      %v1692 = vpop.f32.mrb[0].mxu0
      %v1693 = vpop.f32.mrb[0].mxu0
      %v1694 = vadd.f32 0.0, %v1693
      %v1695 = vpop.f32.mrb[0].mxu0
      %1696 = vmatprep.mubr.bf16.mxu0 0
      %1697 = vmatmul.mubr.bf16.gmra.mrb[0].mxu0 %v556
      %v1698 = vpop.f32.mrb[0].mxu0
      %v1699 = vadd.f32 0.0, %v1698
      %v1700 = vpop.f32.mrb[0].mxu0
      %v1701 = vpop.f32.mrb[0].mxu0
      %v1702 = vadd.f32 0.0, %v1701
      %v1703 = vpop.f32.mrb[0].mxu0
      %1704 = vmatprep.mubr.bf16.mxu0 0
      %1705 = vmatmul.mubr.bf16.gmra.mrb[0].mxu0 %v559
      %v1706 = vpop.f32.mrb[0].mxu0
      %v1707 = vadd.f32 0.0, %v1706
      %v1708 = vpop.f32.mrb[0].mxu0
      %v1709 = vpop.f32.mrb[0].mxu0
      %v1710 = vadd.f32 0.0, %v1709
      %v1711 = vpop.f32.mrb[0].mxu0
      %1712 = vmatprep.mubr.bf16.mxu0 0
      %1713 = vmatmul.mubr.bf16.gmra.mrb[0].mxu0 %v562
      %v1714 = vpop.f32.mrb[0].mxu0
      %v1715 = vadd.f32 0.0, %v1714
      %v1716 = vpop.f32.mrb[0].mxu0
      %v1717 = vpop.f32.mrb[0].mxu0
      %v1718 = vadd.f32 0.0, %v1717
      %v1719 = vpop.f32.mrb[0].mxu0
      %1720 = vmatprep.mubr.bf16.mxu0 0
      %1721 = vmatmul.mubr.bf16.gmra.mrb[0].mxu0 %v565
      %v1722 = vpop.f32.mrb[0].mxu0
      %v1723 = vadd.f32 0.0, %v1722
      %v1724 = vpop.f32.mrb[0].mxu0
      %v1725 = vpop.f32.mrb[0].mxu0
      %v1726 = vadd.f32 0.0, %v1725
      %v1727 = vpop.f32.mrb[0].mxu0
      %1728 = vmatprep.mubr.bf16.mxu0 0
      %1729 = vmatmul.mubr.bf16.gmra.mrb[0].mxu0 %v568
      %v1730 = vpop.f32.mrb[0].mxu0
      %v1731 = vadd.f32 0.0, %v1730
      %v1732 = vpop.f32.mrb[0].mxu0
      %v1733 = vpop.f32.mrb[0].mxu0
      %v1734 = vadd.f32 0.0, %v1733
      %v1735 = vpop.f32.mrb[0].mxu0
      %1736 = vmatprep.mubr.bf16.mxu0 0
      %1737 = vmatmul.mubr.bf16.gmra.mrb[0].mxu0 %v1582
      %v1738 = vpop.f32.mrb[0].mxu0
      %v1739 = vadd.f32 0.0, %v1738
      %v1740 = vpop.f32.mrb[0].mxu0
      %v1741 = vpop.f32.mrb[0].mxu0
      %v1742 = vadd.f32 0.0, %v1741
      %v1743 = vpop.f32.mrb[0].mxu0
      %1744 = vdwg.mxu0
      %v1745 = vadd.f32 %v1521, %v1619
      %v1746 = vadd.f32 %v1522, %v1622
      %v1747 = vadd.f32 %v1523, %v1627
      %v1748 = vadd.f32 %v1524, %v1630
      %v1749 = vadd.f32 %v1525, %v1635
      %v1750 = vadd.f32 %v1526, %v1638
      %v1751 = vadd.f32 %v1527, %v1643
      %v1752 = vadd.f32 %v1528, %v1646
      %v1753 = vadd.f32 %v1529, %v1651
      %v1754 = vadd.f32 %v1530, %v1654
      %v1755 = vadd.f32 %v1531, %v1659
      %v1756 = vadd.f32 %v1532, %v1662
      %v1757 = vadd.f32 %v1533, %v1667
      %v1758 = vadd.f32 %v1534, %v1670
      %v1759 = vadd.f32 %v1535, %v1675
      %v1760 = vadd.f32 %v1536, %v1678
      %v1761 = vadd.f32 %v1537, %v1683
      %v1762 = vadd.f32 %v1538, %v1686
      %v1763 = vadd.f32 %v1539, %v1691
      %v1764 = vadd.f32 %v1540, %v1694
      %v1765 = vadd.f32 %v1541, %v1699
      %v1766 = vadd.f32 %v1542, %v1702
      %v1767 = vadd.f32 %v1543, %v1707
      %v1768 = vadd.f32 %v1544, %v1710
      %v1769 = vadd.f32 %v1545, %v1715
      %v1770 = vadd.f32 %v1546, %v1718
      %v1771 = vadd.f32 %v1547, %v1723
      %v1772 = vadd.f32 %v1548, %v1726
      %v1773 = vadd.f32 %v1549, %v1731
      %v1774 = vadd.f32 %v1550, %v1734
      %v1775 = vadd.f32 %v1551, %v1739
      %v1776 = vadd.f32 %v1552, %v1742
      %v1777 = vrot.slane %v301, 2
      %v1778 = vrot.slane %v302, 2
      %v1779 = vsel %vm952, %v1777, %v1778
      %v1780 = vrot.slane %v303, 2
      %v1781 = vsel %vm952, %v1778, %v1780
      %v1784 = vpack.c.bf16 %v1781, %v1779
      %s1785 = scalar_lea.vmem %s1, 80
      %v1786 = vld [vmem:[%s1785] sm:$0xf]
      %v1787 = vld [vmem:[%s1785 + $0x4] sm:$0xf]
      %v1788 = vld [vmem:[%s1785 + $0x8] sm:$0xf]
      %v1789 = vld [vmem:[%s1785 + $0xc] sm:$0xf]
      %v1794 = vunpack.c.l.b16 %v1786
      %v1795 = vunpack.c.l.b16 %v1787
      %v1796 = vunpack.c.l.b16 %v1788
      %v1797 = vunpack.c.l.b16 %v1789
      %v1798 = vpack.c.b16 %v1795, %v1794
      %v1799 = vpack.c.b16 %v1797, %v1796
      %v1803 = vsel %vm521, %v1784, 0
      %1805 = vmatprep.subr.bf16.mxu0 0
      %1806 = vmatpush1.bf16.msra.mxu0 %v1798
      %1807 = vmatprep.subr.bf16.mxu0 0
      %1808 = vmatpush1.bf16.msra.mxu0 %v1799
      %1809 = vmatprep.subr.bf16.mxu0 0
      %1810 = vmatpush1.bf16.msra.mxu0 0
      %1811 = vmatprep.subr.bf16.mxu0 0
      %1812 = vmatpush1.bf16.msra.mxu0 0
      %1813 = vmatprep.subr.bf16.mxu0 0
      %1814 = vmatpush1.bf16.msra.mxu0 0
      %1815 = vmatprep.subr.bf16.mxu0 0
      %1816 = vmatpush1.bf16.msra.mxu0 0
      %1817 = vmatprep.subr.bf16.mxu0 0
      %1818 = vmatpush1.bf16.msra.mxu0 0
      %1819 = vmatprep.subr.bf16.mxu0 0
      %1820 = vmatpush1.bf16.msra.mxu0 0
      %1821 = vmatprep.subr.bf16.mxu0 0
      %1822 = vmatpush1.bf16.msra.mxu0 0
      %1823 = vmatprep.subr.bf16.mxu0 0
      %1824 = vmatpush1.bf16.msra.mxu0 0
      %1825 = vmatprep.subr.bf16.mxu0 0
      %1826 = vmatpush1.bf16.msra.mxu0 0
      %1827 = vmatprep.subr.bf16.mxu0 0
      %1828 = vmatpush1.bf16.msra.mxu0 0
      %1829 = vmatprep.subr.bf16.mxu0 0
      %1830 = vmatpush1.bf16.msra.mxu0 0
      %1831 = vmatprep.subr.bf16.mxu0 0
      %1832 = vmatpush1.bf16.msra.mxu0 0
      %1833 = vmatprep.subr.bf16.mxu0 0
      %1834 = vmatpush1.bf16.msra.mxu0 0
      %1835 = vmatprep.subr.bf16.mxu0 0
      %1836 = vmatpush1.bf16.msra.mxu0 0
      %1837 = vmatprep.mubr.bf16.mxu0 0
      %1838 = vmatmul.mubr.bf16.gmra.mrb[0].mxu0 %v1102
      %v1839 = vpop.f32.mrb[0].mxu0
      %v1840 = vadd.f32 0.0, %v1839
      %v1841 = vpop.f32.mrb[0].mxu0
      %v1842 = vpop.f32.mrb[0].mxu0
      %v1843 = vadd.f32 0.0, %v1842
      %v1844 = vpop.f32.mrb[0].mxu0
      %1845 = vmatprep.mubr.bf16.mxu0 0
      %1846 = vmatmul.mubr.bf16.gmra.mrb[0].mxu0 %v1105
      %v1847 = vpop.f32.mrb[0].mxu0
      %v1848 = vadd.f32 0.0, %v1847
      %v1849 = vpop.f32.mrb[0].mxu0
      %v1850 = vpop.f32.mrb[0].mxu0
      %v1851 = vadd.f32 0.0, %v1850
      %v1852 = vpop.f32.mrb[0].mxu0
      %1853 = vmatprep.mubr.bf16.mxu0 0
      %1854 = vmatmul.mubr.bf16.gmra.mrb[0].mxu0 %v1108
      %v1855 = vpop.f32.mrb[0].mxu0
      %v1856 = vadd.f32 0.0, %v1855
      %v1857 = vpop.f32.mrb[0].mxu0
      %v1858 = vpop.f32.mrb[0].mxu0
      %v1859 = vadd.f32 0.0, %v1858
      %v1860 = vpop.f32.mrb[0].mxu0
      %1861 = vmatprep.mubr.bf16.mxu0 0
      %1862 = vmatmul.mubr.bf16.gmra.mrb[0].mxu0 %v1111
      %v1863 = vpop.f32.mrb[0].mxu0
      %v1864 = vadd.f32 0.0, %v1863
      %v1865 = vpop.f32.mrb[0].mxu0
      %v1866 = vpop.f32.mrb[0].mxu0
      %v1867 = vadd.f32 0.0, %v1866
      %v1868 = vpop.f32.mrb[0].mxu0
      %1869 = vmatprep.mubr.bf16.mxu0 0
      %1870 = vmatmul.mubr.bf16.gmra.mrb[0].mxu0 %v1114
      %v1871 = vpop.f32.mrb[0].mxu0
      %v1872 = vadd.f32 0.0, %v1871
      %v1873 = vpop.f32.mrb[0].mxu0
      %v1874 = vpop.f32.mrb[0].mxu0
      %v1875 = vadd.f32 0.0, %v1874
      %v1876 = vpop.f32.mrb[0].mxu0
      %1877 = vmatprep.mubr.bf16.mxu0 0
      %1878 = vmatmul.mubr.bf16.gmra.mrb[0].mxu0 %v1117
      %v1879 = vpop.f32.mrb[0].mxu0
      %v1880 = vadd.f32 0.0, %v1879
      %v1881 = vpop.f32.mrb[0].mxu0
      %v1882 = vpop.f32.mrb[0].mxu0
      %v1883 = vadd.f32 0.0, %v1882
      %v1884 = vpop.f32.mrb[0].mxu0
      %1885 = vmatprep.mubr.bf16.mxu0 0
      %1886 = vmatmul.mubr.bf16.gmra.mrb[0].mxu0 %v1120
      %v1887 = vpop.f32.mrb[0].mxu0
      %v1888 = vadd.f32 0.0, %v1887
      %v1889 = vpop.f32.mrb[0].mxu0
      %v1890 = vpop.f32.mrb[0].mxu0
      %v1891 = vadd.f32 0.0, %v1890
      %v1892 = vpop.f32.mrb[0].mxu0
      %1893 = vmatprep.mubr.bf16.mxu0 0
      %1894 = vmatmul.mubr.bf16.gmra.mrb[0].mxu0 %v1123
      %v1895 = vpop.f32.mrb[0].mxu0
      %v1896 = vadd.f32 0.0, %v1895
      %v1897 = vpop.f32.mrb[0].mxu0
      %v1898 = vpop.f32.mrb[0].mxu0
      %v1899 = vadd.f32 0.0, %v1898
      %v1900 = vpop.f32.mrb[0].mxu0
      %1901 = vmatprep.mubr.bf16.mxu0 0
      %1902 = vmatmul.mubr.bf16.gmra.mrb[0].mxu0 %v1126
      %v1903 = vpop.f32.mrb[0].mxu0
      %v1904 = vadd.f32 0.0, %v1903
      %v1905 = vpop.f32.mrb[0].mxu0
      %v1906 = vpop.f32.mrb[0].mxu0
      %v1907 = vadd.f32 0.0, %v1906
      %v1908 = vpop.f32.mrb[0].mxu0
      %1909 = vmatprep.mubr.bf16.mxu0 0
      %1910 = vmatmul.mubr.bf16.gmra.mrb[0].mxu0 %v1129
      %v1911 = vpop.f32.mrb[0].mxu0
      %v1912 = vadd.f32 0.0, %v1911
      %v1913 = vpop.f32.mrb[0].mxu0
      %v1914 = vpop.f32.mrb[0].mxu0
      %v1915 = vadd.f32 0.0, %v1914
      %v1916 = vpop.f32.mrb[0].mxu0
      %1917 = vmatprep.mubr.bf16.mxu0 0
      %1918 = vmatmul.mubr.bf16.gmra.mrb[0].mxu0 %v1132
      %v1919 = vpop.f32.mrb[0].mxu0
      %v1920 = vadd.f32 0.0, %v1919
      %v1921 = vpop.f32.mrb[0].mxu0
      %v1922 = vpop.f32.mrb[0].mxu0
      %v1923 = vadd.f32 0.0, %v1922
      %v1924 = vpop.f32.mrb[0].mxu0
      %1925 = vmatprep.mubr.bf16.mxu0 0
      %1926 = vmatmul.mubr.bf16.gmra.mrb[0].mxu0 %v1135
      %v1927 = vpop.f32.mrb[0].mxu0
      %v1928 = vadd.f32 0.0, %v1927
      %v1929 = vpop.f32.mrb[0].mxu0
      %v1930 = vpop.f32.mrb[0].mxu0
      %v1931 = vadd.f32 0.0, %v1930
      %v1932 = vpop.f32.mrb[0].mxu0
      %1933 = vmatprep.mubr.bf16.mxu0 0
      %1934 = vmatmul.mubr.bf16.gmra.mrb[0].mxu0 %v1138
      %v1935 = vpop.f32.mrb[0].mxu0
      %v1936 = vadd.f32 0.0, %v1935
      %v1937 = vpop.f32.mrb[0].mxu0
      %v1938 = vpop.f32.mrb[0].mxu0
      %v1939 = vadd.f32 0.0, %v1938
      %v1940 = vpop.f32.mrb[0].mxu0
      %1941 = vmatprep.mubr.bf16.mxu0 0
      %1942 = vmatmul.mubr.bf16.gmra.mrb[0].mxu0 %v1141
      %v1943 = vpop.f32.mrb[0].mxu0
      %v1944 = vadd.f32 0.0, %v1943
      %v1945 = vpop.f32.mrb[0].mxu0
      %v1946 = vpop.f32.mrb[0].mxu0
      %v1947 = vadd.f32 0.0, %v1946
      %v1948 = vpop.f32.mrb[0].mxu0
      %1949 = vmatprep.mubr.bf16.mxu0 0
      %1950 = vmatmul.mubr.bf16.gmra.mrb[0].mxu0 %v1144
      %v1951 = vpop.f32.mrb[0].mxu0
      %v1952 = vadd.f32 0.0, %v1951
      %v1953 = vpop.f32.mrb[0].mxu0
      %v1954 = vpop.f32.mrb[0].mxu0
      %v1955 = vadd.f32 0.0, %v1954
      %v1956 = vpop.f32.mrb[0].mxu0
      %1957 = vmatprep.mubr.bf16.mxu0 0
      %1958 = vmatmul.mubr.bf16.gmra.mrb[0].mxu0 %v1803
      %v1959 = vpop.f32.mrb[0].mxu0
      %v1960 = vadd.f32 0.0, %v1959
      %v1961 = vpop.f32.mrb[0].mxu0
      %v1962 = vpop.f32.mrb[0].mxu0
      %v1963 = vadd.f32 0.0, %v1962
      %v1964 = vpop.f32.mrb[0].mxu0
      %1965 = vdwg.mxu0
      %v1966 = vadd.f32 %v1745, %v1840
      %v1967 = vadd.f32 %v1746, %v1843
      %v1968 = vadd.f32 %v1747, %v1848
      %v1969 = vadd.f32 %v1748, %v1851
      %v1970 = vadd.f32 %v1749, %v1856
      %v1971 = vadd.f32 %v1750, %v1859
      %v1972 = vadd.f32 %v1751, %v1864
      %v1973 = vadd.f32 %v1752, %v1867
      %v1974 = vadd.f32 %v1753, %v1872
      %v1975 = vadd.f32 %v1754, %v1875
      %v1976 = vadd.f32 %v1755, %v1880
      %v1977 = vadd.f32 %v1756, %v1883
      %v1978 = vadd.f32 %v1757, %v1888
      %v1979 = vadd.f32 %v1758, %v1891
      %v1980 = vadd.f32 %v1759, %v1896
      %v1981 = vadd.f32 %v1760, %v1899
      %v1982 = vadd.f32 %v1761, %v1904
      %v1983 = vadd.f32 %v1762, %v1907
      %v1984 = vadd.f32 %v1763, %v1912
      %v1985 = vadd.f32 %v1764, %v1915
      %v1986 = vadd.f32 %v1765, %v1920
      %v1987 = vadd.f32 %v1766, %v1923
      %v1988 = vadd.f32 %v1767, %v1928
      %v1989 = vadd.f32 %v1768, %v1931
      %v1990 = vadd.f32 %v1769, %v1936
      %v1991 = vadd.f32 %v1770, %v1939
      %v1992 = vadd.f32 %v1771, %v1944
      %v1993 = vadd.f32 %v1772, %v1947
      %v1994 = vadd.f32 %v1773, %v1952
      %v1995 = vadd.f32 %v1774, %v1955
      %v1996 = vadd.f32 %v1775, %v1960
      %v1997 = vadd.f32 %v1776, %v1963
      %v1998 = vpack.c.bf16 %v305, %v304
      %s1999 = scalar_lea.vmem %s1, 96
      %v2000 = vld [vmem:[%s1999] sm:$0xf]
      %v2001 = vld [vmem:[%s1999 + $0x4] sm:$0xf]
      %v2002 = vld [vmem:[%s1999 + $0x8] sm:$0xf]
      %v2003 = vld [vmem:[%s1999 + $0xc] sm:$0xf]
      %v2008 = vunpack.c.l.b16 %v2000
      %v2009 = vunpack.c.l.b16 %v2001
      %v2010 = vunpack.c.l.b16 %v2002
      %v2011 = vunpack.c.l.b16 %v2003
      %v2012 = vpack.c.b16 %v2009, %v2008
      %v2013 = vpack.c.b16 %v2011, %v2010
      %v2017 = vsel %vm521, %v1998, 0
      %2019 = vmatprep.subr.bf16.mxu0 0
      %2020 = vmatpush1.bf16.msra.mxu0 %v2012
      %2021 = vmatprep.subr.bf16.mxu0 0
      %2022 = vmatpush1.bf16.msra.mxu0 %v2013
      %2023 = vmatprep.subr.bf16.mxu0 0
      %2024 = vmatpush1.bf16.msra.mxu0 0
      %2025 = vmatprep.subr.bf16.mxu0 0
      %2026 = vmatpush1.bf16.msra.mxu0 0
      %2027 = vmatprep.subr.bf16.mxu0 0
      %2028 = vmatpush1.bf16.msra.mxu0 0
      %2029 = vmatprep.subr.bf16.mxu0 0
      %2030 = vmatpush1.bf16.msra.mxu0 0
      %2031 = vmatprep.subr.bf16.mxu0 0
      %2032 = vmatpush1.bf16.msra.mxu0 0
      %2033 = vmatprep.subr.bf16.mxu0 0
      %2034 = vmatpush1.bf16.msra.mxu0 0
      %2035 = vmatprep.subr.bf16.mxu0 0
      %2036 = vmatpush1.bf16.msra.mxu0 0
      %2037 = vmatprep.subr.bf16.mxu0 0
      %2038 = vmatpush1.bf16.msra.mxu0 0
      %2039 = vmatprep.subr.bf16.mxu0 0
      %2040 = vmatpush1.bf16.msra.mxu0 0
      %2041 = vmatprep.subr.bf16.mxu0 0
      %2042 = vmatpush1.bf16.msra.mxu0 0
      %2043 = vmatprep.subr.bf16.mxu0 0
      %2044 = vmatpush1.bf16.msra.mxu0 0
      %2045 = vmatprep.subr.bf16.mxu0 0
      %2046 = vmatpush1.bf16.msra.mxu0 0
      %2047 = vmatprep.subr.bf16.mxu0 0
      %2048 = vmatpush1.bf16.msra.mxu0 0
      %2049 = vmatprep.subr.bf16.mxu0 0
      %2050 = vmatpush1.bf16.msra.mxu0 0
      %2051 = vmatprep.mubr.bf16.mxu0 0
      %2052 = vmatmul.mubr.bf16.gmra.mrb[0].mxu0 %v750
      %v2053 = vpop.f32.mrb[0].mxu0
      %v2054 = vadd.f32 0.0, %v2053
      %v2055 = vpop.f32.mrb[0].mxu0
      %v2056 = vpop.f32.mrb[0].mxu0
      %v2057 = vadd.f32 0.0, %v2056
      %v2058 = vpop.f32.mrb[0].mxu0
      %2059 = vmatprep.mubr.bf16.mxu0 0
      %2060 = vmatmul.mubr.bf16.gmra.mrb[0].mxu0 %v753
      %v2061 = vpop.f32.mrb[0].mxu0
      %v2062 = vadd.f32 0.0, %v2061
      %v2063 = vpop.f32.mrb[0].mxu0
      %v2064 = vpop.f32.mrb[0].mxu0
      %v2065 = vadd.f32 0.0, %v2064
      %v2066 = vpop.f32.mrb[0].mxu0
      %2067 = vmatprep.mubr.bf16.mxu0 0
      %2068 = vmatmul.mubr.bf16.gmra.mrb[0].mxu0 %v756
      %v2069 = vpop.f32.mrb[0].mxu0
      %v2070 = vadd.f32 0.0, %v2069
      %v2071 = vpop.f32.mrb[0].mxu0
      %v2072 = vpop.f32.mrb[0].mxu0
      %v2073 = vadd.f32 0.0, %v2072
      %v2074 = vpop.f32.mrb[0].mxu0
      %2075 = vmatprep.mubr.bf16.mxu0 0
      %2076 = vmatmul.mubr.bf16.gmra.mrb[0].mxu0 %v759
      %v2077 = vpop.f32.mrb[0].mxu0
      %v2078 = vadd.f32 0.0, %v2077
      %v2079 = vpop.f32.mrb[0].mxu0
      %v2080 = vpop.f32.mrb[0].mxu0
      %v2081 = vadd.f32 0.0, %v2080
      %v2082 = vpop.f32.mrb[0].mxu0
      %2083 = vmatprep.mubr.bf16.mxu0 0
      %2084 = vmatmul.mubr.bf16.gmra.mrb[0].mxu0 %v762
      %v2085 = vpop.f32.mrb[0].mxu0
      %v2086 = vadd.f32 0.0, %v2085
      %v2087 = vpop.f32.mrb[0].mxu0
      %v2088 = vpop.f32.mrb[0].mxu0
      %v2089 = vadd.f32 0.0, %v2088
      %v2090 = vpop.f32.mrb[0].mxu0
      %2091 = vmatprep.mubr.bf16.mxu0 0
      %2092 = vmatmul.mubr.bf16.gmra.mrb[0].mxu0 %v765
      %v2093 = vpop.f32.mrb[0].mxu0
      %v2094 = vadd.f32 0.0, %v2093
      %v2095 = vpop.f32.mrb[0].mxu0
      %v2096 = vpop.f32.mrb[0].mxu0
      %v2097 = vadd.f32 0.0, %v2096
      %v2098 = vpop.f32.mrb[0].mxu0
      %2099 = vmatprep.mubr.bf16.mxu0 0
      %2100 = vmatmul.mubr.bf16.gmra.mrb[0].mxu0 %v768
      %v2101 = vpop.f32.mrb[0].mxu0
      %v2102 = vadd.f32 0.0, %v2101
      %v2103 = vpop.f32.mrb[0].mxu0
      %v2104 = vpop.f32.mrb[0].mxu0
      %v2105 = vadd.f32 0.0, %v2104
      %v2106 = vpop.f32.mrb[0].mxu0
      %2107 = vmatprep.mubr.bf16.mxu0 0
      %2108 = vmatmul.mubr.bf16.gmra.mrb[0].mxu0 %v771
      %v2109 = vpop.f32.mrb[0].mxu0
      %v2110 = vadd.f32 0.0, %v2109
      %v2111 = vpop.f32.mrb[0].mxu0
      %v2112 = vpop.f32.mrb[0].mxu0
      %v2113 = vadd.f32 0.0, %v2112
      %v2114 = vpop.f32.mrb[0].mxu0
      %2115 = vmatprep.mubr.bf16.mxu0 0
      %2116 = vmatmul.mubr.bf16.gmra.mrb[0].mxu0 %v774
      %v2117 = vpop.f32.mrb[0].mxu0
      %v2118 = vadd.f32 0.0, %v2117
      %v2119 = vpop.f32.mrb[0].mxu0
      %v2120 = vpop.f32.mrb[0].mxu0
      %v2121 = vadd.f32 0.0, %v2120
      %v2122 = vpop.f32.mrb[0].mxu0
      %2123 = vmatprep.mubr.bf16.mxu0 0
      %2124 = vmatmul.mubr.bf16.gmra.mrb[0].mxu0 %v777
      %v2125 = vpop.f32.mrb[0].mxu0
      %v2126 = vadd.f32 0.0, %v2125
      %v2127 = vpop.f32.mrb[0].mxu0
      %v2128 = vpop.f32.mrb[0].mxu0
      %v2129 = vadd.f32 0.0, %v2128
      %v2130 = vpop.f32.mrb[0].mxu0
      %2131 = vmatprep.mubr.bf16.mxu0 0
      %2132 = vmatmul.mubr.bf16.gmra.mrb[0].mxu0 %v780
      %v2133 = vpop.f32.mrb[0].mxu0
      %v2134 = vadd.f32 0.0, %v2133
      %v2135 = vpop.f32.mrb[0].mxu0
      %v2136 = vpop.f32.mrb[0].mxu0
      %v2137 = vadd.f32 0.0, %v2136
      %v2138 = vpop.f32.mrb[0].mxu0
      %2139 = vmatprep.mubr.bf16.mxu0 0
      %2140 = vmatmul.mubr.bf16.gmra.mrb[0].mxu0 %v783
      %v2141 = vpop.f32.mrb[0].mxu0
      %v2142 = vadd.f32 0.0, %v2141
      %v2143 = vpop.f32.mrb[0].mxu0
      %v2144 = vpop.f32.mrb[0].mxu0
      %v2145 = vadd.f32 0.0, %v2144
      %v2146 = vpop.f32.mrb[0].mxu0
      %2147 = vmatprep.mubr.bf16.mxu0 0
      %2148 = vmatmul.mubr.bf16.gmra.mrb[0].mxu0 %v786
      %v2149 = vpop.f32.mrb[0].mxu0
      %v2150 = vadd.f32 0.0, %v2149
      %v2151 = vpop.f32.mrb[0].mxu0
      %v2152 = vpop.f32.mrb[0].mxu0
      %v2153 = vadd.f32 0.0, %v2152
      %v2154 = vpop.f32.mrb[0].mxu0
      %2155 = vmatprep.mubr.bf16.mxu0 0
      %2156 = vmatmul.mubr.bf16.gmra.mrb[0].mxu0 %v789
      %v2157 = vpop.f32.mrb[0].mxu0
      %v2158 = vadd.f32 0.0, %v2157
      %v2159 = vpop.f32.mrb[0].mxu0
      %v2160 = vpop.f32.mrb[0].mxu0
      %v2161 = vadd.f32 0.0, %v2160
      %v2162 = vpop.f32.mrb[0].mxu0
      %2163 = vmatprep.mubr.bf16.mxu0 0
      %2164 = vmatmul.mubr.bf16.gmra.mrb[0].mxu0 %v1358
      %v2165 = vpop.f32.mrb[0].mxu0
      %v2166 = vadd.f32 0.0, %v2165
      %v2167 = vpop.f32.mrb[0].mxu0
      %v2168 = vpop.f32.mrb[0].mxu0
      %v2169 = vadd.f32 0.0, %v2168
      %v2170 = vpop.f32.mrb[0].mxu0
      %2171 = vmatprep.mubr.bf16.mxu0 0
      %2172 = vmatmul.mubr.bf16.gmra.mrb[0].mxu0 %v2017
      %v2173 = vpop.f32.mrb[0].mxu0
      %v2174 = vadd.f32 0.0, %v2173
      %v2175 = vpop.f32.mrb[0].mxu0
      %v2176 = vpop.f32.mrb[0].mxu0
      %v2177 = vadd.f32 0.0, %v2176
      %v2178 = vpop.f32.mrb[0].mxu0
      %2179 = vdwg.mxu0
      %v2180 = vadd.f32 %v1966, %v2054
      %v2181 = vadd.f32 %v1967, %v2057
      %v2182 = vadd.f32 %v1968, %v2062
      %v2183 = vadd.f32 %v1969, %v2065
      %v2184 = vadd.f32 %v1970, %v2070
      %v2185 = vadd.f32 %v1971, %v2073
      %v2186 = vadd.f32 %v1972, %v2078
      %v2187 = vadd.f32 %v1973, %v2081
      %v2188 = vadd.f32 %v1974, %v2086
      %v2189 = vadd.f32 %v1975, %v2089
      %v2190 = vadd.f32 %v1976, %v2094
      %v2191 = vadd.f32 %v1977, %v2097
      %v2192 = vadd.f32 %v1978, %v2102
      %v2193 = vadd.f32 %v1979, %v2105
      %v2194 = vadd.f32 %v1980, %v2110
      %v2195 = vadd.f32 %v1981, %v2113
      %v2196 = vadd.f32 %v1982, %v2118
      %v2197 = vadd.f32 %v1983, %v2121
      %v2198 = vadd.f32 %v1984, %v2126
      %v2199 = vadd.f32 %v1985, %v2129
      %v2200 = vadd.f32 %v1986, %v2134
      %v2201 = vadd.f32 %v1987, %v2137
      %v2202 = vadd.f32 %v1988, %v2142
      %v2203 = vadd.f32 %v1989, %v2145
      %v2204 = vadd.f32 %v1990, %v2150
      %v2205 = vadd.f32 %v1991, %v2153
      %v2206 = vadd.f32 %v1992, %v2158
      %v2207 = vadd.f32 %v1993, %v2161
      %v2208 = vadd.f32 %v1994, %v2166
      %v2209 = vadd.f32 %v1995, %v2169
      %v2210 = vadd.f32 %v1996, %v2174
      %v2211 = vadd.f32 %v1997, %v2177
      %v2215 = vrot.slane %v304, 1
      %v2216 = vrot.slane %v305, 1
      %v2217 = vsel %vm375, %v2215, %v2216
      %v2218 = vrot.slane %v306, 1
      %v2219 = vsel %vm375, %v2216, %v2218
      %v2222 = vpack.c.bf16 %v2219, %v2217
      %s2223 = scalar_lea.vmem %s1, 112
      %v2224 = vld [vmem:[%s2223] sm:$0xf]
      %v2225 = vld [vmem:[%s2223 + $0x4] sm:$0xf]
      %v2226 = vld [vmem:[%s2223 + $0x8] sm:$0xf]
      %v2227 = vld [vmem:[%s2223 + $0xc] sm:$0xf]
      %v2232 = vunpack.c.l.b16 %v2224
      %v2233 = vunpack.c.l.b16 %v2225
      %v2234 = vunpack.c.l.b16 %v2226
      %v2235 = vunpack.c.l.b16 %v2227
      %v2236 = vpack.c.b16 %v2233, %v2232
      %v2237 = vpack.c.b16 %v2235, %v2234
      %v2241 = vsel %vm521, %v2222, 0
      %2243 = vmatprep.subr.bf16.mxu0 0
      %2244 = vmatpush1.bf16.msra.mxu0 %v2236
      %2245 = vmatprep.subr.bf16.mxu0 0
      %2246 = vmatpush1.bf16.msra.mxu0 %v2237
      %2247 = vmatprep.subr.bf16.mxu0 0
      %2248 = vmatpush1.bf16.msra.mxu0 0
      %2249 = vmatprep.subr.bf16.mxu0 0
      %2250 = vmatpush1.bf16.msra.mxu0 0
      %2251 = vmatprep.subr.bf16.mxu0 0
      %2252 = vmatpush1.bf16.msra.mxu0 0
      %2253 = vmatprep.subr.bf16.mxu0 0
      %2254 = vmatpush1.bf16.msra.mxu0 0
      %2255 = vmatprep.subr.bf16.mxu0 0
      %2256 = vmatpush1.bf16.msra.mxu0 0
      %2257 = vmatprep.subr.bf16.mxu0 0
      %2258 = vmatpush1.bf16.msra.mxu0 0
      %2259 = vmatprep.subr.bf16.mxu0 0
      %2260 = vmatpush1.bf16.msra.mxu0 0
      %2261 = vmatprep.subr.bf16.mxu0 0
      %2262 = vmatpush1.bf16.msra.mxu0 0
      %2263 = vmatprep.subr.bf16.mxu0 0
      %2264 = vmatpush1.bf16.msra.mxu0 0
      %2265 = vmatprep.subr.bf16.mxu0 0
      %2266 = vmatpush1.bf16.msra.mxu0 0
      %2267 = vmatprep.subr.bf16.mxu0 0
      %2268 = vmatpush1.bf16.msra.mxu0 0
      %2269 = vmatprep.subr.bf16.mxu0 0
      %2270 = vmatpush1.bf16.msra.mxu0 0
      %2271 = vmatprep.subr.bf16.mxu0 0
      %2272 = vmatpush1.bf16.msra.mxu0 0
      %2273 = vmatprep.subr.bf16.mxu0 0
      %2274 = vmatpush1.bf16.msra.mxu0 0
      %2275 = vmatprep.mubr.bf16.mxu0 0
      %2276 = vmatmul.mubr.bf16.gmra.mrb[0].mxu0 %v529
      %v2277 = vpop.f32.mrb[0].mxu0
      %v2278 = vadd.f32 0.0, %v2277
      %v2279 = vpop.f32.mrb[0].mxu0
      %v2280 = vpop.f32.mrb[0].mxu0
      %v2281 = vadd.f32 0.0, %v2280
      %v2282 = vpop.f32.mrb[0].mxu0
      %2283 = vmatprep.mubr.bf16.mxu0 0
      %2284 = vmatmul.mubr.bf16.gmra.mrb[0].mxu0 %v532
      %v2285 = vpop.f32.mrb[0].mxu0
      %v2286 = vadd.f32 0.0, %v2285
      %v2287 = vpop.f32.mrb[0].mxu0
      %v2288 = vpop.f32.mrb[0].mxu0
      %v2289 = vadd.f32 0.0, %v2288
      %v2290 = vpop.f32.mrb[0].mxu0
      %2291 = vmatprep.mubr.bf16.mxu0 0
      %2292 = vmatmul.mubr.bf16.gmra.mrb[0].mxu0 %v535
      %v2293 = vpop.f32.mrb[0].mxu0
      %v2294 = vadd.f32 0.0, %v2293
      %v2295 = vpop.f32.mrb[0].mxu0
      %v2296 = vpop.f32.mrb[0].mxu0
      %v2297 = vadd.f32 0.0, %v2296
      %v2298 = vpop.f32.mrb[0].mxu0
      %2299 = vmatprep.mubr.bf16.mxu0 0
      %2300 = vmatmul.mubr.bf16.gmra.mrb[0].mxu0 %v538
      %v2301 = vpop.f32.mrb[0].mxu0
      %v2302 = vadd.f32 0.0, %v2301
      %v2303 = vpop.f32.mrb[0].mxu0
      %v2304 = vpop.f32.mrb[0].mxu0
      %v2305 = vadd.f32 0.0, %v2304
      %v2306 = vpop.f32.mrb[0].mxu0
      %2307 = vmatprep.mubr.bf16.mxu0 0
      %2308 = vmatmul.mubr.bf16.gmra.mrb[0].mxu0 %v541
      %v2309 = vpop.f32.mrb[0].mxu0
      %v2310 = vadd.f32 0.0, %v2309
      %v2311 = vpop.f32.mrb[0].mxu0
      %v2312 = vpop.f32.mrb[0].mxu0
      %v2313 = vadd.f32 0.0, %v2312
      %v2314 = vpop.f32.mrb[0].mxu0
      %2315 = vmatprep.mubr.bf16.mxu0 0
      %2316 = vmatmul.mubr.bf16.gmra.mrb[0].mxu0 %v544
      %v2317 = vpop.f32.mrb[0].mxu0
      %v2318 = vadd.f32 0.0, %v2317
      %v2319 = vpop.f32.mrb[0].mxu0
      %v2320 = vpop.f32.mrb[0].mxu0
      %v2321 = vadd.f32 0.0, %v2320
      %v2322 = vpop.f32.mrb[0].mxu0
      %2323 = vmatprep.mubr.bf16.mxu0 0
      %2324 = vmatmul.mubr.bf16.gmra.mrb[0].mxu0 %v547
      %v2325 = vpop.f32.mrb[0].mxu0
      %v2326 = vadd.f32 0.0, %v2325
      %v2327 = vpop.f32.mrb[0].mxu0
      %v2328 = vpop.f32.mrb[0].mxu0
      %v2329 = vadd.f32 0.0, %v2328
      %v2330 = vpop.f32.mrb[0].mxu0
      %2331 = vmatprep.mubr.bf16.mxu0 0
      %2332 = vmatmul.mubr.bf16.gmra.mrb[0].mxu0 %v550
      %v2333 = vpop.f32.mrb[0].mxu0
      %v2334 = vadd.f32 0.0, %v2333
      %v2335 = vpop.f32.mrb[0].mxu0
      %v2336 = vpop.f32.mrb[0].mxu0
      %v2337 = vadd.f32 0.0, %v2336
      %v2338 = vpop.f32.mrb[0].mxu0
      %2339 = vmatprep.mubr.bf16.mxu0 0
      %2340 = vmatmul.mubr.bf16.gmra.mrb[0].mxu0 %v553
      %v2341 = vpop.f32.mrb[0].mxu0
      %v2342 = vadd.f32 0.0, %v2341
      %v2343 = vpop.f32.mrb[0].mxu0
      %v2344 = vpop.f32.mrb[0].mxu0
      %v2345 = vadd.f32 0.0, %v2344
      %v2346 = vpop.f32.mrb[0].mxu0
      %2347 = vmatprep.mubr.bf16.mxu0 0
      %2348 = vmatmul.mubr.bf16.gmra.mrb[0].mxu0 %v556
      %v2349 = vpop.f32.mrb[0].mxu0
      %v2350 = vadd.f32 0.0, %v2349
      %v2351 = vpop.f32.mrb[0].mxu0
      %v2352 = vpop.f32.mrb[0].mxu0
      %v2353 = vadd.f32 0.0, %v2352
      %v2354 = vpop.f32.mrb[0].mxu0
      %2355 = vmatprep.mubr.bf16.mxu0 0
      %2356 = vmatmul.mubr.bf16.gmra.mrb[0].mxu0 %v559
      %v2357 = vpop.f32.mrb[0].mxu0
      %v2358 = vadd.f32 0.0, %v2357
      %v2359 = vpop.f32.mrb[0].mxu0
      %v2360 = vpop.f32.mrb[0].mxu0
      %v2361 = vadd.f32 0.0, %v2360
      %v2362 = vpop.f32.mrb[0].mxu0
      %2363 = vmatprep.mubr.bf16.mxu0 0
      %2364 = vmatmul.mubr.bf16.gmra.mrb[0].mxu0 %v562
      %v2365 = vpop.f32.mrb[0].mxu0
      %v2366 = vadd.f32 0.0, %v2365
      %v2367 = vpop.f32.mrb[0].mxu0
      %v2368 = vpop.f32.mrb[0].mxu0
      %v2369 = vadd.f32 0.0, %v2368
      %v2370 = vpop.f32.mrb[0].mxu0
      %2371 = vmatprep.mubr.bf16.mxu0 0
      %2372 = vmatmul.mubr.bf16.gmra.mrb[0].mxu0 %v565
      %v2373 = vpop.f32.mrb[0].mxu0
      %v2374 = vadd.f32 0.0, %v2373
      %v2375 = vpop.f32.mrb[0].mxu0
      %v2376 = vpop.f32.mrb[0].mxu0
      %v2377 = vadd.f32 0.0, %v2376
      %v2378 = vpop.f32.mrb[0].mxu0
      %2379 = vmatprep.mubr.bf16.mxu0 0
      %2380 = vmatmul.mubr.bf16.gmra.mrb[0].mxu0 %v568
      %v2381 = vpop.f32.mrb[0].mxu0
      %v2382 = vadd.f32 0.0, %v2381
      %v2383 = vpop.f32.mrb[0].mxu0
      %v2384 = vpop.f32.mrb[0].mxu0
      %v2385 = vadd.f32 0.0, %v2384
      %v2386 = vpop.f32.mrb[0].mxu0
      %2387 = vmatprep.mubr.bf16.mxu0 0
      %2388 = vmatmul.mubr.bf16.gmra.mrb[0].mxu0 %v1582
      %v2389 = vpop.f32.mrb[0].mxu0
      %v2390 = vadd.f32 0.0, %v2389
      %v2391 = vpop.f32.mrb[0].mxu0
      %v2392 = vpop.f32.mrb[0].mxu0
      %v2393 = vadd.f32 0.0, %v2392
      %v2394 = vpop.f32.mrb[0].mxu0
      %2395 = vmatprep.mubr.bf16.mxu0 0
      %2396 = vmatmul.mubr.bf16.gmra.mrb[0].mxu0 %v2241
      %v2397 = vpop.f32.mrb[0].mxu0
      %v2398 = vadd.f32 0.0, %v2397
      %v2399 = vpop.f32.mrb[0].mxu0
      %v2400 = vpop.f32.mrb[0].mxu0
      %v2401 = vadd.f32 0.0, %v2400
      %v2402 = vpop.f32.mrb[0].mxu0
      %2403 = vdwg.mxu0
      %v2404 = vadd.f32 %v2180, %v2278
      %v2405 = vadd.f32 %v2181, %v2281
      %v2406 = vadd.f32 %v2182, %v2286
      %v2407 = vadd.f32 %v2183, %v2289
      %v2408 = vadd.f32 %v2184, %v2294
      %v2409 = vadd.f32 %v2185, %v2297
      %v2410 = vadd.f32 %v2186, %v2302
      %v2411 = vadd.f32 %v2187, %v2305
      %v2412 = vadd.f32 %v2188, %v2310
      %v2413 = vadd.f32 %v2189, %v2313
      %v2414 = vadd.f32 %v2190, %v2318
      %v2415 = vadd.f32 %v2191, %v2321
      %v2416 = vadd.f32 %v2192, %v2326
      %v2417 = vadd.f32 %v2193, %v2329
      %v2418 = vadd.f32 %v2194, %v2334
      %v2419 = vadd.f32 %v2195, %v2337
      %v2420 = vadd.f32 %v2196, %v2342
      %v2421 = vadd.f32 %v2197, %v2345
      %v2422 = vadd.f32 %v2198, %v2350
      %v2423 = vadd.f32 %v2199, %v2353
      %v2424 = vadd.f32 %v2200, %v2358
      %v2425 = vadd.f32 %v2201, %v2361
      %v2426 = vadd.f32 %v2202, %v2366
      %v2427 = vadd.f32 %v2203, %v2369
      %v2428 = vadd.f32 %v2204, %v2374
      %v2429 = vadd.f32 %v2205, %v2377
      %v2430 = vadd.f32 %v2206, %v2382
      %v2431 = vadd.f32 %v2207, %v2385
      %v2432 = vadd.f32 %v2208, %v2390
      %v2433 = vadd.f32 %v2209, %v2393
      %v2434 = vadd.f32 %v2210, %v2398
      %v2435 = vadd.f32 %v2211, %v2401
      %v2436 = vrot.slane %v304, 2
      %v2437 = vrot.slane %v305, 2
      %v2438 = vsel %vm952, %v2436, %v2437
      %v2439 = vrot.slane %v306, 2
      %v2440 = vsel %vm952, %v2437, %v2439
      %v2443 = vpack.c.bf16 %v2440, %v2438
      %s2444 = scalar_lea.vmem %s1, 128
      %v2445 = vld [vmem:[%s2444] sm:$0xf]
      %v2446 = vld [vmem:[%s2444 + $0x4] sm:$0xf]
      %v2447 = vld [vmem:[%s2444 + $0x8] sm:$0xf]
      %v2448 = vld [vmem:[%s2444 + $0xc] sm:$0xf]
      %v2453 = vunpack.c.l.b16 %v2445
      %v2454 = vunpack.c.l.b16 %v2446
      %v2455 = vunpack.c.l.b16 %v2447
      %v2456 = vunpack.c.l.b16 %v2448
      %v2457 = vpack.c.b16 %v2454, %v2453
      %v2458 = vpack.c.b16 %v2456, %v2455
      %v2462 = vsel %vm521, %v2443, 0
      %2464 = vmatprep.subr.bf16.mxu0 0
      %2465 = vmatpush1.bf16.msra.mxu0 %v2457
      %2466 = vmatprep.subr.bf16.mxu0 0
      %2467 = vmatpush1.bf16.msra.mxu0 %v2458
      %2468 = vmatprep.subr.bf16.mxu0 0
      %2469 = vmatpush1.bf16.msra.mxu0 0
      %2470 = vmatprep.subr.bf16.mxu0 0
      %2471 = vmatpush1.bf16.msra.mxu0 0
      %2472 = vmatprep.subr.bf16.mxu0 0
      %2473 = vmatpush1.bf16.msra.mxu0 0
      %2474 = vmatprep.subr.bf16.mxu0 0
      %2475 = vmatpush1.bf16.msra.mxu0 0
      %2476 = vmatprep.subr.bf16.mxu0 0
      %2477 = vmatpush1.bf16.msra.mxu0 0
      %2478 = vmatprep.subr.bf16.mxu0 0
      %2479 = vmatpush1.bf16.msra.mxu0 0
      %2480 = vmatprep.subr.bf16.mxu0 0
      %2481 = vmatpush1.bf16.msra.mxu0 0
      %2482 = vmatprep.subr.bf16.mxu0 0
      %2483 = vmatpush1.bf16.msra.mxu0 0
      %2484 = vmatprep.subr.bf16.mxu0 0
      %2485 = vmatpush1.bf16.msra.mxu0 0
      %2486 = vmatprep.subr.bf16.mxu0 0
      %2487 = vmatpush1.bf16.msra.mxu0 0
      %2488 = vmatprep.subr.bf16.mxu0 0
      %2489 = vmatpush1.bf16.msra.mxu0 0
      %2490 = vmatprep.subr.bf16.mxu0 0
      %2491 = vmatpush1.bf16.msra.mxu0 0
      %2492 = vmatprep.subr.bf16.mxu0 0
      %2493 = vmatpush1.bf16.msra.mxu0 0
      %2494 = vmatprep.subr.bf16.mxu0 0
      %2495 = vmatpush1.bf16.msra.mxu0 0
      %2496 = vmatprep.mubr.bf16.mxu0 0
      %2497 = vmatmul.mubr.bf16.gmra.mrb[0].mxu0 %v1105
      %v2498 = vpop.f32.mrb[0].mxu0
      %v2499 = vadd.f32 0.0, %v2498
      %v2500 = vpop.f32.mrb[0].mxu0
      %v2501 = vpop.f32.mrb[0].mxu0
      %v2502 = vadd.f32 0.0, %v2501
      %v2503 = vpop.f32.mrb[0].mxu0
      %2504 = vmatprep.mubr.bf16.mxu0 0
      %2505 = vmatmul.mubr.bf16.gmra.mrb[0].mxu0 %v1108
      %v2506 = vpop.f32.mrb[0].mxu0
      %v2507 = vadd.f32 0.0, %v2506
      %v2508 = vpop.f32.mrb[0].mxu0
      %v2509 = vpop.f32.mrb[0].mxu0
      %v2510 = vadd.f32 0.0, %v2509
      %v2511 = vpop.f32.mrb[0].mxu0
      %2512 = vmatprep.mubr.bf16.mxu0 0
      %2513 = vmatmul.mubr.bf16.gmra.mrb[0].mxu0 %v1111
      %v2514 = vpop.f32.mrb[0].mxu0
      %v2515 = vadd.f32 0.0, %v2514
      %v2516 = vpop.f32.mrb[0].mxu0
      %v2517 = vpop.f32.mrb[0].mxu0
      %v2518 = vadd.f32 0.0, %v2517
      %v2519 = vpop.f32.mrb[0].mxu0
      %2520 = vmatprep.mubr.bf16.mxu0 0
      %2521 = vmatmul.mubr.bf16.gmra.mrb[0].mxu0 %v1114
      %v2522 = vpop.f32.mrb[0].mxu0
      %v2523 = vadd.f32 0.0, %v2522
      %v2524 = vpop.f32.mrb[0].mxu0
      %v2525 = vpop.f32.mrb[0].mxu0
      %v2526 = vadd.f32 0.0, %v2525
      %v2527 = vpop.f32.mrb[0].mxu0
      %2528 = vmatprep.mubr.bf16.mxu0 0
      %2529 = vmatmul.mubr.bf16.gmra.mrb[0].mxu0 %v1117
      %v2530 = vpop.f32.mrb[0].mxu0
      %v2531 = vadd.f32 0.0, %v2530
      %v2532 = vpop.f32.mrb[0].mxu0
      %v2533 = vpop.f32.mrb[0].mxu0
      %v2534 = vadd.f32 0.0, %v2533
      %v2535 = vpop.f32.mrb[0].mxu0
      %2536 = vmatprep.mubr.bf16.mxu0 0
      %2537 = vmatmul.mubr.bf16.gmra.mrb[0].mxu0 %v1120
      %v2538 = vpop.f32.mrb[0].mxu0
      %v2539 = vadd.f32 0.0, %v2538
      %v2540 = vpop.f32.mrb[0].mxu0
      %v2541 = vpop.f32.mrb[0].mxu0
      %v2542 = vadd.f32 0.0, %v2541
      %v2543 = vpop.f32.mrb[0].mxu0
      %2544 = vmatprep.mubr.bf16.mxu0 0
      %2545 = vmatmul.mubr.bf16.gmra.mrb[0].mxu0 %v1123
      %v2546 = vpop.f32.mrb[0].mxu0
      %v2547 = vadd.f32 0.0, %v2546
      %v2548 = vpop.f32.mrb[0].mxu0
      %v2549 = vpop.f32.mrb[0].mxu0
      %v2550 = vadd.f32 0.0, %v2549
      %v2551 = vpop.f32.mrb[0].mxu0
      %2552 = vmatprep.mubr.bf16.mxu0 0
      %2553 = vmatmul.mubr.bf16.gmra.mrb[0].mxu0 %v1126
      %v2554 = vpop.f32.mrb[0].mxu0
      %v2555 = vadd.f32 0.0, %v2554
      %v2556 = vpop.f32.mrb[0].mxu0
      %v2557 = vpop.f32.mrb[0].mxu0
      %v2558 = vadd.f32 0.0, %v2557
      %v2559 = vpop.f32.mrb[0].mxu0
      %2560 = vmatprep.mubr.bf16.mxu0 0
      %2561 = vmatmul.mubr.bf16.gmra.mrb[0].mxu0 %v1129
      %v2562 = vpop.f32.mrb[0].mxu0
      %v2563 = vadd.f32 0.0, %v2562
      %v2564 = vpop.f32.mrb[0].mxu0
      %v2565 = vpop.f32.mrb[0].mxu0
      %v2566 = vadd.f32 0.0, %v2565
      %v2567 = vpop.f32.mrb[0].mxu0
      %2568 = vmatprep.mubr.bf16.mxu0 0
      %2569 = vmatmul.mubr.bf16.gmra.mrb[0].mxu0 %v1132
      %v2570 = vpop.f32.mrb[0].mxu0
      %v2571 = vadd.f32 0.0, %v2570
      %v2572 = vpop.f32.mrb[0].mxu0
      %v2573 = vpop.f32.mrb[0].mxu0
      %v2574 = vadd.f32 0.0, %v2573
      %v2575 = vpop.f32.mrb[0].mxu0
      %2576 = vmatprep.mubr.bf16.mxu0 0
      %2577 = vmatmul.mubr.bf16.gmra.mrb[0].mxu0 %v1135
      %v2578 = vpop.f32.mrb[0].mxu0
      %v2579 = vadd.f32 0.0, %v2578
      %v2580 = vpop.f32.mrb[0].mxu0
      %v2581 = vpop.f32.mrb[0].mxu0
      %v2582 = vadd.f32 0.0, %v2581
      %v2583 = vpop.f32.mrb[0].mxu0
      %2584 = vmatprep.mubr.bf16.mxu0 0
      %2585 = vmatmul.mubr.bf16.gmra.mrb[0].mxu0 %v1138
      %v2586 = vpop.f32.mrb[0].mxu0
      %v2587 = vadd.f32 0.0, %v2586
      %v2588 = vpop.f32.mrb[0].mxu0
      %v2589 = vpop.f32.mrb[0].mxu0
      %v2590 = vadd.f32 0.0, %v2589
      %v2591 = vpop.f32.mrb[0].mxu0
      %2592 = vmatprep.mubr.bf16.mxu0 0
      %2593 = vmatmul.mubr.bf16.gmra.mrb[0].mxu0 %v1141
      %v2594 = vpop.f32.mrb[0].mxu0
      %v2595 = vadd.f32 0.0, %v2594
      %v2596 = vpop.f32.mrb[0].mxu0
      %v2597 = vpop.f32.mrb[0].mxu0
      %v2598 = vadd.f32 0.0, %v2597
      %v2599 = vpop.f32.mrb[0].mxu0
      %2600 = vmatprep.mubr.bf16.mxu0 0
      %2601 = vmatmul.mubr.bf16.gmra.mrb[0].mxu0 %v1144
      %v2602 = vpop.f32.mrb[0].mxu0
      %v2603 = vadd.f32 0.0, %v2602
      %v2604 = vpop.f32.mrb[0].mxu0
      %v2605 = vpop.f32.mrb[0].mxu0
      %v2606 = vadd.f32 0.0, %v2605
      %v2607 = vpop.f32.mrb[0].mxu0
      %2608 = vmatprep.mubr.bf16.mxu0 0
      %2609 = vmatmul.mubr.bf16.gmra.mrb[0].mxu0 %v1803
      %v2610 = vpop.f32.mrb[0].mxu0
      %v2611 = vadd.f32 0.0, %v2610
      %v2612 = vpop.f32.mrb[0].mxu0
      %v2613 = vpop.f32.mrb[0].mxu0
      %v2614 = vadd.f32 0.0, %v2613
      %v2615 = vpop.f32.mrb[0].mxu0
      %2616 = vmatprep.mubr.bf16.mxu0 0
      %2617 = vmatmul.mubr.bf16.gmra.mrb[0].mxu0 %v2462
      %v2618 = vpop.f32.mrb[0].mxu0
      %v2619 = vadd.f32 0.0, %v2618
      %v2620 = vpop.f32.mrb[0].mxu0
      %v2621 = vpop.f32.mrb[0].mxu0
      %v2622 = vadd.f32 0.0, %v2621
      %v2623 = vpop.f32.mrb[0].mxu0
      %2624 = vdwg.mxu0
      %v2625 = vadd.f32 %v2404, %v2499
      %v2626 = vadd.f32 %v2405, %v2502
      %v2627 = vadd.f32 %v2406, %v2507
      %v2628 = vadd.f32 %v2407, %v2510
      %v2629 = vadd.f32 %v2408, %v2515
      %v2630 = vadd.f32 %v2409, %v2518
      %v2631 = vadd.f32 %v2410, %v2523
      %v2632 = vadd.f32 %v2411, %v2526
      %v2633 = vadd.f32 %v2412, %v2531
      %v2634 = vadd.f32 %v2413, %v2534
      %v2635 = vadd.f32 %v2414, %v2539
      %v2636 = vadd.f32 %v2415, %v2542
      %v2637 = vadd.f32 %v2416, %v2547
      %v2638 = vadd.f32 %v2417, %v2550
      %v2639 = vadd.f32 %v2418, %v2555
      %v2640 = vadd.f32 %v2419, %v2558
      %v2641 = vadd.f32 %v2420, %v2563
      %v2642 = vadd.f32 %v2421, %v2566
      %v2643 = vadd.f32 %v2422, %v2571
      %v2644 = vadd.f32 %v2423, %v2574
      %v2645 = vadd.f32 %v2424, %v2579
      %v2646 = vadd.f32 %v2425, %v2582
      %v2647 = vadd.f32 %v2426, %v2587
      %v2648 = vadd.f32 %v2427, %v2590
      %v2649 = vadd.f32 %v2428, %v2595
      %v2650 = vadd.f32 %v2429, %v2598
      %v2651 = vadd.f32 %v2430, %v2603
      %v2652 = vadd.f32 %v2431, %v2606
      %v2653 = vadd.f32 %v2432, %v2611
      %v2654 = vadd.f32 %v2433, %v2614
      %v2655 = vadd.f32 %v2434, %v2619
      %v2656 = vadd.f32 %v2435, %v2622
      %v2657 = vld [vmem:[%s2] sm:$0x1]
      %v2659 = vlaneseq
      %v2660 = vshrl.u32 %v2659, 7
      %v2661 = vsub.s32 0, %v2660
      %v2662 = vrot.slane %v2657, %v2661
      %v2664 = vadd.f32 %v2625, %v2662
      %v2665 = vadd.f32 %v2626, %v2662
      %v2666 = vadd.f32 %v2627, %v2662
      %v2667 = vadd.f32 %v2628, %v2662
      %v2668 = vadd.f32 %v2629, %v2662
      %v2669 = vadd.f32 %v2630, %v2662
      %v2670 = vadd.f32 %v2631, %v2662
      %v2671 = vadd.f32 %v2632, %v2662
      %v2672 = vadd.f32 %v2633, %v2662
      %v2673 = vadd.f32 %v2634, %v2662
      %v2674 = vadd.f32 %v2635, %v2662
      %v2675 = vadd.f32 %v2636, %v2662
      %v2676 = vadd.f32 %v2637, %v2662
      %v2677 = vadd.f32 %v2638, %v2662
      %v2678 = vadd.f32 %v2639, %v2662
      %v2679 = vadd.f32 %v2640, %v2662
      %v2680 = vadd.f32 %v2641, %v2662
      %v2681 = vadd.f32 %v2642, %v2662
      %v2682 = vadd.f32 %v2643, %v2662
      %v2683 = vadd.f32 %v2644, %v2662
      %v2684 = vadd.f32 %v2645, %v2662
      %v2685 = vadd.f32 %v2646, %v2662
      %v2686 = vadd.f32 %v2647, %v2662
      %v2687 = vadd.f32 %v2648, %v2662
      %v2688 = vadd.f32 %v2649, %v2662
      %v2689 = vadd.f32 %v2650, %v2662
      %v2690 = vadd.f32 %v2651, %v2662
      %v2691 = vadd.f32 %v2652, %v2662
      %v2692 = vadd.f32 %v2653, %v2662
      %v2693 = vadd.f32 %v2654, %v2662
      %v2694 = vadd.f32 %v2655, %v2662
      %v2695 = vadd.f32 %v2656, %v2662
      %vm2696 = vcmp.gt.f32.partialorder %v2664, 0.0
      %vm2697 = vcmp.gt.f32.partialorder %v2665, 0.0
      %vm2698 = vcmp.gt.f32.partialorder %v2666, 0.0
      %vm2699 = vcmp.gt.f32.partialorder %v2667, 0.0
      %vm2700 = vcmp.gt.f32.partialorder %v2668, 0.0
      %vm2701 = vcmp.gt.f32.partialorder %v2669, 0.0
      %vm2702 = vcmp.gt.f32.partialorder %v2670, 0.0
      %vm2703 = vcmp.gt.f32.partialorder %v2671, 0.0
      %vm2704 = vcmp.gt.f32.partialorder %v2672, 0.0
      %vm2705 = vcmp.gt.f32.partialorder %v2673, 0.0
      %vm2706 = vcmp.gt.f32.partialorder %v2674, 0.0
      %vm2707 = vcmp.gt.f32.partialorder %v2675, 0.0
      %vm2708 = vcmp.gt.f32.partialorder %v2676, 0.0
      %vm2709 = vcmp.gt.f32.partialorder %v2677, 0.0
      %vm2710 = vcmp.gt.f32.partialorder %v2678, 0.0
      %vm2711 = vcmp.gt.f32.partialorder %v2679, 0.0
      %vm2712 = vcmp.gt.f32.partialorder %v2680, 0.0
      %vm2713 = vcmp.gt.f32.partialorder %v2681, 0.0
      %vm2714 = vcmp.gt.f32.partialorder %v2682, 0.0
      %vm2715 = vcmp.gt.f32.partialorder %v2683, 0.0
      %vm2716 = vcmp.gt.f32.partialorder %v2684, 0.0
      %vm2717 = vcmp.gt.f32.partialorder %v2685, 0.0
      %vm2718 = vcmp.gt.f32.partialorder %v2686, 0.0
      %vm2719 = vcmp.gt.f32.partialorder %v2687, 0.0
      %vm2720 = vcmp.gt.f32.partialorder %v2688, 0.0
      %vm2721 = vcmp.gt.f32.partialorder %v2689, 0.0
      %vm2722 = vcmp.gt.f32.partialorder %v2690, 0.0
      %vm2723 = vcmp.gt.f32.partialorder %v2691, 0.0
      %vm2724 = vcmp.gt.f32.partialorder %v2692, 0.0
      %vm2725 = vcmp.gt.f32.partialorder %v2693, 0.0
      %vm2726 = vcmp.gt.f32.partialorder %v2694, 0.0
      %vm2727 = vcmp.gt.f32.partialorder %v2695, 0.0
      %v2728 = vld [vmem:[%s3] sm:$0x1]
      %v2730 = vlaneseq
      %v2731 = vshrl.u32 %v2730, 7
      %v2732 = vsub.s32 0, %v2731
      %v2733 = vrot.slane %v2728, %v2732
      %v2735 = vmul.f32 %v2664, %v2733
      %v2736 = vmul.f32 %v2665, %v2733
      %v2737 = vmul.f32 %v2666, %v2733
      %v2738 = vmul.f32 %v2667, %v2733
      %v2739 = vmul.f32 %v2668, %v2733
      %v2740 = vmul.f32 %v2669, %v2733
      %v2741 = vmul.f32 %v2670, %v2733
      %v2742 = vmul.f32 %v2671, %v2733
      %v2743 = vmul.f32 %v2672, %v2733
      %v2744 = vmul.f32 %v2673, %v2733
      %v2745 = vmul.f32 %v2674, %v2733
      %v2746 = vmul.f32 %v2675, %v2733
      %v2747 = vmul.f32 %v2676, %v2733
      %v2748 = vmul.f32 %v2677, %v2733
      %v2749 = vmul.f32 %v2678, %v2733
      %v2750 = vmul.f32 %v2679, %v2733
      %v2751 = vmul.f32 %v2680, %v2733
      %v2752 = vmul.f32 %v2681, %v2733
      %v2753 = vmul.f32 %v2682, %v2733
      %v2754 = vmul.f32 %v2683, %v2733
      %v2755 = vmul.f32 %v2684, %v2733
      %v2756 = vmul.f32 %v2685, %v2733
      %v2757 = vmul.f32 %v2686, %v2733
      %v2758 = vmul.f32 %v2687, %v2733
      %v2759 = vmul.f32 %v2688, %v2733
      %v2760 = vmul.f32 %v2689, %v2733
      %v2761 = vmul.f32 %v2690, %v2733
      %v2762 = vmul.f32 %v2691, %v2733
      %v2763 = vmul.f32 %v2692, %v2733
      %v2764 = vmul.f32 %v2693, %v2733
      %v2765 = vmul.f32 %v2694, %v2733
      %v2766 = vmul.f32 %v2695, %v2733
      %v2767 = vsel %vm2696, %v2664, %v2735
      %v2768 = vsel %vm2697, %v2665, %v2736
      %v2769 = vsel %vm2698, %v2666, %v2737
      %v2770 = vsel %vm2699, %v2667, %v2738
      %v2771 = vsel %vm2700, %v2668, %v2739
      %v2772 = vsel %vm2701, %v2669, %v2740
      %v2773 = vsel %vm2702, %v2670, %v2741
      %v2774 = vsel %vm2703, %v2671, %v2742
      %v2775 = vsel %vm2704, %v2672, %v2743
      %v2776 = vsel %vm2705, %v2673, %v2744
      %v2777 = vsel %vm2706, %v2674, %v2745
      %v2778 = vsel %vm2707, %v2675, %v2746
      %v2779 = vsel %vm2708, %v2676, %v2747
      %v2780 = vsel %vm2709, %v2677, %v2748
      %v2781 = vsel %vm2710, %v2678, %v2749
      %v2782 = vsel %vm2711, %v2679, %v2750
      %v2783 = vsel %vm2712, %v2680, %v2751
      %v2784 = vsel %vm2713, %v2681, %v2752
      %v2785 = vsel %vm2714, %v2682, %v2753
      %v2786 = vsel %vm2715, %v2683, %v2754
      %v2787 = vsel %vm2716, %v2684, %v2755
      %v2788 = vsel %vm2717, %v2685, %v2756
      %v2789 = vsel %vm2718, %v2686, %v2757
      %v2790 = vsel %vm2719, %v2687, %v2758
      %v2791 = vsel %vm2720, %v2688, %v2759
      %v2792 = vsel %vm2721, %v2689, %v2760
      %v2793 = vsel %vm2722, %v2690, %v2761
      %v2794 = vsel %vm2723, %v2691, %v2762
      %v2795 = vsel %vm2724, %v2692, %v2763
      %v2796 = vsel %vm2725, %v2693, %v2764
      %v2797 = vsel %vm2726, %v2694, %v2765
      %v2798 = vsel %vm2727, %v2695, %v2766
      %v2799 = vpack.c.bf16 %v2768, %v2767
      %v2800 = vpack.c.bf16 %v2770, %v2769
      %v2801 = vpack.c.bf16 %v2772, %v2771
      %v2802 = vpack.c.bf16 %v2774, %v2773
      %v2803 = vpack.c.bf16 %v2776, %v2775
      %v2804 = vpack.c.bf16 %v2778, %v2777
      %v2805 = vpack.c.bf16 %v2780, %v2779
      %v2806 = vpack.c.bf16 %v2782, %v2781
      %v2807 = vpack.c.bf16 %v2784, %v2783
      %v2808 = vpack.c.bf16 %v2786, %v2785
      %v2809 = vpack.c.bf16 %v2788, %v2787
      %v2810 = vpack.c.bf16 %v2790, %v2789
      %v2811 = vpack.c.bf16 %v2792, %v2791
      %v2812 = vpack.c.bf16 %v2794, %v2793
      %v2813 = vpack.c.bf16 %v2796, %v2795
      %v2814 = vpack.c.bf16 %v2798, %v2797
      %v2831 = vunpack.c.l.b16 %v2799
      %v2832 = vunpack.c.h.b16 %v2799
      %v2833 = vunpack.c.l.b16 %v2800
      %v2834 = vunpack.c.h.b16 %v2800
      %v2835 = vunpack.c.l.b16 %v2801
      %v2836 = vunpack.c.h.b16 %v2801
      %v2837 = vunpack.c.l.b16 %v2802
      %v2838 = vunpack.c.h.b16 %v2802
      %v2839 = vunpack.c.l.b16 %v2803
      %v2840 = vunpack.c.h.b16 %v2803
      %v2841 = vunpack.c.l.b16 %v2804
      %v2842 = vunpack.c.h.b16 %v2804
      %v2843 = vunpack.c.l.b16 %v2805
      %v2844 = vunpack.c.h.b16 %v2805
      %v2845 = vunpack.c.l.b16 %v2806
      %v2846 = vunpack.c.h.b16 %v2806
      %v2847 = vunpack.c.l.b16 %v2807
      %v2848 = vunpack.c.h.b16 %v2807
      %v2849 = vunpack.c.l.b16 %v2808
      %v2850 = vunpack.c.h.b16 %v2808
      %v2851 = vunpack.c.l.b16 %v2809
      %v2852 = vunpack.c.h.b16 %v2809
      %v2853 = vunpack.c.l.b16 %v2810
      %v2854 = vunpack.c.h.b16 %v2810
      %v2855 = vunpack.c.l.b16 %v2811
      %v2856 = vunpack.c.h.b16 %v2811
      %v2857 = vunpack.c.l.b16 %v2812
      %v2858 = vunpack.c.h.b16 %v2812
      %v2859 = vunpack.c.l.b16 %v2813
      %v2860 = vunpack.c.h.b16 %v2813
      %v2861 = vunpack.c.l.b16 %v2814
      %v2862 = vunpack.c.h.b16 %v2814
      %v2863 = vpack.c.b16 %v2831, %v2831
      %v2864 = vpack.c.b16 %v2832, %v2832
      %v2865 = vpack.c.b16 %v2833, %v2833
      %v2866 = vpack.c.b16 %v2834, %v2834
      %v2867 = vpack.c.b16 %v2835, %v2835
      %v2868 = vpack.c.b16 %v2836, %v2836
      %v2869 = vpack.c.b16 %v2837, %v2837
      %v2870 = vpack.c.b16 %v2838, %v2838
      %v2871 = vpack.c.b16 %v2839, %v2839
      %v2872 = vpack.c.b16 %v2840, %v2840
      %v2873 = vpack.c.b16 %v2841, %v2841
      %v2874 = vpack.c.b16 %v2842, %v2842
      %v2875 = vpack.c.b16 %v2843, %v2843
      %v2876 = vpack.c.b16 %v2844, %v2844
      %v2877 = vpack.c.b16 %v2845, %v2845
      %v2878 = vpack.c.b16 %v2846, %v2846
      %v2879 = vpack.c.b16 %v2847, %v2847
      %v2880 = vpack.c.b16 %v2848, %v2848
      %v2881 = vpack.c.b16 %v2849, %v2849
      %v2882 = vpack.c.b16 %v2850, %v2850
      %v2883 = vpack.c.b16 %v2851, %v2851
      %v2884 = vpack.c.b16 %v2852, %v2852
      %v2885 = vpack.c.b16 %v2853, %v2853
      %v2886 = vpack.c.b16 %v2854, %v2854
      %v2887 = vpack.c.b16 %v2855, %v2855
      %v2888 = vpack.c.b16 %v2856, %v2856
      %v2889 = vpack.c.b16 %v2857, %v2857
      %v2890 = vpack.c.b16 %v2858, %v2858
      %v2891 = vpack.c.b16 %v2859, %v2859
      %v2892 = vpack.c.b16 %v2860, %v2860
      %v2893 = vpack.c.b16 %v2861, %v2861
      %v2894 = vpack.c.b16 %v2862, %v2862
      %vm2927 = vcmask 519168
      %2928 = vst.msk [vmem:[%s197] sm:$0xf] %vm2927, %v2863
      %2929 = vst.msk [vmem:[%s197 + $0x4] sm:$0xf] %vm2927, %v2864
      %2930 = vst.msk [vmem:[%s197 + $0x8] sm:$0xf] %vm2927, %v2865
      %2931 = vst.msk [vmem:[%s197 + $0xc] sm:$0xf] %vm2927, %v2866
      %2932 = vst.msk [vmem:[%s197 + $0x10] sm:$0xf] %vm2927, %v2867
      %2933 = vst.msk [vmem:[%s197 + $0x14] sm:$0xf] %vm2927, %v2868
      %2934 = vst.msk [vmem:[%s197 + $0x18] sm:$0xf] %vm2927, %v2869
      %2935 = vst.msk [vmem:[%s197 + $0x1c] sm:$0xf] %vm2927, %v2870
      %2936 = vst.msk [vmem:[%s197 + $0x20] sm:$0xf] %vm2927, %v2871
      %2937 = vst.msk [vmem:[%s197 + $0x24] sm:$0xf] %vm2927, %v2872
      %2938 = vst.msk [vmem:[%s197 + $0x28] sm:$0xf] %vm2927, %v2873
      %2939 = vst.msk [vmem:[%s197 + $0x2c] sm:$0xf] %vm2927, %v2874
      %2940 = vst.msk [vmem:[%s197 + $0x30] sm:$0xf] %vm2927, %v2875
      %2941 = vst.msk [vmem:[%s197 + $0x34] sm:$0xf] %vm2927, %v2876
      %2942 = vst.msk [vmem:[%s197 + $0x38] sm:$0xf] %vm2927, %v2877
      %2943 = vst.msk [vmem:[%s197 + $0x3c] sm:$0xf] %vm2927, %v2878
      %2944 = vst.msk [vmem:[%s197 + $0x40] sm:$0xf] %vm2927, %v2879
      %2945 = vst.msk [vmem:[%s197 + $0x44] sm:$0xf] %vm2927, %v2880
      %2946 = vst.msk [vmem:[%s197 + $0x48] sm:$0xf] %vm2927, %v2881
      %2947 = vst.msk [vmem:[%s197 + $0x4c] sm:$0xf] %vm2927, %v2882
      %2948 = vst.msk [vmem:[%s197 + $0x50] sm:$0xf] %vm2927, %v2883
      %2949 = vst.msk [vmem:[%s197 + $0x54] sm:$0xf] %vm2927, %v2884
      %2950 = vst.msk [vmem:[%s197 + $0x58] sm:$0xf] %vm2927, %v2885
      %2951 = vst.msk [vmem:[%s197 + $0x5c] sm:$0xf] %vm2927, %v2886
      %2952 = vst.msk [vmem:[%s197 + $0x60] sm:$0xf] %vm2927, %v2887
      %2953 = vst.msk [vmem:[%s197 + $0x64] sm:$0xf] %vm2927, %v2888
      %2954 = vst.msk [vmem:[%s197 + $0x68] sm:$0xf] %vm2927, %v2889
      %2955 = vst.msk [vmem:[%s197 + $0x6c] sm:$0xf] %vm2927, %v2890
      %2956 = vst.msk [vmem:[%s197 + $0x70] sm:$0xf] %vm2927, %v2891
      %2957 = vst.msk [vmem:[%s197 + $0x74] sm:$0xf] %vm2927, %v2892
      %2958 = vst.msk [vmem:[%s197 + $0x78] sm:$0xf] %vm2927, %v2893
      %2959 = vst.msk [vmem:[%s197 + $0x7c] sm:$0xf] %vm2927, %v2894
      %p2960 = scmp.lt.s32.totalorder %s15, 1
      %s2961 = scalar_select %p2960, %s15, 1
      %s2962 = smul.addr %s2961, 32
      %s2963 = smul.addr %s2962, 4
      %s2964 = scalar_lea.vmem %s4, %s2963
      // Predicated region
      $region37: #{forward.6} parent=35 // pred_check
        %p2965 = pneg %p122
      $region38: #{forward.6} parent=35 // pred_check_branch
        %2967 = sbr.rel (%p2965) target = $region40
      $region39: #{forward.6} parent=35 // pred_region
        _
      $region40: #{forward.6} parent=35 // pred_fallthru
        _
    $region36: #{forward.6} parent=5 // pred_fallthru
      _
    %p2968 = scmp.le.s32.totalorder 2, %s10
    // Predicated region
    $region41: #{forward.6} parent=5 // pred_check
      %p2969 = pneg %p2968
    $region42: #{forward.6} parent=5 // pred_check_branch
      %2971 = sbr.rel (%p2969) target = $region44
    $region43: #{forward.6} parent=5 // pred_region
      %s2972 = ssub.s32 %s10, 2
      // Predicated region
      $region45: #{forward.6} parent=43 // pred_check
        %p2973 = pneg %p128
      $region46: #{forward.6} parent=43 // pred_check_branch
        %2975 = sbr.rel (%p2973) target = $region48
      $region47: #{forward.6} parent=43 // pred_region
        %p2976 = scmp.lt.s32.totalorder %s16, 1
        %s2977 = scalar_select %p2976, %s16, 1
        %s2978 = smul.addr %s2977, 32
        %s2979 = smul.addr %s2978, 4
        %s2980 = scalar_lea.vmem %s4, %s2979
      $region48: #{forward.6} parent=43 // pred_fallthru
        _
    $region44: #{forward.6} parent=5 // pred_fallthru
      _
  $region6: #{forward.6} parent=0 // loop_footer
    %s14 = sadd.s32 1, %s10
  $region7: #{forward.6} parent=0 // loop_footer_branch
    %9 = sbr.rel target = $region3
  $region8: #{forward.6} parent=0 // loop_exit
    _

// kernel: forward.7
$region0: #{forward.7}
  #allocation0 [shape = 'u32[]', space=smem, size = 0x4, offset = 0x4, fixed_abs, tag = 'smem constant byte address 0x4 - core index']
  #allocation1 [shape = 'u32[144,128]{1,0:T(1,128)}', space=vmem, size = 0x12000, scoped, tag = 'internal scratch']
  %s0 = inlined_call_operand.vmem [shape: bf16[2,9,64,64], index: 0, kind: input, shape index: {}]
  %s1 = inlined_call_operand.vmem [shape: bf16[9,64,64], index: 1, kind: input, shape index: {}]
  %s2 = inlined_call_operand.vmem [shape: f32[1,64], index: 2, kind: input, shape index: {}]
  %s3 = inlined_call_operand.vmem [shape: f32[64,4], index: 3, kind: input, shape index: {}]
  %s4 = inlined_call_operand.vmem [shape: f32[4,64], index: 4, kind: input, shape index: {}]
  %s5 = inlined_call_operand.vmem [shape: bf16[2,64,32], index: 5, kind: input, shape index: {}]
  %s6 = inlined_call_operand.vmem [shape: bf16[32,64], index: 6, kind: input, shape index: {}]
  %s7 = inlined_call_operand.vmem [shape: f32[1,64], index: 7, kind: input, shape index: {}]
  %s8 = inlined_call_operand.vmem [shape: bf16[2,64,64], index: 8, kind: output, shape index: {}]
  %s9 = sld [smem:[#allocation0]]
  $region65: #{forward.7} parent=0
    _
  %s11 = ssub.s32 1, %s9
  %s12 = scalar_select 0, %s11, %s9
  loop: start=0, step=1, limit=4
  $region2: #{forward.7} parent=0 // loop_pre_header
    _
  $region3: #{forward.7} parent=0 // loop_header
    %s14 = sphi 0, %s18
    %p15 = scmp.ge.s32.totalorder %s14, 4
    %s24 = sphi 0, %s26
    %s27 = sphi 0, %s24
    %s28 = sphi 0, %s27
    %s44 = sphi 0, %s28
    %s48 = sphi 0, %s48
    %s50 = sphi 0, %s48
    %s51 = sphi 0, %s50
    %s65 = sphi 0, %s51
    %s69 = sphi 0, %s69
    %s71 = sphi 0, %s69
    %s72 = sphi 0, %s71
    %s86 = sphi 0, %s72
    %s90 = sphi 0, %s90
    %s92 = sphi 0, %s90
    %s93 = sphi 0, %s92
    %s107 = sphi 0, %s93
    %s111 = sphi 0, %s111
    %s113 = sphi 0, %s111
    %s114 = sphi 0, %s113
    %s128 = sphi 0, %s114
    %s134 = sphi 0, %s136
    %s137 = sphi 0, %s134
    %s138 = sphi 0, %s137
    %s154 = sphi 0, %s138
    %s158 = sphi 0, %s158
    %s160 = sphi 0, %s158
    %s161 = sphi 0, %s160
    %s175 = sphi 0, %s161
    %s179 = sphi 0, %s179
    %s181 = sphi 0, %s179
    %s182 = sphi 0, %s181
    %s196 = sphi 0, %s182
    %s202 = sphi 0, %s204
    %s205 = sphi 0, %s202
    %s206 = sphi 0, %s205
    %s222 = sphi 0, %s206
  $region4: #{forward.7} parent=0 // loop_header_branch
    %17 = sbr.rel (%p15) target = $region8
  $region5: #{forward.7} parent=0 // loop_body
    %s19 = ssub.s32 %s14, 1
    %s20 = ssub.s32 %s14, 2
    %s21 = sadd.s32 %s14, 1
    %s22 = ssub.s32 %s14, %s21
    %p23 = scmp.eq.s32.totalorder %s22, 0
    %s25 = sadd.s32 %s24, 1
    %s26 = scalar_select %p23, %s24, %s25
    %p29 = pneg %p23
    %p30 = scmp.eq.s32.totalorder %s14, 1
    %p31 = por %p29, %p30
    %p32 = scmp.ne.s32.totalorder %s24, %s27
    %p33 = scmp.eq.s32.totalorder %s14, 0
    %p34 = por %p32, %p33
    %p35 = scmp.ne.s32.totalorder %s24, %s27
    %p36 = scmp.eq.s32.totalorder %s19, 1
    %p37 = por %p35, %p36
    %p38 = scmp.ne.s32.totalorder %s27, %s28
    %p39 = scmp.eq.s32.totalorder %s19, 0
    %p40 = por %p38, %p39
    %p41 = scmp.ne.s32.totalorder %s27, %s28
    %p42 = scmp.eq.s32.totalorder %s20, 1
    %p43 = por %p41, %p42
    %p45 = scmp.ne.s32.totalorder %s28, %s44
    %p46 = scmp.eq.s32.totalorder %s20, 0
    %p47 = por %p45, %p46
    %s49 = sadd.s32 %s48, 1
    %p52 = scmp.eq.s32.totalorder %s14, 1
    %p53 = scmp.ne.s32.totalorder %s48, %s50
    %p54 = scmp.eq.s32.totalorder %s14, 0
    %p55 = por %p53, %p54
    %p56 = scmp.ne.s32.totalorder %s48, %s50
    %p57 = scmp.eq.s32.totalorder %s19, 1
    %p58 = por %p56, %p57
    %p59 = scmp.ne.s32.totalorder %s50, %s51
    %p60 = scmp.eq.s32.totalorder %s19, 0
    %p61 = por %p59, %p60
    %p62 = scmp.ne.s32.totalorder %s50, %s51
    %p63 = scmp.eq.s32.totalorder %s20, 1
    %p64 = por %p62, %p63
    %p66 = scmp.ne.s32.totalorder %s51, %s65
    %p67 = scmp.eq.s32.totalorder %s20, 0
    %p68 = por %p66, %p67
    %s70 = sadd.s32 %s69, 1
    %p73 = scmp.eq.s32.totalorder %s14, 1
    %p74 = scmp.ne.s32.totalorder %s69, %s71
    %p75 = scmp.eq.s32.totalorder %s14, 0
    %p76 = por %p74, %p75
    %p77 = scmp.ne.s32.totalorder %s69, %s71
    %p78 = scmp.eq.s32.totalorder %s19, 1
    %p79 = por %p77, %p78
    %p80 = scmp.ne.s32.totalorder %s71, %s72
    %p81 = scmp.eq.s32.totalorder %s19, 0
    %p82 = por %p80, %p81
    %p83 = scmp.ne.s32.totalorder %s71, %s72
    %p84 = scmp.eq.s32.totalorder %s20, 1
    %p85 = por %p83, %p84
    %p87 = scmp.ne.s32.totalorder %s72, %s86
    %p88 = scmp.eq.s32.totalorder %s20, 0
    %p89 = por %p87, %p88
    %s91 = sadd.s32 %s90, 1
    %p94 = scmp.eq.s32.totalorder %s14, 1
    %p95 = scmp.ne.s32.totalorder %s90, %s92
    %p96 = scmp.eq.s32.totalorder %s14, 0
    %p97 = por %p95, %p96
    %p98 = scmp.ne.s32.totalorder %s90, %s92
    %p99 = scmp.eq.s32.totalorder %s19, 1
    %p100 = por %p98, %p99
    %p101 = scmp.ne.s32.totalorder %s92, %s93
    %p102 = scmp.eq.s32.totalorder %s19, 0
    %p103 = por %p101, %p102
    %p104 = scmp.ne.s32.totalorder %s92, %s93
    %p105 = scmp.eq.s32.totalorder %s20, 1
    %p106 = por %p104, %p105
    %p108 = scmp.ne.s32.totalorder %s93, %s107
    %p109 = scmp.eq.s32.totalorder %s20, 0
    %p110 = por %p108, %p109
    %s112 = sadd.s32 %s111, 1
    %p115 = scmp.eq.s32.totalorder %s14, 1
    %p116 = scmp.ne.s32.totalorder %s111, %s113
    %p117 = scmp.eq.s32.totalorder %s14, 0
    %p118 = por %p116, %p117
    %p119 = scmp.ne.s32.totalorder %s111, %s113
    %p120 = scmp.eq.s32.totalorder %s19, 1
    %p121 = por %p119, %p120
    %p122 = scmp.ne.s32.totalorder %s113, %s114
    %p123 = scmp.eq.s32.totalorder %s19, 0
    %p124 = por %p122, %p123
    %p125 = scmp.ne.s32.totalorder %s113, %s114
    %p126 = scmp.eq.s32.totalorder %s20, 1
    %p127 = por %p125, %p126
    %p129 = scmp.ne.s32.totalorder %s114, %s128
    %p130 = scmp.eq.s32.totalorder %s20, 0
    %p131 = por %p129, %p130
    %s132 = ssub.s32 %s14, %s21
    %p133 = scmp.eq.s32.totalorder %s132, 0
    %s135 = sadd.s32 %s134, 1
    %s136 = scalar_select %p133, %s134, %s135
    %p139 = pneg %p133
    %p140 = scmp.eq.s32.totalorder %s14, 1
    %p141 = por %p139, %p140
    %p142 = scmp.ne.s32.totalorder %s134, %s137
    %p143 = scmp.eq.s32.totalorder %s14, 0
    %p144 = por %p142, %p143
    %p145 = scmp.ne.s32.totalorder %s134, %s137
    %p146 = scmp.eq.s32.totalorder %s19, 1
    %p147 = por %p145, %p146
    %p148 = scmp.ne.s32.totalorder %s137, %s138
    %p149 = scmp.eq.s32.totalorder %s19, 0
    %p150 = por %p148, %p149
    %p151 = scmp.ne.s32.totalorder %s137, %s138
    %p152 = scmp.eq.s32.totalorder %s20, 1
    %p153 = por %p151, %p152
    %p155 = scmp.ne.s32.totalorder %s138, %s154
    %p156 = scmp.eq.s32.totalorder %s20, 0
    %p157 = por %p155, %p156
    %s159 = sadd.s32 %s158, 1
    %p162 = scmp.eq.s32.totalorder %s14, 1
    %p163 = scmp.ne.s32.totalorder %s158, %s160
    %p164 = scmp.eq.s32.totalorder %s14, 0
    %p165 = por %p163, %p164
    %p166 = scmp.ne.s32.totalorder %s158, %s160
    %p167 = scmp.eq.s32.totalorder %s19, 1
    %p168 = por %p166, %p167
    %p169 = scmp.ne.s32.totalorder %s160, %s161
    %p170 = scmp.eq.s32.totalorder %s19, 0
    %p171 = por %p169, %p170
    %p172 = scmp.ne.s32.totalorder %s160, %s161
    %p173 = scmp.eq.s32.totalorder %s20, 1
    %p174 = por %p172, %p173
    %p176 = scmp.ne.s32.totalorder %s161, %s175
    %p177 = scmp.eq.s32.totalorder %s20, 0
    %p178 = por %p176, %p177
    %s180 = sadd.s32 %s179, 1
    %p183 = scmp.eq.s32.totalorder %s14, 1
    %p184 = scmp.ne.s32.totalorder %s179, %s181
    %p185 = scmp.eq.s32.totalorder %s14, 0
    %p186 = por %p184, %p185
    %p187 = scmp.ne.s32.totalorder %s179, %s181
    %p188 = scmp.eq.s32.totalorder %s19, 1
    %p189 = por %p187, %p188
    %p190 = scmp.ne.s32.totalorder %s181, %s182
    %p191 = scmp.eq.s32.totalorder %s19, 0
    %p192 = por %p190, %p191
    %p193 = scmp.ne.s32.totalorder %s181, %s182
    %p194 = scmp.eq.s32.totalorder %s20, 1
    %p195 = por %p193, %p194
    %p197 = scmp.ne.s32.totalorder %s182, %s196
    %p198 = scmp.eq.s32.totalorder %s20, 0
    %p199 = por %p197, %p198
    %s200 = ssub.s32 %s14, %s21
    %p201 = scmp.eq.s32.totalorder %s200, 0
    %s203 = sadd.s32 %s202, 1
    %s204 = scalar_select %p201, %s202, %s203
    %p207 = pneg %p201
    %p208 = scmp.eq.s32.totalorder %s14, 1
    %p209 = por %p207, %p208
    %p210 = scmp.ne.s32.totalorder %s202, %s205
    %p211 = scmp.eq.s32.totalorder %s14, 0
    %p212 = por %p210, %p211
    %p213 = scmp.ne.s32.totalorder %s202, %s205
    %p214 = scmp.eq.s32.totalorder %s19, 1
    %p215 = por %p213, %p214
    %p216 = scmp.ne.s32.totalorder %s205, %s206
    %p217 = scmp.eq.s32.totalorder %s19, 0
    %p218 = por %p216, %p217
    %p219 = scmp.ne.s32.totalorder %s205, %s206
    %p220 = scmp.eq.s32.totalorder %s20, 1
    %p221 = por %p219, %p220
    %p223 = scmp.ne.s32.totalorder %s206, %s222
    %p224 = scmp.eq.s32.totalorder %s20, 0
    %p225 = por %p223, %p224
    %p226 = scmp.le.s32.totalorder 1, %s14
    %p227 = scmp.lt.s32.totalorder %s14, 3
    %p228 = pnand %p226, %p227
    %p229 = pneg %p228
    // Predicated region
    $region9: #{forward.7} parent=5 // pred_check
      _
    $region10: #{forward.7} parent=5 // pred_check_branch
      %231 = sbr.rel (%p228) target = $region12
    $region11: #{forward.7} parent=5 // pred_region
      %s232 = ssub.s32 %s14, 1
      // Predicated region
      $region13: #{forward.7} parent=11 // pred_check
        %p233 = pneg %p61
      $region14: #{forward.7} parent=11 // pred_check_branch
        %235 = sbr.rel (%p233) target = $region16
      $region15: #{forward.7} parent=11 // pred_region
        _
      $region16: #{forward.7} parent=11 // pred_fallthru
        _
      // Predicated region
      $region17: #{forward.7} parent=11 // pred_check
        %p236 = pneg %p82
      $region18: #{forward.7} parent=11 // pred_check_branch
        %238 = sbr.rel (%p236) target = $region20
      $region19: #{forward.7} parent=11 // pred_region
        _
      $region20: #{forward.7} parent=11 // pred_fallthru
        _
      // Predicated region
      $region21: #{forward.7} parent=11 // pred_check
        %p239 = pneg %p103
      $region22: #{forward.7} parent=11 // pred_check_branch
        %241 = sbr.rel (%p239) target = $region24
      $region23: #{forward.7} parent=11 // pred_region
        _
      $region24: #{forward.7} parent=11 // pred_fallthru
        _
      // Predicated region
      $region25: #{forward.7} parent=11 // pred_check
        %p242 = pneg %p124
      $region26: #{forward.7} parent=11 // pred_check_branch
        %244 = sbr.rel (%p242) target = $region28
      $region27: #{forward.7} parent=11 // pred_region
        _
      $region28: #{forward.7} parent=11 // pred_fallthru
        _
      // Predicated region
      $region29: #{forward.7} parent=11 // pred_check
        %p245 = pneg %p171
      $region30: #{forward.7} parent=11 // pred_check_branch
        %247 = sbr.rel (%p245) target = $region32
      $region31: #{forward.7} parent=11 // pred_region
        _
      $region32: #{forward.7} parent=11 // pred_fallthru
        _
      // Predicated region
      $region33: #{forward.7} parent=11 // pred_check
        %p248 = pneg %p192
      $region34: #{forward.7} parent=11 // pred_check_branch
        %250 = sbr.rel (%p248) target = $region36
      $region35: #{forward.7} parent=11 // pred_region
        _
      $region36: #{forward.7} parent=11 // pred_fallthru
        _
    $region12: #{forward.7} parent=5 // pred_fallthru
      _
    %p251 = scmp.lt.s32.totalorder %s14, 2
    // Predicated region
    $region37: #{forward.7} parent=5 // pred_check
      %p252 = pneg %p251
    $region38: #{forward.7} parent=5 // pred_check_branch
      %254 = sbr.rel (%p252) target = $region40
    $region39: #{forward.7} parent=5 // pred_region
      // Predicated region
      $region41: #{forward.7} parent=39 // pred_check
        %p255 = pneg %p34
      $region42: #{forward.7} parent=39 // pred_check_branch
        %257 = sbr.rel (%p255) target = $region44
      $region43: #{forward.7} parent=39 // pred_region
        %p258 = scmp.lt.s32.totalorder %s14, 1
        %s259 = scalar_select %p258, %s14, 1
        %s260 = smul.addr %s259, 72
        %s261 = smul.addr %s260, 4
        %s262 = scalar_lea.vmem %s0, %s261
      $region44: #{forward.7} parent=39 // pred_fallthru
        _
      // Predicated region
      $region45: #{forward.7} parent=39 // pred_check
        %p263 = pneg %p144
      $region46: #{forward.7} parent=39 // pred_check_branch
        %265 = sbr.rel (%p263) target = $region48
      $region47: #{forward.7} parent=39 // pred_region
        %p266 = scmp.lt.s32.totalorder %s14, 1
        %s267 = scalar_select %p266, %s14, 1
        %s268 = smul.addr %s267, 8
        %s269 = smul.addr %s268, 4
        %s270 = scalar_lea.vmem %s5, %s269
      $region48: #{forward.7} parent=39 // pred_fallthru
        _
    $region40: #{forward.7} parent=5 // pred_fallthru
      _
    %p271 = scmp.le.s32.totalorder 1, %s14
    %p272 = scmp.lt.s32.totalorder %s14, 3
    %p273 = pnand %p271, %p272
    %p274 = pneg %p273
    // Predicated region
    $region49: #{forward.7} parent=5 // pred_check
      _
    $region50: #{forward.7} parent=5 // pred_check_branch
      %276 = sbr.rel (%p273) target = $region52
    $region51: #{forward.7} parent=5 // pred_region
      %s277 = ssub.s32 %s14, 1
      %p278 = scmp.lt.s32.totalorder %s19, 1
      %s279 = scalar_select %p278, %s19, 1
      %s280 = smul.addr %s279, 72
      %s281 = smul.addr %s280, 4
      %s282 = scalar_lea.vmem %s0, %s281
      %p283 = pneg %p40
      %p284 = pneg %p37
      %p285 = pneg %p61
      %p286 = pneg %p58
      %p287 = pneg %p82
      %p288 = pneg %p79
      %p289 = pneg %p103
      %p290 = pneg %p100
      %p291 = pneg %p124
      %p292 = pneg %p121
      %p293 = scmp.lt.s32.totalorder %s19, 1
      %s294 = scalar_select %p293, %s19, 1
      %s295 = smul.addr %s294, 8
      %s296 = smul.addr %s295, 4
      %s297 = scalar_lea.vmem %s5, %s296
      %p298 = pneg %p150
      %p299 = pneg %p147
      %p300 = pneg %p171
      %p301 = pneg %p168
      %p302 = pneg %p192
      %p303 = pneg %p189
      %p304 = pneg %p218
      %p305 = pneg %p215
      %p306 = scmp.lt.s32.totalorder %s19, 1
      %s307 = scalar_select %p306, %s19, 1
      %s308 = smul.addr %s307, 8
      %s309 = smul.addr %s308, 4
      %s310 = scalar_lea.vmem %s8, %s309
      %p311 = scmp.lt.s32.totalorder %s19, 1
      %s312 = scalar_select %p311, %s19, 1
      %s313 = smul.addr %s312, 72
      %s314 = smul.addr %s313, 4
      %s315 = scalar_lea.vmem %s0, %s314
      %p316 = scmp.lt.s32.totalorder %s19, 1
      %s317 = scalar_select %p316, %s19, 1
      %s318 = smul.addr %s317, 8
      %s319 = smul.addr %s318, 4
      %s320 = scalar_lea.vmem %s5, %s319
      %p321 = scmp.lt.s32.totalorder %s19, 1
      %s322 = scalar_select %p321, %s19, 1
      %s323 = smul.addr %s322, 8
      %s324 = smul.addr %s323, 4
      %s325 = scalar_lea.vmem %s8, %s324
      %v327 = vld [vmem:[%s315] sm:$0xf]
      %v328 = vld [vmem:[%s315 + $0x4] sm:$0xf]
      %v329 = vld [vmem:[%s315 + $0x8] sm:$0xf]
      %v330 = vld [vmem:[%s315 + $0xc] sm:$0xf]
      %v331 = vld [vmem:[%s315 + $0x10] sm:$0xf]
      %v332 = vld [vmem:[%s315 + $0x14] sm:$0xf]
      %v333 = vld [vmem:[%s315 + $0x18] sm:$0xf]
      %v334 = vld [vmem:[%s315 + $0x1c] sm:$0xf]
      %v335 = vld [vmem:[%s1] sm:$0xf]
      %v336 = vld [vmem:[%s1 + $0x4] sm:$0xf]
      %v337 = vld [vmem:[%s1 + $0x8] sm:$0xf]
      %v338 = vld [vmem:[%s1 + $0xc] sm:$0xf]
      %v339 = vld [vmem:[%s1 + $0x10] sm:$0xf]
      %v340 = vld [vmem:[%s1 + $0x14] sm:$0xf]
      %v341 = vld [vmem:[%s1 + $0x18] sm:$0xf]
      %v342 = vld [vmem:[%s1 + $0x1c] sm:$0xf]
      %s343 = scalar_lea.vmem %s315, 32
      %v344 = vld [vmem:[%s343] sm:$0xf]
      %v345 = vld [vmem:[%s343 + $0x4] sm:$0xf]
      %v346 = vld [vmem:[%s343 + $0x8] sm:$0xf]
      %v347 = vld [vmem:[%s343 + $0xc] sm:$0xf]
      %v348 = vld [vmem:[%s343 + $0x10] sm:$0xf]
      %v349 = vld [vmem:[%s343 + $0x14] sm:$0xf]
      %v350 = vld [vmem:[%s343 + $0x18] sm:$0xf]
      %v351 = vld [vmem:[%s343 + $0x1c] sm:$0xf]
      %s352 = scalar_lea.vmem %s1, 32
      %v353 = vld [vmem:[%s352] sm:$0xf]
      %v354 = vld [vmem:[%s352 + $0x4] sm:$0xf]
      %v355 = vld [vmem:[%s352 + $0x8] sm:$0xf]
      %v356 = vld [vmem:[%s352 + $0xc] sm:$0xf]
      %v357 = vld [vmem:[%s352 + $0x10] sm:$0xf]
      %v358 = vld [vmem:[%s352 + $0x14] sm:$0xf]
      %v359 = vld [vmem:[%s352 + $0x18] sm:$0xf]
      %v360 = vld [vmem:[%s352 + $0x1c] sm:$0xf]
      %v369 = vunpack.c.l.b16 %v344
      %v370 = vunpack.c.l.b16 %v345
      %v371 = vunpack.c.l.b16 %v346
      %v372 = vunpack.c.l.b16 %v347
      %v373 = vunpack.c.l.b16 %v348
      %v374 = vunpack.c.l.b16 %v349
      %v375 = vunpack.c.l.b16 %v350
      %v376 = vunpack.c.l.b16 %v351
      %v377 = vpack.c.b16 %v370, %v369
      %v378 = vpack.c.b16 %v372, %v371
      %v379 = vpack.c.b16 %v374, %v373
      %v380 = vpack.c.b16 %v376, %v375
      %v389 = vunpack.c.l.b16 %v353
      %v390 = vunpack.c.l.b16 %v354
      %v391 = vunpack.c.l.b16 %v355
      %v392 = vunpack.c.l.b16 %v356
      %v393 = vunpack.c.l.b16 %v357
      %v394 = vunpack.c.l.b16 %v358
      %v395 = vunpack.c.l.b16 %v359
      %v396 = vunpack.c.l.b16 %v360
      %v397 = vpack.c.b16 %v390, %v389
      %v398 = vpack.c.b16 %v392, %v391
      %v399 = vpack.c.b16 %v394, %v393
      %v400 = vpack.c.b16 %v396, %v395
      %vm405 = vcmask 523264
      %v407 = vsel %vm405, %v377, 0
      %v410 = vsel %vm405, %v378, 0
      %v413 = vsel %vm405, %v379, 0
      %v416 = vsel %vm405, %v380, 0
      %418 = vmatprep.subr.bf16.mxu0 0
      %419 = vmatpush1.bf16.msra.mxu0 %v397
      %420 = vmatprep.subr.bf16.mxu0 0
      %421 = vmatpush1.bf16.msra.mxu0 %v398
      %422 = vmatprep.subr.bf16.mxu0 0
      %423 = vmatpush1.bf16.msra.mxu0 %v399
      %424 = vmatprep.subr.bf16.mxu0 0
      %425 = vmatpush1.bf16.msra.mxu0 %v400
      %426 = vmatprep.subr.bf16.mxu0 0
      %427 = vmatpush1.bf16.msra.mxu0 0
      %428 = vmatprep.subr.bf16.mxu0 0
      %429 = vmatpush1.bf16.msra.mxu0 0
      %430 = vmatprep.subr.bf16.mxu0 0
      %431 = vmatpush1.bf16.msra.mxu0 0
      %432 = vmatprep.subr.bf16.mxu0 0
      %433 = vmatpush1.bf16.msra.mxu0 0
      %434 = vmatprep.subr.bf16.mxu0 0
      %435 = vmatpush1.bf16.msra.mxu0 0
      %436 = vmatprep.subr.bf16.mxu0 0
      %437 = vmatpush1.bf16.msra.mxu0 0
      %438 = vmatprep.subr.bf16.mxu0 0
      %439 = vmatpush1.bf16.msra.mxu0 0
      %440 = vmatprep.subr.bf16.mxu0 0
      %441 = vmatpush1.bf16.msra.mxu0 0
      %442 = vmatprep.subr.bf16.mxu0 0
      %443 = vmatpush1.bf16.msra.mxu0 0
      %444 = vmatprep.subr.bf16.mxu0 0
      %445 = vmatpush1.bf16.msra.mxu0 0
      %446 = vmatprep.subr.bf16.mxu0 0
      %447 = vmatpush1.bf16.msra.mxu0 0
      %448 = vmatprep.subr.bf16.mxu0 0
      %449 = vmatpush1.bf16.msra.mxu0 0
      %450 = vmatprep.mubr.bf16.mxu0 0
      %451 = vmatmul.mubr.bf16.gmra.mrb[0].mxu0 %v407
      %v452 = vpop.f32.mrb[0].mxu0
      %v453 = vadd.f32 0.0, %v452
      %v454 = vpop.f32.mrb[0].mxu0
      %v455 = vpop.f32.mrb[0].mxu0
      %v456 = vadd.f32 0.0, %v455
      %v457 = vpop.f32.mrb[0].mxu0
      %458 = vmatprep.mubr.bf16.mxu0 0
      %459 = vmatmul.mubr.bf16.gmra.mrb[0].mxu0 %v410
      %v460 = vpop.f32.mrb[0].mxu0
      %v461 = vadd.f32 0.0, %v460
      %v462 = vpop.f32.mrb[0].mxu0
      %v463 = vpop.f32.mrb[0].mxu0
      %v464 = vadd.f32 0.0, %v463
      %v465 = vpop.f32.mrb[0].mxu0
      %466 = vmatprep.mubr.bf16.mxu0 0
      %467 = vmatmul.mubr.bf16.gmra.mrb[0].mxu0 %v413
      %v468 = vpop.f32.mrb[0].mxu0
      %v469 = vadd.f32 0.0, %v468
      %v470 = vpop.f32.mrb[0].mxu0
      %v471 = vpop.f32.mrb[0].mxu0
      %v472 = vadd.f32 0.0, %v471
      %v473 = vpop.f32.mrb[0].mxu0
      %474 = vmatprep.mubr.bf16.mxu0 0
      %475 = vmatmul.mubr.bf16.gmra.mrb[0].mxu0 %v416
      %v476 = vpop.f32.mrb[0].mxu0
      %v477 = vadd.f32 0.0, %v476
      %v478 = vpop.f32.mrb[0].mxu0
      %v479 = vpop.f32.mrb[0].mxu0
      %v480 = vadd.f32 0.0, %v479
      %v481 = vpop.f32.mrb[0].mxu0
      %482 = vdwg.mxu0
      %v491 = vunpack.c.l.b16 %v327
      %v492 = vunpack.c.l.b16 %v328
      %v493 = vunpack.c.l.b16 %v329
      %v494 = vunpack.c.l.b16 %v330
      %v495 = vunpack.c.l.b16 %v331
      %v496 = vunpack.c.l.b16 %v332
      %v497 = vunpack.c.l.b16 %v333
      %v498 = vunpack.c.l.b16 %v334
      %v499 = vpack.c.b16 %v492, %v491
      %v500 = vpack.c.b16 %v494, %v493
      %v501 = vpack.c.b16 %v496, %v495
      %v502 = vpack.c.b16 %v498, %v497
      %v511 = vunpack.c.l.b16 %v335
      %v512 = vunpack.c.l.b16 %v336
      %v513 = vunpack.c.l.b16 %v337
      %v514 = vunpack.c.l.b16 %v338
      %v515 = vunpack.c.l.b16 %v339
      %v516 = vunpack.c.l.b16 %v340
      %v517 = vunpack.c.l.b16 %v341
      %v518 = vunpack.c.l.b16 %v342
      %v519 = vpack.c.b16 %v512, %v511
      %v520 = vpack.c.b16 %v514, %v513
      %v521 = vpack.c.b16 %v516, %v515
      %v522 = vpack.c.b16 %v518, %v517
      %v528 = vsel %vm405, %v499, 0
      %v531 = vsel %vm405, %v500, 0
      %v534 = vsel %vm405, %v501, 0
      %v537 = vsel %vm405, %v502, 0
      %539 = vmatprep.subr.bf16.mxu0 0
      %540 = vmatpush1.bf16.msra.mxu0 %v519
      %541 = vmatprep.subr.bf16.mxu0 0
      %542 = vmatpush1.bf16.msra.mxu0 %v520
      %543 = vmatprep.subr.bf16.mxu0 0
      %544 = vmatpush1.bf16.msra.mxu0 %v521
      %545 = vmatprep.subr.bf16.mxu0 0
      %546 = vmatpush1.bf16.msra.mxu0 %v522
      %547 = vmatprep.subr.bf16.mxu0 0
      %548 = vmatpush1.bf16.msra.mxu0 0
      %549 = vmatprep.subr.bf16.mxu0 0
      %550 = vmatpush1.bf16.msra.mxu0 0
      %551 = vmatprep.subr.bf16.mxu0 0
      %552 = vmatpush1.bf16.msra.mxu0 0
      %553 = vmatprep.subr.bf16.mxu0 0
      %554 = vmatpush1.bf16.msra.mxu0 0
      %555 = vmatprep.subr.bf16.mxu0 0
      %556 = vmatpush1.bf16.msra.mxu0 0
      %557 = vmatprep.subr.bf16.mxu0 0
      %558 = vmatpush1.bf16.msra.mxu0 0
      %559 = vmatprep.subr.bf16.mxu0 0
      %560 = vmatpush1.bf16.msra.mxu0 0
      %561 = vmatprep.subr.bf16.mxu0 0
      %562 = vmatpush1.bf16.msra.mxu0 0
      %563 = vmatprep.subr.bf16.mxu0 0
      %564 = vmatpush1.bf16.msra.mxu0 0
      %565 = vmatprep.subr.bf16.mxu0 0
      %566 = vmatpush1.bf16.msra.mxu0 0
      %567 = vmatprep.subr.bf16.mxu0 0
      %568 = vmatpush1.bf16.msra.mxu0 0
      %569 = vmatprep.subr.bf16.mxu0 0
      %570 = vmatpush1.bf16.msra.mxu0 0
      %571 = vmatprep.mubr.bf16.mxu0 0
      %572 = vmatmul.mubr.bf16.gmra.mrb[0].mxu0 %v528
      %v573 = vpop.f32.mrb[0].mxu0
      %v574 = vadd.f32 %v453, %v573
      %v575 = vpop.f32.mrb[0].mxu0
      %v576 = vpop.f32.mrb[0].mxu0
      %v577 = vadd.f32 %v456, %v576
      %v578 = vpop.f32.mrb[0].mxu0
      %579 = vmatprep.mubr.bf16.mxu0 0
      %580 = vmatmul.mubr.bf16.gmra.mrb[0].mxu0 %v531
      %v581 = vpop.f32.mrb[0].mxu0
      %v582 = vadd.f32 %v461, %v581
      %v583 = vpop.f32.mrb[0].mxu0
      %v584 = vpop.f32.mrb[0].mxu0
      %v585 = vadd.f32 %v464, %v584
      %v586 = vpop.f32.mrb[0].mxu0
      %587 = vmatprep.mubr.bf16.mxu0 0
      %588 = vmatmul.mubr.bf16.gmra.mrb[0].mxu0 %v534
      %v589 = vpop.f32.mrb[0].mxu0
      %v590 = vadd.f32 %v469, %v589
      %v591 = vpop.f32.mrb[0].mxu0
      %v592 = vpop.f32.mrb[0].mxu0
      %v593 = vadd.f32 %v472, %v592
      %v594 = vpop.f32.mrb[0].mxu0
      %595 = vmatprep.mubr.bf16.mxu0 0
      %596 = vmatmul.mubr.bf16.gmra.mrb[0].mxu0 %v537
      %v597 = vpop.f32.mrb[0].mxu0
      %v598 = vadd.f32 %v477, %v597
      %v599 = vpop.f32.mrb[0].mxu0
      %v600 = vpop.f32.mrb[0].mxu0
      %v601 = vadd.f32 %v480, %v600
      %v602 = vpop.f32.mrb[0].mxu0
      %603 = vdwg.mxu0
      %s604 = scalar_lea.vmem %s315, 64
      %v605 = vld [vmem:[%s604] sm:$0xf]
      %v606 = vld [vmem:[%s604 + $0x4] sm:$0xf]
      %v607 = vld [vmem:[%s604 + $0x8] sm:$0xf]
      %v608 = vld [vmem:[%s604 + $0xc] sm:$0xf]
      %v609 = vld [vmem:[%s604 + $0x10] sm:$0xf]
      %v610 = vld [vmem:[%s604 + $0x14] sm:$0xf]
      %v611 = vld [vmem:[%s604 + $0x18] sm:$0xf]
      %v612 = vld [vmem:[%s604 + $0x1c] sm:$0xf]
      %s613 = scalar_lea.vmem %s1, 64
      %v614 = vld [vmem:[%s613] sm:$0xf]
      %v615 = vld [vmem:[%s613 + $0x4] sm:$0xf]
      %v616 = vld [vmem:[%s613 + $0x8] sm:$0xf]
      %v617 = vld [vmem:[%s613 + $0xc] sm:$0xf]
      %v618 = vld [vmem:[%s613 + $0x10] sm:$0xf]
      %v619 = vld [vmem:[%s613 + $0x14] sm:$0xf]
      %v620 = vld [vmem:[%s613 + $0x18] sm:$0xf]
      %v621 = vld [vmem:[%s613 + $0x1c] sm:$0xf]
      %v630 = vunpack.c.l.b16 %v605
      %v631 = vunpack.c.l.b16 %v606
      %v632 = vunpack.c.l.b16 %v607
      %v633 = vunpack.c.l.b16 %v608
      %v634 = vunpack.c.l.b16 %v609
      %v635 = vunpack.c.l.b16 %v610
      %v636 = vunpack.c.l.b16 %v611
      %v637 = vunpack.c.l.b16 %v612
      %v638 = vpack.c.b16 %v631, %v630
      %v639 = vpack.c.b16 %v633, %v632
      %v640 = vpack.c.b16 %v635, %v634
      %v641 = vpack.c.b16 %v637, %v636
      %v650 = vunpack.c.l.b16 %v614
      %v651 = vunpack.c.l.b16 %v615
      %v652 = vunpack.c.l.b16 %v616
      %v653 = vunpack.c.l.b16 %v617
      %v654 = vunpack.c.l.b16 %v618
      %v655 = vunpack.c.l.b16 %v619
      %v656 = vunpack.c.l.b16 %v620
      %v657 = vunpack.c.l.b16 %v621
      %v658 = vpack.c.b16 %v651, %v650
      %v659 = vpack.c.b16 %v653, %v652
      %v660 = vpack.c.b16 %v655, %v654
      %v661 = vpack.c.b16 %v657, %v656
      %v667 = vsel %vm405, %v638, 0
      %v670 = vsel %vm405, %v639, 0
      %v673 = vsel %vm405, %v640, 0
      %v676 = vsel %vm405, %v641, 0
      %678 = vmatprep.subr.bf16.mxu0 0
      %679 = vmatpush1.bf16.msra.mxu0 %v658
      %680 = vmatprep.subr.bf16.mxu0 0
      %681 = vmatpush1.bf16.msra.mxu0 %v659
      %682 = vmatprep.subr.bf16.mxu0 0
      %683 = vmatpush1.bf16.msra.mxu0 %v660
      %684 = vmatprep.subr.bf16.mxu0 0
      %685 = vmatpush1.bf16.msra.mxu0 %v661
      %686 = vmatprep.subr.bf16.mxu0 0
      %687 = vmatpush1.bf16.msra.mxu0 0
      %688 = vmatprep.subr.bf16.mxu0 0
      %689 = vmatpush1.bf16.msra.mxu0 0
      %690 = vmatprep.subr.bf16.mxu0 0
      %691 = vmatpush1.bf16.msra.mxu0 0
      %692 = vmatprep.subr.bf16.mxu0 0
      %693 = vmatpush1.bf16.msra.mxu0 0
      %694 = vmatprep.subr.bf16.mxu0 0
      %695 = vmatpush1.bf16.msra.mxu0 0
      %696 = vmatprep.subr.bf16.mxu0 0
      %697 = vmatpush1.bf16.msra.mxu0 0
      %698 = vmatprep.subr.bf16.mxu0 0
      %699 = vmatpush1.bf16.msra.mxu0 0
      %700 = vmatprep.subr.bf16.mxu0 0
      %701 = vmatpush1.bf16.msra.mxu0 0
      %702 = vmatprep.subr.bf16.mxu0 0
      %703 = vmatpush1.bf16.msra.mxu0 0
      %704 = vmatprep.subr.bf16.mxu0 0
      %705 = vmatpush1.bf16.msra.mxu0 0
      %706 = vmatprep.subr.bf16.mxu0 0
      %707 = vmatpush1.bf16.msra.mxu0 0
      %708 = vmatprep.subr.bf16.mxu0 0
      %709 = vmatpush1.bf16.msra.mxu0 0
      %710 = vmatprep.mubr.bf16.mxu0 0
      %711 = vmatmul.mubr.bf16.gmra.mrb[0].mxu0 %v667
      %v712 = vpop.f32.mrb[0].mxu0
      %v713 = vadd.f32 0.0, %v712
      %v714 = vpop.f32.mrb[0].mxu0
      %v715 = vpop.f32.mrb[0].mxu0
      %v716 = vadd.f32 0.0, %v715
      %v717 = vpop.f32.mrb[0].mxu0
      %718 = vmatprep.mubr.bf16.mxu0 0
      %719 = vmatmul.mubr.bf16.gmra.mrb[0].mxu0 %v670
      %v720 = vpop.f32.mrb[0].mxu0
      %v721 = vadd.f32 0.0, %v720
      %v722 = vpop.f32.mrb[0].mxu0
      %v723 = vpop.f32.mrb[0].mxu0
      %v724 = vadd.f32 0.0, %v723
      %v725 = vpop.f32.mrb[0].mxu0
      %726 = vmatprep.mubr.bf16.mxu0 0
      %727 = vmatmul.mubr.bf16.gmra.mrb[0].mxu0 %v673
      %v728 = vpop.f32.mrb[0].mxu0
      %v729 = vadd.f32 0.0, %v728
      %v730 = vpop.f32.mrb[0].mxu0
      %v731 = vpop.f32.mrb[0].mxu0
      %v732 = vadd.f32 0.0, %v731
      %v733 = vpop.f32.mrb[0].mxu0
      %734 = vmatprep.mubr.bf16.mxu0 0
      %735 = vmatmul.mubr.bf16.gmra.mrb[0].mxu0 %v676
      %v736 = vpop.f32.mrb[0].mxu0
      %v737 = vadd.f32 0.0, %v736
      %v738 = vpop.f32.mrb[0].mxu0
      %v739 = vpop.f32.mrb[0].mxu0
      %v740 = vadd.f32 0.0, %v739
      %v741 = vpop.f32.mrb[0].mxu0
      %742 = vdwg.mxu0
      %v743 = vadd.f32 %v574, %v713
      %v744 = vadd.f32 %v577, %v716
      %v745 = vadd.f32 %v582, %v721
      %v746 = vadd.f32 %v585, %v724
      %v747 = vadd.f32 %v590, %v729
      %v748 = vadd.f32 %v593, %v732
      %v749 = vadd.f32 %v598, %v737
      %v750 = vadd.f32 %v601, %v740
      %s751 = scalar_lea.vmem %s315, 96
      %v752 = vld [vmem:[%s751] sm:$0xf]
      %v753 = vld [vmem:[%s751 + $0x4] sm:$0xf]
      %v754 = vld [vmem:[%s751 + $0x8] sm:$0xf]
      %v755 = vld [vmem:[%s751 + $0xc] sm:$0xf]
      %v756 = vld [vmem:[%s751 + $0x10] sm:$0xf]
      %v757 = vld [vmem:[%s751 + $0x14] sm:$0xf]
      %v758 = vld [vmem:[%s751 + $0x18] sm:$0xf]
      %v759 = vld [vmem:[%s751 + $0x1c] sm:$0xf]
      %s760 = scalar_lea.vmem %s1, 96
      %v761 = vld [vmem:[%s760] sm:$0xf]
      %v762 = vld [vmem:[%s760 + $0x4] sm:$0xf]
      %v763 = vld [vmem:[%s760 + $0x8] sm:$0xf]
      %v764 = vld [vmem:[%s760 + $0xc] sm:$0xf]
      %v765 = vld [vmem:[%s760 + $0x10] sm:$0xf]
      %v766 = vld [vmem:[%s760 + $0x14] sm:$0xf]
      %v767 = vld [vmem:[%s760 + $0x18] sm:$0xf]
      %v768 = vld [vmem:[%s760 + $0x1c] sm:$0xf]
      %v777 = vunpack.c.l.b16 %v752
      %v778 = vunpack.c.l.b16 %v753
      %v779 = vunpack.c.l.b16 %v754
      %v780 = vunpack.c.l.b16 %v755
      %v781 = vunpack.c.l.b16 %v756
      %v782 = vunpack.c.l.b16 %v757
      %v783 = vunpack.c.l.b16 %v758
      %v784 = vunpack.c.l.b16 %v759
      %v785 = vpack.c.b16 %v778, %v777
      %v786 = vpack.c.b16 %v780, %v779
      %v787 = vpack.c.b16 %v782, %v781
      %v788 = vpack.c.b16 %v784, %v783
      %v797 = vunpack.c.l.b16 %v761
      %v798 = vunpack.c.l.b16 %v762
      %v799 = vunpack.c.l.b16 %v763
      %v800 = vunpack.c.l.b16 %v764
      %v801 = vunpack.c.l.b16 %v765
      %v802 = vunpack.c.l.b16 %v766
      %v803 = vunpack.c.l.b16 %v767
      %v804 = vunpack.c.l.b16 %v768
      %v805 = vpack.c.b16 %v798, %v797
      %v806 = vpack.c.b16 %v800, %v799
      %v807 = vpack.c.b16 %v802, %v801
      %v808 = vpack.c.b16 %v804, %v803
      %v814 = vsel %vm405, %v785, 0
      %v817 = vsel %vm405, %v786, 0
      %v820 = vsel %vm405, %v787, 0
      %v823 = vsel %vm405, %v788, 0
      %825 = vmatprep.subr.bf16.mxu0 0
      %826 = vmatpush1.bf16.msra.mxu0 %v805
      %827 = vmatprep.subr.bf16.mxu0 0
      %828 = vmatpush1.bf16.msra.mxu0 %v806
      %829 = vmatprep.subr.bf16.mxu0 0
      %830 = vmatpush1.bf16.msra.mxu0 %v807
      %831 = vmatprep.subr.bf16.mxu0 0
      %832 = vmatpush1.bf16.msra.mxu0 %v808
      %833 = vmatprep.subr.bf16.mxu0 0
      %834 = vmatpush1.bf16.msra.mxu0 0
      %835 = vmatprep.subr.bf16.mxu0 0
      %836 = vmatpush1.bf16.msra.mxu0 0
      %837 = vmatprep.subr.bf16.mxu0 0
      %838 = vmatpush1.bf16.msra.mxu0 0
      %839 = vmatprep.subr.bf16.mxu0 0
      %840 = vmatpush1.bf16.msra.mxu0 0
      %841 = vmatprep.subr.bf16.mxu0 0
      %842 = vmatpush1.bf16.msra.mxu0 0
      %843 = vmatprep.subr.bf16.mxu0 0
      %844 = vmatpush1.bf16.msra.mxu0 0
      %845 = vmatprep.subr.bf16.mxu0 0
      %846 = vmatpush1.bf16.msra.mxu0 0
      %847 = vmatprep.subr.bf16.mxu0 0
      %848 = vmatpush1.bf16.msra.mxu0 0
      %849 = vmatprep.subr.bf16.mxu0 0
      %850 = vmatpush1.bf16.msra.mxu0 0
      %851 = vmatprep.subr.bf16.mxu0 0
      %852 = vmatpush1.bf16.msra.mxu0 0
      %853 = vmatprep.subr.bf16.mxu0 0
      %854 = vmatpush1.bf16.msra.mxu0 0
      %855 = vmatprep.subr.bf16.mxu0 0
      %856 = vmatpush1.bf16.msra.mxu0 0
      %857 = vmatprep.mubr.bf16.mxu0 0
      %858 = vmatmul.mubr.bf16.gmra.mrb[0].mxu0 %v814
      %v859 = vpop.f32.mrb[0].mxu0
      %v860 = vadd.f32 0.0, %v859
      %v861 = vpop.f32.mrb[0].mxu0
      %v862 = vpop.f32.mrb[0].mxu0
      %v863 = vadd.f32 0.0, %v862
      %v864 = vpop.f32.mrb[0].mxu0
      %865 = vmatprep.mubr.bf16.mxu0 0
      %866 = vmatmul.mubr.bf16.gmra.mrb[0].mxu0 %v817
      %v867 = vpop.f32.mrb[0].mxu0
      %v868 = vadd.f32 0.0, %v867
      %v869 = vpop.f32.mrb[0].mxu0
      %v870 = vpop.f32.mrb[0].mxu0
      %v871 = vadd.f32 0.0, %v870
      %v872 = vpop.f32.mrb[0].mxu0
      %873 = vmatprep.mubr.bf16.mxu0 0
      %874 = vmatmul.mubr.bf16.gmra.mrb[0].mxu0 %v820
      %v875 = vpop.f32.mrb[0].mxu0
      %v876 = vadd.f32 0.0, %v875
      %v877 = vpop.f32.mrb[0].mxu0
      %v878 = vpop.f32.mrb[0].mxu0
      %v879 = vadd.f32 0.0, %v878
      %v880 = vpop.f32.mrb[0].mxu0
      %881 = vmatprep.mubr.bf16.mxu0 0
      %882 = vmatmul.mubr.bf16.gmra.mrb[0].mxu0 %v823
      %v883 = vpop.f32.mrb[0].mxu0
      %v884 = vadd.f32 0.0, %v883
      %v885 = vpop.f32.mrb[0].mxu0
      %v886 = vpop.f32.mrb[0].mxu0
      %v887 = vadd.f32 0.0, %v886
      %v888 = vpop.f32.mrb[0].mxu0
      %889 = vdwg.mxu0
      %v890 = vadd.f32 %v743, %v860
      %v891 = vadd.f32 %v744, %v863
      %v892 = vadd.f32 %v745, %v868
      %v893 = vadd.f32 %v746, %v871
      %v894 = vadd.f32 %v747, %v876
      %v895 = vadd.f32 %v748, %v879
      %v896 = vadd.f32 %v749, %v884
      %v897 = vadd.f32 %v750, %v887
      %s898 = scalar_lea.vmem %s315, 128
      %v899 = vld [vmem:[%s898] sm:$0xf]
      %v900 = vld [vmem:[%s898 + $0x4] sm:$0xf]
      %v901 = vld [vmem:[%s898 + $0x8] sm:$0xf]
      %v902 = vld [vmem:[%s898 + $0xc] sm:$0xf]
      %v903 = vld [vmem:[%s898 + $0x10] sm:$0xf]
      %v904 = vld [vmem:[%s898 + $0x14] sm:$0xf]
      %v905 = vld [vmem:[%s898 + $0x18] sm:$0xf]
      %v906 = vld [vmem:[%s898 + $0x1c] sm:$0xf]
      %s907 = scalar_lea.vmem %s1, 128
      %v908 = vld [vmem:[%s907] sm:$0xf]
      %v909 = vld [vmem:[%s907 + $0x4] sm:$0xf]
      %v910 = vld [vmem:[%s907 + $0x8] sm:$0xf]
      %v911 = vld [vmem:[%s907 + $0xc] sm:$0xf]
      %v912 = vld [vmem:[%s907 + $0x10] sm:$0xf]
      %v913 = vld [vmem:[%s907 + $0x14] sm:$0xf]
      %v914 = vld [vmem:[%s907 + $0x18] sm:$0xf]
      %v915 = vld [vmem:[%s907 + $0x1c] sm:$0xf]
      %v924 = vunpack.c.l.b16 %v899
      %v925 = vunpack.c.l.b16 %v900
      %v926 = vunpack.c.l.b16 %v901
      %v927 = vunpack.c.l.b16 %v902
      %v928 = vunpack.c.l.b16 %v903
      %v929 = vunpack.c.l.b16 %v904
      %v930 = vunpack.c.l.b16 %v905
      %v931 = vunpack.c.l.b16 %v906
      %v932 = vpack.c.b16 %v925, %v924
      %v933 = vpack.c.b16 %v927, %v926
      %v934 = vpack.c.b16 %v929, %v928
      %v935 = vpack.c.b16 %v931, %v930
      %v944 = vunpack.c.l.b16 %v908
      %v945 = vunpack.c.l.b16 %v909
      %v946 = vunpack.c.l.b16 %v910
      %v947 = vunpack.c.l.b16 %v911
      %v948 = vunpack.c.l.b16 %v912
      %v949 = vunpack.c.l.b16 %v913
      %v950 = vunpack.c.l.b16 %v914
      %v951 = vunpack.c.l.b16 %v915
      %v952 = vpack.c.b16 %v945, %v944
      %v953 = vpack.c.b16 %v947, %v946
      %v954 = vpack.c.b16 %v949, %v948
      %v955 = vpack.c.b16 %v951, %v950
      %v961 = vsel %vm405, %v932, 0
      %v964 = vsel %vm405, %v933, 0
      %v967 = vsel %vm405, %v934, 0
      %v970 = vsel %vm405, %v935, 0
      %972 = vmatprep.subr.bf16.mxu0 0
      %973 = vmatpush1.bf16.msra.mxu0 %v952
      %974 = vmatprep.subr.bf16.mxu0 0
      %975 = vmatpush1.bf16.msra.mxu0 %v953
      %976 = vmatprep.subr.bf16.mxu0 0
      %977 = vmatpush1.bf16.msra.mxu0 %v954
      %978 = vmatprep.subr.bf16.mxu0 0
      %979 = vmatpush1.bf16.msra.mxu0 %v955
      %980 = vmatprep.subr.bf16.mxu0 0
      %981 = vmatpush1.bf16.msra.mxu0 0
      %982 = vmatprep.subr.bf16.mxu0 0
      %983 = vmatpush1.bf16.msra.mxu0 0
      %984 = vmatprep.subr.bf16.mxu0 0
      %985 = vmatpush1.bf16.msra.mxu0 0
      %986 = vmatprep.subr.bf16.mxu0 0
      %987 = vmatpush1.bf16.msra.mxu0 0
      %988 = vmatprep.subr.bf16.mxu0 0
      %989 = vmatpush1.bf16.msra.mxu0 0
      %990 = vmatprep.subr.bf16.mxu0 0
      %991 = vmatpush1.bf16.msra.mxu0 0
      %992 = vmatprep.subr.bf16.mxu0 0
      %993 = vmatpush1.bf16.msra.mxu0 0
      %994 = vmatprep.subr.bf16.mxu0 0
      %995 = vmatpush1.bf16.msra.mxu0 0
      %996 = vmatprep.subr.bf16.mxu0 0
      %997 = vmatpush1.bf16.msra.mxu0 0
      %998 = vmatprep.subr.bf16.mxu0 0
      %999 = vmatpush1.bf16.msra.mxu0 0
      %1000 = vmatprep.subr.bf16.mxu0 0
      %1001 = vmatpush1.bf16.msra.mxu0 0
      %1002 = vmatprep.subr.bf16.mxu0 0
      %1003 = vmatpush1.bf16.msra.mxu0 0
      %1004 = vmatprep.mubr.bf16.mxu0 0
      %1005 = vmatmul.mubr.bf16.gmra.mrb[0].mxu0 %v961
      %v1006 = vpop.f32.mrb[0].mxu0
      %v1007 = vadd.f32 0.0, %v1006
      %v1008 = vpop.f32.mrb[0].mxu0
      %v1009 = vpop.f32.mrb[0].mxu0
      %v1010 = vadd.f32 0.0, %v1009
      %v1011 = vpop.f32.mrb[0].mxu0
      %1012 = vmatprep.mubr.bf16.mxu0 0
      %1013 = vmatmul.mubr.bf16.gmra.mrb[0].mxu0 %v964
      %v1014 = vpop.f32.mrb[0].mxu0
      %v1015 = vadd.f32 0.0, %v1014
      %v1016 = vpop.f32.mrb[0].mxu0
      %v1017 = vpop.f32.mrb[0].mxu0
      %v1018 = vadd.f32 0.0, %v1017
      %v1019 = vpop.f32.mrb[0].mxu0
      %1020 = vmatprep.mubr.bf16.mxu0 0
      %1021 = vmatmul.mubr.bf16.gmra.mrb[0].mxu0 %v967
      %v1022 = vpop.f32.mrb[0].mxu0
      %v1023 = vadd.f32 0.0, %v1022
      %v1024 = vpop.f32.mrb[0].mxu0
      %v1025 = vpop.f32.mrb[0].mxu0
      %v1026 = vadd.f32 0.0, %v1025
      %v1027 = vpop.f32.mrb[0].mxu0
      %1028 = vmatprep.mubr.bf16.mxu0 0
      %1029 = vmatmul.mubr.bf16.gmra.mrb[0].mxu0 %v970
      %v1030 = vpop.f32.mrb[0].mxu0
      %v1031 = vadd.f32 0.0, %v1030
      %v1032 = vpop.f32.mrb[0].mxu0
      %v1033 = vpop.f32.mrb[0].mxu0
      %v1034 = vadd.f32 0.0, %v1033
      %v1035 = vpop.f32.mrb[0].mxu0
      %1036 = vdwg.mxu0
      %v1037 = vadd.f32 %v890, %v1007
      %v1038 = vadd.f32 %v891, %v1010
      %v1039 = vadd.f32 %v892, %v1015
      %v1040 = vadd.f32 %v893, %v1018
      %v1041 = vadd.f32 %v894, %v1023
      %v1042 = vadd.f32 %v895, %v1026
      %v1043 = vadd.f32 %v896, %v1031
      %v1044 = vadd.f32 %v897, %v1034
      %s1045 = scalar_lea.vmem %s315, 160
      %v1046 = vld [vmem:[%s1045] sm:$0xf]
      %v1047 = vld [vmem:[%s1045 + $0x4] sm:$0xf]
      %v1048 = vld [vmem:[%s1045 + $0x8] sm:$0xf]
      %v1049 = vld [vmem:[%s1045 + $0xc] sm:$0xf]
      %v1050 = vld [vmem:[%s1045 + $0x10] sm:$0xf]
      %v1051 = vld [vmem:[%s1045 + $0x14] sm:$0xf]
      %v1052 = vld [vmem:[%s1045 + $0x18] sm:$0xf]
      %v1053 = vld [vmem:[%s1045 + $0x1c] sm:$0xf]
      %s1054 = scalar_lea.vmem %s1, 160
      %v1055 = vld [vmem:[%s1054] sm:$0xf]
      %v1056 = vld [vmem:[%s1054 + $0x4] sm:$0xf]
      %v1057 = vld [vmem:[%s1054 + $0x8] sm:$0xf]
      %v1058 = vld [vmem:[%s1054 + $0xc] sm:$0xf]
      %v1059 = vld [vmem:[%s1054 + $0x10] sm:$0xf]
      %v1060 = vld [vmem:[%s1054 + $0x14] sm:$0xf]
      %v1061 = vld [vmem:[%s1054 + $0x18] sm:$0xf]
      %v1062 = vld [vmem:[%s1054 + $0x1c] sm:$0xf]
      %v1071 = vunpack.c.l.b16 %v1046
      %v1072 = vunpack.c.l.b16 %v1047
      %v1073 = vunpack.c.l.b16 %v1048
      %v1074 = vunpack.c.l.b16 %v1049
      %v1075 = vunpack.c.l.b16 %v1050
      %v1076 = vunpack.c.l.b16 %v1051
      %v1077 = vunpack.c.l.b16 %v1052
      %v1078 = vunpack.c.l.b16 %v1053
      %v1079 = vpack.c.b16 %v1072, %v1071
      %v1080 = vpack.c.b16 %v1074, %v1073
      %v1081 = vpack.c.b16 %v1076, %v1075
      %v1082 = vpack.c.b16 %v1078, %v1077
      %v1091 = vunpack.c.l.b16 %v1055
      %v1092 = vunpack.c.l.b16 %v1056
      %v1093 = vunpack.c.l.b16 %v1057
      %v1094 = vunpack.c.l.b16 %v1058
      %v1095 = vunpack.c.l.b16 %v1059
      %v1096 = vunpack.c.l.b16 %v1060
      %v1097 = vunpack.c.l.b16 %v1061
      %v1098 = vunpack.c.l.b16 %v1062
      %v1099 = vpack.c.b16 %v1092, %v1091
      %v1100 = vpack.c.b16 %v1094, %v1093
      %v1101 = vpack.c.b16 %v1096, %v1095
      %v1102 = vpack.c.b16 %v1098, %v1097
      %v1108 = vsel %vm405, %v1079, 0
      %v1111 = vsel %vm405, %v1080, 0
      %v1114 = vsel %vm405, %v1081, 0
      %v1117 = vsel %vm405, %v1082, 0
      %1119 = vmatprep.subr.bf16.mxu0 0
      %1120 = vmatpush1.bf16.msra.mxu0 %v1099
      %1121 = vmatprep.subr.bf16.mxu0 0
      %1122 = vmatpush1.bf16.msra.mxu0 %v1100
      %1123 = vmatprep.subr.bf16.mxu0 0
      %1124 = vmatpush1.bf16.msra.mxu0 %v1101
      %1125 = vmatprep.subr.bf16.mxu0 0
      %1126 = vmatpush1.bf16.msra.mxu0 %v1102
      %1127 = vmatprep.subr.bf16.mxu0 0
      %1128 = vmatpush1.bf16.msra.mxu0 0
      %1129 = vmatprep.subr.bf16.mxu0 0
      %1130 = vmatpush1.bf16.msra.mxu0 0
      %1131 = vmatprep.subr.bf16.mxu0 0
      %1132 = vmatpush1.bf16.msra.mxu0 0
      %1133 = vmatprep.subr.bf16.mxu0 0
      %1134 = vmatpush1.bf16.msra.mxu0 0
      %1135 = vmatprep.subr.bf16.mxu0 0
      %1136 = vmatpush1.bf16.msra.mxu0 0
      %1137 = vmatprep.subr.bf16.mxu0 0
      %1138 = vmatpush1.bf16.msra.mxu0 0
      %1139 = vmatprep.subr.bf16.mxu0 0
      %1140 = vmatpush1.bf16.msra.mxu0 0
      %1141 = vmatprep.subr.bf16.mxu0 0
      %1142 = vmatpush1.bf16.msra.mxu0 0
      %1143 = vmatprep.subr.bf16.mxu0 0
      %1144 = vmatpush1.bf16.msra.mxu0 0
      %1145 = vmatprep.subr.bf16.mxu0 0
      %1146 = vmatpush1.bf16.msra.mxu0 0
      %1147 = vmatprep.subr.bf16.mxu0 0
      %1148 = vmatpush1.bf16.msra.mxu0 0
      %1149 = vmatprep.subr.bf16.mxu0 0
      %1150 = vmatpush1.bf16.msra.mxu0 0
      %1151 = vmatprep.mubr.bf16.mxu0 0
      %1152 = vmatmul.mubr.bf16.gmra.mrb[0].mxu0 %v1108
      %v1153 = vpop.f32.mrb[0].mxu0
      %v1154 = vadd.f32 0.0, %v1153
      %v1155 = vpop.f32.mrb[0].mxu0
      %v1156 = vpop.f32.mrb[0].mxu0
      %v1157 = vadd.f32 0.0, %v1156
      %v1158 = vpop.f32.mrb[0].mxu0
      %1159 = vmatprep.mubr.bf16.mxu0 0
      %1160 = vmatmul.mubr.bf16.gmra.mrb[0].mxu0 %v1111
      %v1161 = vpop.f32.mrb[0].mxu0
      %v1162 = vadd.f32 0.0, %v1161
      %v1163 = vpop.f32.mrb[0].mxu0
      %v1164 = vpop.f32.mrb[0].mxu0
      %v1165 = vadd.f32 0.0, %v1164
      %v1166 = vpop.f32.mrb[0].mxu0
      %1167 = vmatprep.mubr.bf16.mxu0 0
      %1168 = vmatmul.mubr.bf16.gmra.mrb[0].mxu0 %v1114
      %v1169 = vpop.f32.mrb[0].mxu0
      %v1170 = vadd.f32 0.0, %v1169
      %v1171 = vpop.f32.mrb[0].mxu0
      %v1172 = vpop.f32.mrb[0].mxu0
      %v1173 = vadd.f32 0.0, %v1172
      %v1174 = vpop.f32.mrb[0].mxu0
      %1175 = vmatprep.mubr.bf16.mxu0 0
      %1176 = vmatmul.mubr.bf16.gmra.mrb[0].mxu0 %v1117
      %v1177 = vpop.f32.mrb[0].mxu0
      %v1178 = vadd.f32 0.0, %v1177
      %v1179 = vpop.f32.mrb[0].mxu0
      %v1180 = vpop.f32.mrb[0].mxu0
      %v1181 = vadd.f32 0.0, %v1180
      %v1182 = vpop.f32.mrb[0].mxu0
      %1183 = vdwg.mxu0
      %v1184 = vadd.f32 %v1037, %v1154
      %v1185 = vadd.f32 %v1038, %v1157
      %v1186 = vadd.f32 %v1039, %v1162
      %v1187 = vadd.f32 %v1040, %v1165
      %v1188 = vadd.f32 %v1041, %v1170
      %v1189 = vadd.f32 %v1042, %v1173
      %v1190 = vadd.f32 %v1043, %v1178
      %v1191 = vadd.f32 %v1044, %v1181
      %s1192 = scalar_lea.vmem %s315, 192
      %v1193 = vld [vmem:[%s1192] sm:$0xf]
      %v1194 = vld [vmem:[%s1192 + $0x4] sm:$0xf]
      %v1195 = vld [vmem:[%s1192 + $0x8] sm:$0xf]
      %v1196 = vld [vmem:[%s1192 + $0xc] sm:$0xf]
      %v1197 = vld [vmem:[%s1192 + $0x10] sm:$0xf]
      %v1198 = vld [vmem:[%s1192 + $0x14] sm:$0xf]
      %v1199 = vld [vmem:[%s1192 + $0x18] sm:$0xf]
      %v1200 = vld [vmem:[%s1192 + $0x1c] sm:$0xf]
      %s1201 = scalar_lea.vmem %s1, 192
      %v1202 = vld [vmem:[%s1201] sm:$0xf]
      %v1203 = vld [vmem:[%s1201 + $0x4] sm:$0xf]
      %v1204 = vld [vmem:[%s1201 + $0x8] sm:$0xf]
      %v1205 = vld [vmem:[%s1201 + $0xc] sm:$0xf]
      %v1206 = vld [vmem:[%s1201 + $0x10] sm:$0xf]
      %v1207 = vld [vmem:[%s1201 + $0x14] sm:$0xf]
      %v1208 = vld [vmem:[%s1201 + $0x18] sm:$0xf]
      %v1209 = vld [vmem:[%s1201 + $0x1c] sm:$0xf]
      %v1218 = vunpack.c.l.b16 %v1193
      %v1219 = vunpack.c.l.b16 %v1194
      %v1220 = vunpack.c.l.b16 %v1195
      %v1221 = vunpack.c.l.b16 %v1196
      %v1222 = vunpack.c.l.b16 %v1197
      %v1223 = vunpack.c.l.b16 %v1198
      %v1224 = vunpack.c.l.b16 %v1199
      %v1225 = vunpack.c.l.b16 %v1200
      %v1226 = vpack.c.b16 %v1219, %v1218
      %v1227 = vpack.c.b16 %v1221, %v1220
      %v1228 = vpack.c.b16 %v1223, %v1222
      %v1229 = vpack.c.b16 %v1225, %v1224
      %v1238 = vunpack.c.l.b16 %v1202
      %v1239 = vunpack.c.l.b16 %v1203
      %v1240 = vunpack.c.l.b16 %v1204
      %v1241 = vunpack.c.l.b16 %v1205
      %v1242 = vunpack.c.l.b16 %v1206
      %v1243 = vunpack.c.l.b16 %v1207
      %v1244 = vunpack.c.l.b16 %v1208
      %v1245 = vunpack.c.l.b16 %v1209
      %v1246 = vpack.c.b16 %v1239, %v1238
      %v1247 = vpack.c.b16 %v1241, %v1240
      %v1248 = vpack.c.b16 %v1243, %v1242
      %v1249 = vpack.c.b16 %v1245, %v1244
      %v1255 = vsel %vm405, %v1226, 0
      %v1258 = vsel %vm405, %v1227, 0
      %v1261 = vsel %vm405, %v1228, 0
      %v1264 = vsel %vm405, %v1229, 0
      %1266 = vmatprep.subr.bf16.mxu0 0
      %1267 = vmatpush1.bf16.msra.mxu0 %v1246
      %1268 = vmatprep.subr.bf16.mxu0 0
      %1269 = vmatpush1.bf16.msra.mxu0 %v1247
      %1270 = vmatprep.subr.bf16.mxu0 0
      %1271 = vmatpush1.bf16.msra.mxu0 %v1248
      %1272 = vmatprep.subr.bf16.mxu0 0
      %1273 = vmatpush1.bf16.msra.mxu0 %v1249
      %1274 = vmatprep.subr.bf16.mxu0 0
      %1275 = vmatpush1.bf16.msra.mxu0 0
      %1276 = vmatprep.subr.bf16.mxu0 0
      %1277 = vmatpush1.bf16.msra.mxu0 0
      %1278 = vmatprep.subr.bf16.mxu0 0
      %1279 = vmatpush1.bf16.msra.mxu0 0
      %1280 = vmatprep.subr.bf16.mxu0 0
      %1281 = vmatpush1.bf16.msra.mxu0 0
      %1282 = vmatprep.subr.bf16.mxu0 0
      %1283 = vmatpush1.bf16.msra.mxu0 0
      %1284 = vmatprep.subr.bf16.mxu0 0
      %1285 = vmatpush1.bf16.msra.mxu0 0
      %1286 = vmatprep.subr.bf16.mxu0 0
      %1287 = vmatpush1.bf16.msra.mxu0 0
      %1288 = vmatprep.subr.bf16.mxu0 0
      %1289 = vmatpush1.bf16.msra.mxu0 0
      %1290 = vmatprep.subr.bf16.mxu0 0
      %1291 = vmatpush1.bf16.msra.mxu0 0
      %1292 = vmatprep.subr.bf16.mxu0 0
      %1293 = vmatpush1.bf16.msra.mxu0 0
      %1294 = vmatprep.subr.bf16.mxu0 0
      %1295 = vmatpush1.bf16.msra.mxu0 0
      %1296 = vmatprep.subr.bf16.mxu0 0
      %1297 = vmatpush1.bf16.msra.mxu0 0
      %1298 = vmatprep.mubr.bf16.mxu0 0
      %1299 = vmatmul.mubr.bf16.gmra.mrb[0].mxu0 %v1255
      %v1300 = vpop.f32.mrb[0].mxu0
      %v1301 = vadd.f32 0.0, %v1300
      %v1302 = vpop.f32.mrb[0].mxu0
      %v1303 = vpop.f32.mrb[0].mxu0
      %v1304 = vadd.f32 0.0, %v1303
      %v1305 = vpop.f32.mrb[0].mxu0
      %1306 = vmatprep.mubr.bf16.mxu0 0
      %1307 = vmatmul.mubr.bf16.gmra.mrb[0].mxu0 %v1258
      %v1308 = vpop.f32.mrb[0].mxu0
      %v1309 = vadd.f32 0.0, %v1308
      %v1310 = vpop.f32.mrb[0].mxu0
      %v1311 = vpop.f32.mrb[0].mxu0
      %v1312 = vadd.f32 0.0, %v1311
      %v1313 = vpop.f32.mrb[0].mxu0
      %1314 = vmatprep.mubr.bf16.mxu0 0
      %1315 = vmatmul.mubr.bf16.gmra.mrb[0].mxu0 %v1261
      %v1316 = vpop.f32.mrb[0].mxu0
      %v1317 = vadd.f32 0.0, %v1316
      %v1318 = vpop.f32.mrb[0].mxu0
      %v1319 = vpop.f32.mrb[0].mxu0
      %v1320 = vadd.f32 0.0, %v1319
      %v1321 = vpop.f32.mrb[0].mxu0
      %1322 = vmatprep.mubr.bf16.mxu0 0
      %1323 = vmatmul.mubr.bf16.gmra.mrb[0].mxu0 %v1264
      %v1324 = vpop.f32.mrb[0].mxu0
      %v1325 = vadd.f32 0.0, %v1324
      %v1326 = vpop.f32.mrb[0].mxu0
      %v1327 = vpop.f32.mrb[0].mxu0
      %v1328 = vadd.f32 0.0, %v1327
      %v1329 = vpop.f32.mrb[0].mxu0
      %1330 = vdwg.mxu0
      %v1331 = vadd.f32 %v1184, %v1301
      %v1332 = vadd.f32 %v1185, %v1304
      %v1333 = vadd.f32 %v1186, %v1309
      %v1334 = vadd.f32 %v1187, %v1312
      %v1335 = vadd.f32 %v1188, %v1317
      %v1336 = vadd.f32 %v1189, %v1320
      %v1337 = vadd.f32 %v1190, %v1325
      %v1338 = vadd.f32 %v1191, %v1328
      %s1339 = scalar_lea.vmem %s315, 224
      %v1340 = vld [vmem:[%s1339] sm:$0xf]
      %v1341 = vld [vmem:[%s1339 + $0x4] sm:$0xf]
      %v1342 = vld [vmem:[%s1339 + $0x8] sm:$0xf]
      %v1343 = vld [vmem:[%s1339 + $0xc] sm:$0xf]
      %v1344 = vld [vmem:[%s1339 + $0x10] sm:$0xf]
      %v1345 = vld [vmem:[%s1339 + $0x14] sm:$0xf]
      %v1346 = vld [vmem:[%s1339 + $0x18] sm:$0xf]
      %v1347 = vld [vmem:[%s1339 + $0x1c] sm:$0xf]
      %s1348 = scalar_lea.vmem %s1, 224
      %v1349 = vld [vmem:[%s1348] sm:$0xf]
      %v1350 = vld [vmem:[%s1348 + $0x4] sm:$0xf]
      %v1351 = vld [vmem:[%s1348 + $0x8] sm:$0xf]
      %v1352 = vld [vmem:[%s1348 + $0xc] sm:$0xf]
      %v1353 = vld [vmem:[%s1348 + $0x10] sm:$0xf]
      %v1354 = vld [vmem:[%s1348 + $0x14] sm:$0xf]
      %v1355 = vld [vmem:[%s1348 + $0x18] sm:$0xf]
      %v1356 = vld [vmem:[%s1348 + $0x1c] sm:$0xf]
      %v1365 = vunpack.c.l.b16 %v1340
      %v1366 = vunpack.c.l.b16 %v1341
      %v1367 = vunpack.c.l.b16 %v1342
      %v1368 = vunpack.c.l.b16 %v1343
      %v1369 = vunpack.c.l.b16 %v1344
      %v1370 = vunpack.c.l.b16 %v1345
      %v1371 = vunpack.c.l.b16 %v1346
      %v1372 = vunpack.c.l.b16 %v1347
      %v1373 = vpack.c.b16 %v1366, %v1365
      %v1374 = vpack.c.b16 %v1368, %v1367
      %v1375 = vpack.c.b16 %v1370, %v1369
      %v1376 = vpack.c.b16 %v1372, %v1371
      %v1385 = vunpack.c.l.b16 %v1349
      %v1386 = vunpack.c.l.b16 %v1350
      %v1387 = vunpack.c.l.b16 %v1351
      %v1388 = vunpack.c.l.b16 %v1352
      %v1389 = vunpack.c.l.b16 %v1353
      %v1390 = vunpack.c.l.b16 %v1354
      %v1391 = vunpack.c.l.b16 %v1355
      %v1392 = vunpack.c.l.b16 %v1356
      %v1393 = vpack.c.b16 %v1386, %v1385
      %v1394 = vpack.c.b16 %v1388, %v1387
      %v1395 = vpack.c.b16 %v1390, %v1389
      %v1396 = vpack.c.b16 %v1392, %v1391
      %v1402 = vsel %vm405, %v1373, 0
      %v1405 = vsel %vm405, %v1374, 0
      %v1408 = vsel %vm405, %v1375, 0
      %v1411 = vsel %vm405, %v1376, 0
      %1413 = vmatprep.subr.bf16.mxu0 0
      %1414 = vmatpush1.bf16.msra.mxu0 %v1393
      %1415 = vmatprep.subr.bf16.mxu0 0
      %1416 = vmatpush1.bf16.msra.mxu0 %v1394
      %1417 = vmatprep.subr.bf16.mxu0 0
      %1418 = vmatpush1.bf16.msra.mxu0 %v1395
      %1419 = vmatprep.subr.bf16.mxu0 0
      %1420 = vmatpush1.bf16.msra.mxu0 %v1396
      %1421 = vmatprep.subr.bf16.mxu0 0
      %1422 = vmatpush1.bf16.msra.mxu0 0
      %1423 = vmatprep.subr.bf16.mxu0 0
      %1424 = vmatpush1.bf16.msra.mxu0 0
      %1425 = vmatprep.subr.bf16.mxu0 0
      %1426 = vmatpush1.bf16.msra.mxu0 0
      %1427 = vmatprep.subr.bf16.mxu0 0
      %1428 = vmatpush1.bf16.msra.mxu0 0
      %1429 = vmatprep.subr.bf16.mxu0 0
      %1430 = vmatpush1.bf16.msra.mxu0 0
      %1431 = vmatprep.subr.bf16.mxu0 0
      %1432 = vmatpush1.bf16.msra.mxu0 0
      %1433 = vmatprep.subr.bf16.mxu0 0
      %1434 = vmatpush1.bf16.msra.mxu0 0
      %1435 = vmatprep.subr.bf16.mxu0 0
      %1436 = vmatpush1.bf16.msra.mxu0 0
      %1437 = vmatprep.subr.bf16.mxu0 0
      %1438 = vmatpush1.bf16.msra.mxu0 0
      %1439 = vmatprep.subr.bf16.mxu0 0
      %1440 = vmatpush1.bf16.msra.mxu0 0
      %1441 = vmatprep.subr.bf16.mxu0 0
      %1442 = vmatpush1.bf16.msra.mxu0 0
      %1443 = vmatprep.subr.bf16.mxu0 0
      %1444 = vmatpush1.bf16.msra.mxu0 0
      %1445 = vmatprep.mubr.bf16.mxu0 0
      %1446 = vmatmul.mubr.bf16.gmra.mrb[0].mxu0 %v1402
      %v1447 = vpop.f32.mrb[0].mxu0
      %v1448 = vadd.f32 0.0, %v1447
      %v1449 = vpop.f32.mrb[0].mxu0
      %v1450 = vpop.f32.mrb[0].mxu0
      %v1451 = vadd.f32 0.0, %v1450
      %v1452 = vpop.f32.mrb[0].mxu0
      %1453 = vmatprep.mubr.bf16.mxu0 0
      %1454 = vmatmul.mubr.bf16.gmra.mrb[0].mxu0 %v1405
      %v1455 = vpop.f32.mrb[0].mxu0
      %v1456 = vadd.f32 0.0, %v1455
      %v1457 = vpop.f32.mrb[0].mxu0
      %v1458 = vpop.f32.mrb[0].mxu0
      %v1459 = vadd.f32 0.0, %v1458
      %v1460 = vpop.f32.mrb[0].mxu0
      %1461 = vmatprep.mubr.bf16.mxu0 0
      %1462 = vmatmul.mubr.bf16.gmra.mrb[0].mxu0 %v1408
      %v1463 = vpop.f32.mrb[0].mxu0
      %v1464 = vadd.f32 0.0, %v1463
      %v1465 = vpop.f32.mrb[0].mxu0
      %v1466 = vpop.f32.mrb[0].mxu0
      %v1467 = vadd.f32 0.0, %v1466
      %v1468 = vpop.f32.mrb[0].mxu0
      %1469 = vmatprep.mubr.bf16.mxu0 0
      %1470 = vmatmul.mubr.bf16.gmra.mrb[0].mxu0 %v1411
      %v1471 = vpop.f32.mrb[0].mxu0
      %v1472 = vadd.f32 0.0, %v1471
      %v1473 = vpop.f32.mrb[0].mxu0
      %v1474 = vpop.f32.mrb[0].mxu0
      %v1475 = vadd.f32 0.0, %v1474
      %v1476 = vpop.f32.mrb[0].mxu0
      %1477 = vdwg.mxu0
      %v1478 = vadd.f32 %v1331, %v1448
      %v1479 = vadd.f32 %v1332, %v1451
      %v1480 = vadd.f32 %v1333, %v1456
      %v1481 = vadd.f32 %v1334, %v1459
      %v1482 = vadd.f32 %v1335, %v1464
      %v1483 = vadd.f32 %v1336, %v1467
      %v1484 = vadd.f32 %v1337, %v1472
      %v1485 = vadd.f32 %v1338, %v1475
      %s1486 = scalar_lea.vmem %s315, 256
      %v1487 = vld [vmem:[%s1486] sm:$0xf]
      %v1488 = vld [vmem:[%s1486 + $0x4] sm:$0xf]
      %v1489 = vld [vmem:[%s1486 + $0x8] sm:$0xf]
      %v1490 = vld [vmem:[%s1486 + $0xc] sm:$0xf]
      %v1491 = vld [vmem:[%s1486 + $0x10] sm:$0xf]
      %v1492 = vld [vmem:[%s1486 + $0x14] sm:$0xf]
      %v1493 = vld [vmem:[%s1486 + $0x18] sm:$0xf]
      %v1494 = vld [vmem:[%s1486 + $0x1c] sm:$0xf]
      %s1495 = scalar_lea.vmem %s1, 256
      %v1496 = vld [vmem:[%s1495] sm:$0xf]
      %v1497 = vld [vmem:[%s1495 + $0x4] sm:$0xf]
      %v1498 = vld [vmem:[%s1495 + $0x8] sm:$0xf]
      %v1499 = vld [vmem:[%s1495 + $0xc] sm:$0xf]
      %v1500 = vld [vmem:[%s1495 + $0x10] sm:$0xf]
      %v1501 = vld [vmem:[%s1495 + $0x14] sm:$0xf]
      %v1502 = vld [vmem:[%s1495 + $0x18] sm:$0xf]
      %v1503 = vld [vmem:[%s1495 + $0x1c] sm:$0xf]
      %v1512 = vunpack.c.l.b16 %v1487
      %v1513 = vunpack.c.l.b16 %v1488
      %v1514 = vunpack.c.l.b16 %v1489
      %v1515 = vunpack.c.l.b16 %v1490
      %v1516 = vunpack.c.l.b16 %v1491
      %v1517 = vunpack.c.l.b16 %v1492
      %v1518 = vunpack.c.l.b16 %v1493
      %v1519 = vunpack.c.l.b16 %v1494
      %v1520 = vpack.c.b16 %v1513, %v1512
      %v1521 = vpack.c.b16 %v1515, %v1514
      %v1522 = vpack.c.b16 %v1517, %v1516
      %v1523 = vpack.c.b16 %v1519, %v1518
      %v1532 = vunpack.c.l.b16 %v1496
      %v1533 = vunpack.c.l.b16 %v1497
      %v1534 = vunpack.c.l.b16 %v1498
      %v1535 = vunpack.c.l.b16 %v1499
      %v1536 = vunpack.c.l.b16 %v1500
      %v1537 = vunpack.c.l.b16 %v1501
      %v1538 = vunpack.c.l.b16 %v1502
      %v1539 = vunpack.c.l.b16 %v1503
      %v1540 = vpack.c.b16 %v1533, %v1532
      %v1541 = vpack.c.b16 %v1535, %v1534
      %v1542 = vpack.c.b16 %v1537, %v1536
      %v1543 = vpack.c.b16 %v1539, %v1538
      %v1549 = vsel %vm405, %v1520, 0
      %v1552 = vsel %vm405, %v1521, 0
      %v1555 = vsel %vm405, %v1522, 0
      %v1558 = vsel %vm405, %v1523, 0
      %1560 = vmatprep.subr.bf16.mxu0 0
      %1561 = vmatpush1.bf16.msra.mxu0 %v1540
      %1562 = vmatprep.subr.bf16.mxu0 0
      %1563 = vmatpush1.bf16.msra.mxu0 %v1541
      %1564 = vmatprep.subr.bf16.mxu0 0
      %1565 = vmatpush1.bf16.msra.mxu0 %v1542
      %1566 = vmatprep.subr.bf16.mxu0 0
      %1567 = vmatpush1.bf16.msra.mxu0 %v1543
      %1568 = vmatprep.subr.bf16.mxu0 0
      %1569 = vmatpush1.bf16.msra.mxu0 0
      %1570 = vmatprep.subr.bf16.mxu0 0
      %1571 = vmatpush1.bf16.msra.mxu0 0
      %1572 = vmatprep.subr.bf16.mxu0 0
      %1573 = vmatpush1.bf16.msra.mxu0 0
      %1574 = vmatprep.subr.bf16.mxu0 0
      %1575 = vmatpush1.bf16.msra.mxu0 0
      %1576 = vmatprep.subr.bf16.mxu0 0
      %1577 = vmatpush1.bf16.msra.mxu0 0
      %1578 = vmatprep.subr.bf16.mxu0 0
      %1579 = vmatpush1.bf16.msra.mxu0 0
      %1580 = vmatprep.subr.bf16.mxu0 0
      %1581 = vmatpush1.bf16.msra.mxu0 0
      %1582 = vmatprep.subr.bf16.mxu0 0
      %1583 = vmatpush1.bf16.msra.mxu0 0
      %1584 = vmatprep.subr.bf16.mxu0 0
      %1585 = vmatpush1.bf16.msra.mxu0 0
      %1586 = vmatprep.subr.bf16.mxu0 0
      %1587 = vmatpush1.bf16.msra.mxu0 0
      %1588 = vmatprep.subr.bf16.mxu0 0
      %1589 = vmatpush1.bf16.msra.mxu0 0
      %1590 = vmatprep.subr.bf16.mxu0 0
      %1591 = vmatpush1.bf16.msra.mxu0 0
      %1592 = vmatprep.mubr.bf16.mxu0 0
      %1593 = vmatmul.mubr.bf16.gmra.mrb[0].mxu0 %v1549
      %v1594 = vpop.f32.mrb[0].mxu0
      %v1595 = vadd.f32 0.0, %v1594
      %v1596 = vpop.f32.mrb[0].mxu0
      %v1597 = vpop.f32.mrb[0].mxu0
      %v1598 = vadd.f32 0.0, %v1597
      %v1599 = vpop.f32.mrb[0].mxu0
      %1600 = vmatprep.mubr.bf16.mxu0 0
      %1601 = vmatmul.mubr.bf16.gmra.mrb[0].mxu0 %v1552
      %v1602 = vpop.f32.mrb[0].mxu0
      %v1603 = vadd.f32 0.0, %v1602
      %v1604 = vpop.f32.mrb[0].mxu0
      %v1605 = vpop.f32.mrb[0].mxu0
      %v1606 = vadd.f32 0.0, %v1605
      %v1607 = vpop.f32.mrb[0].mxu0
      %1608 = vmatprep.mubr.bf16.mxu0 0
      %1609 = vmatmul.mubr.bf16.gmra.mrb[0].mxu0 %v1555
      %v1610 = vpop.f32.mrb[0].mxu0
      %v1611 = vadd.f32 0.0, %v1610
      %v1612 = vpop.f32.mrb[0].mxu0
      %v1613 = vpop.f32.mrb[0].mxu0
      %v1614 = vadd.f32 0.0, %v1613
      %v1615 = vpop.f32.mrb[0].mxu0
      %1616 = vmatprep.mubr.bf16.mxu0 0
      %1617 = vmatmul.mubr.bf16.gmra.mrb[0].mxu0 %v1558
      %v1618 = vpop.f32.mrb[0].mxu0
      %v1619 = vadd.f32 0.0, %v1618
      %v1620 = vpop.f32.mrb[0].mxu0
      %v1621 = vpop.f32.mrb[0].mxu0
      %v1622 = vadd.f32 0.0, %v1621
      %v1623 = vpop.f32.mrb[0].mxu0
      %1624 = vdwg.mxu0
      %v1625 = vadd.f32 %v1478, %v1595
      %v1626 = vadd.f32 %v1479, %v1598
      %v1627 = vadd.f32 %v1480, %v1603
      %v1628 = vadd.f32 %v1481, %v1606
      %v1629 = vadd.f32 %v1482, %v1611
      %v1630 = vadd.f32 %v1483, %v1614
      %v1631 = vadd.f32 %v1484, %v1619
      %v1632 = vadd.f32 %v1485, %v1622
      %v1633 = vld [vmem:[%s2] sm:$0x1]
      %v1635 = vlaneseq
      %v1636 = vshrl.u32 %v1635, 7
      %v1637 = vsub.s32 0, %v1636
      %v1638 = vrot.slane %v1633, %v1637
      %v1640 = vadd.f32 %v1625, %v1638
      %v1641 = vadd.f32 %v1626, %v1638
      %v1642 = vadd.f32 %v1627, %v1638
      %v1643 = vadd.f32 %v1628, %v1638
      %v1644 = vadd.f32 %v1629, %v1638
      %v1645 = vadd.f32 %v1630, %v1638
      %v1646 = vadd.f32 %v1631, %v1638
      %v1647 = vadd.f32 %v1632, %v1638
      %v1648 = vsel %vm405, %v1640, 0.0
      %v1649 = vsel %vm405, %v1641, 0.0
      %v1650 = vadd.f32 %v1648, %v1649
      %v1651 = vsel %vm405, %v1642, 0.0
      %v1652 = vadd.f32 %v1650, %v1651
      %v1653 = vsel %vm405, %v1643, 0.0
      %v1654 = vadd.f32 %v1652, %v1653
      %v1655 = vsel %vm405, %v1644, 0.0
      %v1656 = vadd.f32 %v1654, %v1655
      %v1657 = vsel %vm405, %v1645, 0.0
      %v1658 = vadd.f32 %v1656, %v1657
      %v1659 = vsel %vm405, %v1646, 0.0
      %v1660 = vadd.f32 %v1658, %v1659
      %v1661 = vsel %vm405, %v1647, 0.0
      %v1662 = vadd.f32 %v1660, %v1661
      %v1663 = vrot.slane %v1662, 4
      %v1664 = vadd.f32 %v1662, %v1663
      %v1665 = vrot.slane %v1664, 2
      %v1666 = vadd.f32 %v1664, %v1665
      %v1667 = vrot.slane %v1666, 1
      %v1668 = vadd.f32 %v1666, %v1667
      %v1669 = vrcp.pop 64.0
      %v1670 = vmul.f32 %v1668, %v1669
      %v1671 = vld [vmem:[%s3] sm:$0xff]
      %v1672 = vld [vmem:[%s3 + $0x8] sm:$0xff]
      %v1673 = vld [vmem:[%s3 + $0x10] sm:$0xff]
      %v1674 = vld [vmem:[%s3 + $0x18] sm:$0xff]
      %v1675 = vld [vmem:[%s3 + $0x20] sm:$0xff]
      %v1676 = vld [vmem:[%s3 + $0x28] sm:$0xff]
      %v1677 = vld [vmem:[%s3 + $0x30] sm:$0xff]
      %v1678 = vld [vmem:[%s3 + $0x38] sm:$0xff]
      %v1680 = vsel %vm405, %v1670, 0
      %1682 = vmatprep.subr.mxu0 0.0
      %1683 = vmatpush1.msra.mxu0 %v1671
      %1684 = vmatprep.subr.mxu0 0.0
      %1685 = vmatpush1.msra.mxu0 %v1672
      %1686 = vmatprep.subr.mxu0 0.0
      %1687 = vmatpush1.msra.mxu0 %v1673
      %1688 = vmatprep.subr.mxu0 0.0
      %1689 = vmatpush1.msra.mxu0 %v1674
      %1690 = vmatprep.subr.mxu0 0.0
      %1691 = vmatpush1.msra.mxu0 %v1675
      %1692 = vmatprep.subr.mxu0 0.0
      %1693 = vmatpush1.msra.mxu0 %v1676
      %1694 = vmatprep.subr.mxu0 0.0
      %1695 = vmatpush1.msra.mxu0 %v1677
      %1696 = vmatprep.subr.mxu0 0.0
      %1697 = vmatpush1.msra.mxu0 %v1678
      %1698 = vmatprep.subr.mxu0 0.0
      %1699 = vmatpush1.msra.mxu0 0.0
      %1700 = vmatprep.subr.mxu0 0.0
      %1701 = vmatpush1.msra.mxu0 0.0
      %1702 = vmatprep.subr.mxu0 0.0
      %1703 = vmatpush1.msra.mxu0 0.0
      %1704 = vmatprep.subr.mxu0 0.0
      %1705 = vmatpush1.msra.mxu0 0.0
      %1706 = vmatprep.subr.mxu0 0.0
      %1707 = vmatpush1.msra.mxu0 0.0
      %1708 = vmatprep.subr.mxu0 0.0
      %1709 = vmatpush1.msra.mxu0 0.0
      %1710 = vmatprep.subr.mxu0 0.0
      %1711 = vmatpush1.msra.mxu0 0.0
      %1712 = vmatprep.subr.mxu0 0.0
      %1713 = vmatpush1.msra.mxu0 0.0
      %1714 = vmatprep.subr.mxu0 0.0
      %1715 = vmatpush1.msra.mxu0 0.0
      %1716 = vmatprep.subr.mxu0 0.0
      %1717 = vmatpush1.msra.mxu0 0.0
      %1718 = vmatprep.subr.mxu0 0.0
      %1719 = vmatpush1.msra.mxu0 0.0
      %1720 = vmatprep.subr.mxu0 0.0
      %1721 = vmatpush1.msra.mxu0 0.0
      %1722 = vmatprep.subr.mxu0 0.0
      %1723 = vmatpush1.msra.mxu0 0.0
      %1724 = vmatprep.subr.mxu0 0.0
      %1725 = vmatpush1.msra.mxu0 0.0
      %1726 = vmatprep.subr.mxu0 0.0
      %1727 = vmatpush1.msra.mxu0 0.0
      %1728 = vmatprep.subr.mxu0 0.0
      %1729 = vmatpush1.msra.mxu0 0.0
      %1730 = vmatprep.subr.mxu0 0.0
      %1731 = vmatpush1.msra.mxu0 0.0
      %1732 = vmatprep.subr.mxu0 0.0
      %1733 = vmatpush1.msra.mxu0 0.0
      %1734 = vmatprep.subr.mxu0 0.0
      %1735 = vmatpush1.msra.mxu0 0.0
      %1736 = vmatprep.subr.mxu0 0.0
      %1737 = vmatpush1.msra.mxu0 0.0
      %1738 = vmatprep.subr.mxu0 0.0
      %1739 = vmatpush1.msra.mxu0 0.0
      %1740 = vmatprep.subr.mxu0 0.0
      %1741 = vmatpush1.msra.mxu0 0.0
      %1742 = vmatprep.subr.mxu0 0.0
      %1743 = vmatpush1.msra.mxu0 0.0
      %1744 = vmatprep.subr.mxu0 0.0
      %1745 = vmatpush1.msra.mxu0 0.0
      %1746 = vmatprep.mubr.f32.mxu0 0.0
      %1747 = vmatmul.mubr.f32.gmra.mrb[0].mxu0 %v1680
      %v1748 = vpop.f32.mrb[0].mxu0
      %v1749 = vadd.f32 0.0, %v1748
      %v1750 = vpop.f32.mrb[0].mxu0
      %1751 = vdwg.mxu0
      %v1752 = vmax.f32 %v1749, 0.0
      %v1753 = vld [vmem:[%s4] sm:$0xf]
      %vm1754 = vcmask 31744
      %v1756 = vsel %vm1754, %v1752, 0
      %vm1758 = vcmask 1043456
      %v1760 = vsel %vm1758, %v1753, 0
      %1762 = vmatprep.subr.mxu0 0.0
      %1763 = vmatpush1.msra.mxu0 %v1760
      %1764 = vmatprep.subr.mxu0 0.0
      %1765 = vmatpush1.msra.mxu0 0.0
      %1766 = vmatprep.subr.mxu0 0.0
      %1767 = vmatpush1.msra.mxu0 0.0
      %1768 = vmatprep.subr.mxu0 0.0
      %1769 = vmatpush1.msra.mxu0 0.0
      %1770 = vmatprep.subr.mxu0 0.0
      %1771 = vmatpush1.msra.mxu0 0.0
      %1772 = vmatprep.subr.mxu0 0.0
      %1773 = vmatpush1.msra.mxu0 0.0
      %1774 = vmatprep.subr.mxu0 0.0
      %1775 = vmatpush1.msra.mxu0 0.0
      %1776 = vmatprep.subr.mxu0 0.0
      %1777 = vmatpush1.msra.mxu0 0.0
      %1778 = vmatprep.subr.mxu0 0.0
      %1779 = vmatpush1.msra.mxu0 0.0
      %1780 = vmatprep.subr.mxu0 0.0
      %1781 = vmatpush1.msra.mxu0 0.0
      %1782 = vmatprep.subr.mxu0 0.0
      %1783 = vmatpush1.msra.mxu0 0.0
      %1784 = vmatprep.subr.mxu0 0.0
      %1785 = vmatpush1.msra.mxu0 0.0
      %1786 = vmatprep.subr.mxu0 0.0
      %1787 = vmatpush1.msra.mxu0 0.0
      %1788 = vmatprep.subr.mxu0 0.0
      %1789 = vmatpush1.msra.mxu0 0.0
      %1790 = vmatprep.subr.mxu0 0.0
      %1791 = vmatpush1.msra.mxu0 0.0
      %1792 = vmatprep.subr.mxu0 0.0
      %1793 = vmatpush1.msra.mxu0 0.0
      %1794 = vmatprep.subr.mxu0 0.0
      %1795 = vmatpush1.msra.mxu0 0.0
      %1796 = vmatprep.subr.mxu0 0.0
      %1797 = vmatpush1.msra.mxu0 0.0
      %1798 = vmatprep.subr.mxu0 0.0
      %1799 = vmatpush1.msra.mxu0 0.0
      %1800 = vmatprep.subr.mxu0 0.0
      %1801 = vmatpush1.msra.mxu0 0.0
      %1802 = vmatprep.subr.mxu0 0.0
      %1803 = vmatpush1.msra.mxu0 0.0
      %1804 = vmatprep.subr.mxu0 0.0
      %1805 = vmatpush1.msra.mxu0 0.0
      %1806 = vmatprep.subr.mxu0 0.0
      %1807 = vmatpush1.msra.mxu0 0.0
      %1808 = vmatprep.subr.mxu0 0.0
      %1809 = vmatpush1.msra.mxu0 0.0
      %1810 = vmatprep.subr.mxu0 0.0
      %1811 = vmatpush1.msra.mxu0 0.0
      %1812 = vmatprep.subr.mxu0 0.0
      %1813 = vmatpush1.msra.mxu0 0.0
      %1814 = vmatprep.subr.mxu0 0.0
      %1815 = vmatpush1.msra.mxu0 0.0
      %1816 = vmatprep.subr.mxu0 0.0
      %1817 = vmatpush1.msra.mxu0 0.0
      %1818 = vmatprep.subr.mxu0 0.0
      %1819 = vmatpush1.msra.mxu0 0.0
      %1820 = vmatprep.subr.mxu0 0.0
      %1821 = vmatpush1.msra.mxu0 0.0
      %1822 = vmatprep.subr.mxu0 0.0
      %1823 = vmatpush1.msra.mxu0 0.0
      %1824 = vmatprep.subr.mxu0 0.0
      %1825 = vmatpush1.msra.mxu0 0.0
      %1826 = vmatprep.mubr.f32.mxu0 0.0
      %1827 = vmatmul.mubr.f32.gmra.mrb[0].mxu0 %v1756
      %v1828 = vpop.f32.mrb[0].mxu0
      %v1829 = vadd.f32 0.0, %v1828
      %v1830 = vpop.f32.mrb[0].mxu0
      %1831 = vdwg.mxu0
      %v1832 = vsub.f32 0.0, %v1829
      %v1833 = vmul.f32 %v1832, 1.442695
      %v1834 = vpow.pop %v1833
      %v1835 = vadd.f32 %v1834, 1.0
      %v1836 = vrcp.pop %v1835
      %v1837 = vmul.f32 1.0, %v1836
      %v1838 = vld [vmem:[%s320] sm:$0xf]
      %v1839 = vld [vmem:[%s320 + $0x4] sm:$0xf]
      %v1840 = vld [vmem:[%s320 + $0x8] sm:$0xf]
      %v1841 = vld [vmem:[%s320 + $0xc] sm:$0xf]
      %v1842 = vld [vmem:[%s320 + $0x10] sm:$0xf]
      %v1843 = vld [vmem:[%s320 + $0x14] sm:$0xf]
      %v1844 = vld [vmem:[%s320 + $0x18] sm:$0xf]
      %v1845 = vld [vmem:[%s320 + $0x1c] sm:$0xf]
      %v1846 = vld [vmem:[%s6] sm:$0xf]
      %v1847 = vld [vmem:[%s6 + $0x4] sm:$0xf]
      %v1848 = vld [vmem:[%s6 + $0x8] sm:$0xf]
      %v1849 = vld [vmem:[%s6 + $0xc] sm:$0xf]
      %v1850 = vld [vmem:[%s7] sm:$0x1]
      %v1852 = vlaneseq
      %v1853 = vshrl.u32 %v1852, 7
      %v1854 = vsub.s32 0, %v1853
      %v1855 = vrot.slane %v1850, %v1854
      %v1865 = vunpack.c.l.b16 %v1838
      %v1866 = vunpack.c.l.b16 %v1839
      %v1867 = vunpack.c.l.b16 %v1840
      %v1868 = vunpack.c.l.b16 %v1841
      %v1869 = vunpack.c.l.b16 %v1842
      %v1870 = vunpack.c.l.b16 %v1843
      %v1871 = vunpack.c.l.b16 %v1844
      %v1872 = vunpack.c.l.b16 %v1845
      %v1873 = vpack.c.b16 %v1866, %v1865
      %v1874 = vpack.c.b16 %v1868, %v1867
      %v1875 = vpack.c.b16 %v1870, %v1869
      %v1876 = vpack.c.b16 %v1872, %v1871
      %v1881 = vunpack.c.l.b16 %v1846
      %v1882 = vunpack.c.l.b16 %v1847
      %v1883 = vunpack.c.l.b16 %v1848
      %v1884 = vunpack.c.l.b16 %v1849
      %v1885 = vpack.c.b16 %v1882, %v1881
      %v1886 = vpack.c.b16 %v1884, %v1883
      %vm1889 = vcmask 261120
      %v1891 = vsel %vm1889, %v1873, 0
      %v1894 = vsel %vm1889, %v1874, 0
      %v1897 = vsel %vm1889, %v1875, 0
      %v1900 = vsel %vm1889, %v1876, 0
      %1902 = vmatprep.subr.bf16.mxu0 0
      %1903 = vmatpush1.bf16.msra.mxu0 %v1885
      %1904 = vmatprep.subr.bf16.mxu0 0
      %1905 = vmatpush1.bf16.msra.mxu0 %v1886
      %1906 = vmatprep.subr.bf16.mxu0 0
      %1907 = vmatpush1.bf16.msra.mxu0 0
      %1908 = vmatprep.subr.bf16.mxu0 0
      %1909 = vmatpush1.bf16.msra.mxu0 0
      %1910 = vmatprep.subr.bf16.mxu0 0
      %1911 = vmatpush1.bf16.msra.mxu0 0
      %1912 = vmatprep.subr.bf16.mxu0 0
      %1913 = vmatpush1.bf16.msra.mxu0 0
      %1914 = vmatprep.subr.bf16.mxu0 0
      %1915 = vmatpush1.bf16.msra.mxu0 0
      %1916 = vmatprep.subr.bf16.mxu0 0
      %1917 = vmatpush1.bf16.msra.mxu0 0
      %1918 = vmatprep.subr.bf16.mxu0 0
      %1919 = vmatpush1.bf16.msra.mxu0 0
      %1920 = vmatprep.subr.bf16.mxu0 0
      %1921 = vmatpush1.bf16.msra.mxu0 0
      %1922 = vmatprep.subr.bf16.mxu0 0
      %1923 = vmatpush1.bf16.msra.mxu0 0
      %1924 = vmatprep.subr.bf16.mxu0 0
      %1925 = vmatpush1.bf16.msra.mxu0 0
      %1926 = vmatprep.subr.bf16.mxu0 0
      %1927 = vmatpush1.bf16.msra.mxu0 0
      %1928 = vmatprep.subr.bf16.mxu0 0
      %1929 = vmatpush1.bf16.msra.mxu0 0
      %1930 = vmatprep.subr.bf16.mxu0 0
      %1931 = vmatpush1.bf16.msra.mxu0 0
      %1932 = vmatprep.subr.bf16.mxu0 0
      %1933 = vmatpush1.bf16.msra.mxu0 0
      %1934 = vmatprep.mubr.bf16.mxu0 0
      %1935 = vmatmul.mubr.bf16.gmra.mrb[0].mxu0 %v1891
      %v1936 = vpop.f32.mrb[0].mxu0
      %v1937 = vadd.f32 %v1855, %v1936
      %v1938 = vpop.f32.mrb[0].mxu0
      %v1939 = vpop.f32.mrb[0].mxu0
      %v1940 = vadd.f32 %v1855, %v1939
      %v1941 = vpop.f32.mrb[0].mxu0
      %1942 = vmatprep.mubr.bf16.mxu0 0
      %1943 = vmatmul.mubr.bf16.gmra.mrb[0].mxu0 %v1894
      %v1944 = vpop.f32.mrb[0].mxu0
      %v1945 = vadd.f32 %v1855, %v1944
      %v1946 = vpop.f32.mrb[0].mxu0
      %v1947 = vpop.f32.mrb[0].mxu0
      %v1948 = vadd.f32 %v1855, %v1947
      %v1949 = vpop.f32.mrb[0].mxu0
      %1950 = vmatprep.mubr.bf16.mxu0 0
      %1951 = vmatmul.mubr.bf16.gmra.mrb[0].mxu0 %v1897
      %v1952 = vpop.f32.mrb[0].mxu0
      %v1953 = vadd.f32 %v1855, %v1952
      %v1954 = vpop.f32.mrb[0].mxu0
      %v1955 = vpop.f32.mrb[0].mxu0
      %v1956 = vadd.f32 %v1855, %v1955
      %v1957 = vpop.f32.mrb[0].mxu0
      %1958 = vmatprep.mubr.bf16.mxu0 0
      %1959 = vmatmul.mubr.bf16.gmra.mrb[0].mxu0 %v1900
      %v1960 = vpop.f32.mrb[0].mxu0
      %v1961 = vadd.f32 %v1855, %v1960
      %v1962 = vpop.f32.mrb[0].mxu0
      %v1963 = vpop.f32.mrb[0].mxu0
      %v1964 = vadd.f32 %v1855, %v1963
      %v1965 = vpop.f32.mrb[0].mxu0
      %1966 = vdwg.mxu0
      %v1967 = vlaneseq
      %v1968 = vshrl.u32 %v1967, 7
      %v1969 = vsub.s32 0, %v1968
      %v1970 = vrot.slane %v1837, %v1969
      %v1971 = vmul.f32 %v1640, %v1970
      %v1972 = vmul.f32 %v1641, %v1970
      %v1973 = vmul.f32 %v1642, %v1970
      %v1974 = vmul.f32 %v1643, %v1970
      %v1975 = vmul.f32 %v1644, %v1970
      %v1976 = vmul.f32 %v1645, %v1970
      %v1977 = vmul.f32 %v1646, %v1970
      %v1978 = vmul.f32 %v1647, %v1970
      %v1979 = vadd.f32 %v1971, %v1937
      %v1980 = vadd.f32 %v1972, %v1940
      %v1981 = vadd.f32 %v1973, %v1945
      %v1982 = vadd.f32 %v1974, %v1948
      %v1983 = vadd.f32 %v1975, %v1953
      %v1984 = vadd.f32 %v1976, %v1956
      %v1985 = vadd.f32 %v1977, %v1961
      %v1986 = vadd.f32 %v1978, %v1964
      %v1987 = vpack.c.bf16 %v1980, %v1979
      %v1988 = vpack.c.bf16 %v1982, %v1981
      %v1989 = vpack.c.bf16 %v1984, %v1983
      %v1990 = vpack.c.bf16 %v1986, %v1985
      %v1995 = vunpack.c.l.b16 %v1987
      %v1996 = vunpack.c.h.b16 %v1987
      %v1997 = vunpack.c.l.b16 %v1988
      %v1998 = vunpack.c.h.b16 %v1988
      %v1999 = vunpack.c.l.b16 %v1989
      %v2000 = vunpack.c.h.b16 %v1989
      %v2001 = vunpack.c.l.b16 %v1990
      %v2002 = vunpack.c.h.b16 %v1990
      %v2003 = vpack.c.b16 %v1995, %v1995
      %v2004 = vpack.c.b16 %v1996, %v1996
      %v2005 = vpack.c.b16 %v1997, %v1997
      %v2006 = vpack.c.b16 %v1998, %v1998
      %v2007 = vpack.c.b16 %v1999, %v1999
      %v2008 = vpack.c.b16 %v2000, %v2000
      %v2009 = vpack.c.b16 %v2001, %v2001
      %v2010 = vpack.c.b16 %v2002, %v2002
      %vm2019 = vcmask 519168
      %2020 = vst.msk [vmem:[%s325] sm:$0xf] %vm2019, %v2003
      %2021 = vst.msk [vmem:[%s325 + $0x4] sm:$0xf] %vm2019, %v2004
      %2022 = vst.msk [vmem:[%s325 + $0x8] sm:$0xf] %vm2019, %v2005
      %2023 = vst.msk [vmem:[%s325 + $0xc] sm:$0xf] %vm2019, %v2006
      %2024 = vst.msk [vmem:[%s325 + $0x10] sm:$0xf] %vm2019, %v2007
      %2025 = vst.msk [vmem:[%s325 + $0x14] sm:$0xf] %vm2019, %v2008
      %2026 = vst.msk [vmem:[%s325 + $0x18] sm:$0xf] %vm2019, %v2009
      %2027 = vst.msk [vmem:[%s325 + $0x1c] sm:$0xf] %vm2019, %v2010
      %p2028 = scmp.lt.s32.totalorder %s19, 1
      %s2029 = scalar_select %p2028, %s19, 1
      %s2030 = smul.addr %s2029, 8
      %s2031 = smul.addr %s2030, 4
      %s2032 = scalar_lea.vmem %s8, %s2031
      // Predicated region
      $region53: #{forward.7} parent=51 // pred_check
        %p2033 = pneg %p215
      $region54: #{forward.7} parent=51 // pred_check_branch
        %2035 = sbr.rel (%p2033) target = $region56
      $region55: #{forward.7} parent=51 // pred_region
        _
      $region56: #{forward.7} parent=51 // pred_fallthru
        _
    $region52: #{forward.7} parent=5 // pred_fallthru
      _
    %p2036 = scmp.le.s32.totalorder 2, %s14
    // Predicated region
    $region57: #{forward.7} parent=5 // pred_check
      %p2037 = pneg %p2036
    $region58: #{forward.7} parent=5 // pred_check_branch
      %2039 = sbr.rel (%p2037) target = $region60
    $region59: #{forward.7} parent=5 // pred_region
      %s2040 = ssub.s32 %s14, 2
      // Predicated region
      $region61: #{forward.7} parent=59 // pred_check
        %p2041 = pneg %p221
      $region62: #{forward.7} parent=59 // pred_check_branch
        %2043 = sbr.rel (%p2041) target = $region64
      $region63: #{forward.7} parent=59 // pred_region
        %p2044 = scmp.lt.s32.totalorder %s20, 1
        %s2045 = scalar_select %p2044, %s20, 1
        %s2046 = smul.addr %s2045, 8
        %s2047 = smul.addr %s2046, 4
        %s2048 = scalar_lea.vmem %s8, %s2047
      $region64: #{forward.7} parent=59 // pred_fallthru
        _
    $region60: #{forward.7} parent=5 // pred_fallthru
      _
  $region6: #{forward.7} parent=0 // loop_footer
    %s18 = sadd.s32 1, %s14
  $region7: #{forward.7} parent=0 // loop_footer_branch
    %13 = sbr.rel target = $region3
  $region8: #{forward.7} parent=0 // loop_exit
    _

// kernel: forward.11
$region0: #{forward.11}
  #allocation0 [shape = 'u32[]', space=smem, size = 0x4, offset = 0x4, fixed_abs, tag = 'smem constant byte address 0x4 - core index']
  #allocation1 [shape = 'u32[144,128]{1,0:T(1,128)}', space=vmem, size = 0x12000, scoped, tag = 'internal scratch']
  %s0 = inlined_call_operand.vmem [shape: bf16[2,9,16,64], index: 0, kind: input, shape index: {}]
  %s1 = inlined_call_operand.vmem [shape: bf16[9,64,64], index: 1, kind: input, shape index: {}]
  %s2 = inlined_call_operand.vmem [shape: f32[1,64], index: 2, kind: input, shape index: {}]
  %s3 = inlined_call_operand.vmem [shape: f32[64,4], index: 3, kind: input, shape index: {}]
  %s4 = inlined_call_operand.vmem [shape: f32[4,64], index: 4, kind: input, shape index: {}]
  %s5 = inlined_call_operand.vmem [shape: bf16[2,16,64], index: 5, kind: input, shape index: {}]
  %s6 = inlined_call_operand.hbm [shape: bf16[2,16,64], index: 6, kind: output, shape index: {}]
  %s7 = sld [smem:[#allocation0]]
  $region57: #{forward.11} parent=0
    _
  %s9 = ssub.s32 1, %s7
  %s10 = scalar_select 0, %s9, %s7
  $region1: #{forward.11} parent=0
    #allocation2 [shape = 'u8[8192]{0}', space=vmem, size = 0x2000, scoped, tag = 'output window, operand 0']
    #allocation3 [shape = 's32[2]{0}', space=sflag, size = 0x8, scoped, tag = 'scoped memory for forward.11']
    %11 = vsyncpa [#allocation3], 0
    %s12 = scalar_lea.sflag [#allocation3], 1
    %13 = vsyncpa %s12, 0
    loop: start=0, step=1, limit=4
    $region2: #{forward.11} parent=1 // loop_pre_header
      _
    $region3: #{forward.11} parent=1 // loop_header
      %s15 = sphi 0, %s19
      %p16 = scmp.ge.s32.totalorder %s15, 4
      %s25 = sphi 0, %s27
      %s28 = sphi 0, %s25
      %s29 = sphi 0, %s28
      %s45 = sphi 0, %s29
      %s49 = sphi 0, %s49
      %s51 = sphi 0, %s49
      %s52 = sphi 0, %s51
      %s66 = sphi 0, %s52
      %s70 = sphi 0, %s70
      %s72 = sphi 0, %s70
      %s73 = sphi 0, %s72
      %s87 = sphi 0, %s73
      %s91 = sphi 0, %s91
      %s93 = sphi 0, %s91
      %s94 = sphi 0, %s93
      %s108 = sphi 0, %s94
      %s112 = sphi 0, %s112
      %s114 = sphi 0, %s112
      %s115 = sphi 0, %s114
      %s129 = sphi 0, %s115
      %s135 = sphi 0, %s137
      %s138 = sphi 0, %s135
      %s139 = sphi 0, %s138
      %s155 = sphi 0, %s139
      %s161 = sphi 0, %s163
      %s164 = sphi 0, %s161
      %s165 = sphi 0, %s164
      %s181 = sphi 0, %s165
    $region4: #{forward.11} parent=1 // loop_header_branch
      %18 = sbr.rel (%p16) target = $region8
    $region5: #{forward.11} parent=1 // loop_body
      %s20 = ssub.s32 %s15, 1
      %s21 = ssub.s32 %s15, 2
      %s22 = sadd.s32 %s15, 1
      %s23 = ssub.s32 %s15, %s22
      %p24 = scmp.eq.s32.totalorder %s23, 0
      %s26 = sadd.s32 %s25, 1
      %s27 = scalar_select %p24, %s25, %s26
      %p30 = pneg %p24
      %p31 = scmp.eq.s32.totalorder %s15, 1
      %p32 = por %p30, %p31
      %p33 = scmp.ne.s32.totalorder %s25, %s28
      %p34 = scmp.eq.s32.totalorder %s15, 0
      %p35 = por %p33, %p34
      %p36 = scmp.ne.s32.totalorder %s25, %s28
      %p37 = scmp.eq.s32.totalorder %s20, 1
      %p38 = por %p36, %p37
      %p39 = scmp.ne.s32.totalorder %s28, %s29
      %p40 = scmp.eq.s32.totalorder %s20, 0
      %p41 = por %p39, %p40
      %p42 = scmp.ne.s32.totalorder %s28, %s29
      %p43 = scmp.eq.s32.totalorder %s21, 1
      %p44 = por %p42, %p43
      %p46 = scmp.ne.s32.totalorder %s29, %s45
      %p47 = scmp.eq.s32.totalorder %s21, 0
      %p48 = por %p46, %p47
      %s50 = sadd.s32 %s49, 1
      %p53 = scmp.eq.s32.totalorder %s15, 1
      %p54 = scmp.ne.s32.totalorder %s49, %s51
      %p55 = scmp.eq.s32.totalorder %s15, 0
      %p56 = por %p54, %p55
      %p57 = scmp.ne.s32.totalorder %s49, %s51
      %p58 = scmp.eq.s32.totalorder %s20, 1
      %p59 = por %p57, %p58
      %p60 = scmp.ne.s32.totalorder %s51, %s52
      %p61 = scmp.eq.s32.totalorder %s20, 0
      %p62 = por %p60, %p61
      %p63 = scmp.ne.s32.totalorder %s51, %s52
      %p64 = scmp.eq.s32.totalorder %s21, 1
      %p65 = por %p63, %p64
      %p67 = scmp.ne.s32.totalorder %s52, %s66
      %p68 = scmp.eq.s32.totalorder %s21, 0
      %p69 = por %p67, %p68
      %s71 = sadd.s32 %s70, 1
      %p74 = scmp.eq.s32.totalorder %s15, 1
      %p75 = scmp.ne.s32.totalorder %s70, %s72
      %p76 = scmp.eq.s32.totalorder %s15, 0
      %p77 = por %p75, %p76
      %p78 = scmp.ne.s32.totalorder %s70, %s72
      %p79 = scmp.eq.s32.totalorder %s20, 1
      %p80 = por %p78, %p79
      %p81 = scmp.ne.s32.totalorder %s72, %s73
      %p82 = scmp.eq.s32.totalorder %s20, 0
      %p83 = por %p81, %p82
      %p84 = scmp.ne.s32.totalorder %s72, %s73
      %p85 = scmp.eq.s32.totalorder %s21, 1
      %p86 = por %p84, %p85
      %p88 = scmp.ne.s32.totalorder %s73, %s87
      %p89 = scmp.eq.s32.totalorder %s21, 0
      %p90 = por %p88, %p89
      %s92 = sadd.s32 %s91, 1
      %p95 = scmp.eq.s32.totalorder %s15, 1
      %p96 = scmp.ne.s32.totalorder %s91, %s93
      %p97 = scmp.eq.s32.totalorder %s15, 0
      %p98 = por %p96, %p97
      %p99 = scmp.ne.s32.totalorder %s91, %s93
      %p100 = scmp.eq.s32.totalorder %s20, 1
      %p101 = por %p99, %p100
      %p102 = scmp.ne.s32.totalorder %s93, %s94
      %p103 = scmp.eq.s32.totalorder %s20, 0
      %p104 = por %p102, %p103
      %p105 = scmp.ne.s32.totalorder %s93, %s94
      %p106 = scmp.eq.s32.totalorder %s21, 1
      %p107 = por %p105, %p106
      %p109 = scmp.ne.s32.totalorder %s94, %s108
      %p110 = scmp.eq.s32.totalorder %s21, 0
      %p111 = por %p109, %p110
      %s113 = sadd.s32 %s112, 1
      %p116 = scmp.eq.s32.totalorder %s15, 1
      %p117 = scmp.ne.s32.totalorder %s112, %s114
      %p118 = scmp.eq.s32.totalorder %s15, 0
      %p119 = por %p117, %p118
      %p120 = scmp.ne.s32.totalorder %s112, %s114
      %p121 = scmp.eq.s32.totalorder %s20, 1
      %p122 = por %p120, %p121
      %p123 = scmp.ne.s32.totalorder %s114, %s115
      %p124 = scmp.eq.s32.totalorder %s20, 0
      %p125 = por %p123, %p124
      %p126 = scmp.ne.s32.totalorder %s114, %s115
      %p127 = scmp.eq.s32.totalorder %s21, 1
      %p128 = por %p126, %p127
      %p130 = scmp.ne.s32.totalorder %s115, %s129
      %p131 = scmp.eq.s32.totalorder %s21, 0
      %p132 = por %p130, %p131
      %s133 = ssub.s32 %s15, %s22
      %p134 = scmp.eq.s32.totalorder %s133, 0
      %s136 = sadd.s32 %s135, 1
      %s137 = scalar_select %p134, %s135, %s136
      %p140 = pneg %p134
      %p141 = scmp.eq.s32.totalorder %s15, 1
      %p142 = por %p140, %p141
      %p143 = scmp.ne.s32.totalorder %s135, %s138
      %p144 = scmp.eq.s32.totalorder %s15, 0
      %p145 = por %p143, %p144
      %p146 = scmp.ne.s32.totalorder %s135, %s138
      %p147 = scmp.eq.s32.totalorder %s20, 1
      %p148 = por %p146, %p147
      %p149 = scmp.ne.s32.totalorder %s138, %s139
      %p150 = scmp.eq.s32.totalorder %s20, 0
      %p151 = por %p149, %p150
      %p152 = scmp.ne.s32.totalorder %s138, %s139
      %p153 = scmp.eq.s32.totalorder %s21, 1
      %p154 = por %p152, %p153
      %p156 = scmp.ne.s32.totalorder %s139, %s155
      %p157 = scmp.eq.s32.totalorder %s21, 0
      %p158 = por %p156, %p157
      %s159 = ssub.s32 %s15, %s22
      %p160 = scmp.eq.s32.totalorder %s159, 0
      %s162 = sadd.s32 %s161, 1
      %s163 = scalar_select %p160, %s161, %s162
      %p166 = pneg %p160
      %p167 = scmp.eq.s32.totalorder %s15, 1
      %p168 = por %p166, %p167
      %p169 = scmp.ne.s32.totalorder %s161, %s164
      %p170 = scmp.eq.s32.totalorder %s15, 0
      %p171 = por %p169, %p170
      %p172 = scmp.ne.s32.totalorder %s161, %s164
      %p173 = scmp.eq.s32.totalorder %s20, 1
      %p174 = por %p172, %p173
      %p175 = scmp.ne.s32.totalorder %s164, %s165
      %p176 = scmp.eq.s32.totalorder %s20, 0
      %p177 = por %p175, %p176
      %p178 = scmp.ne.s32.totalorder %s164, %s165
      %p179 = scmp.eq.s32.totalorder %s21, 1
      %p180 = por %p178, %p179
      %p182 = scmp.ne.s32.totalorder %s165, %s181
      %p183 = scmp.eq.s32.totalorder %s21, 0
      %p184 = por %p182, %p183
      %p185 = scmp.le.s32.totalorder 1, %s15
      %p186 = scmp.lt.s32.totalorder %s15, 3
      %p187 = pnand %p185, %p186
      %p188 = pneg %p187
      // Predicated region
      $region9: #{forward.11} parent=5 // pred_check
        _
      $region10: #{forward.11} parent=5 // pred_check_branch
        %190 = sbr.rel (%p187) target = $region12
      $region11: #{forward.11} parent=5 // pred_region
        %s191 = ssub.s32 %s15, 1
        // Predicated region
        $region13: #{forward.11} parent=11 // pred_check
          %p192 = pneg %p62
        $region14: #{forward.11} parent=11 // pred_check_branch
          %194 = sbr.rel (%p192) target = $region16
        $region15: #{forward.11} parent=11 // pred_region
          _
        $region16: #{forward.11} parent=11 // pred_fallthru
          _
        // Predicated region
        $region17: #{forward.11} parent=11 // pred_check
          %p195 = pneg %p83
        $region18: #{forward.11} parent=11 // pred_check_branch
          %197 = sbr.rel (%p195) target = $region20
        $region19: #{forward.11} parent=11 // pred_region
          _
        $region20: #{forward.11} parent=11 // pred_fallthru
          _
        // Predicated region
        $region21: #{forward.11} parent=11 // pred_check
          %p198 = pneg %p104
        $region22: #{forward.11} parent=11 // pred_check_branch
          %200 = sbr.rel (%p198) target = $region24
        $region23: #{forward.11} parent=11 // pred_region
          _
        $region24: #{forward.11} parent=11 // pred_fallthru
          _
        // Predicated region
        $region25: #{forward.11} parent=11 // pred_check
          %p201 = pneg %p125
        $region26: #{forward.11} parent=11 // pred_check_branch
          %203 = sbr.rel (%p201) target = $region28
        $region27: #{forward.11} parent=11 // pred_region
          _
        $region28: #{forward.11} parent=11 // pred_fallthru
          _
      $region12: #{forward.11} parent=5 // pred_fallthru
        _
      %p204 = scmp.lt.s32.totalorder %s15, 2
      // Predicated region
      $region29: #{forward.11} parent=5 // pred_check
        %p205 = pneg %p204
      $region30: #{forward.11} parent=5 // pred_check_branch
        %207 = sbr.rel (%p205) target = $region32
      $region31: #{forward.11} parent=5 // pred_region
        // Predicated region
        $region33: #{forward.11} parent=31 // pred_check
          %p208 = pneg %p35
        $region34: #{forward.11} parent=31 // pred_check_branch
          %210 = sbr.rel (%p208) target = $region36
        $region35: #{forward.11} parent=31 // pred_region
          %p211 = scmp.lt.s32.totalorder %s15, 1
          %s212 = scalar_select %p211, %s15, 1
          %s213 = smul.addr %s212, 18
          %s214 = smul.addr %s213, 4
          %s215 = scalar_lea.vmem %s0, %s214
        $region36: #{forward.11} parent=31 // pred_fallthru
          _
        // Predicated region
        $region37: #{forward.11} parent=31 // pred_check
          %p216 = pneg %p145
        $region38: #{forward.11} parent=31 // pred_check_branch
          %218 = sbr.rel (%p216) target = $region40
        $region39: #{forward.11} parent=31 // pred_region
          %p219 = scmp.lt.s32.totalorder %s15, 1
          %s220 = scalar_select %p219, %s15, 1
          %s221 = smul.addr %s220, 2
          %s222 = smul.addr %s221, 4
          %s223 = scalar_lea.vmem %s5, %s222
        $region40: #{forward.11} parent=31 // pred_fallthru
          _
      $region32: #{forward.11} parent=5 // pred_fallthru
        _
      %p224 = scmp.le.s32.totalorder 1, %s15
      %p225 = scmp.lt.s32.totalorder %s15, 3
      %p226 = pnand %p224, %p225
      %p227 = pneg %p226
      // Predicated region
      $region41: #{forward.11} parent=5 // pred_check
        _
      $region42: #{forward.11} parent=5 // pred_check_branch
        %229 = sbr.rel (%p226) target = $region44
      $region43: #{forward.11} parent=5 // pred_region
        %s230 = ssub.s32 %s15, 1
        %p231 = scmp.lt.s32.totalorder %s20, 1
        %s232 = scalar_select %p231, %s20, 1
        %s233 = smul.addr %s232, 18
        %s234 = smul.addr %s233, 4
        %s235 = scalar_lea.vmem %s0, %s234
        %p236 = pneg %p41
        %p237 = pneg %p38
        %p238 = pneg %p62
        %p239 = pneg %p59
        %p240 = pneg %p83
        %p241 = pneg %p80
        %p242 = pneg %p104
        %p243 = pneg %p101
        %p244 = pneg %p125
        %p245 = pneg %p122
        %p246 = scmp.lt.s32.totalorder %s20, 1
        %s247 = scalar_select %p246, %s20, 1
        %s248 = smul.addr %s247, 2
        %s249 = smul.addr %s248, 4
        %s250 = scalar_lea.vmem %s5, %s249
        %p251 = pneg %p151
        %p252 = pneg %p148
        %p253 = pneg %p177
        %p254 = pneg %p174
        %s255 = sand.u32 %s164, 1
        %s256 = scalar_lea.sflag [#allocation3], %s255
        %s257 = sand.u32 %s164, 1
        %s258 = smul.addr %s257, 8
        %s259 = scalar_lea.vmem [#allocation2], %s258
        %p260 = scmp.lt.s32.totalorder %s20, 1
        %s261 = scalar_select %p260, %s20, 1
        %s262 = smul.addr %s261, 18
        %s263 = smul.addr %s262, 4
        %s264 = scalar_lea.vmem %s0, %s263
        %p265 = scmp.lt.s32.totalorder %s20, 1
        %s266 = scalar_select %p265, %s20, 1
        %s267 = smul.addr %s266, 2
        %s268 = smul.addr %s267, 4
        %s269 = scalar_lea.vmem %s5, %s268
        %v271 = vld [vmem:[%s264] sm:$0xf]
        %v272 = vld [vmem:[%s264 + $0x4] sm:$0xf]
        %v273 = vld [vmem:[%s1] sm:$0xf]
        %v274 = vld [vmem:[%s1 + $0x4] sm:$0xf]
        %v275 = vld [vmem:[%s1 + $0x8] sm:$0xf]
        %v276 = vld [vmem:[%s1 + $0xc] sm:$0xf]
        %v277 = vld [vmem:[%s1 + $0x10] sm:$0xf]
        %v278 = vld [vmem:[%s1 + $0x14] sm:$0xf]
        %v279 = vld [vmem:[%s1 + $0x18] sm:$0xf]
        %v280 = vld [vmem:[%s1 + $0x1c] sm:$0xf]
        %s281 = scalar_lea.vmem %s264, 8
        %v282 = vld [vmem:[%s281] sm:$0xf]
        %v283 = vld [vmem:[%s281 + $0x4] sm:$0xf]
        %s284 = scalar_lea.vmem %s1, 32
        %v285 = vld [vmem:[%s284] sm:$0xf]
        %v286 = vld [vmem:[%s284 + $0x4] sm:$0xf]
        %v287 = vld [vmem:[%s284 + $0x8] sm:$0xf]
        %v288 = vld [vmem:[%s284 + $0xc] sm:$0xf]
        %v289 = vld [vmem:[%s284 + $0x10] sm:$0xf]
        %v290 = vld [vmem:[%s284 + $0x14] sm:$0xf]
        %v291 = vld [vmem:[%s284 + $0x18] sm:$0xf]
        %v292 = vld [vmem:[%s284 + $0x1c] sm:$0xf]
        %v295 = vunpack.c.l.b16 %v282
        %v296 = vunpack.c.l.b16 %v283
        %v297 = vpack.c.b16 %v296, %v295
        %v306 = vunpack.c.l.b16 %v285
        %v307 = vunpack.c.l.b16 %v286
        %v308 = vunpack.c.l.b16 %v287
        %v309 = vunpack.c.l.b16 %v288
        %v310 = vunpack.c.l.b16 %v289
        %v311 = vunpack.c.l.b16 %v290
        %v312 = vunpack.c.l.b16 %v291
        %v313 = vunpack.c.l.b16 %v292
        %v314 = vpack.c.b16 %v307, %v306
        %v315 = vpack.c.b16 %v309, %v308
        %v316 = vpack.c.b16 %v311, %v310
        %v317 = vpack.c.b16 %v313, %v312
        %vm322 = vcmask 523264
        %v324 = vsel %vm322, %v297, 0
        %326 = vmatprep.subr.bf16.mxu0 0
        %327 = vmatpush1.bf16.msra.mxu0 %v314
        %328 = vmatprep.subr.bf16.mxu0 0
        %329 = vmatpush1.bf16.msra.mxu0 %v315
        %330 = vmatprep.subr.bf16.mxu0 0
        %331 = vmatpush1.bf16.msra.mxu0 %v316
        %332 = vmatprep.subr.bf16.mxu0 0
        %333 = vmatpush1.bf16.msra.mxu0 %v317
        %334 = vmatprep.subr.bf16.mxu0 0
        %335 = vmatpush1.bf16.msra.mxu0 0
        %336 = vmatprep.subr.bf16.mxu0 0
        %337 = vmatpush1.bf16.msra.mxu0 0
        %338 = vmatprep.subr.bf16.mxu0 0
        %339 = vmatpush1.bf16.msra.mxu0 0
        %340 = vmatprep.subr.bf16.mxu0 0
        %341 = vmatpush1.bf16.msra.mxu0 0
        %342 = vmatprep.subr.bf16.mxu0 0
        %343 = vmatpush1.bf16.msra.mxu0 0
        %344 = vmatprep.subr.bf16.mxu0 0
        %345 = vmatpush1.bf16.msra.mxu0 0
        %346 = vmatprep.subr.bf16.mxu0 0
        %347 = vmatpush1.bf16.msra.mxu0 0
        %348 = vmatprep.subr.bf16.mxu0 0
        %349 = vmatpush1.bf16.msra.mxu0 0
        %350 = vmatprep.subr.bf16.mxu0 0
        %351 = vmatpush1.bf16.msra.mxu0 0
        %352 = vmatprep.subr.bf16.mxu0 0
        %353 = vmatpush1.bf16.msra.mxu0 0
        %354 = vmatprep.subr.bf16.mxu0 0
        %355 = vmatpush1.bf16.msra.mxu0 0
        %356 = vmatprep.subr.bf16.mxu0 0
        %357 = vmatpush1.bf16.msra.mxu0 0
        %358 = vmatprep.mubr.bf16.mxu0 0
        %359 = vmatmul.mubr.bf16.gmra.mrb[0].mxu0 %v324
        %v360 = vpop.f32.mrb[0].mxu0
        %v361 = vadd.f32 0.0, %v360
        %v362 = vpop.f32.mrb[0].mxu0
        %v363 = vpop.f32.mrb[0].mxu0
        %v364 = vadd.f32 0.0, %v363
        %v365 = vpop.f32.mrb[0].mxu0
        %366 = vdwg.mxu0
        %v369 = vunpack.c.l.b16 %v271
        %v370 = vunpack.c.l.b16 %v272
        %v371 = vpack.c.b16 %v370, %v369
        %v380 = vunpack.c.l.b16 %v273
        %v381 = vunpack.c.l.b16 %v274
        %v382 = vunpack.c.l.b16 %v275
        %v383 = vunpack.c.l.b16 %v276
        %v384 = vunpack.c.l.b16 %v277
        %v385 = vunpack.c.l.b16 %v278
        %v386 = vunpack.c.l.b16 %v279
        %v387 = vunpack.c.l.b16 %v280
        %v388 = vpack.c.b16 %v381, %v380
        %v389 = vpack.c.b16 %v383, %v382
        %v390 = vpack.c.b16 %v385, %v384
        %v391 = vpack.c.b16 %v387, %v386
        %v397 = vsel %vm322, %v371, 0
        %399 = vmatprep.subr.bf16.mxu0 0
        %400 = vmatpush1.bf16.msra.mxu0 %v388
        %401 = vmatprep.subr.bf16.mxu0 0
        %402 = vmatpush1.bf16.msra.mxu0 %v389
        %403 = vmatprep.subr.bf16.mxu0 0
        %404 = vmatpush1.bf16.msra.mxu0 %v390
        %405 = vmatprep.subr.bf16.mxu0 0
        %406 = vmatpush1.bf16.msra.mxu0 %v391
        %407 = vmatprep.subr.bf16.mxu0 0
        %408 = vmatpush1.bf16.msra.mxu0 0
        %409 = vmatprep.subr.bf16.mxu0 0
        %410 = vmatpush1.bf16.msra.mxu0 0
        %411 = vmatprep.subr.bf16.mxu0 0
        %412 = vmatpush1.bf16.msra.mxu0 0
        %413 = vmatprep.subr.bf16.mxu0 0
        %414 = vmatpush1.bf16.msra.mxu0 0
        %415 = vmatprep.subr.bf16.mxu0 0
        %416 = vmatpush1.bf16.msra.mxu0 0
        %417 = vmatprep.subr.bf16.mxu0 0
        %418 = vmatpush1.bf16.msra.mxu0 0
        %419 = vmatprep.subr.bf16.mxu0 0
        %420 = vmatpush1.bf16.msra.mxu0 0
        %421 = vmatprep.subr.bf16.mxu0 0
        %422 = vmatpush1.bf16.msra.mxu0 0
        %423 = vmatprep.subr.bf16.mxu0 0
        %424 = vmatpush1.bf16.msra.mxu0 0
        %425 = vmatprep.subr.bf16.mxu0 0
        %426 = vmatpush1.bf16.msra.mxu0 0
        %427 = vmatprep.subr.bf16.mxu0 0
        %428 = vmatpush1.bf16.msra.mxu0 0
        %429 = vmatprep.subr.bf16.mxu0 0
        %430 = vmatpush1.bf16.msra.mxu0 0
        %431 = vmatprep.mubr.bf16.mxu0 0
        %432 = vmatmul.mubr.bf16.gmra.mrb[0].mxu0 %v397
        %v433 = vpop.f32.mrb[0].mxu0
        %v434 = vadd.f32 %v361, %v433
        %v435 = vpop.f32.mrb[0].mxu0
        %v436 = vpop.f32.mrb[0].mxu0
        %v437 = vadd.f32 %v364, %v436
        %v438 = vpop.f32.mrb[0].mxu0
        %439 = vdwg.mxu0
        %s440 = scalar_lea.vmem %s264, 16
        %v441 = vld [vmem:[%s440] sm:$0xf]
        %v442 = vld [vmem:[%s440 + $0x4] sm:$0xf]
        %s443 = scalar_lea.vmem %s1, 64
        %v444 = vld [vmem:[%s443] sm:$0xf]
        %v445 = vld [vmem:[%s443 + $0x4] sm:$0xf]
        %v446 = vld [vmem:[%s443 + $0x8] sm:$0xf]
        %v447 = vld [vmem:[%s443 + $0xc] sm:$0xf]
        %v448 = vld [vmem:[%s443 + $0x10] sm:$0xf]
        %v449 = vld [vmem:[%s443 + $0x14] sm:$0xf]
        %v450 = vld [vmem:[%s443 + $0x18] sm:$0xf]
        %v451 = vld [vmem:[%s443 + $0x1c] sm:$0xf]
        %v454 = vunpack.c.l.b16 %v441
        %v455 = vunpack.c.l.b16 %v442
        %v456 = vpack.c.b16 %v455, %v454
        %v465 = vunpack.c.l.b16 %v444
        %v466 = vunpack.c.l.b16 %v445
        %v467 = vunpack.c.l.b16 %v446
        %v468 = vunpack.c.l.b16 %v447
        %v469 = vunpack.c.l.b16 %v448
        %v470 = vunpack.c.l.b16 %v449
        %v471 = vunpack.c.l.b16 %v450
        %v472 = vunpack.c.l.b16 %v451
        %v473 = vpack.c.b16 %v466, %v465
        %v474 = vpack.c.b16 %v468, %v467
        %v475 = vpack.c.b16 %v470, %v469
        %v476 = vpack.c.b16 %v472, %v471
        %v482 = vsel %vm322, %v456, 0
        %484 = vmatprep.subr.bf16.mxu0 0
        %485 = vmatpush1.bf16.msra.mxu0 %v473
        %486 = vmatprep.subr.bf16.mxu0 0
        %487 = vmatpush1.bf16.msra.mxu0 %v474
        %488 = vmatprep.subr.bf16.mxu0 0
        %489 = vmatpush1.bf16.msra.mxu0 %v475
        %490 = vmatprep.subr.bf16.mxu0 0
        %491 = vmatpush1.bf16.msra.mxu0 %v476
        %492 = vmatprep.subr.bf16.mxu0 0
        %493 = vmatpush1.bf16.msra.mxu0 0
        %494 = vmatprep.subr.bf16.mxu0 0
        %495 = vmatpush1.bf16.msra.mxu0 0
        %496 = vmatprep.subr.bf16.mxu0 0
        %497 = vmatpush1.bf16.msra.mxu0 0
        %498 = vmatprep.subr.bf16.mxu0 0
        %499 = vmatpush1.bf16.msra.mxu0 0
        %500 = vmatprep.subr.bf16.mxu0 0
        %501 = vmatpush1.bf16.msra.mxu0 0
        %502 = vmatprep.subr.bf16.mxu0 0
        %503 = vmatpush1.bf16.msra.mxu0 0
        %504 = vmatprep.subr.bf16.mxu0 0
        %505 = vmatpush1.bf16.msra.mxu0 0
        %506 = vmatprep.subr.bf16.mxu0 0
        %507 = vmatpush1.bf16.msra.mxu0 0
        %508 = vmatprep.subr.bf16.mxu0 0
        %509 = vmatpush1.bf16.msra.mxu0 0
        %510 = vmatprep.subr.bf16.mxu0 0
        %511 = vmatpush1.bf16.msra.mxu0 0
        %512 = vmatprep.subr.bf16.mxu0 0
        %513 = vmatpush1.bf16.msra.mxu0 0
        %514 = vmatprep.subr.bf16.mxu0 0
        %515 = vmatpush1.bf16.msra.mxu0 0
        %516 = vmatprep.mubr.bf16.mxu0 0
        %517 = vmatmul.mubr.bf16.gmra.mrb[0].mxu0 %v482
        %v518 = vpop.f32.mrb[0].mxu0
        %v519 = vadd.f32 0.0, %v518
        %v520 = vpop.f32.mrb[0].mxu0
        %v521 = vpop.f32.mrb[0].mxu0
        %v522 = vadd.f32 0.0, %v521
        %v523 = vpop.f32.mrb[0].mxu0
        %524 = vdwg.mxu0
        %v525 = vadd.f32 %v434, %v519
        %v526 = vadd.f32 %v437, %v522
        %s527 = scalar_lea.vmem %s264, 24
        %v528 = vld [vmem:[%s527] sm:$0xf]
        %v529 = vld [vmem:[%s527 + $0x4] sm:$0xf]
        %s530 = scalar_lea.vmem %s1, 96
        %v531 = vld [vmem:[%s530] sm:$0xf]
        %v532 = vld [vmem:[%s530 + $0x4] sm:$0xf]
        %v533 = vld [vmem:[%s530 + $0x8] sm:$0xf]
        %v534 = vld [vmem:[%s530 + $0xc] sm:$0xf]
        %v535 = vld [vmem:[%s530 + $0x10] sm:$0xf]
        %v536 = vld [vmem:[%s530 + $0x14] sm:$0xf]
        %v537 = vld [vmem:[%s530 + $0x18] sm:$0xf]
        %v538 = vld [vmem:[%s530 + $0x1c] sm:$0xf]
        %v541 = vunpack.c.l.b16 %v528
        %v542 = vunpack.c.l.b16 %v529
        %v543 = vpack.c.b16 %v542, %v541
        %v552 = vunpack.c.l.b16 %v531
        %v553 = vunpack.c.l.b16 %v532
        %v554 = vunpack.c.l.b16 %v533
        %v555 = vunpack.c.l.b16 %v534
        %v556 = vunpack.c.l.b16 %v535
        %v557 = vunpack.c.l.b16 %v536
        %v558 = vunpack.c.l.b16 %v537
        %v559 = vunpack.c.l.b16 %v538
        %v560 = vpack.c.b16 %v553, %v552
        %v561 = vpack.c.b16 %v555, %v554
        %v562 = vpack.c.b16 %v557, %v556
        %v563 = vpack.c.b16 %v559, %v558
        %v569 = vsel %vm322, %v543, 0
        %571 = vmatprep.subr.bf16.mxu0 0
        %572 = vmatpush1.bf16.msra.mxu0 %v560
        %573 = vmatprep.subr.bf16.mxu0 0
        %574 = vmatpush1.bf16.msra.mxu0 %v561
        %575 = vmatprep.subr.bf16.mxu0 0
        %576 = vmatpush1.bf16.msra.mxu0 %v562
        %577 = vmatprep.subr.bf16.mxu0 0
        %578 = vmatpush1.bf16.msra.mxu0 %v563
        %579 = vmatprep.subr.bf16.mxu0 0
        %580 = vmatpush1.bf16.msra.mxu0 0
        %581 = vmatprep.subr.bf16.mxu0 0
        %582 = vmatpush1.bf16.msra.mxu0 0
        %583 = vmatprep.subr.bf16.mxu0 0
        %584 = vmatpush1.bf16.msra.mxu0 0
        %585 = vmatprep.subr.bf16.mxu0 0
        %586 = vmatpush1.bf16.msra.mxu0 0
        %587 = vmatprep.subr.bf16.mxu0 0
        %588 = vmatpush1.bf16.msra.mxu0 0
        %589 = vmatprep.subr.bf16.mxu0 0
        %590 = vmatpush1.bf16.msra.mxu0 0
        %591 = vmatprep.subr.bf16.mxu0 0
        %592 = vmatpush1.bf16.msra.mxu0 0
        %593 = vmatprep.subr.bf16.mxu0 0
        %594 = vmatpush1.bf16.msra.mxu0 0
        %595 = vmatprep.subr.bf16.mxu0 0
        %596 = vmatpush1.bf16.msra.mxu0 0
        %597 = vmatprep.subr.bf16.mxu0 0
        %598 = vmatpush1.bf16.msra.mxu0 0
        %599 = vmatprep.subr.bf16.mxu0 0
        %600 = vmatpush1.bf16.msra.mxu0 0
        %601 = vmatprep.subr.bf16.mxu0 0
        %602 = vmatpush1.bf16.msra.mxu0 0
        %603 = vmatprep.mubr.bf16.mxu0 0
        %604 = vmatmul.mubr.bf16.gmra.mrb[0].mxu0 %v569
        %v605 = vpop.f32.mrb[0].mxu0
        %v606 = vadd.f32 0.0, %v605
        %v607 = vpop.f32.mrb[0].mxu0
        %v608 = vpop.f32.mrb[0].mxu0
        %v609 = vadd.f32 0.0, %v608
        %v610 = vpop.f32.mrb[0].mxu0
        %611 = vdwg.mxu0
        %v612 = vadd.f32 %v525, %v606
        %v613 = vadd.f32 %v526, %v609
        %s614 = scalar_lea.vmem %s264, 32
        %v615 = vld [vmem:[%s614] sm:$0xf]
        %v616 = vld [vmem:[%s614 + $0x4] sm:$0xf]
        %s617 = scalar_lea.vmem %s1, 128
        %v618 = vld [vmem:[%s617] sm:$0xf]
        %v619 = vld [vmem:[%s617 + $0x4] sm:$0xf]
        %v620 = vld [vmem:[%s617 + $0x8] sm:$0xf]
        %v621 = vld [vmem:[%s617 + $0xc] sm:$0xf]
        %v622 = vld [vmem:[%s617 + $0x10] sm:$0xf]
        %v623 = vld [vmem:[%s617 + $0x14] sm:$0xf]
        %v624 = vld [vmem:[%s617 + $0x18] sm:$0xf]
        %v625 = vld [vmem:[%s617 + $0x1c] sm:$0xf]
        %v628 = vunpack.c.l.b16 %v615
        %v629 = vunpack.c.l.b16 %v616
        %v630 = vpack.c.b16 %v629, %v628
        %v639 = vunpack.c.l.b16 %v618
        %v640 = vunpack.c.l.b16 %v619
        %v641 = vunpack.c.l.b16 %v620
        %v642 = vunpack.c.l.b16 %v621
        %v643 = vunpack.c.l.b16 %v622
        %v644 = vunpack.c.l.b16 %v623
        %v645 = vunpack.c.l.b16 %v624
        %v646 = vunpack.c.l.b16 %v625
        %v647 = vpack.c.b16 %v640, %v639
        %v648 = vpack.c.b16 %v642, %v641
        %v649 = vpack.c.b16 %v644, %v643
        %v650 = vpack.c.b16 %v646, %v645
        %v656 = vsel %vm322, %v630, 0
        %658 = vmatprep.subr.bf16.mxu0 0
        %659 = vmatpush1.bf16.msra.mxu0 %v647
        %660 = vmatprep.subr.bf16.mxu0 0
        %661 = vmatpush1.bf16.msra.mxu0 %v648
        %662 = vmatprep.subr.bf16.mxu0 0
        %663 = vmatpush1.bf16.msra.mxu0 %v649
        %664 = vmatprep.subr.bf16.mxu0 0
        %665 = vmatpush1.bf16.msra.mxu0 %v650
        %666 = vmatprep.subr.bf16.mxu0 0
        %667 = vmatpush1.bf16.msra.mxu0 0
        %668 = vmatprep.subr.bf16.mxu0 0
        %669 = vmatpush1.bf16.msra.mxu0 0
        %670 = vmatprep.subr.bf16.mxu0 0
        %671 = vmatpush1.bf16.msra.mxu0 0
        %672 = vmatprep.subr.bf16.mxu0 0
        %673 = vmatpush1.bf16.msra.mxu0 0
        %674 = vmatprep.subr.bf16.mxu0 0
        %675 = vmatpush1.bf16.msra.mxu0 0
        %676 = vmatprep.subr.bf16.mxu0 0
        %677 = vmatpush1.bf16.msra.mxu0 0
        %678 = vmatprep.subr.bf16.mxu0 0
        %679 = vmatpush1.bf16.msra.mxu0 0
        %680 = vmatprep.subr.bf16.mxu0 0
        %681 = vmatpush1.bf16.msra.mxu0 0
        %682 = vmatprep.subr.bf16.mxu0 0
        %683 = vmatpush1.bf16.msra.mxu0 0
        %684 = vmatprep.subr.bf16.mxu0 0
        %685 = vmatpush1.bf16.msra.mxu0 0
        %686 = vmatprep.subr.bf16.mxu0 0
        %687 = vmatpush1.bf16.msra.mxu0 0
        %688 = vmatprep.subr.bf16.mxu0 0
        %689 = vmatpush1.bf16.msra.mxu0 0
        %690 = vmatprep.mubr.bf16.mxu0 0
        %691 = vmatmul.mubr.bf16.gmra.mrb[0].mxu0 %v656
        %v692 = vpop.f32.mrb[0].mxu0
        %v693 = vadd.f32 0.0, %v692
        %v694 = vpop.f32.mrb[0].mxu0
        %v695 = vpop.f32.mrb[0].mxu0
        %v696 = vadd.f32 0.0, %v695
        %v697 = vpop.f32.mrb[0].mxu0
        %698 = vdwg.mxu0
        %v699 = vadd.f32 %v612, %v693
        %v700 = vadd.f32 %v613, %v696
        %s701 = scalar_lea.vmem %s264, 40
        %v702 = vld [vmem:[%s701] sm:$0xf]
        %v703 = vld [vmem:[%s701 + $0x4] sm:$0xf]
        %s704 = scalar_lea.vmem %s1, 160
        %v705 = vld [vmem:[%s704] sm:$0xf]
        %v706 = vld [vmem:[%s704 + $0x4] sm:$0xf]
        %v707 = vld [vmem:[%s704 + $0x8] sm:$0xf]
        %v708 = vld [vmem:[%s704 + $0xc] sm:$0xf]
        %v709 = vld [vmem:[%s704 + $0x10] sm:$0xf]
        %v710 = vld [vmem:[%s704 + $0x14] sm:$0xf]
        %v711 = vld [vmem:[%s704 + $0x18] sm:$0xf]
        %v712 = vld [vmem:[%s704 + $0x1c] sm:$0xf]
        %v715 = vunpack.c.l.b16 %v702
        %v716 = vunpack.c.l.b16 %v703
        %v717 = vpack.c.b16 %v716, %v715
        %v726 = vunpack.c.l.b16 %v705
        %v727 = vunpack.c.l.b16 %v706
        %v728 = vunpack.c.l.b16 %v707
        %v729 = vunpack.c.l.b16 %v708
        %v730 = vunpack.c.l.b16 %v709
        %v731 = vunpack.c.l.b16 %v710
        %v732 = vunpack.c.l.b16 %v711
        %v733 = vunpack.c.l.b16 %v712
        %v734 = vpack.c.b16 %v727, %v726
        %v735 = vpack.c.b16 %v729, %v728
        %v736 = vpack.c.b16 %v731, %v730
        %v737 = vpack.c.b16 %v733, %v732
        %v743 = vsel %vm322, %v717, 0
        %745 = vmatprep.subr.bf16.mxu0 0
        %746 = vmatpush1.bf16.msra.mxu0 %v734
        %747 = vmatprep.subr.bf16.mxu0 0
        %748 = vmatpush1.bf16.msra.mxu0 %v735
        %749 = vmatprep.subr.bf16.mxu0 0
        %750 = vmatpush1.bf16.msra.mxu0 %v736
        %751 = vmatprep.subr.bf16.mxu0 0
        %752 = vmatpush1.bf16.msra.mxu0 %v737
        %753 = vmatprep.subr.bf16.mxu0 0
        %754 = vmatpush1.bf16.msra.mxu0 0
        %755 = vmatprep.subr.bf16.mxu0 0
        %756 = vmatpush1.bf16.msra.mxu0 0
        %757 = vmatprep.subr.bf16.mxu0 0
        %758 = vmatpush1.bf16.msra.mxu0 0
        %759 = vmatprep.subr.bf16.mxu0 0
        %760 = vmatpush1.bf16.msra.mxu0 0
        %761 = vmatprep.subr.bf16.mxu0 0
        %762 = vmatpush1.bf16.msra.mxu0 0
        %763 = vmatprep.subr.bf16.mxu0 0
        %764 = vmatpush1.bf16.msra.mxu0 0
        %765 = vmatprep.subr.bf16.mxu0 0
        %766 = vmatpush1.bf16.msra.mxu0 0
        %767 = vmatprep.subr.bf16.mxu0 0
        %768 = vmatpush1.bf16.msra.mxu0 0
        %769 = vmatprep.subr.bf16.mxu0 0
        %770 = vmatpush1.bf16.msra.mxu0 0
        %771 = vmatprep.subr.bf16.mxu0 0
        %772 = vmatpush1.bf16.msra.mxu0 0
        %773 = vmatprep.subr.bf16.mxu0 0
        %774 = vmatpush1.bf16.msra.mxu0 0
        %775 = vmatprep.subr.bf16.mxu0 0
        %776 = vmatpush1.bf16.msra.mxu0 0
        %777 = vmatprep.mubr.bf16.mxu0 0
        %778 = vmatmul.mubr.bf16.gmra.mrb[0].mxu0 %v743
        %v779 = vpop.f32.mrb[0].mxu0
        %v780 = vadd.f32 0.0, %v779
        %v781 = vpop.f32.mrb[0].mxu0
        %v782 = vpop.f32.mrb[0].mxu0
        %v783 = vadd.f32 0.0, %v782
        %v784 = vpop.f32.mrb[0].mxu0
        %785 = vdwg.mxu0
        %v786 = vadd.f32 %v699, %v780
        %v787 = vadd.f32 %v700, %v783
        %s788 = scalar_lea.vmem %s264, 48
        %v789 = vld [vmem:[%s788] sm:$0xf]
        %v790 = vld [vmem:[%s788 + $0x4] sm:$0xf]
        %s791 = scalar_lea.vmem %s1, 192
        %v792 = vld [vmem:[%s791] sm:$0xf]
        %v793 = vld [vmem:[%s791 + $0x4] sm:$0xf]
        %v794 = vld [vmem:[%s791 + $0x8] sm:$0xf]
        %v795 = vld [vmem:[%s791 + $0xc] sm:$0xf]
        %v796 = vld [vmem:[%s791 + $0x10] sm:$0xf]
        %v797 = vld [vmem:[%s791 + $0x14] sm:$0xf]
        %v798 = vld [vmem:[%s791 + $0x18] sm:$0xf]
        %v799 = vld [vmem:[%s791 + $0x1c] sm:$0xf]
        %v802 = vunpack.c.l.b16 %v789
        %v803 = vunpack.c.l.b16 %v790
        %v804 = vpack.c.b16 %v803, %v802
        %v813 = vunpack.c.l.b16 %v792
        %v814 = vunpack.c.l.b16 %v793
        %v815 = vunpack.c.l.b16 %v794
        %v816 = vunpack.c.l.b16 %v795
        %v817 = vunpack.c.l.b16 %v796
        %v818 = vunpack.c.l.b16 %v797
        %v819 = vunpack.c.l.b16 %v798
        %v820 = vunpack.c.l.b16 %v799
        %v821 = vpack.c.b16 %v814, %v813
        %v822 = vpack.c.b16 %v816, %v815
        %v823 = vpack.c.b16 %v818, %v817
        %v824 = vpack.c.b16 %v820, %v819
        %v830 = vsel %vm322, %v804, 0
        %832 = vmatprep.subr.bf16.mxu0 0
        %833 = vmatpush1.bf16.msra.mxu0 %v821
        %834 = vmatprep.subr.bf16.mxu0 0
        %835 = vmatpush1.bf16.msra.mxu0 %v822
        %836 = vmatprep.subr.bf16.mxu0 0
        %837 = vmatpush1.bf16.msra.mxu0 %v823
        %838 = vmatprep.subr.bf16.mxu0 0
        %839 = vmatpush1.bf16.msra.mxu0 %v824
        %840 = vmatprep.subr.bf16.mxu0 0
        %841 = vmatpush1.bf16.msra.mxu0 0
        %842 = vmatprep.subr.bf16.mxu0 0
        %843 = vmatpush1.bf16.msra.mxu0 0
        %844 = vmatprep.subr.bf16.mxu0 0
        %845 = vmatpush1.bf16.msra.mxu0 0
        %846 = vmatprep.subr.bf16.mxu0 0
        %847 = vmatpush1.bf16.msra.mxu0 0
        %848 = vmatprep.subr.bf16.mxu0 0
        %849 = vmatpush1.bf16.msra.mxu0 0
        %850 = vmatprep.subr.bf16.mxu0 0
        %851 = vmatpush1.bf16.msra.mxu0 0
        %852 = vmatprep.subr.bf16.mxu0 0
        %853 = vmatpush1.bf16.msra.mxu0 0
        %854 = vmatprep.subr.bf16.mxu0 0
        %855 = vmatpush1.bf16.msra.mxu0 0
        %856 = vmatprep.subr.bf16.mxu0 0
        %857 = vmatpush1.bf16.msra.mxu0 0
        %858 = vmatprep.subr.bf16.mxu0 0
        %859 = vmatpush1.bf16.msra.mxu0 0
        %860 = vmatprep.subr.bf16.mxu0 0
        %861 = vmatpush1.bf16.msra.mxu0 0
        %862 = vmatprep.subr.bf16.mxu0 0
        %863 = vmatpush1.bf16.msra.mxu0 0
        %864 = vmatprep.mubr.bf16.mxu0 0
        %865 = vmatmul.mubr.bf16.gmra.mrb[0].mxu0 %v830
        %v866 = vpop.f32.mrb[0].mxu0
        %v867 = vadd.f32 0.0, %v866
        %v868 = vpop.f32.mrb[0].mxu0
        %v869 = vpop.f32.mrb[0].mxu0
        %v870 = vadd.f32 0.0, %v869
        %v871 = vpop.f32.mrb[0].mxu0
        %872 = vdwg.mxu0
        %v873 = vadd.f32 %v786, %v867
        %v874 = vadd.f32 %v787, %v870
        %s875 = scalar_lea.vmem %s264, 56
        %v876 = vld [vmem:[%s875] sm:$0xf]
        %v877 = vld [vmem:[%s875 + $0x4] sm:$0xf]
        %s878 = scalar_lea.vmem %s1, 224
        %v879 = vld [vmem:[%s878] sm:$0xf]
        %v880 = vld [vmem:[%s878 + $0x4] sm:$0xf]
        %v881 = vld [vmem:[%s878 + $0x8] sm:$0xf]
        %v882 = vld [vmem:[%s878 + $0xc] sm:$0xf]
        %v883 = vld [vmem:[%s878 + $0x10] sm:$0xf]
        %v884 = vld [vmem:[%s878 + $0x14] sm:$0xf]
        %v885 = vld [vmem:[%s878 + $0x18] sm:$0xf]
        %v886 = vld [vmem:[%s878 + $0x1c] sm:$0xf]
        %v889 = vunpack.c.l.b16 %v876
        %v890 = vunpack.c.l.b16 %v877
        %v891 = vpack.c.b16 %v890, %v889
        %v900 = vunpack.c.l.b16 %v879
        %v901 = vunpack.c.l.b16 %v880
        %v902 = vunpack.c.l.b16 %v881
        %v903 = vunpack.c.l.b16 %v882
        %v904 = vunpack.c.l.b16 %v883
        %v905 = vunpack.c.l.b16 %v884
        %v906 = vunpack.c.l.b16 %v885
        %v907 = vunpack.c.l.b16 %v886
        %v908 = vpack.c.b16 %v901, %v900
        %v909 = vpack.c.b16 %v903, %v902
        %v910 = vpack.c.b16 %v905, %v904
        %v911 = vpack.c.b16 %v907, %v906
        %v917 = vsel %vm322, %v891, 0
        %919 = vmatprep.subr.bf16.mxu0 0
        %920 = vmatpush1.bf16.msra.mxu0 %v908
        %921 = vmatprep.subr.bf16.mxu0 0
        %922 = vmatpush1.bf16.msra.mxu0 %v909
        %923 = vmatprep.subr.bf16.mxu0 0
        %924 = vmatpush1.bf16.msra.mxu0 %v910
        %925 = vmatprep.subr.bf16.mxu0 0
        %926 = vmatpush1.bf16.msra.mxu0 %v911
        %927 = vmatprep.subr.bf16.mxu0 0
        %928 = vmatpush1.bf16.msra.mxu0 0
        %929 = vmatprep.subr.bf16.mxu0 0
        %930 = vmatpush1.bf16.msra.mxu0 0
        %931 = vmatprep.subr.bf16.mxu0 0
        %932 = vmatpush1.bf16.msra.mxu0 0
        %933 = vmatprep.subr.bf16.mxu0 0
        %934 = vmatpush1.bf16.msra.mxu0 0
        %935 = vmatprep.subr.bf16.mxu0 0
        %936 = vmatpush1.bf16.msra.mxu0 0
        %937 = vmatprep.subr.bf16.mxu0 0
        %938 = vmatpush1.bf16.msra.mxu0 0
        %939 = vmatprep.subr.bf16.mxu0 0
        %940 = vmatpush1.bf16.msra.mxu0 0
        %941 = vmatprep.subr.bf16.mxu0 0
        %942 = vmatpush1.bf16.msra.mxu0 0
        %943 = vmatprep.subr.bf16.mxu0 0
        %944 = vmatpush1.bf16.msra.mxu0 0
        %945 = vmatprep.subr.bf16.mxu0 0
        %946 = vmatpush1.bf16.msra.mxu0 0
        %947 = vmatprep.subr.bf16.mxu0 0
        %948 = vmatpush1.bf16.msra.mxu0 0
        %949 = vmatprep.subr.bf16.mxu0 0
        %950 = vmatpush1.bf16.msra.mxu0 0
        %951 = vmatprep.mubr.bf16.mxu0 0
        %952 = vmatmul.mubr.bf16.gmra.mrb[0].mxu0 %v917
        %v953 = vpop.f32.mrb[0].mxu0
        %v954 = vadd.f32 0.0, %v953
        %v955 = vpop.f32.mrb[0].mxu0
        %v956 = vpop.f32.mrb[0].mxu0
        %v957 = vadd.f32 0.0, %v956
        %v958 = vpop.f32.mrb[0].mxu0
        %959 = vdwg.mxu0
        %v960 = vadd.f32 %v873, %v954
        %v961 = vadd.f32 %v874, %v957
        %s962 = scalar_lea.vmem %s264, 64
        %v963 = vld [vmem:[%s962] sm:$0xf]
        %v964 = vld [vmem:[%s962 + $0x4] sm:$0xf]
        %s965 = scalar_lea.vmem %s1, 256
        %v966 = vld [vmem:[%s965] sm:$0xf]
        %v967 = vld [vmem:[%s965 + $0x4] sm:$0xf]
        %v968 = vld [vmem:[%s965 + $0x8] sm:$0xf]
        %v969 = vld [vmem:[%s965 + $0xc] sm:$0xf]
        %v970 = vld [vmem:[%s965 + $0x10] sm:$0xf]
        %v971 = vld [vmem:[%s965 + $0x14] sm:$0xf]
        %v972 = vld [vmem:[%s965 + $0x18] sm:$0xf]
        %v973 = vld [vmem:[%s965 + $0x1c] sm:$0xf]
        %v976 = vunpack.c.l.b16 %v963
        %v977 = vunpack.c.l.b16 %v964
        %v978 = vpack.c.b16 %v977, %v976
        %v987 = vunpack.c.l.b16 %v966
        %v988 = vunpack.c.l.b16 %v967
        %v989 = vunpack.c.l.b16 %v968
        %v990 = vunpack.c.l.b16 %v969
        %v991 = vunpack.c.l.b16 %v970
        %v992 = vunpack.c.l.b16 %v971
        %v993 = vunpack.c.l.b16 %v972
        %v994 = vunpack.c.l.b16 %v973
        %v995 = vpack.c.b16 %v988, %v987
        %v996 = vpack.c.b16 %v990, %v989
        %v997 = vpack.c.b16 %v992, %v991
        %v998 = vpack.c.b16 %v994, %v993
        %v1004 = vsel %vm322, %v978, 0
        %1006 = vmatprep.subr.bf16.mxu0 0
        %1007 = vmatpush1.bf16.msra.mxu0 %v995
        %1008 = vmatprep.subr.bf16.mxu0 0
        %1009 = vmatpush1.bf16.msra.mxu0 %v996
        %1010 = vmatprep.subr.bf16.mxu0 0
        %1011 = vmatpush1.bf16.msra.mxu0 %v997
        %1012 = vmatprep.subr.bf16.mxu0 0
        %1013 = vmatpush1.bf16.msra.mxu0 %v998
        %1014 = vmatprep.subr.bf16.mxu0 0
        %1015 = vmatpush1.bf16.msra.mxu0 0
        %1016 = vmatprep.subr.bf16.mxu0 0
        %1017 = vmatpush1.bf16.msra.mxu0 0
        %1018 = vmatprep.subr.bf16.mxu0 0
        %1019 = vmatpush1.bf16.msra.mxu0 0
        %1020 = vmatprep.subr.bf16.mxu0 0
        %1021 = vmatpush1.bf16.msra.mxu0 0
        %1022 = vmatprep.subr.bf16.mxu0 0
        %1023 = vmatpush1.bf16.msra.mxu0 0
        %1024 = vmatprep.subr.bf16.mxu0 0
        %1025 = vmatpush1.bf16.msra.mxu0 0
        %1026 = vmatprep.subr.bf16.mxu0 0
        %1027 = vmatpush1.bf16.msra.mxu0 0
        %1028 = vmatprep.subr.bf16.mxu0 0
        %1029 = vmatpush1.bf16.msra.mxu0 0
        %1030 = vmatprep.subr.bf16.mxu0 0
        %1031 = vmatpush1.bf16.msra.mxu0 0
        %1032 = vmatprep.subr.bf16.mxu0 0
        %1033 = vmatpush1.bf16.msra.mxu0 0
        %1034 = vmatprep.subr.bf16.mxu0 0
        %1035 = vmatpush1.bf16.msra.mxu0 0
        %1036 = vmatprep.subr.bf16.mxu0 0
        %1037 = vmatpush1.bf16.msra.mxu0 0
        %1038 = vmatprep.mubr.bf16.mxu0 0
        %1039 = vmatmul.mubr.bf16.gmra.mrb[0].mxu0 %v1004
        %v1040 = vpop.f32.mrb[0].mxu0
        %v1041 = vadd.f32 0.0, %v1040
        %v1042 = vpop.f32.mrb[0].mxu0
        %v1043 = vpop.f32.mrb[0].mxu0
        %v1044 = vadd.f32 0.0, %v1043
        %v1045 = vpop.f32.mrb[0].mxu0
        %1046 = vdwg.mxu0
        %v1047 = vadd.f32 %v960, %v1041
        %v1048 = vadd.f32 %v961, %v1044
        %v1049 = vld [vmem:[%s2] sm:$0x1]
        %v1051 = vlaneseq
        %v1052 = vshrl.u32 %v1051, 7
        %v1053 = vsub.s32 0, %v1052
        %v1054 = vrot.slane %v1049, %v1053
        %v1056 = vadd.f32 %v1047, %v1054
        %v1057 = vadd.f32 %v1048, %v1054
        %v1058 = vsel %vm322, %v1056, 0.0
        %v1059 = vsel %vm322, %v1057, 0.0
        %v1060 = vadd.f32 %v1058, %v1059
        %v1061 = vrot.slane %v1060, 4
        %v1062 = vadd.f32 %v1060, %v1061
        %v1063 = vrot.slane %v1062, 2
        %v1064 = vadd.f32 %v1062, %v1063
        %v1065 = vrot.slane %v1064, 1
        %v1066 = vadd.f32 %v1064, %v1065
        %v1067 = vrcp.pop 16.0
        %v1068 = vmul.f32 %v1066, %v1067
        %v1069 = vld [vmem:[%s3] sm:$0xff]
        %v1070 = vld [vmem:[%s3 + $0x8] sm:$0xff]
        %v1071 = vld [vmem:[%s3 + $0x10] sm:$0xff]
        %v1072 = vld [vmem:[%s3 + $0x18] sm:$0xff]
        %v1073 = vld [vmem:[%s3 + $0x20] sm:$0xff]
        %v1074 = vld [vmem:[%s3 + $0x28] sm:$0xff]
        %v1075 = vld [vmem:[%s3 + $0x30] sm:$0xff]
        %v1076 = vld [vmem:[%s3 + $0x38] sm:$0xff]
        %v1078 = vsel %vm322, %v1068, 0
        %1080 = vmatprep.subr.mxu0 0.0
        %1081 = vmatpush1.msra.mxu0 %v1069
        %1082 = vmatprep.subr.mxu0 0.0
        %1083 = vmatpush1.msra.mxu0 %v1070
        %1084 = vmatprep.subr.mxu0 0.0
        %1085 = vmatpush1.msra.mxu0 %v1071
        %1086 = vmatprep.subr.mxu0 0.0
        %1087 = vmatpush1.msra.mxu0 %v1072
        %1088 = vmatprep.subr.mxu0 0.0
        %1089 = vmatpush1.msra.mxu0 %v1073
        %1090 = vmatprep.subr.mxu0 0.0
        %1091 = vmatpush1.msra.mxu0 %v1074
        %1092 = vmatprep.subr.mxu0 0.0
        %1093 = vmatpush1.msra.mxu0 %v1075
        %1094 = vmatprep.subr.mxu0 0.0
        %1095 = vmatpush1.msra.mxu0 %v1076
        %1096 = vmatprep.subr.mxu0 0.0
        %1097 = vmatpush1.msra.mxu0 0.0
        %1098 = vmatprep.subr.mxu0 0.0
        %1099 = vmatpush1.msra.mxu0 0.0
        %1100 = vmatprep.subr.mxu0 0.0
        %1101 = vmatpush1.msra.mxu0 0.0
        %1102 = vmatprep.subr.mxu0 0.0
        %1103 = vmatpush1.msra.mxu0 0.0
        %1104 = vmatprep.subr.mxu0 0.0
        %1105 = vmatpush1.msra.mxu0 0.0
        %1106 = vmatprep.subr.mxu0 0.0
        %1107 = vmatpush1.msra.mxu0 0.0
        %1108 = vmatprep.subr.mxu0 0.0
        %1109 = vmatpush1.msra.mxu0 0.0
        %1110 = vmatprep.subr.mxu0 0.0
        %1111 = vmatpush1.msra.mxu0 0.0
        %1112 = vmatprep.subr.mxu0 0.0
        %1113 = vmatpush1.msra.mxu0 0.0
        %1114 = vmatprep.subr.mxu0 0.0
        %1115 = vmatpush1.msra.mxu0 0.0
        %1116 = vmatprep.subr.mxu0 0.0
        %1117 = vmatpush1.msra.mxu0 0.0
        %1118 = vmatprep.subr.mxu0 0.0
        %1119 = vmatpush1.msra.mxu0 0.0
        %1120 = vmatprep.subr.mxu0 0.0
        %1121 = vmatpush1.msra.mxu0 0.0
        %1122 = vmatprep.subr.mxu0 0.0
        %1123 = vmatpush1.msra.mxu0 0.0
        %1124 = vmatprep.subr.mxu0 0.0
        %1125 = vmatpush1.msra.mxu0 0.0
        %1126 = vmatprep.subr.mxu0 0.0
        %1127 = vmatpush1.msra.mxu0 0.0
        %1128 = vmatprep.subr.mxu0 0.0
        %1129 = vmatpush1.msra.mxu0 0.0
        %1130 = vmatprep.subr.mxu0 0.0
        %1131 = vmatpush1.msra.mxu0 0.0
        %1132 = vmatprep.subr.mxu0 0.0
        %1133 = vmatpush1.msra.mxu0 0.0
        %1134 = vmatprep.subr.mxu0 0.0
        %1135 = vmatpush1.msra.mxu0 0.0
        %1136 = vmatprep.subr.mxu0 0.0
        %1137 = vmatpush1.msra.mxu0 0.0
        %1138 = vmatprep.subr.mxu0 0.0
        %1139 = vmatpush1.msra.mxu0 0.0
        %1140 = vmatprep.subr.mxu0 0.0
        %1141 = vmatpush1.msra.mxu0 0.0
        %1142 = vmatprep.subr.mxu0 0.0
        %1143 = vmatpush1.msra.mxu0 0.0
        %1144 = vmatprep.mubr.f32.mxu0 0.0
        %1145 = vmatmul.mubr.f32.gmra.mrb[0].mxu0 %v1078
        %v1146 = vpop.f32.mrb[0].mxu0
        %v1147 = vadd.f32 0.0, %v1146
        %v1148 = vpop.f32.mrb[0].mxu0
        %1149 = vdwg.mxu0
        %v1150 = vmax.f32 %v1147, 0.0
        %v1151 = vld [vmem:[%s4] sm:$0xf]
        %vm1152 = vcmask 31744
        %v1154 = vsel %vm1152, %v1150, 0
        %vm1156 = vcmask 1043456
        %v1158 = vsel %vm1156, %v1151, 0
        %1160 = vmatprep.subr.mxu0 0.0
        %1161 = vmatpush1.msra.mxu0 %v1158
        %1162 = vmatprep.subr.mxu0 0.0
        %1163 = vmatpush1.msra.mxu0 0.0
        %1164 = vmatprep.subr.mxu0 0.0
        %1165 = vmatpush1.msra.mxu0 0.0
        %1166 = vmatprep.subr.mxu0 0.0
        %1167 = vmatpush1.msra.mxu0 0.0
        %1168 = vmatprep.subr.mxu0 0.0
        %1169 = vmatpush1.msra.mxu0 0.0
        %1170 = vmatprep.subr.mxu0 0.0
        %1171 = vmatpush1.msra.mxu0 0.0
        %1172 = vmatprep.subr.mxu0 0.0
        %1173 = vmatpush1.msra.mxu0 0.0
        %1174 = vmatprep.subr.mxu0 0.0
        %1175 = vmatpush1.msra.mxu0 0.0
        %1176 = vmatprep.subr.mxu0 0.0
        %1177 = vmatpush1.msra.mxu0 0.0
        %1178 = vmatprep.subr.mxu0 0.0
        %1179 = vmatpush1.msra.mxu0 0.0
        %1180 = vmatprep.subr.mxu0 0.0
        %1181 = vmatpush1.msra.mxu0 0.0
        %1182 = vmatprep.subr.mxu0 0.0
        %1183 = vmatpush1.msra.mxu0 0.0
        %1184 = vmatprep.subr.mxu0 0.0
        %1185 = vmatpush1.msra.mxu0 0.0
        %1186 = vmatprep.subr.mxu0 0.0
        %1187 = vmatpush1.msra.mxu0 0.0
        %1188 = vmatprep.subr.mxu0 0.0
        %1189 = vmatpush1.msra.mxu0 0.0
        %1190 = vmatprep.subr.mxu0 0.0
        %1191 = vmatpush1.msra.mxu0 0.0
        %1192 = vmatprep.subr.mxu0 0.0
        %1193 = vmatpush1.msra.mxu0 0.0
        %1194 = vmatprep.subr.mxu0 0.0
        %1195 = vmatpush1.msra.mxu0 0.0
        %1196 = vmatprep.subr.mxu0 0.0
        %1197 = vmatpush1.msra.mxu0 0.0
        %1198 = vmatprep.subr.mxu0 0.0
        %1199 = vmatpush1.msra.mxu0 0.0
        %1200 = vmatprep.subr.mxu0 0.0
        %1201 = vmatpush1.msra.mxu0 0.0
        %1202 = vmatprep.subr.mxu0 0.0
        %1203 = vmatpush1.msra.mxu0 0.0
        %1204 = vmatprep.subr.mxu0 0.0
        %1205 = vmatpush1.msra.mxu0 0.0
        %1206 = vmatprep.subr.mxu0 0.0
        %1207 = vmatpush1.msra.mxu0 0.0
        %1208 = vmatprep.subr.mxu0 0.0
        %1209 = vmatpush1.msra.mxu0 0.0
        %1210 = vmatprep.subr.mxu0 0.0
        %1211 = vmatpush1.msra.mxu0 0.0
        %1212 = vmatprep.subr.mxu0 0.0
        %1213 = vmatpush1.msra.mxu0 0.0
        %1214 = vmatprep.subr.mxu0 0.0
        %1215 = vmatpush1.msra.mxu0 0.0
        %1216 = vmatprep.subr.mxu0 0.0
        %1217 = vmatpush1.msra.mxu0 0.0
        %1218 = vmatprep.subr.mxu0 0.0
        %1219 = vmatpush1.msra.mxu0 0.0
        %1220 = vmatprep.subr.mxu0 0.0
        %1221 = vmatpush1.msra.mxu0 0.0
        %1222 = vmatprep.subr.mxu0 0.0
        %1223 = vmatpush1.msra.mxu0 0.0
        %1224 = vmatprep.mubr.f32.mxu0 0.0
        %1225 = vmatmul.mubr.f32.gmra.mrb[0].mxu0 %v1154
        %v1226 = vpop.f32.mrb[0].mxu0
        %v1227 = vadd.f32 0.0, %v1226
        %v1228 = vpop.f32.mrb[0].mxu0
        %1229 = vdwg.mxu0
        %v1230 = vsub.f32 0.0, %v1227
        %v1231 = vmul.f32 %v1230, 1.442695
        %v1232 = vpow.pop %v1231
        %v1233 = vadd.f32 %v1232, 1.0
        %v1234 = vrcp.pop %v1233
        %v1235 = vmul.f32 1.0, %v1234
        %v1236 = vlaneseq
        %v1237 = vshrl.u32 %v1236, 7
        %v1238 = vsub.s32 0, %v1237
        %v1239 = vrot.slane %v1235, %v1238
        %v1240 = vmul.f32 %v1056, %v1239
        %v1241 = vmul.f32 %v1057, %v1239
        %v1242 = vld [vmem:[%s269] sm:$0xf]
        %v1243 = vld [vmem:[%s269 + $0x4] sm:$0xf]
        %v1244 = vunpack.c.l.bf16 %v1242
        %v1245 = vunpack.c.l.bf16 %v1243
        %v1246 = vadd.f32 %v1240, %v1244
        %v1247 = vadd.f32 %v1241, %v1245
        %v1248 = vpack.c.bf16 %v1247, %v1246
        %v1250 = vunpack.c.l.b16 %v1248
        %v1251 = vunpack.c.h.b16 %v1248
        %v1252 = vpack.c.b16 %v1250, %v1250
        %v1253 = vpack.c.b16 %v1251, %v1251
        %vm1256 = vcmask 519168
        %1257 = vst.msk [vmem:[%s259] sm:$0xf] %vm1256, %v1252
        %1258 = vst.msk [vmem:[%s259 + $0x4] sm:$0xf] %vm1256, %v1253
        %s1259 = sand.u32 %s164, 1
        %s1260 = scalar_lea.sflag [#allocation3], %s1259
        %s1261 = sand.u32 %s164, 1
        %s1262 = smul.addr %s1261, 8
        %s1263 = scalar_lea.vmem [#allocation2], %s1262
        // Predicated region
        $region45: #{forward.11} parent=43 // pred_check
          %p1264 = pneg %p174
        $region46: #{forward.11} parent=43 // pred_check_branch
          %1266 = sbr.rel (%p1264) target = $region48
        $region47: #{forward.11} parent=43 // pred_region
          %s1268 = ssub.s32 128, 128
          %1269 = vsyncadd %s1260, %s1268
          %s1270 = smul.addr %s20, 2
          %s1271 = smul.addr %s1270, 64
          %s1272 = scalar_lea.hbm %s6, %s1271
          %s1273 = sshll.u32 %s1263, 4
          %s1274 = int_to_ptr.vmem [resolvable:$true] %s1273
          %1279 = dma.vmem_to_hbm [thread:$0]  %s1274, 128, %s1272, %s1260, 64, 64, 4
        $region48: #{forward.11} parent=43 // pred_fallthru
          _
      $region44: #{forward.11} parent=5 // pred_fallthru
        _
      %p1280 = scmp.le.s32.totalorder 2, %s15
      // Predicated region
      $region49: #{forward.11} parent=5 // pred_check
        %p1281 = pneg %p1280
      $region50: #{forward.11} parent=5 // pred_check_branch
        %1283 = sbr.rel (%p1281) target = $region52
      $region51: #{forward.11} parent=5 // pred_region
        %s1284 = ssub.s32 %s15, 2
        // Predicated region
        $region53: #{forward.11} parent=51 // pred_check
          %p1285 = pneg %p180
        $region54: #{forward.11} parent=51 // pred_check_branch
          %1287 = sbr.rel (%p1285) target = $region56
        $region55: #{forward.11} parent=51 // pred_region
          %s1288 = sand.u32 %s165, 1
          %s1289 = scalar_lea.sflag [#allocation3], %s1288
          %s1290 = sand.u32 %s165, 1
          %s1291 = smul.addr %s1290, 8
          %s1292 = scalar_lea.vmem [#allocation2], %s1291
          %1293 = dma.done %s1289, 128
        $region56: #{forward.11} parent=51 // pred_fallthru
          _
      $region52: #{forward.11} parent=5 // pred_fallthru
        _
    $region6: #{forward.11} parent=1 // loop_footer
      %s19 = sadd.s32 1, %s15
    $region7: #{forward.11} parent=1 // loop_footer_branch
      %14 = sbr.rel target = $region3
    $region8: #{forward.11} parent=1 // loop_exit
      _
    %1294 = vsyncpa [#allocation3], 1
    %s1295 = scalar_lea.sflag [#allocation3], 1
    %1296 = vsyncpa %s1295, 1

</llo_original>
